<compile_context>
chip_gen: v6e
topology: v6e:2x2x1
jax: 0.10.0
libtpu: 0.0.40
codegen_flags: <defaults>
</compile_context>

<pallas_src>
import jax
import jax.numpy as jnp
from jax.experimental import pallas as pl
from jax.experimental.pallas import tpu as pltpu

BN_EPS = 1e-5


def _silu_f32(y):
    # SiLU in f32; approximate reciprocal runs on the EUP slot (nearly free).
    return y * pl.reciprocal(1.0 + jnp.exp(-y), approx=True)


def _choose_tile(m):
    for tm in (256, 128, 512):
        if m >= tm and m % tm == 0:
            return tm
    return m  # tiny-problem fallback (single block)


# ----------------------------------------------------------------------------
# Kernel 1: fused multi-input 1x1 conv:  y = SiLU(sum_i xs[i] @ ws[i] + bias)
# ----------------------------------------------------------------------------
def conv1x1_bn_silu_pallas(xs, ws, bias, *, out_dtype=jnp.bfloat16):
    n_in = len(xs)
    M = xs[0].shape[0]
    Cout = ws[0].shape[1]
    tm = _choose_tile(M)
    bias2 = bias.reshape(1, Cout).astype(jnp.float32)

    def kernel(*refs):
        x_refs = refs[:n_in]
        w_refs = refs[n_in:2 * n_in]
        b_ref = refs[2 * n_in]
        o_ref = refs[2 * n_in + 1]
        acc = jnp.zeros((tm, Cout), jnp.float32)
        for xr, wr in zip(x_refs, w_refs):
            acc = acc + jnp.dot(xr[...], wr[...],
                                preferred_element_type=jnp.float32)
        o_ref[...] = _silu_f32(acc + b_ref[...]).astype(o_ref.dtype)

    in_specs = (
        [pl.BlockSpec((tm, int(x.shape[1])), lambda i: (i, 0)) for x in xs]
        + [pl.BlockSpec((int(w.shape[0]), Cout), lambda i: (0, 0)) for w in ws]
        + [pl.BlockSpec((1, Cout), lambda i: (0, 0))]
    )

    return pl.pallas_call(
        kernel,
        out_shape=jax.ShapeDtypeStruct((M, Cout), out_dtype),
        grid=(M // tm,),
        in_specs=in_specs,
        out_specs=pl.BlockSpec((tm, Cout), lambda i: (i, 0)),
        compiler_params=pltpu.CompilerParams(
            dimension_semantics=("parallel",)),
    )(*[x.astype(jnp.bfloat16) for x in xs],
      *[w.astype(jnp.bfloat16) for w in ws],
      bias2)


# ----------------------------------------------------------------------------
# Kernel 2: 3x3 "same" conv + bias + SiLU (+ fused residual shortcut).
# Input is a flattened zero-padded image (N, (H+3)*(W+2), Cin) so every tap is a
# contiguous (H*(W+2), Cin) slice -> one MXU matmul per tap, f32 accumulation.
# The 2 junk pad columns of each image row are dropped in the epilogue.
# ----------------------------------------------------------------------------
def conv3x3_bn_silu_pallas(xf, w9, bias, H, W, residual=None, *,
                           out_dtype=jnp.bfloat16):
    N, Lp, Cin = xf.shape
    Wp, Hp = W + 2, H + 3
    assert Lp == Hp * Wp, (Lp, Hp, Wp)
    L = H * Wp                      # accumulator rows (includes 2 junk cols/row)
    Cout = w9.shape[-1]
    b2 = bias.reshape(1, Cout).astype(jnp.float32)
    have_res = residual is not None

    def kernel(*args):
        xf_ref, w_ref, b_ref = args[0], args[1], args[2]
        r_ref = args[3] if have_res else None
        o_ref = args[3 + int(have_res)]
        y_scr = args[4 + int(have_res)]

        acc = jnp.zeros((L, Cout), jnp.float32)
        for k in range(9):
            dy, dx = divmod(k, 3)
            off = dy * Wp + dx       # tap (dy, dx) == contiguous row window
            acc = acc + jnp.dot(xf_ref[0, off:off + L, :], w_ref[k],
                                preferred_element_type=jnp.float32)
        y_scr[...] = _silu_f32(acc + b_ref[...])

        # drop the 2 pad columns of every image row -> single dense store
        rows = [y_scr[r * Wp:r * Wp + W, :] for r in range(H)]
        out_val = jnp.concatenate(rows, axis=0)                # (H*W, Cout)
        if have_res:
            out_val = out_val + r_ref[0].astype(jnp.float32)   # shortcut after act
        o_ref[0] = out_val.astype(o_ref.dtype)

    in_specs = [pl.BlockSpec((1, Lp, Cin), lambda b: (b, 0, 0)),
                pl.BlockSpec((9, Cin, Cout), lambda b: (0, 0, 0)),
                pl.BlockSpec((1, Cout), lambda b: (0, 0))]
    inputs = [xf.astype(jnp.bfloat16), w9.astype(jnp.bfloat16), b2]
    if have_res:
        in_specs.append(pl.BlockSpec((1, H * W, Cout), lambda b: (b, 0, 0)))
        inputs.append(residual.astype(jnp.bfloat16))

    return pl.pallas_call(
        kernel,
        out_shape=jax.ShapeDtypeStruct((N, H * W, Cout), out_dtype),
        grid=(N,),
        in_specs=in_specs,
        out_specs=pl.BlockSpec((1, H * W, Cout), lambda b: (b, 0, 0)),
        scratch_shapes=[pltpu.VMEM((L, Cout), jnp.float32)],
        compiler_params=pltpu.CompilerParams(
            dimension_semantics=("parallel",)),
    )(*inputs)


# ----------------------------------------------------------------------------
# Parameters (conv weight in HWIO layout + BatchNorm stats), BN folding helpers
# ----------------------------------------------------------------------------
def init_conv_bn(key, cin, cout, k):
    kw, kg, kb, km, kv = jax.random.split(key, 5)
    fan_in = cin * k * k
    bound = 1.0 / float(fan_in) ** 0.5
    return dict(
        w=jax.random.uniform(kw, (k, k, cin, cout), jnp.float32, -bound, bound),
        gamma=jax.random.uniform(kg, (cout,), jnp.float32, 0.5, 1.5),
        beta=jax.random.uniform(kb, (cout,), jnp.float32, -0.5, 0.5),
        mean=jax.random.uniform(km, (cout,), jnp.float32, -0.5, 0.5),
        var=jax.random.uniform(kv, (cout,), jnp.float32, 0.5, 1.5),
    )


def fold_bn(p):
    """Fold inference-mode BatchNorm into the (bias-free) conv -> (w_eff, b_eff)."""
    scale = p['gamma'] / jnp.sqrt(p['var'] + BN_EPS)
    return p['w'] * scale[None, None, None, :], p['beta'] - p['mean'] * scale


def init_cspstage_params(key, ch_in, ch_out, n, ch_hidden_ratio=1.0):
    split_ratio = 2
    ch_first = ch_out // split_ratio
    ch_mid = ch_out - ch_first
    ch_hidden = int(ch_mid * ch_hidden_ratio)
    keys = jax.random.split(key, 3 + n)
    params = dict(
        conv1=init_conv_bn(keys[0], ch_in, ch_first, 1),
        conv2=init_conv_bn(keys[1], ch_in, ch_mid, 1),
        conv3=init_conv_bn(keys[2], ch_first + n * ch_mid, ch_out, 1),
        blocks=[],
    )
    for i in range(n):
        kd, k1, kc = jax.random.split(keys[3 + i], 3)
        params['blocks'].append(dict(
            rep_dense=init_conv_bn(kd, ch_mid, ch_hidden, 3),   # RepConv 3x3 + BN
            rep_1x1=init_conv_bn(k1, ch_mid, ch_hidden, 1),     # RepConv 1x1 + BN
            conv1=init_conv_bn(kc, ch_hidden, ch_mid, 3),       # ConvBNAct 3x3
        ))
    return params


# ----------------------------------------------------------------------------
# Forward pass
# ----------------------------------------------------------------------------
def pad_flat(y_nlc, H, W):
    """(N, H*W, C) -> flattened zero-padded image (N, (H+3)*(W+2), C)."""
    N, L, C = y_nlc.shape
    y4 = y_nlc.reshape(N, H, W, C)
    yp = jnp.pad(y4, ((0, 0), (1, 2), (1, 1), (0, 0)))
    return yp.reshape(N, (H + 3) * (W + 2), C)


def csp_stage_forward(x_nchw, params):
    N, C, H, W = x_nchw.shape
    x = jnp.transpose(x_nchw, (0, 2, 3, 1))               # NHWC
    M = N * H * W
    x2d = x.reshape(M, C)

    # conv1 & conv2 (1x1 + BN + SiLU) fused into one matmul (concat output channels)
    w1, b1 = fold_bn(params['conv1'])
    w2, b2 = fold_bn(params['conv2'])
    ch_first, ch_mid = w1.shape[-1], w2.shape[-1]
    w12 = jnp.concatenate([w1.reshape(C, ch_first), w2.reshape(C, ch_mid)], axis=1)
    b12 = jnp.concatenate([b1, b2])
    y12 = conv1x1_bn_silu_pallas([x2d], [w12], b12)        # (M, ch_first+ch_mid) bf16
    y1_2d = y12[:, :ch_first]
    y2 = y12[:, ch_first:].reshape(N, H * W, ch_mid)

    mid_2d = [y1_2d]
    for blk in params['blocks']:
        # RepConv: fold (3x3 conv + BN) + (1x1 conv + BN) into ONE 3x3 conv (+ SiLU)
        wd, bd = fold_bn(blk['rep_dense'])
        w1x, b1x = fold_bn(blk['rep_1x1'])
        w_rep = wd.at[1, 1].add(w1x[0, 0])                 # 1x1 goes to the center tap
        b_rep = bd + b1x
        h = conv3x3_bn_silu_pallas(
            pad_flat(y2, H, W), w_rep.reshape(9, *w_rep.shape[2:]), b_rep, H, W)
        # ConvBNAct 3x3 + residual shortcut, fused in one kernel
        wc, bc = fold_bn(blk['conv1'])
        y2 = conv3x3_bn_silu_pallas(
            pad_flat(h, H, W), wc.reshape(9, *wc.shape[2:]), bc, H, W, residual=y2)
        mid_2d.append(y2.reshape(M, ch_mid))

    # conv3 (1x1 + BN + SiLU) over the channel concat, as a multi-input matmul
    w3, b3 = fold_bn(params['conv3'])
    w3_2d = w3.reshape(w3.shape[2], w3.shape[3])
    ws, off = [], 0
    for t in mid_2d:
        k = t.shape[1]
        ws.append(w3_2d[off:off + k])
        off += k
    y = conv1x1_bn_silu_pallas(mid_2d, ws, b3, out_dtype=jnp.float32)  # (M, ch_out)
    return jnp.transpose(y.reshape(N, H, W, -1), (0, 3, 1, 2))         # NCHW


# ----------------------------------------------------------------------------
# Pure-JAX reference (mirrors the PyTorch forward, eval-mode BN), for validation
# ----------------------------------------------------------------------------
def _ref_conv(x, p, *, act):
    w, b = fold_bn(p)
    y = jax.lax.conv_general_dilated(
        x, w, (1, 1), 'SAME',
        dimension_numbers=('NHWC', 'HWIO', 'NHWC'),
        precision=jax.lax.Precision.HIGHEST) + b
    if act:
        y = y * jax.nn.sigmoid(y)
    return y


def csp_stage_reference(x_nchw, params):
    x = jnp.transpose(x_nchw, (0, 2, 3, 1))
    y1 = _ref_conv(x, params['conv1'], act=True)
    y2 = _ref_conv(x, params['conv2'], act=True)
    mid = [y1]
    for blk in params['blocks']:
        t = (_ref_conv(y2, blk['rep_dense'], act=False)
             + _ref_conv(y2, blk['rep_1x1'], act=False))
        t = t * jax.nn.sigmoid(t)                       # RepConv SiLU
        t = _ref_conv(t, blk['conv1'], act=True)        # ConvBNAct 3x3
        y2 = y2 + t                                     # shortcut
        mid.append(y2)
    y = _ref_conv(jnp.concatenate(mid, axis=-1), params['conv3'], act=True)
    return jnp.transpose(y, (0, 3, 1, 2))


if __name__ == "__main__":
    N, CH_IN, H, W = 2, 32, 16, 16
    CH_OUT, N_BLOCKS = 64, 2

    key = jax.random.PRNGKey(0)
    kx, kp = jax.random.split(key)
    x = jax.random.normal(kx, (N, CH_IN, H, W), jnp.float32)
    params = init_cspstage_params(kp, CH_IN, CH_OUT, N_BLOCKS)

    out = jax.block_until_ready(jax.jit(csp_stage_forward)(x, params))
    assert out.shape == (N, CH_OUT, H, W), out.shape
    assert bool(jnp.all(jnp.isfinite(out)))

    # Loose tolerance: kernels use bf16 storage for activations/weights (f32 accum).
    ref = csp_stage_reference(x, params)
    max_err = float(jnp.max(jnp.abs(out - ref)))
    assert max_err < 0.3, max_err

    print("KERNEL_OK")
</pallas_src>

<mosaic_0001>
module attributes {stable_mosaic.version = 11 : i64} {
  func.func @kernel(%arg0: i32, %arg1: memref<256x32xbf16, #tpu.memory_space<vmem>>, %arg2: memref<32x64xbf16, #tpu.memory_space<vmem>>, %arg3: memref<1x64xf32, #tpu.memory_space<vmem>>, %arg4: memref<256x64xbf16, #tpu.memory_space<vmem>>) attributes {dimension_semantics = [#tpu.dimension_semantics<parallel>], iteration_bounds = array<i64: 2>, scalar_prefetch = 0 : i64, scratch_operands = 0 : i64, tpu.core_type = #tpu.core_type<tc>, window_params = [{transform_indices = @transform_0, window_bounds = array<i64: 256, 32>}, {pipeline_mode = #tpu.pipeline_mode<synchronous>, transform_indices = @transform_1, window_bounds = array<i64: 32, 64>}, {pipeline_mode = #tpu.pipeline_mode<synchronous>, transform_indices = @transform_2, window_bounds = array<i64: 1, 64>}, {transform_indices = @transform_3, window_bounds = array<i64: 256, 64>}]} {
    %cst = arith.constant 0.000000e+00 : f32
    %0 = vector.broadcast %cst : f32 to vector<256x64xf32>
    %c0 = arith.constant 0 : index
    %c0_0 = arith.constant 0 : index
    %1 = vector.load %arg1[%c0, %c0_0] : memref<256x32xbf16, #tpu.memory_space<vmem>>, vector<256x32xbf16>
    %c0_1 = arith.constant 0 : index
    %c0_2 = arith.constant 0 : index
    %2 = vector.load %arg2[%c0_1, %c0_2] : memref<32x64xbf16, #tpu.memory_space<vmem>>, vector<32x64xbf16>
    %cst_3 = arith.constant dense<0.000000e+00> : vector<256x64xf32>
    %3 = tpu.matmul %1, %2, %cst_3 {dimension_numbers = #tpu.dot_dimension_numbers<[1], [0], [0], [1], [0, 0, 1, 1], [], []>} : vector<256x32xbf16>, vector<32x64xbf16>, vector<256x64xf32> -> vector<256x64xf32>
    %4 = arith.addf %0, %3 : vector<256x64xf32>
    %c0_4 = arith.constant 0 : index
    %c0_5 = arith.constant 0 : index
    %5 = vector.load %arg3[%c0_4, %c0_5] : memref<1x64xf32, #tpu.memory_space<vmem>>, vector<1x64xf32>
    %6 = vector.broadcast %5 : vector<1x64xf32> to vector<256x64xf32>
    %7 = arith.addf %4, %6 : vector<256x64xf32>
    %cst_6 = arith.constant 0.000000e+00 : f32
    %8 = vector.broadcast %cst_6 : f32 to vector<256x64xf32>
    %9 = arith.subf %8, %7 : vector<256x64xf32>
    %10 = math.exp %9 : vector<256x64xf32>
    %cst_7 = arith.constant 1.000000e+00 : f32
    %11 = vector.broadcast %cst_7 : f32 to vector<256x64xf32>
    %12 = arith.addf %11, %10 : vector<256x64xf32>
    %13 = tpu.reciprocal %12 {approx = true} : vector<256x64xf32> -> vector<256x64xf32>
    %14 = arith.mulf %7, %13 : vector<256x64xf32>
    %15 = arith.truncf %14 : vector<256x64xf32> to vector<256x64xbf16>
    %c0_8 = arith.constant 0 : index
    %c0_9 = arith.constant 0 : index
    %16 = vector.load %arg4[%c0_8, %c0_9] : memref<256x64xbf16, #tpu.memory_space<vmem>>, vector<256x64xbf16>
    tpu.vector_store %arg4[%c0_8, %c0_9], %15 {strides = array<i32>} : memref<256x64xbf16, #tpu.memory_space<vmem>>, vector<256x64xbf16>,
    return
  }
  func.func @transform_0(%arg0: i32) -> (i32, i32) {
    %c0_i32 = arith.constant 0 : i32
    %c0_i32_0 = arith.constant 0 : i32
    return %arg0, %c0_i32 : i32, i32
  }
  func.func @transform_1(%arg0: i32) -> (i32, i32) {
    %c0_i32 = arith.constant 0 : i32
    %c0_i32_0 = arith.constant 0 : i32
    %c0_i32_1 = arith.constant 0 : i32
    return %c0_i32, %c0_i32_0 : i32, i32
  }
  func.func @transform_2(%arg0: i32) -> (i32, i32) {
    %c0_i32 = arith.constant 0 : i32
    %c0_i32_0 = arith.constant 0 : i32
    %c0_i32_1 = arith.constant 0 : i32
    return %c0_i32, %c0_i32_0 : i32, i32
  }
  func.func @transform_3(%arg0: i32) -> (i32, i32) {
    %c0_i32 = arith.constant 0 : i32
    %c0_i32_0 = arith.constant 0 : i32
    return %arg0, %c0_i32 : i32, i32
  }
}

module attributes {stable_mosaic.version = 11 : i64} {
  func.func @kernel(%arg0: i32, %arg1: memref<1x342x32xbf16, #tpu.memory_space<vmem>>, %arg2: memref<9x32x32xbf16, #tpu.memory_space<vmem>>, %arg3: memref<1x32xf32, #tpu.memory_space<vmem>>, %arg4: memref<1x256x32xbf16, #tpu.memory_space<vmem>>, %arg5: memref<1x256x32xbf16, #tpu.memory_space<vmem>>, %arg6: memref<288x32xf32, #tpu.memory_space<vmem>>) attributes {dimension_semantics = [#tpu.dimension_semantics<parallel>], iteration_bounds = array<i64: 2>, scalar_prefetch = 0 : i64, scratch_operands = 1 : i64, tpu.core_type = #tpu.core_type<tc>, window_params = [{transform_indices = @transform_0, window_bounds = array<i64: 1, 342, 32>}, {pipeline_mode = #tpu.pipeline_mode<synchronous>, transform_indices = @transform_1, window_bounds = array<i64: 9, 32, 32>}, {pipeline_mode = #tpu.pipeline_mode<synchronous>, transform_indices = @transform_2, window_bounds = array<i64: 1, 32>}, {transform_indices = @transform_3, window_bounds = array<i64: 1, 256, 32>}, {transform_indices = @transform_4, window_bounds = array<i64: 1, 256, 32>}]} {
    %cst = arith.constant 0.000000e+00 : f32
    %0 = vector.broadcast %cst : f32 to vector<288x32xf32>
    %c0 = arith.constant 0 : index
    %c0_0 = arith.constant 0 : index
    %c0_1 = arith.constant 0 : index
    %1 = vector.load %arg1[%c0, %c0_0, %c0_1] : memref<1x342x32xbf16, #tpu.memory_space<vmem>>, vector<1x288x32xbf16>
    %2 = vector.shape_cast %1 : vector<1x288x32xbf16> to vector<288x32xbf16>
    %c0_2 = arith.constant 0 : index
    %c0_3 = arith.constant 0 : index
    %c0_4 = arith.constant 0 : index
    %3 = vector.load %arg2[%c0_2, %c0_3, %c0_4] : memref<9x32x32xbf16, #tpu.memory_space<vmem>>, vector<1x32x32xbf16>
    %4 = vector.shape_cast %3 : vector<1x32x32xbf16> to vector<32x32xbf16>
    %cst_5 = arith.constant dense<0.000000e+00> : vector<288x32xf32>
    %5 = tpu.matmul %2, %4, %cst_5 {dimension_numbers = #tpu.dot_dimension_numbers<[1], [0], [0], [1], [0, 0, 1, 1], [], []>} : vector<288x32xbf16>, vector<32x32xbf16>, vector<288x32xf32> -> vector<288x32xf32>
    %6 = arith.addf %0, %5 : vector<288x32xf32>
    %c0_6 = arith.constant 0 : index
    %c1 = arith.constant 1 : index
    %c0_7 = arith.constant 0 : index
    %7 = vector.load %arg1[%c0_6, %c1, %c0_7] : memref<1x342x32xbf16, #tpu.memory_space<vmem>>, vector<1x288x32xbf16>
    %8 = vector.shape_cast %7 : vector<1x288x32xbf16> to vector<288x32xbf16>
    %c1_8 = arith.constant 1 : index
    %c0_9 = arith.constant 0 : index
    %c0_10 = arith.constant 0 : index
    %9 = vector.load %arg2[%c1_8, %c0_9, %c0_10] : memref<9x32x32xbf16, #tpu.memory_space<vmem>>, vector<1x32x32xbf16>
    %10 = vector.shape_cast %9 : vector<1x32x32xbf16> to vector<32x32xbf16>
    %cst_11 = arith.constant dense<0.000000e+00> : vector<288x32xf32>
    %11 = tpu.matmul %8, %10, %cst_11 {dimension_numbers = #tpu.dot_dimension_numbers<[1], [0], [0], [1], [0, 0, 1, 1], [], []>} : vector<288x32xbf16>, vector<32x32xbf16>, vector<288x32xf32> -> vector<288x32xf32>
    %12 = arith.addf %6, %11 : vector<288x32xf32>
    %c0_12 = arith.constant 0 : index
    %c2 = arith.constant 2 : index
    %c0_13 = arith.constant 0 : index
    %13 = vector.load %arg1[%c0_12, %c2, %c0_13] : memref<1x342x32xbf16, #tpu.memory_space<vmem>>, vector<1x288x32xbf16>
    %14 = vector.shape_cast %13 : vector<1x288x32xbf16> to vector<288x32xbf16>
    %c2_14 = arith.constant 2 : index
    %c0_15 = arith.constant 0 : index
    %c0_16 = arith.constant 0 : index
    %15 = vector.load %arg2[%c2_14, %c0_15, %c0_16] : memref<9x32x32xbf16, #tpu.memory_space<vmem>>, vector<1x32x32xbf16>
    %16 = vector.shape_cast %15 : vector<1x32x32xbf16> to vector<32x32xbf16>
    %cst_17 = arith.constant dense<0.000000e+00> : vector<288x32xf32>
    %17 = tpu.matmul %14, %16, %cst_17 {dimension_numbers = #tpu.dot_dimension_numbers<[1], [0], [0], [1], [0, 0, 1, 1], [], []>} : vector<288x32xbf16>, vector<32x32xbf16>, vector<288x32xf32> -> vector<288x32xf32>
    %18 = arith.addf %12, %17 : vector<288x32xf32>
    %c0_18 = arith.constant 0 : index
    %c18 = arith.constant 18 : index
    %c0_19 = arith.constant 0 : index
    %19 = vector.load %arg1[%c0_18, %c18, %c0_19] : memref<1x342x32xbf16, #tpu.memory_space<vmem>>, vector<1x288x32xbf16>
    %20 = vector.shape_cast %19 : vector<1x288x32xbf16> to vector<288x32xbf16>
    %c3 = arith.constant 3 : index
    %c0_20 = arith.constant 0 : index
    %c0_21 = arith.constant 0 : index
    %21 = vector.load %arg2[%c3, %c0_20, %c0_21] : memref<9x32x32xbf16, #tpu.memory_space<vmem>>, vector<1x32x32xbf16>
    %22 = vector.shape_cast %21 : vector<1x32x32xbf16> to vector<32x32xbf16>
    %cst_22 = arith.constant dense<0.000000e+00> : vector<288x32xf32>
    %23 = tpu.matmul %20, %22, %cst_22 {dimension_numbers = #tpu.dot_dimension_numbers<[1], [0], [0], [1], [0, 0, 1, 1], [], []>} : vector<288x32xbf16>, vector<32x32xbf16>, vector<288x32xf32> -> vector<288x32xf32>
    %24 = arith.addf %18, %23 : vector<288x32xf32>
    %c0_23 = arith.constant 0 : index
    %c19 = arith.constant 19 : index
    %c0_24 = arith.constant 0 : index
    %25 = vector.load %arg1[%c0_23, %c19, %c0_24] : memref<1x342x32xbf16, #tpu.memory_space<vmem>>, vector<1x288x32xbf16>
    %26 = vector.shape_cast %25 : vector<1x288x32xbf16> to vector<288x32xbf16>
    %c4 = arith.constant 4 : index
    %c0_25 = arith.constant 0 : index
    %c0_26 = arith.constant 0 : index
    %27 = vector.load %arg2[%c4, %c0_25, %c0_26] : memref<9x32x32xbf16, #tpu.memory_space<vmem>>, vector<1x32x32xbf16>
    %28 = vector.shape_cast %27 : vector<1x32x32xbf16> to vector<32x32xbf16>
    %cst_27 = arith.constant dense<0.000000e+00> : vector<288x32xf32>
    %29 = tpu.matmul %26, %28, %cst_27 {dimension_numbers = #tpu.dot_dimension_numbers<[1], [0], [0], [1], [0, 0, 1, 1], [], []>} : vector<288x32xbf16>, vector<32x32xbf16>, vector<288x32xf32> -> vector<288x32xf32>
    %30 = arith.addf %24, %29 : vector<288x32xf32>
    %c0_28 = arith.constant 0 : index
    %c20 = arith.constant 20 : index
    %c0_29 = arith.constant 0 : index
    %31 = vector.load %arg1[%c0_28, %c20, %c0_29] : memref<1x342x32xbf16, #tpu.memory_space<vmem>>, vector<1x288x32xbf16>
    %32 = vector.shape_cast %31 : vector<1x288x32xbf16> to vector<288x32xbf16>
    %c5 = arith.constant 5 : index
    %c0_30 = arith.constant 0 : index
    %c0_31 = arith.constant 0 : index
    %33 = vector.load %arg2[%c5, %c0_30, %c0_31] : memref<9x32x32xbf16, #tpu.memory_space<vmem>>, vector<1x32x32xbf16>
    %34 = vector.shape_cast %33 : vector<1x32x32xbf16> to vector<32x32xbf16>
    %cst_32 = arith.constant dense<0.000000e+00> : vector<288x32xf32>
    %35 = tpu.matmul %32, %34, %cst_32 {dimension_numbers = #tpu.dot_dimension_numbers<[1], [0], [0], [1], [0, 0, 1, 1], [], []>} : vector<288x32xbf16>, vector<32x32xbf16>, vector<288x32xf32> -> vector<288x32xf32>
    %36 = arith.addf %30, %35 : vector<288x32xf32>
    %c0_33 = arith.constant 0 : index
    %c36 = arith.constant 36 : index
    %c0_34 = arith.constant 0 : index
    %37 = vector.load %arg1[%c0_33, %c36, %c0_34] : memref<1x342x32xbf16, #tpu.memory_space<vmem>>, vector<1x288x32xbf16>
    %38 = vector.shape_cast %37 : vector<1x288x32xbf16> to vector<288x32xbf16>
    %c6 = arith.constant 6 : index
    %c0_35 = arith.constant 0 : index
    %c0_36 = arith.constant 0 : index
    %39 = vector.load %arg2[%c6, %c0_35, %c0_36] : memref<9x32x32xbf16, #tpu.memory_space<vmem>>, vector<1x32x32xbf16>
    %40 = vector.shape_cast %39 : vector<1x32x32xbf16> to vector<32x32xbf16>
    %cst_37 = arith.constant dense<0.000000e+00> : vector<288x32xf32>
    %41 = tpu.matmul %38, %40, %cst_37 {dimension_numbers = #tpu.dot_dimension_numbers<[1], [0], [0], [1], [0, 0, 1, 1], [], []>} : vector<288x32xbf16>, vector<32x32xbf16>, vector<288x32xf32> -> vector<288x32xf32>
    %42 = arith.addf %36, %41 : vector<288x32xf32>
    %c0_38 = arith.constant 0 : index
    %c37 = arith.constant 37 : index
    %c0_39 = arith.constant 0 : index
    %43 = vector.load %arg1[%c0_38, %c37, %c0_39] : memref<1x342x32xbf16, #tpu.memory_space<vmem>>, vector<1x288x32xbf16>
    %44 = vector.shape_cast %43 : vector<1x288x32xbf16> to vector<288x32xbf16>
    %c7 = arith.constant 7 : index
    %c0_40 = arith.constant 0 : index
    %c0_41 = arith.constant 0 : index
    %45 = vector.load %arg2[%c7, %c0_40, %c0_41] : memref<9x32x32xbf16, #tpu.memory_space<vmem>>, vector<1x32x32xbf16>
    %46 = vector.shape_cast %45 : vector<1x32x32xbf16> to vector<32x32xbf16>
    %cst_42 = arith.constant dense<0.000000e+00> : vector<288x32xf32>
    %47 = tpu.matmul %44, %46, %cst_42 {dimension_numbers = #tpu.dot_dimension_numbers<[1], [0], [0], [1], [0, 0, 1, 1], [], []>} : vector<288x32xbf16>, vector<32x32xbf16>, vector<288x32xf32> -> vector<288x32xf32>
    %48 = arith.addf %42, %47 : vector<288x32xf32>
    %c0_43 = arith.constant 0 : index
    %c38 = arith.constant 38 : index
    %c0_44 = arith.constant 0 : index
    %49 = vector.load %arg1[%c0_43, %c38, %c0_44] : memref<1x342x32xbf16, #tpu.memory_space<vmem>>, vector<1x288x32xbf16>
    %50 = vector.shape_cast %49 : vector<1x288x32xbf16> to vector<288x32xbf16>
    %c8 = arith.constant 8 : index
    %c0_45 = arith.constant 0 : index
    %c0_46 = arith.constant 0 : index
    %51 = vector.load %arg2[%c8, %c0_45, %c0_46] : memref<9x32x32xbf16, #tpu.memory_space<vmem>>, vector<1x32x32xbf16>
    %52 = vector.shape_cast %51 : vector<1x32x32xbf16> to vector<32x32xbf16>
    %cst_47 = arith.constant dense<0.000000e+00> : vector<288x32xf32>
    %53 = tpu.matmul %50, %52, %cst_47 {dimension_numbers = #tpu.dot_dimension_numbers<[1], [0], [0], [1], [0, 0, 1, 1], [], []>} : vector<288x32xbf16>, vector<32x32xbf16>, vector<288x32xf32> -> vector<288x32xf32>
    %54 = arith.addf %48, %53 : vector<288x32xf32>
    %c0_48 = arith.constant 0 : index
    %c0_49 = arith.constant 0 : index
    %55 = vector.load %arg3[%c0_48, %c0_49] : memref<1x32xf32, #tpu.memory_space<vmem>>, vector<1x32xf32>
    %56 = vector.broadcast %55 : vector<1x32xf32> to vector<288x32xf32>
    %57 = arith.addf %54, %56 : vector<288x32xf32>
    %cst_50 = arith.constant 0.000000e+00 : f32
    %58 = vector.broadcast %cst_50 : f32 to vector<288x32xf32>
    %59 = arith.subf %58, %57 : vector<288x32xf32>
    %60 = math.exp %59 : vector<288x32xf32>
    %cst_51 = arith.constant 1.000000e+00 : f32
    %61 = vector.broadcast %cst_51 : f32 to vector<288x32xf32>
    %62 = arith.addf %61, %60 : vector<288x32xf32>
    %63 = tpu.reciprocal %62 {approx = true} : vector<288x32xf32> -> vector<288x32xf32>
    %64 = arith.mulf %57, %63 : vector<288x32xf32>
    %c0_52 = arith.constant 0 : index
    %c0_53 = arith.constant 0 : index
    %65 = vector.load %arg6[%c0_52, %c0_53] : memref<288x32xf32, #tpu.memory_space<vmem>>, vector<288x32xf32>
    tpu.vector_store %arg6[%c0_52, %c0_53], %64 {strides = array<i32>} : memref<288x32xf32, #tpu.memory_space<vmem>>, vector<288x32xf32>,
    %c0_54 = arith.constant 0 : index
    %c0_55 = arith.constant 0 : index
    %66 = vector.load %arg6[%c0_54, %c0_55] : memref<288x32xf32, #tpu.memory_space<vmem>>, vector<16x32xf32>
    %c18_56 = arith.constant 18 : index
    %c0_57 = arith.constant 0 : index
    %67 = vector.load %arg6[%c18_56, %c0_57] : memref<288x32xf32, #tpu.memory_space<vmem>>, vector<16x32xf32>
    %c36_58 = arith.constant 36 : index
    %c0_59 = arith.constant 0 : index
    %68 = vector.load %arg6[%c36_58, %c0_59] : memref<288x32xf32, #tpu.memory_space<vmem>>, vector<16x32xf32>
    %c54 = arith.constant 54 : index
    %c0_60 = arith.constant 0 : index
    %69 = vector.load %arg6[%c54, %c0_60] : memref<288x32xf32, #tpu.memory_space<vmem>>, vector<16x32xf32>
    %c72 = arith.constant 72 : index
    %c0_61 = arith.constant 0 : index
    %70 = vector.load %arg6[%c72, %c0_61] : memref<288x32xf32, #tpu.memory_space<vmem>>, vector<16x32xf32>
    %c90 = arith.constant 90 : index
    %c0_62 = arith.constant 0 : index
    %71 = vector.load %arg6[%c90, %c0_62] : memref<288x32xf32, #tpu.memory_space<vmem>>, vector<16x32xf32>
    %c108 = arith.constant 108 : index
    %c0_63 = arith.constant 0 : index
    %72 = vector.load %arg6[%c108, %c0_63] : memref<288x32xf32, #tpu.memory_space<vmem>>, vector<16x32xf32>
    %c126 = arith.constant 126 : index
    %c0_64 = arith.constant 0 : index
    %73 = vector.load %arg6[%c126, %c0_64] : memref<288x32xf32, #tpu.memory_space<vmem>>, vector<16x32xf32>
    %c144 = arith.constant 144 : index
    %c0_65 = arith.constant 0 : index
    %74 = vector.load %arg6[%c144, %c0_65] : memref<288x32xf32, #tpu.memory_space<vmem>>, vector<16x32xf32>
    %c162 = arith.constant 162 : index
    %c0_66 = arith.constant 0 : index
    %75 = vector.load %arg6[%c162, %c0_66] : memref<288x32xf32, #tpu.memory_space<vmem>>, vector<16x32xf32>
    %c180 = arith.constant 180 : index
    %c0_67 = arith.constant 0 : index
    %76 = vector.load %arg6[%c180, %c0_67] : memref<288x32xf32, #tpu.memory_space<vmem>>, vector<16x32xf32>
    %c198 = arith.constant 198 : index
    %c0_68 = arith.constant 0 : index
    %77 = vector.load %arg6[%c198, %c0_68] : memref<288x32xf32, #tpu.memory_space<vmem>>, vector<16x32xf32>
    %c216 = arith.constant 216 : index
    %c0_69 = arith.constant 0 : index
    %78 = vector.load %arg6[%c216, %c0_69] : memref<288x32xf32, #tpu.memory_space<vmem>>, vector<16x32xf32>
    %c234 = arith.constant 234 : index
    %c0_70 = arith.constant 0 : index
    %79 = vector.load %arg6[%c234, %c0_70] : memref<288x32xf32, #tpu.memory_space<vmem>>, vector<16x32xf32>
    %c252 = arith.constant 252 : index
    %c0_71 = arith.constant 0 : index
    %80 = vector.load %arg6[%c252, %c0_71] : memref<288x32xf32, #tpu.memory_space<vmem>>, vector<16x32xf32>
    %c270 = arith.constant 270 : index
    %c0_72 = arith.constant 0 : index
    %81 = vector.load %arg6[%c270, %c0_72] : memref<288x32xf32, #tpu.memory_space<vmem>>, vector<16x32xf32>
    %82 = tpu.concatenate %66, %67, %68, %69, %70, %71, %72, %73, %74, %75, %76, %77, %78, %79, %80, %81 in 0 : vector<16x32xf32>, vector<16x32xf32>, vector<16x32xf32>, vector<16x32xf32>, vector<16x32xf32>, vector<16x32xf32>, vector<16x32xf32>, vector<16x32xf32>, vector<16x32xf32>, vector<16x32xf32>, vector<16x32xf32>, vector<16x32xf32>, vector<16x32xf32>, vector<16x32xf32>, vector<16x32xf32>, vector<16x32xf32> -> vector<256x32xf32>
    %c0_73 = arith.constant 0 : index
    %c0_74 = arith.constant 0 : index
    %c0_75 = arith.constant 0 : index
    %83 = vector.load %arg4[%c0_73, %c0_74, %c0_75] : memref<1x256x32xbf16, #tpu.memory_space<vmem>>, vector<1x256x32xbf16>
    %84 = vector.shape_cast %83 : vector<1x256x32xbf16> to vector<256x32xbf16>
    %85 = arith.extf %84 : vector<256x32xbf16> to vector<256x32xf32>
    %86 = arith.addf %82, %85 : vector<256x32xf32>
    %87 = arith.truncf %86 : vector<256x32xf32> to vector<256x32xbf16>
    %c0_76 = arith.constant 0 : index
    %c0_77 = arith.constant 0 : index
    %c0_78 = arith.constant 0 : index
    %88 = vector.load %arg5[%c0_76, %c0_77, %c0_78] : memref<1x256x32xbf16, #tpu.memory_space<vmem>>, vector<1x256x32xbf16>
    %89 = vector.shape_cast %88 : vector<1x256x32xbf16> to vector<256x32xbf16>
    %90 = vector.shape_cast %87 : vector<256x32xbf16> to vector<1x256x32xbf16>
    tpu.vector_store %arg5[%c0_76, %c0_77, %c0_78], %90 {strides = array<i32>} : memref<1x256x32xbf16, #tpu.memory_space<vmem>>, vector<1x256x32xbf16>,
    return
  }
  func.func @transform_0(%arg0: i32) -> (i32, i32, i32) {
    %c0_i32 = arith.constant 0 : i32
    %c0_i32_0 = arith.constant 0 : i32
    %c0_i32_1 = arith.constant 0 : i32
    return %arg0, %c0_i32, %c0_i32_0 : i32, i32, i32
  }
  func.func @transform_1(%arg0: i32) -> (i32, i32, i32) {
    %c0_i32 = arith.constant 0 : i32
    %c0_i32_0 = arith.constant 0 : i32
    %c0_i32_1 = arith.constant 0 : i32
    %c0_i32_2 = arith.constant 0 : i32
    return %c0_i32, %c0_i32_0, %c0_i32_1 : i32, i32, i32
  }
  func.func @transform_2(%arg0: i32) -> (i32, i32) {
    %c0_i32 = arith.constant 0 : i32
    %c0_i32_0 = arith.constant 0 : i32
    %c0_i32_1 = arith.constant 0 : i32
    return %c0_i32, %c0_i32_0 : i32, i32
  }
  func.func @transform_3(%arg0: i32) -> (i32, i32, i32) {
    %c0_i32 = arith.constant 0 : i32
    %c0_i32_0 = arith.constant 0 : i32
    %c0_i32_1 = arith.constant 0 : i32
    return %arg0, %c0_i32, %c0_i32_0 : i32, i32, i32
  }
  func.func @transform_4(%arg0: i32) -> (i32, i32, i32) {
    %c0_i32 = arith.constant 0 : i32
    %c0_i32_0 = arith.constant 0 : i32
    %c0_i32_1 = arith.constant 0 : i32
    return %arg0, %c0_i32, %c0_i32_0 : i32, i32, i32
  }
}

module attributes {stable_mosaic.version = 11 : i64} {
  func.func @kernel(%arg0: i32, %arg1: memref<1x342x32xbf16, #tpu.memory_space<vmem>>, %arg2: memref<9x32x32xbf16, #tpu.memory_space<vmem>>, %arg3: memref<1x32xf32, #tpu.memory_space<vmem>>, %arg4: memref<1x256x32xbf16, #tpu.memory_space<vmem>>, %arg5: memref<288x32xf32, #tpu.memory_space<vmem>>) attributes {dimension_semantics = [#tpu.dimension_semantics<parallel>], iteration_bounds = array<i64: 2>, scalar_prefetch = 0 : i64, scratch_operands = 1 : i64, tpu.core_type = #tpu.core_type<tc>, window_params = [{transform_indices = @transform_0, window_bounds = array<i64: 1, 342, 32>}, {pipeline_mode = #tpu.pipeline_mode<synchronous>, transform_indices = @transform_1, window_bounds = array<i64: 9, 32, 32>}, {pipeline_mode = #tpu.pipeline_mode<synchronous>, transform_indices = @transform_2, window_bounds = array<i64: 1, 32>}, {transform_indices = @transform_3, window_bounds = array<i64: 1, 256, 32>}]} {
    %cst = arith.constant 0.000000e+00 : f32
    %0 = vector.broadcast %cst : f32 to vector<288x32xf32>
    %c0 = arith.constant 0 : index
    %c0_0 = arith.constant 0 : index
    %c0_1 = arith.constant 0 : index
    %1 = vector.load %arg1[%c0, %c0_0, %c0_1] : memref<1x342x32xbf16, #tpu.memory_space<vmem>>, vector<1x288x32xbf16>
    %2 = vector.shape_cast %1 : vector<1x288x32xbf16> to vector<288x32xbf16>
    %c0_2 = arith.constant 0 : index
    %c0_3 = arith.constant 0 : index
    %c0_4 = arith.constant 0 : index
    %3 = vector.load %arg2[%c0_2, %c0_3, %c0_4] : memref<9x32x32xbf16, #tpu.memory_space<vmem>>, vector<1x32x32xbf16>
    %4 = vector.shape_cast %3 : vector<1x32x32xbf16> to vector<32x32xbf16>
    %cst_5 = arith.constant dense<0.000000e+00> : vector<288x32xf32>
    %5 = tpu.matmul %2, %4, %cst_5 {dimension_numbers = #tpu.dot_dimension_numbers<[1], [0], [0], [1], [0, 0, 1, 1], [], []>} : vector<288x32xbf16>, vector<32x32xbf16>, vector<288x32xf32> -> vector<288x32xf32>
    %6 = arith.addf %0, %5 : vector<288x32xf32>
    %c0_6 = arith.constant 0 : index
    %c1 = arith.constant 1 : index
    %c0_7 = arith.constant 0 : index
    %7 = vector.load %arg1[%c0_6, %c1, %c0_7] : memref<1x342x32xbf16, #tpu.memory_space<vmem>>, vector<1x288x32xbf16>
    %8 = vector.shape_cast %7 : vector<1x288x32xbf16> to vector<288x32xbf16>
    %c1_8 = arith.constant 1 : index
    %c0_9 = arith.constant 0 : index
    %c0_10 = arith.constant 0 : index
    %9 = vector.load %arg2[%c1_8, %c0_9, %c0_10] : memref<9x32x32xbf16, #tpu.memory_space<vmem>>, vector<1x32x32xbf16>
    %10 = vector.shape_cast %9 : vector<1x32x32xbf16> to vector<32x32xbf16>
    %cst_11 = arith.constant dense<0.000000e+00> : vector<288x32xf32>
    %11 = tpu.matmul %8, %10, %cst_11 {dimension_numbers = #tpu.dot_dimension_numbers<[1], [0], [0], [1], [0, 0, 1, 1], [], []>} : vector<288x32xbf16>, vector<32x32xbf16>, vector<288x32xf32> -> vector<288x32xf32>
    %12 = arith.addf %6, %11 : vector<288x32xf32>
    %c0_12 = arith.constant 0 : index
    %c2 = arith.constant 2 : index
    %c0_13 = arith.constant 0 : index
    %13 = vector.load %arg1[%c0_12, %c2, %c0_13] : memref<1x342x32xbf16, #tpu.memory_space<vmem>>, vector<1x288x32xbf16>
    %14 = vector.shape_cast %13 : vector<1x288x32xbf16> to vector<288x32xbf16>
    %c2_14 = arith.constant 2 : index
    %c0_15 = arith.constant 0 : index
    %c0_16 = arith.constant 0 : index
    %15 = vector.load %arg2[%c2_14, %c0_15, %c0_16] : memref<9x32x32xbf16, #tpu.memory_space<vmem>>, vector<1x32x32xbf16>
    %16 = vector.shape_cast %15 : vector<1x32x32xbf16> to vector<32x32xbf16>
    %cst_17 = arith.constant dense<0.000000e+00> : vector<288x32xf32>
    %17 = tpu.matmul %14, %16, %cst_17 {dimension_numbers = #tpu.dot_dimension_numbers<[1], [0], [0], [1], [0, 0, 1, 1], [], []>} : vector<288x32xbf16>, vector<32x32xbf16>, vector<288x32xf32> -> vector<288x32xf32>
    %18 = arith.addf %12, %17 : vector<288x32xf32>
    %c0_18 = arith.constant 0 : index
    %c18 = arith.constant 18 : index
    %c0_19 = arith.constant 0 : index
    %19 = vector.load %arg1[%c0_18, %c18, %c0_19] : memref<1x342x32xbf16, #tpu.memory_space<vmem>>, vector<1x288x32xbf16>
    %20 = vector.shape_cast %19 : vector<1x288x32xbf16> to vector<288x32xbf16>
    %c3 = arith.constant 3 : index
    %c0_20 = arith.constant 0 : index
    %c0_21 = arith.constant 0 : index
    %21 = vector.load %arg2[%c3, %c0_20, %c0_21] : memref<9x32x32xbf16, #tpu.memory_space<vmem>>, vector<1x32x32xbf16>
    %22 = vector.shape_cast %21 : vector<1x32x32xbf16> to vector<32x32xbf16>
    %cst_22 = arith.constant dense<0.000000e+00> : vector<288x32xf32>
    %23 = tpu.matmul %20, %22, %cst_22 {dimension_numbers = #tpu.dot_dimension_numbers<[1], [0], [0], [1], [0, 0, 1, 1], [], []>} : vector<288x32xbf16>, vector<32x32xbf16>, vector<288x32xf32> -> vector<288x32xf32>
    %24 = arith.addf %18, %23 : vector<288x32xf32>
    %c0_23 = arith.constant 0 : index
    %c19 = arith.constant 19 : index
    %c0_24 = arith.constant 0 : index
    %25 = vector.load %arg1[%c0_23, %c19, %c0_24] : memref<1x342x32xbf16, #tpu.memory_space<vmem>>, vector<1x288x32xbf16>
    %26 = vector.shape_cast %25 : vector<1x288x32xbf16> to vector<288x32xbf16>
    %c4 = arith.constant 4 : index
    %c0_25 = arith.constant 0 : index
    %c0_26 = arith.constant 0 : index
    %27 = vector.load %arg2[%c4, %c0_25, %c0_26] : memref<9x32x32xbf16, #tpu.memory_space<vmem>>, vector<1x32x32xbf16>
    %28 = vector.shape_cast %27 : vector<1x32x32xbf16> to vector<32x32xbf16>
    %cst_27 = arith.constant dense<0.000000e+00> : vector<288x32xf32>
    %29 = tpu.matmul %26, %28, %cst_27 {dimension_numbers = #tpu.dot_dimension_numbers<[1], [0], [0], [1], [0, 0, 1, 1], [], []>} : vector<288x32xbf16>, vector<32x32xbf16>, vector<288x32xf32> -> vector<288x32xf32>
    %30 = arith.addf %24, %29 : vector<288x32xf32>
    %c0_28 = arith.constant 0 : index
    %c20 = arith.constant 20 : index
    %c0_29 = arith.constant 0 : index
    %31 = vector.load %arg1[%c0_28, %c20, %c0_29] : memref<1x342x32xbf16, #tpu.memory_space<vmem>>, vector<1x288x32xbf16>
    %32 = vector.shape_cast %31 : vector<1x288x32xbf16> to vector<288x32xbf16>
    %c5 = arith.constant 5 : index
    %c0_30 = arith.constant 0 : index
    %c0_31 = arith.constant 0 : index
    %33 = vector.load %arg2[%c5, %c0_30, %c0_31] : memref<9x32x32xbf16, #tpu.memory_space<vmem>>, vector<1x32x32xbf16>
    %34 = vector.shape_cast %33 : vector<1x32x32xbf16> to vector<32x32xbf16>
    %cst_32 = arith.constant dense<0.000000e+00> : vector<288x32xf32>
    %35 = tpu.matmul %32, %34, %cst_32 {dimension_numbers = #tpu.dot_dimension_numbers<[1], [0], [0], [1], [0, 0, 1, 1], [], []>} : vector<288x32xbf16>, vector<32x32xbf16>, vector<288x32xf32> -> vector<288x32xf32>
    %36 = arith.addf %30, %35 : vector<288x32xf32>
    %c0_33 = arith.constant 0 : index
    %c36 = arith.constant 36 : index
    %c0_34 = arith.constant 0 : index
    %37 = vector.load %arg1[%c0_33, %c36, %c0_34] : memref<1x342x32xbf16, #tpu.memory_space<vmem>>, vector<1x288x32xbf16>
    %38 = vector.shape_cast %37 : vector<1x288x32xbf16> to vector<288x32xbf16>
    %c6 = arith.constant 6 : index
    %c0_35 = arith.constant 0 : index
    %c0_36 = arith.constant 0 : index
    %39 = vector.load %arg2[%c6, %c0_35, %c0_36] : memref<9x32x32xbf16, #tpu.memory_space<vmem>>, vector<1x32x32xbf16>
    %40 = vector.shape_cast %39 : vector<1x32x32xbf16> to vector<32x32xbf16>
    %cst_37 = arith.constant dense<0.000000e+00> : vector<288x32xf32>
    %41 = tpu.matmul %38, %40, %cst_37 {dimension_numbers = #tpu.dot_dimension_numbers<[1], [0], [0], [1], [0, 0, 1, 1], [], []>} : vector<288x32xbf16>, vector<32x32xbf16>, vector<288x32xf32> -> vector<288x32xf32>
    %42 = arith.addf %36, %41 : vector<288x32xf32>
    %c0_38 = arith.constant 0 : index
    %c37 = arith.constant 37 : index
    %c0_39 = arith.constant 0 : index
    %43 = vector.load %arg1[%c0_38, %c37, %c0_39] : memref<1x342x32xbf16, #tpu.memory_space<vmem>>, vector<1x288x32xbf16>
    %44 = vector.shape_cast %43 : vector<1x288x32xbf16> to vector<288x32xbf16>
    %c7 = arith.constant 7 : index
    %c0_40 = arith.constant 0 : index
    %c0_41 = arith.constant 0 : index
    %45 = vector.load %arg2[%c7, %c0_40, %c0_41] : memref<9x32x32xbf16, #tpu.memory_space<vmem>>, vector<1x32x32xbf16>
    %46 = vector.shape_cast %45 : vector<1x32x32xbf16> to vector<32x32xbf16>
    %cst_42 = arith.constant dense<0.000000e+00> : vector<288x32xf32>
    %47 = tpu.matmul %44, %46, %cst_42 {dimension_numbers = #tpu.dot_dimension_numbers<[1], [0], [0], [1], [0, 0, 1, 1], [], []>} : vector<288x32xbf16>, vector<32x32xbf16>, vector<288x32xf32> -> vector<288x32xf32>
    %48 = arith.addf %42, %47 : vector<288x32xf32>
    %c0_43 = arith.constant 0 : index
    %c38 = arith.constant 38 : index
    %c0_44 = arith.constant 0 : index
    %49 = vector.load %arg1[%c0_43, %c38, %c0_44] : memref<1x342x32xbf16, #tpu.memory_space<vmem>>, vector<1x288x32xbf16>
    %50 = vector.shape_cast %49 : vector<1x288x32xbf16> to vector<288x32xbf16>
    %c8 = arith.constant 8 : index
    %c0_45 = arith.constant 0 : index
    %c0_46 = arith.constant 0 : index
    %51 = vector.load %arg2[%c8, %c0_45, %c0_46] : memref<9x32x32xbf16, #tpu.memory_space<vmem>>, vector<1x32x32xbf16>
    %52 = vector.shape_cast %51 : vector<1x32x32xbf16> to vector<32x32xbf16>
    %cst_47 = arith.constant dense<0.000000e+00> : vector<288x32xf32>
    %53 = tpu.matmul %50, %52, %cst_47 {dimension_numbers = #tpu.dot_dimension_numbers<[1], [0], [0], [1], [0, 0, 1, 1], [], []>} : vector<288x32xbf16>, vector<32x32xbf16>, vector<288x32xf32> -> vector<288x32xf32>
    %54 = arith.addf %48, %53 : vector<288x32xf32>
    %c0_48 = arith.constant 0 : index
    %c0_49 = arith.constant 0 : index
    %55 = vector.load %arg3[%c0_48, %c0_49] : memref<1x32xf32, #tpu.memory_space<vmem>>, vector<1x32xf32>
    %56 = vector.broadcast %55 : vector<1x32xf32> to vector<288x32xf32>
    %57 = arith.addf %54, %56 : vector<288x32xf32>
    %cst_50 = arith.constant 0.000000e+00 : f32
    %58 = vector.broadcast %cst_50 : f32 to vector<288x32xf32>
    %59 = arith.subf %58, %57 : vector<288x32xf32>
    %60 = math.exp %59 : vector<288x32xf32>
    %cst_51 = arith.constant 1.000000e+00 : f32
    %61 = vector.broadcast %cst_51 : f32 to vector<288x32xf32>
    %62 = arith.addf %61, %60 : vector<288x32xf32>
    %63 = tpu.reciprocal %62 {approx = true} : vector<288x32xf32> -> vector<288x32xf32>
    %64 = arith.mulf %57, %63 : vector<288x32xf32>
    %c0_52 = arith.constant 0 : index
    %c0_53 = arith.constant 0 : index
    %65 = vector.load %arg5[%c0_52, %c0_53] : memref<288x32xf32, #tpu.memory_space<vmem>>, vector<288x32xf32>
    tpu.vector_store %arg5[%c0_52, %c0_53], %64 {strides = array<i32>} : memref<288x32xf32, #tpu.memory_space<vmem>>, vector<288x32xf32>,
    %c0_54 = arith.constant 0 : index
    %c0_55 = arith.constant 0 : index
    %66 = vector.load %arg5[%c0_54, %c0_55] : memref<288x32xf32, #tpu.memory_space<vmem>>, vector<16x32xf32>
    %c18_56 = arith.constant 18 : index
    %c0_57 = arith.constant 0 : index
    %67 = vector.load %arg5[%c18_56, %c0_57] : memref<288x32xf32, #tpu.memory_space<vmem>>, vector<16x32xf32>
    %c36_58 = arith.constant 36 : index
    %c0_59 = arith.constant 0 : index
    %68 = vector.load %arg5[%c36_58, %c0_59] : memref<288x32xf32, #tpu.memory_space<vmem>>, vector<16x32xf32>
    %c54 = arith.constant 54 : index
    %c0_60 = arith.constant 0 : index
    %69 = vector.load %arg5[%c54, %c0_60] : memref<288x32xf32, #tpu.memory_space<vmem>>, vector<16x32xf32>
    %c72 = arith.constant 72 : index
    %c0_61 = arith.constant 0 : index
    %70 = vector.load %arg5[%c72, %c0_61] : memref<288x32xf32, #tpu.memory_space<vmem>>, vector<16x32xf32>
    %c90 = arith.constant 90 : index
    %c0_62 = arith.constant 0 : index
    %71 = vector.load %arg5[%c90, %c0_62] : memref<288x32xf32, #tpu.memory_space<vmem>>, vector<16x32xf32>
    %c108 = arith.constant 108 : index
    %c0_63 = arith.constant 0 : index
    %72 = vector.load %arg5[%c108, %c0_63] : memref<288x32xf32, #tpu.memory_space<vmem>>, vector<16x32xf32>
    %c126 = arith.constant 126 : index
    %c0_64 = arith.constant 0 : index
    %73 = vector.load %arg5[%c126, %c0_64] : memref<288x32xf32, #tpu.memory_space<vmem>>, vector<16x32xf32>
    %c144 = arith.constant 144 : index
    %c0_65 = arith.constant 0 : index
    %74 = vector.load %arg5[%c144, %c0_65] : memref<288x32xf32, #tpu.memory_space<vmem>>, vector<16x32xf32>
    %c162 = arith.constant 162 : index
    %c0_66 = arith.constant 0 : index
    %75 = vector.load %arg5[%c162, %c0_66] : memref<288x32xf32, #tpu.memory_space<vmem>>, vector<16x32xf32>
    %c180 = arith.constant 180 : index
    %c0_67 = arith.constant 0 : index
    %76 = vector.load %arg5[%c180, %c0_67] : memref<288x32xf32, #tpu.memory_space<vmem>>, vector<16x32xf32>
    %c198 = arith.constant 198 : index
    %c0_68 = arith.constant 0 : index
    %77 = vector.load %arg5[%c198, %c0_68] : memref<288x32xf32, #tpu.memory_space<vmem>>, vector<16x32xf32>
    %c216 = arith.constant 216 : index
    %c0_69 = arith.constant 0 : index
    %78 = vector.load %arg5[%c216, %c0_69] : memref<288x32xf32, #tpu.memory_space<vmem>>, vector<16x32xf32>
    %c234 = arith.constant 234 : index
    %c0_70 = arith.constant 0 : index
    %79 = vector.load %arg5[%c234, %c0_70] : memref<288x32xf32, #tpu.memory_space<vmem>>, vector<16x32xf32>
    %c252 = arith.constant 252 : index
    %c0_71 = arith.constant 0 : index
    %80 = vector.load %arg5[%c252, %c0_71] : memref<288x32xf32, #tpu.memory_space<vmem>>, vector<16x32xf32>
    %c270 = arith.constant 270 : index
    %c0_72 = arith.constant 0 : index
    %81 = vector.load %arg5[%c270, %c0_72] : memref<288x32xf32, #tpu.memory_space<vmem>>, vector<16x32xf32>
    %82 = tpu.concatenate %66, %67, %68, %69, %70, %71, %72, %73, %74, %75, %76, %77, %78, %79, %80, %81 in 0 : vector<16x32xf32>, vector<16x32xf32>, vector<16x32xf32>, vector<16x32xf32>, vector<16x32xf32>, vector<16x32xf32>, vector<16x32xf32>, vector<16x32xf32>, vector<16x32xf32>, vector<16x32xf32>, vector<16x32xf32>, vector<16x32xf32>, vector<16x32xf32>, vector<16x32xf32>, vector<16x32xf32>, vector<16x32xf32> -> vector<256x32xf32>
    %83 = arith.truncf %82 : vector<256x32xf32> to vector<256x32xbf16>
    %c0_73 = arith.constant 0 : index
    %c0_74 = arith.constant 0 : index
    %c0_75 = arith.constant 0 : index
    %84 = vector.load %arg4[%c0_73, %c0_74, %c0_75] : memref<1x256x32xbf16, #tpu.memory_space<vmem>>, vector<1x256x32xbf16>
    %85 = vector.shape_cast %84 : vector<1x256x32xbf16> to vector<256x32xbf16>
    %86 = vector.shape_cast %83 : vector<256x32xbf16> to vector<1x256x32xbf16>
    tpu.vector_store %arg4[%c0_73, %c0_74, %c0_75], %86 {strides = array<i32>} : memref<1x256x32xbf16, #tpu.memory_space<vmem>>, vector<1x256x32xbf16>,
    return
  }
  func.func @transform_0(%arg0: i32) -> (i32, i32, i32) {
    %c0_i32 = arith.constant 0 : i32
    %c0_i32_0 = arith.constant 0 : i32
    %c0_i32_1 = arith.constant 0 : i32
    return %arg0, %c0_i32, %c0_i32_0 : i32, i32, i32
  }
  func.func @transform_1(%arg0: i32) -> (i32, i32, i32) {
    %c0_i32 = arith.constant 0 : i32
    %c0_i32_0 = arith.constant 0 : i32
    %c0_i32_1 = arith.constant 0 : i32
    %c0_i32_2 = arith.constant 0 : i32
    return %c0_i32, %c0_i32_0, %c0_i32_1 : i32, i32, i32
  }
  func.func @transform_2(%arg0: i32) -> (i32, i32) {
    %c0_i32 = arith.constant 0 : i32
    %c0_i32_0 = arith.constant 0 : i32
    %c0_i32_1 = arith.constant 0 : i32
    return %c0_i32, %c0_i32_0 : i32, i32
  }
  func.func @transform_3(%arg0: i32) -> (i32, i32, i32) {
    %c0_i32 = arith.constant 0 : i32
    %c0_i32_0 = arith.constant 0 : i32
    %c0_i32_1 = arith.constant 0 : i32
    return %arg0, %c0_i32, %c0_i32_0 : i32, i32, i32
  }
}

module attributes {stable_mosaic.version = 11 : i64} {
  func.func @kernel(%arg0: i32, %arg1: memref<256x32xbf16, #tpu.memory_space<vmem>>, %arg2: memref<256x32xbf16, #tpu.memory_space<vmem>>, %arg3: memref<256x32xbf16, #tpu.memory_space<vmem>>, %arg4: memref<32x64xbf16, #tpu.memory_space<vmem>>, %arg5: memref<32x64xbf16, #tpu.memory_space<vmem>>, %arg6: memref<32x64xbf16, #tpu.memory_space<vmem>>, %arg7: memref<1x64xf32, #tpu.memory_space<vmem>>, %arg8: memref<256x64xf32, #tpu.memory_space<vmem>>) attributes {dimension_semantics = [#tpu.dimension_semantics<parallel>], iteration_bounds = array<i64: 2>, scalar_prefetch = 0 : i64, scratch_operands = 0 : i64, tpu.core_type = #tpu.core_type<tc>, window_params = [{transform_indices = @transform_0, window_bounds = array<i64: 256, 32>}, {transform_indices = @transform_1, window_bounds = array<i64: 256, 32>}, {transform_indices = @transform_2, window_bounds = array<i64: 256, 32>}, {pipeline_mode = #tpu.pipeline_mode<synchronous>, transform_indices = @transform_3, window_bounds = array<i64: 32, 64>}, {pipeline_mode = #tpu.pipeline_mode<synchronous>, transform_indices = @transform_4, window_bounds = array<i64: 32, 64>}, {pipeline_mode = #tpu.pipeline_mode<synchronous>, transform_indices = @transform_5, window_bounds = array<i64: 32, 64>}, {pipeline_mode = #tpu.pipeline_mode<synchronous>, transform_indices = @transform_6, window_bounds = array<i64: 1, 64>}, {transform_indices = @transform_7, window_bounds = array<i64: 256, 64>}]} {
    %cst = arith.constant 0.000000e+00 : f32
    %0 = vector.broadcast %cst : f32 to vector<256x64xf32>
    %c0 = arith.constant 0 : index
    %c0_0 = arith.constant 0 : index
    %1 = vector.load %arg1[%c0, %c0_0] : memref<256x32xbf16, #tpu.memory_space<vmem>>, vector<256x32xbf16>
    %c0_1 = arith.constant 0 : index
    %c0_2 = arith.constant 0 : index
    %2 = vector.load %arg4[%c0_1, %c0_2] : memref<32x64xbf16, #tpu.memory_space<vmem>>, vector<32x64xbf16>
    %cst_3 = arith.constant dense<0.000000e+00> : vector<256x64xf32>
    %3 = tpu.matmul %1, %2, %cst_3 {dimension_numbers = #tpu.dot_dimension_numbers<[1], [0], [0], [1], [0, 0, 1, 1], [], []>} : vector<256x32xbf16>, vector<32x64xbf16>, vector<256x64xf32> -> vector<256x64xf32>
    %4 = arith.addf %0, %3 : vector<256x64xf32>
    %c0_4 = arith.constant 0 : index
    %c0_5 = arith.constant 0 : index
    %5 = vector.load %arg2[%c0_4, %c0_5] : memref<256x32xbf16, #tpu.memory_space<vmem>>, vector<256x32xbf16>
    %c0_6 = arith.constant 0 : index
    %c0_7 = arith.constant 0 : index
    %6 = vector.load %arg5[%c0_6, %c0_7] : memref<32x64xbf16, #tpu.memory_space<vmem>>, vector<32x64xbf16>
    %cst_8 = arith.constant dense<0.000000e+00> : vector<256x64xf32>
    %7 = tpu.matmul %5, %6, %cst_8 {dimension_numbers = #tpu.dot_dimension_numbers<[1], [0], [0], [1], [0, 0, 1, 1], [], []>} : vector<256x32xbf16>, vector<32x64xbf16>, vector<256x64xf32> -> vector<256x64xf32>
    %8 = arith.addf %4, %7 : vector<256x64xf32>
    %c0_9 = arith.constant 0 : index
    %c0_10 = arith.constant 0 : index
    %9 = vector.load %arg3[%c0_9, %c0_10] : memref<256x32xbf16, #tpu.memory_space<vmem>>, vector<256x32xbf16>
    %c0_11 = arith.constant 0 : index
    %c0_12 = arith.constant 0 : index
    %10 = vector.load %arg6[%c0_11, %c0_12] : memref<32x64xbf16, #tpu.memory_space<vmem>>, vector<32x64xbf16>
    %cst_13 = arith.constant dense<0.000000e+00> : vector<256x64xf32>
    %11 = tpu.matmul %9, %10, %cst_13 {dimension_numbers = #tpu.dot_dimension_numbers<[1], [0], [0], [1], [0, 0, 1, 1], [], []>} : vector<256x32xbf16>, vector<32x64xbf16>, vector<256x64xf32> -> vector<256x64xf32>
    %12 = arith.addf %8, %11 : vector<256x64xf32>
    %c0_14 = arith.constant 0 : index
    %c0_15 = arith.constant 0 : index
    %13 = vector.load %arg7[%c0_14, %c0_15] : memref<1x64xf32, #tpu.memory_space<vmem>>, vector<1x64xf32>
    %14 = vector.broadcast %13 : vector<1x64xf32> to vector<256x64xf32>
    %15 = arith.addf %12, %14 : vector<256x64xf32>
    %cst_16 = arith.constant 0.000000e+00 : f32
    %16 = vector.broadcast %cst_16 : f32 to vector<256x64xf32>
    %17 = arith.subf %16, %15 : vector<256x64xf32>
    %18 = math.exp %17 : vector<256x64xf32>
    %cst_17 = arith.constant 1.000000e+00 : f32
    %19 = vector.broadcast %cst_17 : f32 to vector<256x64xf32>
    %20 = arith.addf %19, %18 : vector<256x64xf32>
    %21 = tpu.reciprocal %20 {approx = true} : vector<256x64xf32> -> vector<256x64xf32>
    %22 = arith.mulf %15, %21 : vector<256x64xf32>
    %c0_18 = arith.constant 0 : index
    %c0_19 = arith.constant 0 : index
    %23 = vector.load %arg8[%c0_18, %c0_19] : memref<256x64xf32, #tpu.memory_space<vmem>>, vector<256x64xf32>
    tpu.vector_store %arg8[%c0_18, %c0_19], %22 {strides = array<i32>} : memref<256x64xf32, #tpu.memory_space<vmem>>, vector<256x64xf32>,
    return
  }
  func.func @transform_0(%arg0: i32) -> (i32, i32) {
    %c0_i32 = arith.constant 0 : i32
    %c0_i32_0 = arith.constant 0 : i32
    return %arg0, %c0_i32 : i32, i32
  }
  func.func @transform_1(%arg0: i32) -> (i32, i32) {
    %c0_i32 = arith.constant 0 : i32
    %c0_i32_0 = arith.constant 0 : i32
    return %arg0, %c0_i32 : i32, i32
  }
  func.func @transform_2(%arg0: i32) -> (i32, i32) {
    %c0_i32 = arith.constant 0 : i32
    %c0_i32_0 = arith.constant 0 : i32
    return %arg0, %c0_i32 : i32, i32
  }
  func.func @transform_3(%arg0: i32) -> (i32, i32) {
    %c0_i32 = arith.constant 0 : i32
    %c0_i32_0 = arith.constant 0 : i32
    %c0_i32_1 = arith.constant 0 : i32
    return %c0_i32, %c0_i32_0 : i32, i32
  }
  func.func @transform_4(%arg0: i32) -> (i32, i32) {
    %c0_i32 = arith.constant 0 : i32
    %c0_i32_0 = arith.constant 0 : i32
    %c0_i32_1 = arith.constant 0 : i32
    return %c0_i32, %c0_i32_0 : i32, i32
  }
  func.func @transform_5(%arg0: i32) -> (i32, i32) {
    %c0_i32 = arith.constant 0 : i32
    %c0_i32_0 = arith.constant 0 : i32
    %c0_i32_1 = arith.constant 0 : i32
    return %c0_i32, %c0_i32_0 : i32, i32
  }
  func.func @transform_6(%arg0: i32) -> (i32, i32) {
    %c0_i32 = arith.constant 0 : i32
    %c0_i32_0 = arith.constant 0 : i32
    %c0_i32_1 = arith.constant 0 : i32
    return %c0_i32, %c0_i32_0 : i32, i32
  }
  func.func @transform_7(%arg0: i32) -> (i32, i32) {
    %c0_i32 = arith.constant 0 : i32
    %c0_i32_0 = arith.constant 0 : i32
    return %arg0, %c0_i32 : i32, i32
  }
}

</mosaic_0001>

<llo_original>
// kernel: csp_stage_forward.6
$region0: #{csp_stage_forward.6}
  #allocation0 [shape = 'u32[]', space=smem, size = 0x4, offset = 0x4, fixed_abs, tag = 'smem constant byte address 0x4 - core index']
  #allocation1 [shape = 'u32[144,128]{1,0:T(1,128)}', space=vmem, size = 0x12000, scoped, tag = 'internal scratch']
  %s0 = inlined_call_operand.vmem [shape: bf16[512,32], index: 0, kind: input, shape index: {}]
  %s1 = inlined_call_operand.vmem [shape: bf16[32,64], index: 1, kind: input, shape index: {}]
  %s2 = inlined_call_operand.vmem [shape: f32[1,64], index: 2, kind: input, shape index: {}]
  %s3 = inlined_call_operand.vmem [shape: bf16[512,64], index: 3, kind: output, shape index: {}]
  %s4 = sld [smem:[#allocation0]]
  $region45: #{csp_stage_forward.6} parent=0
    _
  %s6 = ssub.s32 1, %s4
  %s7 = scalar_select 0, %s6, %s4
  loop: start=0, step=1, limit=4
  $region2: #{csp_stage_forward.6} parent=0 // loop_pre_header
    _
  $region3: #{csp_stage_forward.6} parent=0 // loop_header
    %s9 = sphi 0, %s13
    %p10 = scmp.ge.s32.totalorder %s9, 4
    %s19 = sphi 0, %s21
    %s22 = sphi 0, %s19
    %s23 = sphi 0, %s22
    %s39 = sphi 0, %s23
    %s43 = sphi 0, %s43
    %s45 = sphi 0, %s43
    %s46 = sphi 0, %s45
    %s60 = sphi 0, %s46
    %s64 = sphi 0, %s64
    %s66 = sphi 0, %s64
    %s67 = sphi 0, %s66
    %s81 = sphi 0, %s67
    %s87 = sphi 0, %s89
    %s90 = sphi 0, %s87
    %s91 = sphi 0, %s90
    %s107 = sphi 0, %s91
  $region4: #{csp_stage_forward.6} parent=0 // loop_header_branch
    %12 = sbr.rel (%p10) target = $region8
  $region5: #{csp_stage_forward.6} parent=0 // loop_body
    %s14 = ssub.s32 %s9, 1
    %s15 = ssub.s32 %s9, 2
    %s16 = sadd.s32 %s9, 1
    %s17 = ssub.s32 %s9, %s16
    %p18 = scmp.eq.s32.totalorder %s17, 0
    %s20 = sadd.s32 %s19, 1
    %s21 = scalar_select %p18, %s19, %s20
    %p24 = pneg %p18
    %p25 = scmp.eq.s32.totalorder %s9, 1
    %p26 = por %p24, %p25
    %p27 = scmp.ne.s32.totalorder %s19, %s22
    %p28 = scmp.eq.s32.totalorder %s9, 0
    %p29 = por %p27, %p28
    %p30 = scmp.ne.s32.totalorder %s19, %s22
    %p31 = scmp.eq.s32.totalorder %s14, 1
    %p32 = por %p30, %p31
    %p33 = scmp.ne.s32.totalorder %s22, %s23
    %p34 = scmp.eq.s32.totalorder %s14, 0
    %p35 = por %p33, %p34
    %p36 = scmp.ne.s32.totalorder %s22, %s23
    %p37 = scmp.eq.s32.totalorder %s15, 1
    %p38 = por %p36, %p37
    %p40 = scmp.ne.s32.totalorder %s23, %s39
    %p41 = scmp.eq.s32.totalorder %s15, 0
    %p42 = por %p40, %p41
    %s44 = sadd.s32 %s43, 1
    %p47 = scmp.eq.s32.totalorder %s9, 1
    %p48 = scmp.ne.s32.totalorder %s43, %s45
    %p49 = scmp.eq.s32.totalorder %s9, 0
    %p50 = por %p48, %p49
    %p51 = scmp.ne.s32.totalorder %s43, %s45
    %p52 = scmp.eq.s32.totalorder %s14, 1
    %p53 = por %p51, %p52
    %p54 = scmp.ne.s32.totalorder %s45, %s46
    %p55 = scmp.eq.s32.totalorder %s14, 0
    %p56 = por %p54, %p55
    %p57 = scmp.ne.s32.totalorder %s45, %s46
    %p58 = scmp.eq.s32.totalorder %s15, 1
    %p59 = por %p57, %p58
    %p61 = scmp.ne.s32.totalorder %s46, %s60
    %p62 = scmp.eq.s32.totalorder %s15, 0
    %p63 = por %p61, %p62
    %s65 = sadd.s32 %s64, 1
    %p68 = scmp.eq.s32.totalorder %s9, 1
    %p69 = scmp.ne.s32.totalorder %s64, %s66
    %p70 = scmp.eq.s32.totalorder %s9, 0
    %p71 = por %p69, %p70
    %p72 = scmp.ne.s32.totalorder %s64, %s66
    %p73 = scmp.eq.s32.totalorder %s14, 1
    %p74 = por %p72, %p73
    %p75 = scmp.ne.s32.totalorder %s66, %s67
    %p76 = scmp.eq.s32.totalorder %s14, 0
    %p77 = por %p75, %p76
    %p78 = scmp.ne.s32.totalorder %s66, %s67
    %p79 = scmp.eq.s32.totalorder %s15, 1
    %p80 = por %p78, %p79
    %p82 = scmp.ne.s32.totalorder %s67, %s81
    %p83 = scmp.eq.s32.totalorder %s15, 0
    %p84 = por %p82, %p83
    %s85 = ssub.s32 %s9, %s16
    %p86 = scmp.eq.s32.totalorder %s85, 0
    %s88 = sadd.s32 %s87, 1
    %s89 = scalar_select %p86, %s87, %s88
    %p92 = pneg %p86
    %p93 = scmp.eq.s32.totalorder %s9, 1
    %p94 = por %p92, %p93
    %p95 = scmp.ne.s32.totalorder %s87, %s90
    %p96 = scmp.eq.s32.totalorder %s9, 0
    %p97 = por %p95, %p96
    %p98 = scmp.ne.s32.totalorder %s87, %s90
    %p99 = scmp.eq.s32.totalorder %s14, 1
    %p100 = por %p98, %p99
    %p101 = scmp.ne.s32.totalorder %s90, %s91
    %p102 = scmp.eq.s32.totalorder %s14, 0
    %p103 = por %p101, %p102
    %p104 = scmp.ne.s32.totalorder %s90, %s91
    %p105 = scmp.eq.s32.totalorder %s15, 1
    %p106 = por %p104, %p105
    %p108 = scmp.ne.s32.totalorder %s91, %s107
    %p109 = scmp.eq.s32.totalorder %s15, 0
    %p110 = por %p108, %p109
    %p111 = scmp.le.s32.totalorder 1, %s9
    %p112 = scmp.lt.s32.totalorder %s9, 3
    %p113 = pnand %p111, %p112
    %p114 = pneg %p113
    // Predicated region
    $region9: #{csp_stage_forward.6} parent=5 // pred_check
      _
    $region10: #{csp_stage_forward.6} parent=5 // pred_check_branch
      %116 = sbr.rel (%p113) target = $region12
    $region11: #{csp_stage_forward.6} parent=5 // pred_region
      %s117 = ssub.s32 %s9, 1
      // Predicated region
      $region13: #{csp_stage_forward.6} parent=11 // pred_check
        %p118 = pneg %p56
      $region14: #{csp_stage_forward.6} parent=11 // pred_check_branch
        %120 = sbr.rel (%p118) target = $region16
      $region15: #{csp_stage_forward.6} parent=11 // pred_region
        _
      $region16: #{csp_stage_forward.6} parent=11 // pred_fallthru
        _
      // Predicated region
      $region17: #{csp_stage_forward.6} parent=11 // pred_check
        %p121 = pneg %p77
      $region18: #{csp_stage_forward.6} parent=11 // pred_check_branch
        %123 = sbr.rel (%p121) target = $region20
      $region19: #{csp_stage_forward.6} parent=11 // pred_region
        _
      $region20: #{csp_stage_forward.6} parent=11 // pred_fallthru
        _
    $region12: #{csp_stage_forward.6} parent=5 // pred_fallthru
      _
    %p124 = scmp.lt.s32.totalorder %s9, 2
    // Predicated region
    $region21: #{csp_stage_forward.6} parent=5 // pred_check
      %p125 = pneg %p124
    $region22: #{csp_stage_forward.6} parent=5 // pred_check_branch
      %127 = sbr.rel (%p125) target = $region24
    $region23: #{csp_stage_forward.6} parent=5 // pred_region
      // Predicated region
      $region25: #{csp_stage_forward.6} parent=23 // pred_check
        %p128 = pneg %p29
      $region26: #{csp_stage_forward.6} parent=23 // pred_check_branch
        %130 = sbr.rel (%p128) target = $region28
      $region27: #{csp_stage_forward.6} parent=23 // pred_region
        %s131 = smul.u32 32, %s9
        %p132 = scmp.lt.s32.totalorder %s131, 63
        %s133 = scalar_select %p132, %s131, 63
        %s134 = smul.addr %s133, 4
        %s135 = scalar_lea.vmem %s0, %s134
        %s136 = smul.u32 32, %s9
      $region28: #{csp_stage_forward.6} parent=23 // pred_fallthru
        _
    $region24: #{csp_stage_forward.6} parent=5 // pred_fallthru
      _
    %p137 = scmp.le.s32.totalorder 1, %s9
    %p138 = scmp.lt.s32.totalorder %s9, 3
    %p139 = pnand %p137, %p138
    %p140 = pneg %p139
    // Predicated region
    $region29: #{csp_stage_forward.6} parent=5 // pred_check
      _
    $region30: #{csp_stage_forward.6} parent=5 // pred_check_branch
      %142 = sbr.rel (%p139) target = $region32
    $region31: #{csp_stage_forward.6} parent=5 // pred_region
      %s143 = ssub.s32 %s9, 1
      %s144 = smul.u32 32, %s14
      %p145 = scmp.lt.s32.totalorder %s144, 63
      %s146 = scalar_select %p145, %s144, 63
      %s147 = smul.addr %s146, 4
      %s148 = scalar_lea.vmem %s0, %s147
      %p149 = pneg %p35
      %p150 = pneg %p32
      %p151 = pneg %p56
      %p152 = pneg %p53
      %p153 = pneg %p77
      %p154 = pneg %p74
      %p155 = pneg %p103
      %p156 = pneg %p100
      %s157 = smul.u32 32, %s14
      %p158 = scmp.lt.s32.totalorder %s157, 63
      %s159 = scalar_select %p158, %s157, 63
      %s160 = smul.addr %s159, 4
      %s161 = scalar_lea.vmem %s3, %s160
      %s162 = smul.u32 32, %s14
      %p163 = scmp.lt.s32.totalorder %s162, 63
      %s164 = scalar_select %p163, %s162, 63
      %s165 = smul.addr %s164, 4
      %s166 = scalar_lea.vmem %s0, %s165
      %s167 = smul.u32 32, %s14
      %s168 = smul.u32 32, %s14
      %p169 = scmp.lt.s32.totalorder %s168, 63
      %s170 = scalar_select %p169, %s168, 63
      %s171 = smul.addr %s170, 4
      %s172 = scalar_lea.vmem %s3, %s171
      %s173 = smul.u32 32, %s14
      %v175 = vld [vmem:[%s166] sm:$0xf]
      %v176 = vld [vmem:[%s166 + $0x4] sm:$0xf]
      %v177 = vld [vmem:[%s166 + $0x8] sm:$0xf]
      %v178 = vld [vmem:[%s166 + $0xc] sm:$0xf]
      %v179 = vld [vmem:[%s166 + $0x10] sm:$0xf]
      %v180 = vld [vmem:[%s166 + $0x14] sm:$0xf]
      %v181 = vld [vmem:[%s166 + $0x18] sm:$0xf]
      %v182 = vld [vmem:[%s166 + $0x1c] sm:$0xf]
      %v183 = vld [vmem:[%s166 + $0x20] sm:$0xf]
      %v184 = vld [vmem:[%s166 + $0x24] sm:$0xf]
      %v185 = vld [vmem:[%s166 + $0x28] sm:$0xf]
      %v186 = vld [vmem:[%s166 + $0x2c] sm:$0xf]
      %v187 = vld [vmem:[%s166 + $0x30] sm:$0xf]
      %v188 = vld [vmem:[%s166 + $0x34] sm:$0xf]
      %v189 = vld [vmem:[%s166 + $0x38] sm:$0xf]
      %v190 = vld [vmem:[%s166 + $0x3c] sm:$0xf]
      %v191 = vld [vmem:[%s166 + $0x40] sm:$0xf]
      %v192 = vld [vmem:[%s166 + $0x44] sm:$0xf]
      %v193 = vld [vmem:[%s166 + $0x48] sm:$0xf]
      %v194 = vld [vmem:[%s166 + $0x4c] sm:$0xf]
      %v195 = vld [vmem:[%s166 + $0x50] sm:$0xf]
      %v196 = vld [vmem:[%s166 + $0x54] sm:$0xf]
      %v197 = vld [vmem:[%s166 + $0x58] sm:$0xf]
      %v198 = vld [vmem:[%s166 + $0x5c] sm:$0xf]
      %v199 = vld [vmem:[%s166 + $0x60] sm:$0xf]
      %v200 = vld [vmem:[%s166 + $0x64] sm:$0xf]
      %v201 = vld [vmem:[%s166 + $0x68] sm:$0xf]
      %v202 = vld [vmem:[%s166 + $0x6c] sm:$0xf]
      %v203 = vld [vmem:[%s166 + $0x70] sm:$0xf]
      %v204 = vld [vmem:[%s166 + $0x74] sm:$0xf]
      %v205 = vld [vmem:[%s166 + $0x78] sm:$0xf]
      %v206 = vld [vmem:[%s166 + $0x7c] sm:$0xf]
      %v207 = vld [vmem:[%s1] sm:$0xf]
      %v208 = vld [vmem:[%s1 + $0x4] sm:$0xf]
      %v209 = vld [vmem:[%s1 + $0x8] sm:$0xf]
      %v210 = vld [vmem:[%s1 + $0xc] sm:$0xf]
      %v211 = vld [vmem:[%s2] sm:$0x1]
      %v213 = vlaneseq
      %v214 = vshrl.u32 %v213, 7
      %v215 = vsub.s32 0, %v214
      %v216 = vrot.slane %v211, %v215
      %v250 = vunpack.c.l.b16 %v175
      %v251 = vunpack.c.l.b16 %v176
      %v252 = vunpack.c.l.b16 %v177
      %v253 = vunpack.c.l.b16 %v178
      %v254 = vunpack.c.l.b16 %v179
      %v255 = vunpack.c.l.b16 %v180
      %v256 = vunpack.c.l.b16 %v181
      %v257 = vunpack.c.l.b16 %v182
      %v258 = vunpack.c.l.b16 %v183
      %v259 = vunpack.c.l.b16 %v184
      %v260 = vunpack.c.l.b16 %v185
      %v261 = vunpack.c.l.b16 %v186
      %v262 = vunpack.c.l.b16 %v187
      %v263 = vunpack.c.l.b16 %v188
      %v264 = vunpack.c.l.b16 %v189
      %v265 = vunpack.c.l.b16 %v190
      %v266 = vunpack.c.l.b16 %v191
      %v267 = vunpack.c.l.b16 %v192
      %v268 = vunpack.c.l.b16 %v193
      %v269 = vunpack.c.l.b16 %v194
      %v270 = vunpack.c.l.b16 %v195
      %v271 = vunpack.c.l.b16 %v196
      %v272 = vunpack.c.l.b16 %v197
      %v273 = vunpack.c.l.b16 %v198
      %v274 = vunpack.c.l.b16 %v199
      %v275 = vunpack.c.l.b16 %v200
      %v276 = vunpack.c.l.b16 %v201
      %v277 = vunpack.c.l.b16 %v202
      %v278 = vunpack.c.l.b16 %v203
      %v279 = vunpack.c.l.b16 %v204
      %v280 = vunpack.c.l.b16 %v205
      %v281 = vunpack.c.l.b16 %v206
      %v282 = vpack.c.b16 %v251, %v250
      %v283 = vpack.c.b16 %v253, %v252
      %v284 = vpack.c.b16 %v255, %v254
      %v285 = vpack.c.b16 %v257, %v256
      %v286 = vpack.c.b16 %v259, %v258
      %v287 = vpack.c.b16 %v261, %v260
      %v288 = vpack.c.b16 %v263, %v262
      %v289 = vpack.c.b16 %v265, %v264
      %v290 = vpack.c.b16 %v267, %v266
      %v291 = vpack.c.b16 %v269, %v268
      %v292 = vpack.c.b16 %v271, %v270
      %v293 = vpack.c.b16 %v273, %v272
      %v294 = vpack.c.b16 %v275, %v274
      %v295 = vpack.c.b16 %v277, %v276
      %v296 = vpack.c.b16 %v279, %v278
      %v297 = vpack.c.b16 %v281, %v280
      %v302 = vunpack.c.l.b16 %v207
      %v303 = vunpack.c.l.b16 %v208
      %v304 = vunpack.c.l.b16 %v209
      %v305 = vunpack.c.l.b16 %v210
      %v306 = vpack.c.b16 %v303, %v302
      %v307 = vpack.c.b16 %v305, %v304
      %vm310 = vcmask 261120
      %v312 = vsel %vm310, %v282, 0
      %v315 = vsel %vm310, %v283, 0
      %v318 = vsel %vm310, %v284, 0
      %v321 = vsel %vm310, %v285, 0
      %v324 = vsel %vm310, %v286, 0
      %v327 = vsel %vm310, %v287, 0
      %v330 = vsel %vm310, %v288, 0
      %v333 = vsel %vm310, %v289, 0
      %v336 = vsel %vm310, %v290, 0
      %v339 = vsel %vm310, %v291, 0
      %v342 = vsel %vm310, %v292, 0
      %v345 = vsel %vm310, %v293, 0
      %v348 = vsel %vm310, %v294, 0
      %v351 = vsel %vm310, %v295, 0
      %v354 = vsel %vm310, %v296, 0
      %v357 = vsel %vm310, %v297, 0
      %359 = vmatprep.subr.bf16.mxu0 0
      %360 = vmatpush1.bf16.msra.mxu0 0
      %361 = vmatprep.subr.bf16.mxu0 0
      %362 = vmatpush1.bf16.msra.mxu0 0
      %363 = vmatprep.subr.bf16.mxu0 0
      %364 = vmatpush1.bf16.msra.mxu0 0
      %365 = vmatprep.subr.bf16.mxu0 0
      %366 = vmatpush1.bf16.msra.mxu0 0
      %367 = vmatprep.subr.bf16.mxu0 0
      %368 = vmatpush1.bf16.msra.mxu0 0
      %369 = vmatprep.subr.bf16.mxu0 0
      %370 = vmatpush1.bf16.msra.mxu0 0
      %371 = vmatprep.subr.bf16.mxu0 0
      %372 = vmatpush1.bf16.msra.mxu0 %v307
      %373 = vmatprep.subr.bf16.mxu0 0
      %374 = vmatpush1.bf16.msra.mxu0 %v306
      %375 = vmatprep.subr.bf16.mxu0 0
      %376 = vmatpush2.bf16.msra.mxu0 0
      %377 = vmatprep.subr.bf16.mxu0 0
      %378 = vmatpush2.bf16.msra.mxu0 0
      %379 = vmatprep.subr.bf16.mxu0 0
      %380 = vmatpush2.bf16.msra.mxu0 0
      %381 = vmatprep.subr.bf16.mxu0 0
      %382 = vmatpush2.bf16.msra.mxu0 0
      %383 = vmatprep.subr.bf16.mxu0 0
      %384 = vmatpush2.bf16.msra.mxu0 0
      %385 = vmatprep.subr.bf16.mxu0 0
      %386 = vmatpush2.bf16.msra.mxu0 0
      %387 = vmatprep.subr.bf16.mxu0 0
      %388 = vmatpush2.bf16.msra.mxu0 0
      %389 = vmatprep.subr.bf16.mxu0 0
      %390 = vmatpush2.bf16.msra.mxu0 0
      %391 = vmatprep.mubr.bf16.mxu0 0
      %392 = vmatmul.mubr.bf16.gmra.mxu0 %v312
      %v393 = vpop.f32.mrf.mxu0
      %v394 = vadd.f32 %v216, %v393
      %v395 = vpop.f32.mrf.mxu0
      %v396 = vpop.f32.mrf.mxu0
      %v397 = vadd.f32 %v216, %v396
      %v398 = vpop.f32.mrf.mxu0
      %399 = vmatprep.mubr.bf16.mxu0 0
      %400 = vmatmul.mubr.bf16.gmra.mxu0 %v315
      %v401 = vpop.f32.mrf.mxu0
      %v402 = vadd.f32 %v216, %v401
      %v403 = vpop.f32.mrf.mxu0
      %v404 = vpop.f32.mrf.mxu0
      %v405 = vadd.f32 %v216, %v404
      %v406 = vpop.f32.mrf.mxu0
      %407 = vmatprep.mubr.bf16.mxu0 0
      %408 = vmatmul.mubr.bf16.gmra.mxu0 %v318
      %v409 = vpop.f32.mrf.mxu0
      %v410 = vadd.f32 %v216, %v409
      %v411 = vpop.f32.mrf.mxu0
      %v412 = vpop.f32.mrf.mxu0
      %v413 = vadd.f32 %v216, %v412
      %v414 = vpop.f32.mrf.mxu0
      %415 = vmatprep.mubr.bf16.mxu0 0
      %416 = vmatmul.mubr.bf16.gmra.mxu0 %v321
      %v417 = vpop.f32.mrf.mxu0
      %v418 = vadd.f32 %v216, %v417
      %v419 = vpop.f32.mrf.mxu0
      %v420 = vpop.f32.mrf.mxu0
      %v421 = vadd.f32 %v216, %v420
      %v422 = vpop.f32.mrf.mxu0
      %423 = vmatprep.mubr.bf16.mxu0 0
      %424 = vmatmul.mubr.bf16.gmra.mxu0 %v324
      %v425 = vpop.f32.mrf.mxu0
      %v426 = vadd.f32 %v216, %v425
      %v427 = vpop.f32.mrf.mxu0
      %v428 = vpop.f32.mrf.mxu0
      %v429 = vadd.f32 %v216, %v428
      %v430 = vpop.f32.mrf.mxu0
      %431 = vmatprep.mubr.bf16.mxu0 0
      %432 = vmatmul.mubr.bf16.gmra.mxu0 %v327
      %v433 = vpop.f32.mrf.mxu0
      %v434 = vadd.f32 %v216, %v433
      %v435 = vpop.f32.mrf.mxu0
      %v436 = vpop.f32.mrf.mxu0
      %v437 = vadd.f32 %v216, %v436
      %v438 = vpop.f32.mrf.mxu0
      %439 = vmatprep.mubr.bf16.mxu0 0
      %440 = vmatmul.mubr.bf16.gmra.mxu0 %v330
      %v441 = vpop.f32.mrf.mxu0
      %v442 = vadd.f32 %v216, %v441
      %v443 = vpop.f32.mrf.mxu0
      %v444 = vpop.f32.mrf.mxu0
      %v445 = vadd.f32 %v216, %v444
      %v446 = vpop.f32.mrf.mxu0
      %447 = vmatprep.mubr.bf16.mxu0 0
      %448 = vmatmul.mubr.bf16.gmra.mxu0 %v333
      %v449 = vpop.f32.mrf.mxu0
      %v450 = vadd.f32 %v216, %v449
      %v451 = vpop.f32.mrf.mxu0
      %v452 = vpop.f32.mrf.mxu0
      %v453 = vadd.f32 %v216, %v452
      %v454 = vpop.f32.mrf.mxu0
      %455 = vmatprep.mubr.bf16.mxu0 0
      %456 = vmatmul.mubr.bf16.gmra.mxu0 %v336
      %v457 = vpop.f32.mrf.mxu0
      %v458 = vadd.f32 %v216, %v457
      %v459 = vpop.f32.mrf.mxu0
      %v460 = vpop.f32.mrf.mxu0
      %v461 = vadd.f32 %v216, %v460
      %v462 = vpop.f32.mrf.mxu0
      %463 = vmatprep.mubr.bf16.mxu0 0
      %464 = vmatmul.mubr.bf16.gmra.mxu0 %v339
      %v465 = vpop.f32.mrf.mxu0
      %v466 = vadd.f32 %v216, %v465
      %v467 = vpop.f32.mrf.mxu0
      %v468 = vpop.f32.mrf.mxu0
      %v469 = vadd.f32 %v216, %v468
      %v470 = vpop.f32.mrf.mxu0
      %471 = vmatprep.mubr.bf16.mxu0 0
      %472 = vmatmul.mubr.bf16.gmra.mxu0 %v342
      %v473 = vpop.f32.mrf.mxu0
      %v474 = vadd.f32 %v216, %v473
      %v475 = vpop.f32.mrf.mxu0
      %v476 = vpop.f32.mrf.mxu0
      %v477 = vadd.f32 %v216, %v476
      %v478 = vpop.f32.mrf.mxu0
      %479 = vmatprep.mubr.bf16.mxu0 0
      %480 = vmatmul.mubr.bf16.gmra.mxu0 %v345
      %v481 = vpop.f32.mrf.mxu0
      %v482 = vadd.f32 %v216, %v481
      %v483 = vpop.f32.mrf.mxu0
      %v484 = vpop.f32.mrf.mxu0
      %v485 = vadd.f32 %v216, %v484
      %v486 = vpop.f32.mrf.mxu0
      %487 = vmatprep.mubr.bf16.mxu0 0
      %488 = vmatmul.mubr.bf16.gmra.mxu0 %v348
      %v489 = vpop.f32.mrf.mxu0
      %v490 = vadd.f32 %v216, %v489
      %v491 = vpop.f32.mrf.mxu0
      %v492 = vpop.f32.mrf.mxu0
      %v493 = vadd.f32 %v216, %v492
      %v494 = vpop.f32.mrf.mxu0
      %495 = vmatprep.mubr.bf16.mxu0 0
      %496 = vmatmul.mubr.bf16.gmra.mxu0 %v351
      %v497 = vpop.f32.mrf.mxu0
      %v498 = vadd.f32 %v216, %v497
      %v499 = vpop.f32.mrf.mxu0
      %v500 = vpop.f32.mrf.mxu0
      %v501 = vadd.f32 %v216, %v500
      %v502 = vpop.f32.mrf.mxu0
      %503 = vmatprep.mubr.bf16.mxu0 0
      %504 = vmatmul.mubr.bf16.gmra.mxu0 %v354
      %v505 = vpop.f32.mrf.mxu0
      %v506 = vadd.f32 %v216, %v505
      %v507 = vpop.f32.mrf.mxu0
      %v508 = vpop.f32.mrf.mxu0
      %v509 = vadd.f32 %v216, %v508
      %v510 = vpop.f32.mrf.mxu0
      %511 = vmatprep.mubr.bf16.mxu0 0
      %512 = vmatmul.mubr.bf16.gmra.mxu0 %v357
      %v513 = vpop.f32.mrf.mxu0
      %v514 = vadd.f32 %v216, %v513
      %v515 = vpop.f32.mrf.mxu0
      %v516 = vpop.f32.mrf.mxu0
      %v517 = vadd.f32 %v216, %v516
      %v518 = vpop.f32.mrf.mxu0
      %519 = vdwg.mxu0
      %v520 = vsub.f32 0.0, %v394
      %v521 = vsub.f32 0.0, %v397
      %v522 = vsub.f32 0.0, %v402
      %v523 = vsub.f32 0.0, %v405
      %v524 = vsub.f32 0.0, %v410
      %v525 = vsub.f32 0.0, %v413
      %v526 = vsub.f32 0.0, %v418
      %v527 = vsub.f32 0.0, %v421
      %v528 = vsub.f32 0.0, %v426
      %v529 = vsub.f32 0.0, %v429
      %v530 = vsub.f32 0.0, %v434
      %v531 = vsub.f32 0.0, %v437
      %v532 = vsub.f32 0.0, %v442
      %v533 = vsub.f32 0.0, %v445
      %v534 = vsub.f32 0.0, %v450
      %v535 = vsub.f32 0.0, %v453
      %v536 = vsub.f32 0.0, %v458
      %v537 = vsub.f32 0.0, %v461
      %v538 = vsub.f32 0.0, %v466
      %v539 = vsub.f32 0.0, %v469
      %v540 = vsub.f32 0.0, %v474
      %v541 = vsub.f32 0.0, %v477
      %v542 = vsub.f32 0.0, %v482
      %v543 = vsub.f32 0.0, %v485
      %v544 = vsub.f32 0.0, %v490
      %v545 = vsub.f32 0.0, %v493
      %v546 = vsub.f32 0.0, %v498
      %v547 = vsub.f32 0.0, %v501
      %v548 = vsub.f32 0.0, %v506
      %v549 = vsub.f32 0.0, %v509
      %v550 = vsub.f32 0.0, %v514
      %v551 = vsub.f32 0.0, %v517
      %v552 = vmul.f32 %v520, 1.442695
      %v553 = vpow.pop %v552
      %v554 = vmul.f32 %v521, 1.442695
      %v555 = vpow.pop %v554
      %v556 = vmul.f32 %v522, 1.442695
      %v557 = vpow.pop %v556
      %v558 = vmul.f32 %v523, 1.442695
      %v559 = vpow.pop %v558
      %v560 = vmul.f32 %v524, 1.442695
      %v561 = vpow.pop %v560
      %v562 = vmul.f32 %v525, 1.442695
      %v563 = vpow.pop %v562
      %v564 = vmul.f32 %v526, 1.442695
      %v565 = vpow.pop %v564
      %v566 = vmul.f32 %v527, 1.442695
      %v567 = vpow.pop %v566
      %v568 = vmul.f32 %v528, 1.442695
      %v569 = vpow.pop %v568
      %v570 = vmul.f32 %v529, 1.442695
      %v571 = vpow.pop %v570
      %v572 = vmul.f32 %v530, 1.442695
      %v573 = vpow.pop %v572
      %v574 = vmul.f32 %v531, 1.442695
      %v575 = vpow.pop %v574
      %v576 = vmul.f32 %v532, 1.442695
      %v577 = vpow.pop %v576
      %v578 = vmul.f32 %v533, 1.442695
      %v579 = vpow.pop %v578
      %v580 = vmul.f32 %v534, 1.442695
      %v581 = vpow.pop %v580
      %v582 = vmul.f32 %v535, 1.442695
      %v583 = vpow.pop %v582
      %v584 = vmul.f32 %v536, 1.442695
      %v585 = vpow.pop %v584
      %v586 = vmul.f32 %v537, 1.442695
      %v587 = vpow.pop %v586
      %v588 = vmul.f32 %v538, 1.442695
      %v589 = vpow.pop %v588
      %v590 = vmul.f32 %v539, 1.442695
      %v591 = vpow.pop %v590
      %v592 = vmul.f32 %v540, 1.442695
      %v593 = vpow.pop %v592
      %v594 = vmul.f32 %v541, 1.442695
      %v595 = vpow.pop %v594
      %v596 = vmul.f32 %v542, 1.442695
      %v597 = vpow.pop %v596
      %v598 = vmul.f32 %v543, 1.442695
      %v599 = vpow.pop %v598
      %v600 = vmul.f32 %v544, 1.442695
      %v601 = vpow.pop %v600
      %v602 = vmul.f32 %v545, 1.442695
      %v603 = vpow.pop %v602
      %v604 = vmul.f32 %v546, 1.442695
      %v605 = vpow.pop %v604
      %v606 = vmul.f32 %v547, 1.442695
      %v607 = vpow.pop %v606
      %v608 = vmul.f32 %v548, 1.442695
      %v609 = vpow.pop %v608
      %v610 = vmul.f32 %v549, 1.442695
      %v611 = vpow.pop %v610
      %v612 = vmul.f32 %v550, 1.442695
      %v613 = vpow.pop %v612
      %v614 = vmul.f32 %v551, 1.442695
      %v615 = vpow.pop %v614
      %v616 = vadd.f32 %v553, 1.0
      %v617 = vadd.f32 %v555, 1.0
      %v618 = vadd.f32 %v557, 1.0
      %v619 = vadd.f32 %v559, 1.0
      %v620 = vadd.f32 %v561, 1.0
      %v621 = vadd.f32 %v563, 1.0
      %v622 = vadd.f32 %v565, 1.0
      %v623 = vadd.f32 %v567, 1.0
      %v624 = vadd.f32 %v569, 1.0
      %v625 = vadd.f32 %v571, 1.0
      %v626 = vadd.f32 %v573, 1.0
      %v627 = vadd.f32 %v575, 1.0
      %v628 = vadd.f32 %v577, 1.0
      %v629 = vadd.f32 %v579, 1.0
      %v630 = vadd.f32 %v581, 1.0
      %v631 = vadd.f32 %v583, 1.0
      %v632 = vadd.f32 %v585, 1.0
      %v633 = vadd.f32 %v587, 1.0
      %v634 = vadd.f32 %v589, 1.0
      %v635 = vadd.f32 %v591, 1.0
      %v636 = vadd.f32 %v593, 1.0
      %v637 = vadd.f32 %v595, 1.0
      %v638 = vadd.f32 %v597, 1.0
      %v639 = vadd.f32 %v599, 1.0
      %v640 = vadd.f32 %v601, 1.0
      %v641 = vadd.f32 %v603, 1.0
      %v642 = vadd.f32 %v605, 1.0
      %v643 = vadd.f32 %v607, 1.0
      %v644 = vadd.f32 %v609, 1.0
      %v645 = vadd.f32 %v611, 1.0
      %v646 = vadd.f32 %v613, 1.0
      %v647 = vadd.f32 %v615, 1.0
      %v648 = vrcp.pop %v616
      %v649 = vrcp.pop %v617
      %v650 = vrcp.pop %v618
      %v651 = vrcp.pop %v619
      %v652 = vrcp.pop %v620
      %v653 = vrcp.pop %v621
      %v654 = vrcp.pop %v622
      %v655 = vrcp.pop %v623
      %v656 = vrcp.pop %v624
      %v657 = vrcp.pop %v625
      %v658 = vrcp.pop %v626
      %v659 = vrcp.pop %v627
      %v660 = vrcp.pop %v628
      %v661 = vrcp.pop %v629
      %v662 = vrcp.pop %v630
      %v663 = vrcp.pop %v631
      %v664 = vrcp.pop %v632
      %v665 = vrcp.pop %v633
      %v666 = vrcp.pop %v634
      %v667 = vrcp.pop %v635
      %v668 = vrcp.pop %v636
      %v669 = vrcp.pop %v637
      %v670 = vrcp.pop %v638
      %v671 = vrcp.pop %v639
      %v672 = vrcp.pop %v640
      %v673 = vrcp.pop %v641
      %v674 = vrcp.pop %v642
      %v675 = vrcp.pop %v643
      %v676 = vrcp.pop %v644
      %v677 = vrcp.pop %v645
      %v678 = vrcp.pop %v646
      %v679 = vrcp.pop %v647
      %v680 = vmul.f32 %v394, %v648
      %v681 = vmul.f32 %v397, %v649
      %v682 = vmul.f32 %v402, %v650
      %v683 = vmul.f32 %v405, %v651
      %v684 = vmul.f32 %v410, %v652
      %v685 = vmul.f32 %v413, %v653
      %v686 = vmul.f32 %v418, %v654
      %v687 = vmul.f32 %v421, %v655
      %v688 = vmul.f32 %v426, %v656
      %v689 = vmul.f32 %v429, %v657
      %v690 = vmul.f32 %v434, %v658
      %v691 = vmul.f32 %v437, %v659
      %v692 = vmul.f32 %v442, %v660
      %v693 = vmul.f32 %v445, %v661
      %v694 = vmul.f32 %v450, %v662
      %v695 = vmul.f32 %v453, %v663
      %v696 = vmul.f32 %v458, %v664
      %v697 = vmul.f32 %v461, %v665
      %v698 = vmul.f32 %v466, %v666
      %v699 = vmul.f32 %v469, %v667
      %v700 = vmul.f32 %v474, %v668
      %v701 = vmul.f32 %v477, %v669
      %v702 = vmul.f32 %v482, %v670
      %v703 = vmul.f32 %v485, %v671
      %v704 = vmul.f32 %v490, %v672
      %v705 = vmul.f32 %v493, %v673
      %v706 = vmul.f32 %v498, %v674
      %v707 = vmul.f32 %v501, %v675
      %v708 = vmul.f32 %v506, %v676
      %v709 = vmul.f32 %v509, %v677
      %v710 = vmul.f32 %v514, %v678
      %v711 = vmul.f32 %v517, %v679
      %v712 = vpack.c.bf16 %v681, %v680
      %v713 = vpack.c.bf16 %v683, %v682
      %v714 = vpack.c.bf16 %v685, %v684
      %v715 = vpack.c.bf16 %v687, %v686
      %v716 = vpack.c.bf16 %v689, %v688
      %v717 = vpack.c.bf16 %v691, %v690
      %v718 = vpack.c.bf16 %v693, %v692
      %v719 = vpack.c.bf16 %v695, %v694
      %v720 = vpack.c.bf16 %v697, %v696
      %v721 = vpack.c.bf16 %v699, %v698
      %v722 = vpack.c.bf16 %v701, %v700
      %v723 = vpack.c.bf16 %v703, %v702
      %v724 = vpack.c.bf16 %v705, %v704
      %v725 = vpack.c.bf16 %v707, %v706
      %v726 = vpack.c.bf16 %v709, %v708
      %v727 = vpack.c.bf16 %v711, %v710
      %v744 = vunpack.c.l.b16 %v712
      %v745 = vunpack.c.h.b16 %v712
      %v746 = vunpack.c.l.b16 %v713
      %v747 = vunpack.c.h.b16 %v713
      %v748 = vunpack.c.l.b16 %v714
      %v749 = vunpack.c.h.b16 %v714
      %v750 = vunpack.c.l.b16 %v715
      %v751 = vunpack.c.h.b16 %v715
      %v752 = vunpack.c.l.b16 %v716
      %v753 = vunpack.c.h.b16 %v716
      %v754 = vunpack.c.l.b16 %v717
      %v755 = vunpack.c.h.b16 %v717
      %v756 = vunpack.c.l.b16 %v718
      %v757 = vunpack.c.h.b16 %v718
      %v758 = vunpack.c.l.b16 %v719
      %v759 = vunpack.c.h.b16 %v719
      %v760 = vunpack.c.l.b16 %v720
      %v761 = vunpack.c.h.b16 %v720
      %v762 = vunpack.c.l.b16 %v721
      %v763 = vunpack.c.h.b16 %v721
      %v764 = vunpack.c.l.b16 %v722
      %v765 = vunpack.c.h.b16 %v722
      %v766 = vunpack.c.l.b16 %v723
      %v767 = vunpack.c.h.b16 %v723
      %v768 = vunpack.c.l.b16 %v724
      %v769 = vunpack.c.h.b16 %v724
      %v770 = vunpack.c.l.b16 %v725
      %v771 = vunpack.c.h.b16 %v725
      %v772 = vunpack.c.l.b16 %v726
      %v773 = vunpack.c.h.b16 %v726
      %v774 = vunpack.c.l.b16 %v727
      %v775 = vunpack.c.h.b16 %v727
      %v776 = vpack.c.b16 %v744, %v744
      %v777 = vpack.c.b16 %v745, %v745
      %v778 = vpack.c.b16 %v746, %v746
      %v779 = vpack.c.b16 %v747, %v747
      %v780 = vpack.c.b16 %v748, %v748
      %v781 = vpack.c.b16 %v749, %v749
      %v782 = vpack.c.b16 %v750, %v750
      %v783 = vpack.c.b16 %v751, %v751
      %v784 = vpack.c.b16 %v752, %v752
      %v785 = vpack.c.b16 %v753, %v753
      %v786 = vpack.c.b16 %v754, %v754
      %v787 = vpack.c.b16 %v755, %v755
      %v788 = vpack.c.b16 %v756, %v756
      %v789 = vpack.c.b16 %v757, %v757
      %v790 = vpack.c.b16 %v758, %v758
      %v791 = vpack.c.b16 %v759, %v759
      %v792 = vpack.c.b16 %v760, %v760
      %v793 = vpack.c.b16 %v761, %v761
      %v794 = vpack.c.b16 %v762, %v762
      %v795 = vpack.c.b16 %v763, %v763
      %v796 = vpack.c.b16 %v764, %v764
      %v797 = vpack.c.b16 %v765, %v765
      %v798 = vpack.c.b16 %v766, %v766
      %v799 = vpack.c.b16 %v767, %v767
      %v800 = vpack.c.b16 %v768, %v768
      %v801 = vpack.c.b16 %v769, %v769
      %v802 = vpack.c.b16 %v770, %v770
      %v803 = vpack.c.b16 %v771, %v771
      %v804 = vpack.c.b16 %v772, %v772
      %v805 = vpack.c.b16 %v773, %v773
      %v806 = vpack.c.b16 %v774, %v774
      %v807 = vpack.c.b16 %v775, %v775
      %vm840 = vcmask 519168
      %841 = vst.msk [vmem:[%s172] sm:$0xf] %vm840, %v776
      %842 = vst.msk [vmem:[%s172 + $0x4] sm:$0xf] %vm840, %v777
      %843 = vst.msk [vmem:[%s172 + $0x8] sm:$0xf] %vm840, %v778
      %844 = vst.msk [vmem:[%s172 + $0xc] sm:$0xf] %vm840, %v779
      %845 = vst.msk [vmem:[%s172 + $0x10] sm:$0xf] %vm840, %v780
      %846 = vst.msk [vmem:[%s172 + $0x14] sm:$0xf] %vm840, %v781
      %847 = vst.msk [vmem:[%s172 + $0x18] sm:$0xf] %vm840, %v782
      %848 = vst.msk [vmem:[%s172 + $0x1c] sm:$0xf] %vm840, %v783
      %849 = vst.msk [vmem:[%s172 + $0x20] sm:$0xf] %vm840, %v784
      %850 = vst.msk [vmem:[%s172 + $0x24] sm:$0xf] %vm840, %v785
      %851 = vst.msk [vmem:[%s172 + $0x28] sm:$0xf] %vm840, %v786
      %852 = vst.msk [vmem:[%s172 + $0x2c] sm:$0xf] %vm840, %v787
      %853 = vst.msk [vmem:[%s172 + $0x30] sm:$0xf] %vm840, %v788
      %854 = vst.msk [vmem:[%s172 + $0x34] sm:$0xf] %vm840, %v789
      %855 = vst.msk [vmem:[%s172 + $0x38] sm:$0xf] %vm840, %v790
      %856 = vst.msk [vmem:[%s172 + $0x3c] sm:$0xf] %vm840, %v791
      %857 = vst.msk [vmem:[%s172 + $0x40] sm:$0xf] %vm840, %v792
      %858 = vst.msk [vmem:[%s172 + $0x44] sm:$0xf] %vm840, %v793
      %859 = vst.msk [vmem:[%s172 + $0x48] sm:$0xf] %vm840, %v794
      %860 = vst.msk [vmem:[%s172 + $0x4c] sm:$0xf] %vm840, %v795
      %861 = vst.msk [vmem:[%s172 + $0x50] sm:$0xf] %vm840, %v796
      %862 = vst.msk [vmem:[%s172 + $0x54] sm:$0xf] %vm840, %v797
      %863 = vst.msk [vmem:[%s172 + $0x58] sm:$0xf] %vm840, %v798
      %864 = vst.msk [vmem:[%s172 + $0x5c] sm:$0xf] %vm840, %v799
      %865 = vst.msk [vmem:[%s172 + $0x60] sm:$0xf] %vm840, %v800
      %866 = vst.msk [vmem:[%s172 + $0x64] sm:$0xf] %vm840, %v801
      %867 = vst.msk [vmem:[%s172 + $0x68] sm:$0xf] %vm840, %v802
      %868 = vst.msk [vmem:[%s172 + $0x6c] sm:$0xf] %vm840, %v803
      %869 = vst.msk [vmem:[%s172 + $0x70] sm:$0xf] %vm840, %v804
      %870 = vst.msk [vmem:[%s172 + $0x74] sm:$0xf] %vm840, %v805
      %871 = vst.msk [vmem:[%s172 + $0x78] sm:$0xf] %vm840, %v806
      %872 = vst.msk [vmem:[%s172 + $0x7c] sm:$0xf] %vm840, %v807
      %s873 = smul.u32 32, %s14
      %p874 = scmp.lt.s32.totalorder %s873, 63
      %s875 = scalar_select %p874, %s873, 63
      %s876 = smul.addr %s875, 4
      %s877 = scalar_lea.vmem %s3, %s876
      // Predicated region
      $region33: #{csp_stage_forward.6} parent=31 // pred_check
        %p878 = pneg %p100
      $region34: #{csp_stage_forward.6} parent=31 // pred_check_branch
        %880 = sbr.rel (%p878) target = $region36
      $region35: #{csp_stage_forward.6} parent=31 // pred_region
        %s881 = smul.u32 32, %s14
      $region36: #{csp_stage_forward.6} parent=31 // pred_fallthru
        _
    $region32: #{csp_stage_forward.6} parent=5 // pred_fallthru
      _
    %p882 = scmp.le.s32.totalorder 2, %s9
    // Predicated region
    $region37: #{csp_stage_forward.6} parent=5 // pred_check
      %p883 = pneg %p882
    $region38: #{csp_stage_forward.6} parent=5 // pred_check_branch
      %885 = sbr.rel (%p883) target = $region40
    $region39: #{csp_stage_forward.6} parent=5 // pred_region
      %s886 = ssub.s32 %s9, 2
      // Predicated region
      $region41: #{csp_stage_forward.6} parent=39 // pred_check
        %p887 = pneg %p106
      $region42: #{csp_stage_forward.6} parent=39 // pred_check_branch
        %889 = sbr.rel (%p887) target = $region44
      $region43: #{csp_stage_forward.6} parent=39 // pred_region
        %s890 = smul.u32 32, %s15
        %p891 = scmp.lt.s32.totalorder %s890, 63
        %s892 = scalar_select %p891, %s890, 63
        %s893 = smul.addr %s892, 4
        %s894 = scalar_lea.vmem %s3, %s893
      $region44: #{csp_stage_forward.6} parent=39 // pred_fallthru
        _
    $region40: #{csp_stage_forward.6} parent=5 // pred_fallthru
      _
  $region6: #{csp_stage_forward.6} parent=0 // loop_footer
    %s13 = sadd.s32 1, %s9
  $region7: #{csp_stage_forward.6} parent=0 // loop_footer_branch
    %8 = sbr.rel target = $region3
  $region8: #{csp_stage_forward.6} parent=0 // loop_exit
    _

// kernel: csp_stage_forward.11
$region0: #{csp_stage_forward.11}
  #allocation0 [shape = 'u32[]', space=smem, size = 0x4, offset = 0x4, fixed_abs, tag = 'smem constant byte address 0x4 - core index']
  #allocation1 [shape = 'u32[144,128]{1,0:T(1,128)}', space=vmem, size = 0x12000, scoped, tag = 'internal scratch']
  %s0 = inlined_call_operand.vmem [shape: bf16[512,32], index: 0, kind: input, shape index: {}]
  %s1 = inlined_call_operand.vmem [shape: bf16[512,32], index: 1, kind: input, shape index: {}]
  %s2 = inlined_call_operand.vmem [shape: bf16[512,32], index: 2, kind: input, shape index: {}]
  %s3 = inlined_call_operand.vmem [shape: bf16[32,64], index: 3, kind: input, shape index: {}]
  %s4 = inlined_call_operand.vmem [shape: bf16[32,64], index: 4, kind: input, shape index: {}]
  %s5 = inlined_call_operand.vmem [shape: bf16[32,64], index: 5, kind: input, shape index: {}]
  %s6 = inlined_call_operand.vmem [shape: f32[1,64], index: 6, kind: input, shape index: {}]
  %s7 = inlined_call_operand.hbm [shape: f32[512,64], index: 7, kind: output, shape index: {}]
  %s8 = sld [smem:[#allocation0]]
  $region61: #{csp_stage_forward.11} parent=0
    _
  %s10 = ssub.s32 1, %s8
  %s11 = scalar_select 0, %s10, %s8
  $region1: #{csp_stage_forward.11} parent=0
    #allocation2 [shape = 'u8[262144]{0}', space=vmem, size = 0x40000, scoped, tag = 'output window, operand 0']
    #allocation3 [shape = 's32[2]{0}', space=sflag, size = 0x8, scoped, tag = 'scoped memory for csp_stage_forward.11']
    %12 = vsyncpa [#allocation3], 0
    %s13 = scalar_lea.sflag [#allocation3], 1
    %14 = vsyncpa %s13, 0
    loop: start=0, step=1, limit=4
    $region2: #{csp_stage_forward.11} parent=1 // loop_pre_header
      _
    $region3: #{csp_stage_forward.11} parent=1 // loop_header
      %s16 = sphi 0, %s20
      %p17 = scmp.ge.s32.totalorder %s16, 4
      %s26 = sphi 0, %s28
      %s29 = sphi 0, %s26
      %s30 = sphi 0, %s29
      %s46 = sphi 0, %s30
      %s52 = sphi 0, %s54
      %s55 = sphi 0, %s52
      %s56 = sphi 0, %s55
      %s72 = sphi 0, %s56
      %s78 = sphi 0, %s80
      %s81 = sphi 0, %s78
      %s82 = sphi 0, %s81
      %s98 = sphi 0, %s82
      %s102 = sphi 0, %s102
      %s104 = sphi 0, %s102
      %s105 = sphi 0, %s104
      %s119 = sphi 0, %s105
      %s123 = sphi 0, %s123
      %s125 = sphi 0, %s123
      %s126 = sphi 0, %s125
      %s140 = sphi 0, %s126
      %s144 = sphi 0, %s144
      %s146 = sphi 0, %s144
      %s147 = sphi 0, %s146
      %s161 = sphi 0, %s147
      %s165 = sphi 0, %s165
      %s167 = sphi 0, %s165
      %s168 = sphi 0, %s167
      %s182 = sphi 0, %s168
      %s188 = sphi 0, %s190
      %s191 = sphi 0, %s188
      %s192 = sphi 0, %s191
      %s208 = sphi 0, %s192
    $region4: #{csp_stage_forward.11} parent=1 // loop_header_branch
      %19 = sbr.rel (%p17) target = $region8
    $region5: #{csp_stage_forward.11} parent=1 // loop_body
      %s21 = ssub.s32 %s16, 1
      %s22 = ssub.s32 %s16, 2
      %s23 = sadd.s32 %s16, 1
      %s24 = ssub.s32 %s16, %s23
      %p25 = scmp.eq.s32.totalorder %s24, 0
      %s27 = sadd.s32 %s26, 1
      %s28 = scalar_select %p25, %s26, %s27
      %p31 = pneg %p25
      %p32 = scmp.eq.s32.totalorder %s16, 1
      %p33 = por %p31, %p32
      %p34 = scmp.ne.s32.totalorder %s26, %s29
      %p35 = scmp.eq.s32.totalorder %s16, 0
      %p36 = por %p34, %p35
      %p37 = scmp.ne.s32.totalorder %s26, %s29
      %p38 = scmp.eq.s32.totalorder %s21, 1
      %p39 = por %p37, %p38
      %p40 = scmp.ne.s32.totalorder %s29, %s30
      %p41 = scmp.eq.s32.totalorder %s21, 0
      %p42 = por %p40, %p41
      %p43 = scmp.ne.s32.totalorder %s29, %s30
      %p44 = scmp.eq.s32.totalorder %s22, 1
      %p45 = por %p43, %p44
      %p47 = scmp.ne.s32.totalorder %s30, %s46
      %p48 = scmp.eq.s32.totalorder %s22, 0
      %p49 = por %p47, %p48
      %s50 = ssub.s32 %s16, %s23
      %p51 = scmp.eq.s32.totalorder %s50, 0
      %s53 = sadd.s32 %s52, 1
      %s54 = scalar_select %p51, %s52, %s53
      %p57 = pneg %p51
      %p58 = scmp.eq.s32.totalorder %s16, 1
      %p59 = por %p57, %p58
      %p60 = scmp.ne.s32.totalorder %s52, %s55
      %p61 = scmp.eq.s32.totalorder %s16, 0
      %p62 = por %p60, %p61
      %p63 = scmp.ne.s32.totalorder %s52, %s55
      %p64 = scmp.eq.s32.totalorder %s21, 1
      %p65 = por %p63, %p64
      %p66 = scmp.ne.s32.totalorder %s55, %s56
      %p67 = scmp.eq.s32.totalorder %s21, 0
      %p68 = por %p66, %p67
      %p69 = scmp.ne.s32.totalorder %s55, %s56
      %p70 = scmp.eq.s32.totalorder %s22, 1
      %p71 = por %p69, %p70
      %p73 = scmp.ne.s32.totalorder %s56, %s72
      %p74 = scmp.eq.s32.totalorder %s22, 0
      %p75 = por %p73, %p74
      %s76 = ssub.s32 %s16, %s23
      %p77 = scmp.eq.s32.totalorder %s76, 0
      %s79 = sadd.s32 %s78, 1
      %s80 = scalar_select %p77, %s78, %s79
      %p83 = pneg %p77
      %p84 = scmp.eq.s32.totalorder %s16, 1
      %p85 = por %p83, %p84
      %p86 = scmp.ne.s32.totalorder %s78, %s81
      %p87 = scmp.eq.s32.totalorder %s16, 0
      %p88 = por %p86, %p87
      %p89 = scmp.ne.s32.totalorder %s78, %s81
      %p90 = scmp.eq.s32.totalorder %s21, 1
      %p91 = por %p89, %p90
      %p92 = scmp.ne.s32.totalorder %s81, %s82
      %p93 = scmp.eq.s32.totalorder %s21, 0
      %p94 = por %p92, %p93
      %p95 = scmp.ne.s32.totalorder %s81, %s82
      %p96 = scmp.eq.s32.totalorder %s22, 1
      %p97 = por %p95, %p96
      %p99 = scmp.ne.s32.totalorder %s82, %s98
      %p100 = scmp.eq.s32.totalorder %s22, 0
      %p101 = por %p99, %p100
      %s103 = sadd.s32 %s102, 1
      %p106 = scmp.eq.s32.totalorder %s16, 1
      %p107 = scmp.ne.s32.totalorder %s102, %s104
      %p108 = scmp.eq.s32.totalorder %s16, 0
      %p109 = por %p107, %p108
      %p110 = scmp.ne.s32.totalorder %s102, %s104
      %p111 = scmp.eq.s32.totalorder %s21, 1
      %p112 = por %p110, %p111
      %p113 = scmp.ne.s32.totalorder %s104, %s105
      %p114 = scmp.eq.s32.totalorder %s21, 0
      %p115 = por %p113, %p114
      %p116 = scmp.ne.s32.totalorder %s104, %s105
      %p117 = scmp.eq.s32.totalorder %s22, 1
      %p118 = por %p116, %p117
      %p120 = scmp.ne.s32.totalorder %s105, %s119
      %p121 = scmp.eq.s32.totalorder %s22, 0
      %p122 = por %p120, %p121
      %s124 = sadd.s32 %s123, 1
      %p127 = scmp.eq.s32.totalorder %s16, 1
      %p128 = scmp.ne.s32.totalorder %s123, %s125
      %p129 = scmp.eq.s32.totalorder %s16, 0
      %p130 = por %p128, %p129
      %p131 = scmp.ne.s32.totalorder %s123, %s125
      %p132 = scmp.eq.s32.totalorder %s21, 1
      %p133 = por %p131, %p132
      %p134 = scmp.ne.s32.totalorder %s125, %s126
      %p135 = scmp.eq.s32.totalorder %s21, 0
      %p136 = por %p134, %p135
      %p137 = scmp.ne.s32.totalorder %s125, %s126
      %p138 = scmp.eq.s32.totalorder %s22, 1
      %p139 = por %p137, %p138
      %p141 = scmp.ne.s32.totalorder %s126, %s140
      %p142 = scmp.eq.s32.totalorder %s22, 0
      %p143 = por %p141, %p142
      %s145 = sadd.s32 %s144, 1
      %p148 = scmp.eq.s32.totalorder %s16, 1
      %p149 = scmp.ne.s32.totalorder %s144, %s146
      %p150 = scmp.eq.s32.totalorder %s16, 0
      %p151 = por %p149, %p150
      %p152 = scmp.ne.s32.totalorder %s144, %s146
      %p153 = scmp.eq.s32.totalorder %s21, 1
      %p154 = por %p152, %p153
      %p155 = scmp.ne.s32.totalorder %s146, %s147
      %p156 = scmp.eq.s32.totalorder %s21, 0
      %p157 = por %p155, %p156
      %p158 = scmp.ne.s32.totalorder %s146, %s147
      %p159 = scmp.eq.s32.totalorder %s22, 1
      %p160 = por %p158, %p159
      %p162 = scmp.ne.s32.totalorder %s147, %s161
      %p163 = scmp.eq.s32.totalorder %s22, 0
      %p164 = por %p162, %p163
      %s166 = sadd.s32 %s165, 1
      %p169 = scmp.eq.s32.totalorder %s16, 1
      %p170 = scmp.ne.s32.totalorder %s165, %s167
      %p171 = scmp.eq.s32.totalorder %s16, 0
      %p172 = por %p170, %p171
      %p173 = scmp.ne.s32.totalorder %s165, %s167
      %p174 = scmp.eq.s32.totalorder %s21, 1
      %p175 = por %p173, %p174
      %p176 = scmp.ne.s32.totalorder %s167, %s168
      %p177 = scmp.eq.s32.totalorder %s21, 0
      %p178 = por %p176, %p177
      %p179 = scmp.ne.s32.totalorder %s167, %s168
      %p180 = scmp.eq.s32.totalorder %s22, 1
      %p181 = por %p179, %p180
      %p183 = scmp.ne.s32.totalorder %s168, %s182
      %p184 = scmp.eq.s32.totalorder %s22, 0
      %p185 = por %p183, %p184
      %s186 = ssub.s32 %s16, %s23
      %p187 = scmp.eq.s32.totalorder %s186, 0
      %s189 = sadd.s32 %s188, 1
      %s190 = scalar_select %p187, %s188, %s189
      %p193 = pneg %p187
      %p194 = scmp.eq.s32.totalorder %s16, 1
      %p195 = por %p193, %p194
      %p196 = scmp.ne.s32.totalorder %s188, %s191
      %p197 = scmp.eq.s32.totalorder %s16, 0
      %p198 = por %p196, %p197
      %p199 = scmp.ne.s32.totalorder %s188, %s191
      %p200 = scmp.eq.s32.totalorder %s21, 1
      %p201 = por %p199, %p200
      %p202 = scmp.ne.s32.totalorder %s191, %s192
      %p203 = scmp.eq.s32.totalorder %s21, 0
      %p204 = por %p202, %p203
      %p205 = scmp.ne.s32.totalorder %s191, %s192
      %p206 = scmp.eq.s32.totalorder %s22, 1
      %p207 = por %p205, %p206
      %p209 = scmp.ne.s32.totalorder %s192, %s208
      %p210 = scmp.eq.s32.totalorder %s22, 0
      %p211 = por %p209, %p210
      %p212 = scmp.le.s32.totalorder 1, %s16
      %p213 = scmp.lt.s32.totalorder %s16, 3
      %p214 = pnand %p212, %p213
      %p215 = pneg %p214
      // Predicated region
      $region9: #{csp_stage_forward.11} parent=5 // pred_check
        _
      $region10: #{csp_stage_forward.11} parent=5 // pred_check_branch
        %217 = sbr.rel (%p214) target = $region12
      $region11: #{csp_stage_forward.11} parent=5 // pred_region
        %s218 = ssub.s32 %s16, 1
        // Predicated region
        $region13: #{csp_stage_forward.11} parent=11 // pred_check
          %p219 = pneg %p115
        $region14: #{csp_stage_forward.11} parent=11 // pred_check_branch
          %221 = sbr.rel (%p219) target = $region16
        $region15: #{csp_stage_forward.11} parent=11 // pred_region
          _
        $region16: #{csp_stage_forward.11} parent=11 // pred_fallthru
          _
        // Predicated region
        $region17: #{csp_stage_forward.11} parent=11 // pred_check
          %p222 = pneg %p136
        $region18: #{csp_stage_forward.11} parent=11 // pred_check_branch
          %224 = sbr.rel (%p222) target = $region20
        $region19: #{csp_stage_forward.11} parent=11 // pred_region
          _
        $region20: #{csp_stage_forward.11} parent=11 // pred_fallthru
          _
        // Predicated region
        $region21: #{csp_stage_forward.11} parent=11 // pred_check
          %p225 = pneg %p157
        $region22: #{csp_stage_forward.11} parent=11 // pred_check_branch
          %227 = sbr.rel (%p225) target = $region24
        $region23: #{csp_stage_forward.11} parent=11 // pred_region
          _
        $region24: #{csp_stage_forward.11} parent=11 // pred_fallthru
          _
        // Predicated region
        $region25: #{csp_stage_forward.11} parent=11 // pred_check
          %p228 = pneg %p178
        $region26: #{csp_stage_forward.11} parent=11 // pred_check_branch
          %230 = sbr.rel (%p228) target = $region28
        $region27: #{csp_stage_forward.11} parent=11 // pred_region
          _
        $region28: #{csp_stage_forward.11} parent=11 // pred_fallthru
          _
      $region12: #{csp_stage_forward.11} parent=5 // pred_fallthru
        _
      %p231 = scmp.lt.s32.totalorder %s16, 2
      // Predicated region
      $region29: #{csp_stage_forward.11} parent=5 // pred_check
        %p232 = pneg %p231
      $region30: #{csp_stage_forward.11} parent=5 // pred_check_branch
        %234 = sbr.rel (%p232) target = $region32
      $region31: #{csp_stage_forward.11} parent=5 // pred_region
        // Predicated region
        $region33: #{csp_stage_forward.11} parent=31 // pred_check
          %p235 = pneg %p36
        $region34: #{csp_stage_forward.11} parent=31 // pred_check_branch
          %237 = sbr.rel (%p235) target = $region36
        $region35: #{csp_stage_forward.11} parent=31 // pred_region
          %s238 = smul.u32 32, %s16
          %p239 = scmp.lt.s32.totalorder %s238, 63
          %s240 = scalar_select %p239, %s238, 63
          %s241 = smul.addr %s240, 4
          %s242 = scalar_lea.vmem %s0, %s241
          %s243 = smul.u32 32, %s16
        $region36: #{csp_stage_forward.11} parent=31 // pred_fallthru
          _
        // Predicated region
        $region37: #{csp_stage_forward.11} parent=31 // pred_check
          %p244 = pneg %p62
        $region38: #{csp_stage_forward.11} parent=31 // pred_check_branch
          %246 = sbr.rel (%p244) target = $region40
        $region39: #{csp_stage_forward.11} parent=31 // pred_region
          %s247 = smul.u32 32, %s16
          %p248 = scmp.lt.s32.totalorder %s247, 63
          %s249 = scalar_select %p248, %s247, 63
          %s250 = smul.addr %s249, 4
          %s251 = scalar_lea.vmem %s1, %s250
          %s252 = smul.u32 32, %s16
        $region40: #{csp_stage_forward.11} parent=31 // pred_fallthru
          _
        // Predicated region
        $region41: #{csp_stage_forward.11} parent=31 // pred_check
          %p253 = pneg %p88
        $region42: #{csp_stage_forward.11} parent=31 // pred_check_branch
          %255 = sbr.rel (%p253) target = $region44
        $region43: #{csp_stage_forward.11} parent=31 // pred_region
          %s256 = smul.u32 32, %s16
          %p257 = scmp.lt.s32.totalorder %s256, 63
          %s258 = scalar_select %p257, %s256, 63
          %s259 = smul.addr %s258, 4
          %s260 = scalar_lea.vmem %s2, %s259
          %s261 = smul.u32 32, %s16
        $region44: #{csp_stage_forward.11} parent=31 // pred_fallthru
          _
      $region32: #{csp_stage_forward.11} parent=5 // pred_fallthru
        _
      %p262 = scmp.le.s32.totalorder 1, %s16
      %p263 = scmp.lt.s32.totalorder %s16, 3
      %p264 = pnand %p262, %p263
      %p265 = pneg %p264
      // Predicated region
      $region45: #{csp_stage_forward.11} parent=5 // pred_check
        _
      $region46: #{csp_stage_forward.11} parent=5 // pred_check_branch
        %267 = sbr.rel (%p264) target = $region48
      $region47: #{csp_stage_forward.11} parent=5 // pred_region
        %s268 = ssub.s32 %s16, 1
        %s269 = smul.u32 32, %s21
        %p270 = scmp.lt.s32.totalorder %s269, 63
        %s271 = scalar_select %p270, %s269, 63
        %s272 = smul.addr %s271, 4
        %s273 = scalar_lea.vmem %s0, %s272
        %p274 = pneg %p42
        %p275 = pneg %p39
        %s276 = smul.u32 32, %s21
        %p277 = scmp.lt.s32.totalorder %s276, 63
        %s278 = scalar_select %p277, %s276, 63
        %s279 = smul.addr %s278, 4
        %s280 = scalar_lea.vmem %s1, %s279
        %p281 = pneg %p68
        %p282 = pneg %p65
        %s283 = smul.u32 32, %s21
        %p284 = scmp.lt.s32.totalorder %s283, 63
        %s285 = scalar_select %p284, %s283, 63
        %s286 = smul.addr %s285, 4
        %s287 = scalar_lea.vmem %s2, %s286
        %p288 = pneg %p94
        %p289 = pneg %p91
        %p290 = pneg %p115
        %p291 = pneg %p112
        %p292 = pneg %p136
        %p293 = pneg %p133
        %p294 = pneg %p157
        %p295 = pneg %p154
        %p296 = pneg %p178
        %p297 = pneg %p175
        %p298 = pneg %p204
        %p299 = pneg %p201
        %s300 = sand.u32 %s191, 1
        %s301 = scalar_lea.sflag [#allocation3], %s300
        %s302 = sand.u32 %s191, 1
        %s303 = smul.addr %s302, 256
        %s304 = scalar_lea.vmem [#allocation2], %s303
        %s305 = smul.u32 32, %s21
        %p306 = scmp.lt.s32.totalorder %s305, 63
        %s307 = scalar_select %p306, %s305, 63
        %s308 = smul.addr %s307, 4
        %s309 = scalar_lea.vmem %s0, %s308
        %s310 = smul.u32 32, %s21
        %s311 = smul.u32 32, %s21
        %p312 = scmp.lt.s32.totalorder %s311, 63
        %s313 = scalar_select %p312, %s311, 63
        %s314 = smul.addr %s313, 4
        %s315 = scalar_lea.vmem %s1, %s314
        %s316 = smul.u32 32, %s21
        %s317 = smul.u32 32, %s21
        %p318 = scmp.lt.s32.totalorder %s317, 63
        %s319 = scalar_select %p318, %s317, 63
        %s320 = smul.addr %s319, 4
        %s321 = scalar_lea.vmem %s2, %s320
        %s322 = smul.u32 32, %s21
        %s323 = smul.u32 32, %s21
        %v325 = vld [vmem:[%s309] sm:$0xf]
        %v326 = vld [vmem:[%s309 + $0x4] sm:$0xf]
        %v327 = vld [vmem:[%s309 + $0x8] sm:$0xf]
        %v328 = vld [vmem:[%s309 + $0xc] sm:$0xf]
        %v329 = vld [vmem:[%s309 + $0x10] sm:$0xf]
        %v330 = vld [vmem:[%s309 + $0x14] sm:$0xf]
        %v331 = vld [vmem:[%s309 + $0x18] sm:$0xf]
        %v332 = vld [vmem:[%s309 + $0x1c] sm:$0xf]
        %v333 = vld [vmem:[%s309 + $0x20] sm:$0xf]
        %v334 = vld [vmem:[%s309 + $0x24] sm:$0xf]
        %v335 = vld [vmem:[%s309 + $0x28] sm:$0xf]
        %v336 = vld [vmem:[%s309 + $0x2c] sm:$0xf]
        %v337 = vld [vmem:[%s309 + $0x30] sm:$0xf]
        %v338 = vld [vmem:[%s309 + $0x34] sm:$0xf]
        %v339 = vld [vmem:[%s309 + $0x38] sm:$0xf]
        %v340 = vld [vmem:[%s309 + $0x3c] sm:$0xf]
        %v341 = vld [vmem:[%s309 + $0x40] sm:$0xf]
        %v342 = vld [vmem:[%s309 + $0x44] sm:$0xf]
        %v343 = vld [vmem:[%s309 + $0x48] sm:$0xf]
        %v344 = vld [vmem:[%s309 + $0x4c] sm:$0xf]
        %v345 = vld [vmem:[%s309 + $0x50] sm:$0xf]
        %v346 = vld [vmem:[%s309 + $0x54] sm:$0xf]
        %v347 = vld [vmem:[%s309 + $0x58] sm:$0xf]
        %v348 = vld [vmem:[%s309 + $0x5c] sm:$0xf]
        %v349 = vld [vmem:[%s309 + $0x60] sm:$0xf]
        %v350 = vld [vmem:[%s309 + $0x64] sm:$0xf]
        %v351 = vld [vmem:[%s309 + $0x68] sm:$0xf]
        %v352 = vld [vmem:[%s309 + $0x6c] sm:$0xf]
        %v353 = vld [vmem:[%s309 + $0x70] sm:$0xf]
        %v354 = vld [vmem:[%s309 + $0x74] sm:$0xf]
        %v355 = vld [vmem:[%s309 + $0x78] sm:$0xf]
        %v356 = vld [vmem:[%s309 + $0x7c] sm:$0xf]
        %v357 = vld [vmem:[%s3] sm:$0xf]
        %v358 = vld [vmem:[%s3 + $0x4] sm:$0xf]
        %v359 = vld [vmem:[%s3 + $0x8] sm:$0xf]
        %v360 = vld [vmem:[%s3 + $0xc] sm:$0xf]
        %v361 = vld [vmem:[%s315] sm:$0xf]
        %v362 = vld [vmem:[%s315 + $0x4] sm:$0xf]
        %v363 = vld [vmem:[%s315 + $0x8] sm:$0xf]
        %v364 = vld [vmem:[%s315 + $0xc] sm:$0xf]
        %v365 = vld [vmem:[%s315 + $0x10] sm:$0xf]
        %v366 = vld [vmem:[%s315 + $0x14] sm:$0xf]
        %v367 = vld [vmem:[%s315 + $0x18] sm:$0xf]
        %v368 = vld [vmem:[%s315 + $0x1c] sm:$0xf]
        %v369 = vld [vmem:[%s315 + $0x20] sm:$0xf]
        %v370 = vld [vmem:[%s315 + $0x24] sm:$0xf]
        %v371 = vld [vmem:[%s315 + $0x28] sm:$0xf]
        %v372 = vld [vmem:[%s315 + $0x2c] sm:$0xf]
        %v373 = vld [vmem:[%s315 + $0x30] sm:$0xf]
        %v374 = vld [vmem:[%s315 + $0x34] sm:$0xf]
        %v375 = vld [vmem:[%s315 + $0x38] sm:$0xf]
        %v376 = vld [vmem:[%s315 + $0x3c] sm:$0xf]
        %v377 = vld [vmem:[%s315 + $0x40] sm:$0xf]
        %v378 = vld [vmem:[%s315 + $0x44] sm:$0xf]
        %v379 = vld [vmem:[%s315 + $0x48] sm:$0xf]
        %v380 = vld [vmem:[%s315 + $0x4c] sm:$0xf]
        %v381 = vld [vmem:[%s315 + $0x50] sm:$0xf]
        %v382 = vld [vmem:[%s315 + $0x54] sm:$0xf]
        %v383 = vld [vmem:[%s315 + $0x58] sm:$0xf]
        %v384 = vld [vmem:[%s315 + $0x5c] sm:$0xf]
        %v385 = vld [vmem:[%s315 + $0x60] sm:$0xf]
        %v386 = vld [vmem:[%s315 + $0x64] sm:$0xf]
        %v387 = vld [vmem:[%s315 + $0x68] sm:$0xf]
        %v388 = vld [vmem:[%s315 + $0x6c] sm:$0xf]
        %v389 = vld [vmem:[%s315 + $0x70] sm:$0xf]
        %v390 = vld [vmem:[%s315 + $0x74] sm:$0xf]
        %v391 = vld [vmem:[%s315 + $0x78] sm:$0xf]
        %v392 = vld [vmem:[%s315 + $0x7c] sm:$0xf]
        %v393 = vld [vmem:[%s4] sm:$0xf]
        %v394 = vld [vmem:[%s4 + $0x4] sm:$0xf]
        %v395 = vld [vmem:[%s4 + $0x8] sm:$0xf]
        %v396 = vld [vmem:[%s4 + $0xc] sm:$0xf]
        %v429 = vunpack.c.l.b16 %v361
        %v430 = vunpack.c.l.b16 %v362
        %v431 = vunpack.c.l.b16 %v363
        %v432 = vunpack.c.l.b16 %v364
        %v433 = vunpack.c.l.b16 %v365
        %v434 = vunpack.c.l.b16 %v366
        %v435 = vunpack.c.l.b16 %v367
        %v436 = vunpack.c.l.b16 %v368
        %v437 = vunpack.c.l.b16 %v369
        %v438 = vunpack.c.l.b16 %v370
        %v439 = vunpack.c.l.b16 %v371
        %v440 = vunpack.c.l.b16 %v372
        %v441 = vunpack.c.l.b16 %v373
        %v442 = vunpack.c.l.b16 %v374
        %v443 = vunpack.c.l.b16 %v375
        %v444 = vunpack.c.l.b16 %v376
        %v445 = vunpack.c.l.b16 %v377
        %v446 = vunpack.c.l.b16 %v378
        %v447 = vunpack.c.l.b16 %v379
        %v448 = vunpack.c.l.b16 %v380
        %v449 = vunpack.c.l.b16 %v381
        %v450 = vunpack.c.l.b16 %v382
        %v451 = vunpack.c.l.b16 %v383
        %v452 = vunpack.c.l.b16 %v384
        %v453 = vunpack.c.l.b16 %v385
        %v454 = vunpack.c.l.b16 %v386
        %v455 = vunpack.c.l.b16 %v387
        %v456 = vunpack.c.l.b16 %v388
        %v457 = vunpack.c.l.b16 %v389
        %v458 = vunpack.c.l.b16 %v390
        %v459 = vunpack.c.l.b16 %v391
        %v460 = vunpack.c.l.b16 %v392
        %v461 = vpack.c.b16 %v430, %v429
        %v462 = vpack.c.b16 %v432, %v431
        %v463 = vpack.c.b16 %v434, %v433
        %v464 = vpack.c.b16 %v436, %v435
        %v465 = vpack.c.b16 %v438, %v437
        %v466 = vpack.c.b16 %v440, %v439
        %v467 = vpack.c.b16 %v442, %v441
        %v468 = vpack.c.b16 %v444, %v443
        %v469 = vpack.c.b16 %v446, %v445
        %v470 = vpack.c.b16 %v448, %v447
        %v471 = vpack.c.b16 %v450, %v449
        %v472 = vpack.c.b16 %v452, %v451
        %v473 = vpack.c.b16 %v454, %v453
        %v474 = vpack.c.b16 %v456, %v455
        %v475 = vpack.c.b16 %v458, %v457
        %v476 = vpack.c.b16 %v460, %v459
        %v481 = vunpack.c.l.b16 %v393
        %v482 = vunpack.c.l.b16 %v394
        %v483 = vunpack.c.l.b16 %v395
        %v484 = vunpack.c.l.b16 %v396
        %v485 = vpack.c.b16 %v482, %v481
        %v486 = vpack.c.b16 %v484, %v483
        %vm489 = vcmask 261120
        %v491 = vsel %vm489, %v461, 0
        %v494 = vsel %vm489, %v462, 0
        %v497 = vsel %vm489, %v463, 0
        %v500 = vsel %vm489, %v464, 0
        %v503 = vsel %vm489, %v465, 0
        %v506 = vsel %vm489, %v466, 0
        %v509 = vsel %vm489, %v467, 0
        %v512 = vsel %vm489, %v468, 0
        %v515 = vsel %vm489, %v469, 0
        %v518 = vsel %vm489, %v470, 0
        %v521 = vsel %vm489, %v471, 0
        %v524 = vsel %vm489, %v472, 0
        %v527 = vsel %vm489, %v473, 0
        %v530 = vsel %vm489, %v474, 0
        %v533 = vsel %vm489, %v475, 0
        %v536 = vsel %vm489, %v476, 0
        %538 = vmatprep.subr.bf16.mxu0 0
        %539 = vmatpush1.bf16.msra.mxu0 0
        %540 = vmatprep.subr.bf16.mxu0 0
        %541 = vmatpush1.bf16.msra.mxu0 0
        %542 = vmatprep.subr.bf16.mxu0 0
        %543 = vmatpush1.bf16.msra.mxu0 0
        %544 = vmatprep.subr.bf16.mxu0 0
        %545 = vmatpush1.bf16.msra.mxu0 0
        %546 = vmatprep.subr.bf16.mxu0 0
        %547 = vmatpush1.bf16.msra.mxu0 0
        %548 = vmatprep.subr.bf16.mxu0 0
        %549 = vmatpush1.bf16.msra.mxu0 0
        %550 = vmatprep.subr.bf16.mxu0 0
        %551 = vmatpush1.bf16.msra.mxu0 %v486
        %552 = vmatprep.subr.bf16.mxu0 0
        %553 = vmatpush1.bf16.msra.mxu0 %v485
        %554 = vmatprep.subr.bf16.mxu0 0
        %555 = vmatpush2.bf16.msra.mxu0 0
        %556 = vmatprep.subr.bf16.mxu0 0
        %557 = vmatpush2.bf16.msra.mxu0 0
        %558 = vmatprep.subr.bf16.mxu0 0
        %559 = vmatpush2.bf16.msra.mxu0 0
        %560 = vmatprep.subr.bf16.mxu0 0
        %561 = vmatpush2.bf16.msra.mxu0 0
        %562 = vmatprep.subr.bf16.mxu0 0
        %563 = vmatpush2.bf16.msra.mxu0 0
        %564 = vmatprep.subr.bf16.mxu0 0
        %565 = vmatpush2.bf16.msra.mxu0 0
        %566 = vmatprep.subr.bf16.mxu0 0
        %567 = vmatpush2.bf16.msra.mxu0 0
        %568 = vmatprep.subr.bf16.mxu0 0
        %569 = vmatpush2.bf16.msra.mxu0 0
        %570 = vmatprep.mubr.bf16.mxu0 0
        %571 = vmatmul.mubr.bf16.gmra.mxu0 %v491
        %v572 = vpop.f32.mrf.mxu0
        %v573 = vadd.f32 0.0, %v572
        %v574 = vpop.f32.mrf.mxu0
        %v575 = vpop.f32.mrf.mxu0
        %v576 = vadd.f32 0.0, %v575
        %v577 = vpop.f32.mrf.mxu0
        %578 = vmatprep.mubr.bf16.mxu0 0
        %579 = vmatmul.mubr.bf16.gmra.mxu0 %v494
        %v580 = vpop.f32.mrf.mxu0
        %v581 = vadd.f32 0.0, %v580
        %v582 = vpop.f32.mrf.mxu0
        %v583 = vpop.f32.mrf.mxu0
        %v584 = vadd.f32 0.0, %v583
        %v585 = vpop.f32.mrf.mxu0
        %586 = vmatprep.mubr.bf16.mxu0 0
        %587 = vmatmul.mubr.bf16.gmra.mxu0 %v497
        %v588 = vpop.f32.mrf.mxu0
        %v589 = vadd.f32 0.0, %v588
        %v590 = vpop.f32.mrf.mxu0
        %v591 = vpop.f32.mrf.mxu0
        %v592 = vadd.f32 0.0, %v591
        %v593 = vpop.f32.mrf.mxu0
        %594 = vmatprep.mubr.bf16.mxu0 0
        %595 = vmatmul.mubr.bf16.gmra.mxu0 %v500
        %v596 = vpop.f32.mrf.mxu0
        %v597 = vadd.f32 0.0, %v596
        %v598 = vpop.f32.mrf.mxu0
        %v599 = vpop.f32.mrf.mxu0
        %v600 = vadd.f32 0.0, %v599
        %v601 = vpop.f32.mrf.mxu0
        %602 = vmatprep.mubr.bf16.mxu0 0
        %603 = vmatmul.mubr.bf16.gmra.mxu0 %v503
        %v604 = vpop.f32.mrf.mxu0
        %v605 = vadd.f32 0.0, %v604
        %v606 = vpop.f32.mrf.mxu0
        %v607 = vpop.f32.mrf.mxu0
        %v608 = vadd.f32 0.0, %v607
        %v609 = vpop.f32.mrf.mxu0
        %610 = vmatprep.mubr.bf16.mxu0 0
        %611 = vmatmul.mubr.bf16.gmra.mxu0 %v506
        %v612 = vpop.f32.mrf.mxu0
        %v613 = vadd.f32 0.0, %v612
        %v614 = vpop.f32.mrf.mxu0
        %v615 = vpop.f32.mrf.mxu0
        %v616 = vadd.f32 0.0, %v615
        %v617 = vpop.f32.mrf.mxu0
        %618 = vmatprep.mubr.bf16.mxu0 0
        %619 = vmatmul.mubr.bf16.gmra.mxu0 %v509
        %v620 = vpop.f32.mrf.mxu0
        %v621 = vadd.f32 0.0, %v620
        %v622 = vpop.f32.mrf.mxu0
        %v623 = vpop.f32.mrf.mxu0
        %v624 = vadd.f32 0.0, %v623
        %v625 = vpop.f32.mrf.mxu0
        %626 = vmatprep.mubr.bf16.mxu0 0
        %627 = vmatmul.mubr.bf16.gmra.mxu0 %v512
        %v628 = vpop.f32.mrf.mxu0
        %v629 = vadd.f32 0.0, %v628
        %v630 = vpop.f32.mrf.mxu0
        %v631 = vpop.f32.mrf.mxu0
        %v632 = vadd.f32 0.0, %v631
        %v633 = vpop.f32.mrf.mxu0
        %634 = vmatprep.mubr.bf16.mxu0 0
        %635 = vmatmul.mubr.bf16.gmra.mxu0 %v515
        %v636 = vpop.f32.mrf.mxu0
        %v637 = vadd.f32 0.0, %v636
        %v638 = vpop.f32.mrf.mxu0
        %v639 = vpop.f32.mrf.mxu0
        %v640 = vadd.f32 0.0, %v639
        %v641 = vpop.f32.mrf.mxu0
        %642 = vmatprep.mubr.bf16.mxu0 0
        %643 = vmatmul.mubr.bf16.gmra.mxu0 %v518
        %v644 = vpop.f32.mrf.mxu0
        %v645 = vadd.f32 0.0, %v644
        %v646 = vpop.f32.mrf.mxu0
        %v647 = vpop.f32.mrf.mxu0
        %v648 = vadd.f32 0.0, %v647
        %v649 = vpop.f32.mrf.mxu0
        %650 = vmatprep.mubr.bf16.mxu0 0
        %651 = vmatmul.mubr.bf16.gmra.mxu0 %v521
        %v652 = vpop.f32.mrf.mxu0
        %v653 = vadd.f32 0.0, %v652
        %v654 = vpop.f32.mrf.mxu0
        %v655 = vpop.f32.mrf.mxu0
        %v656 = vadd.f32 0.0, %v655
        %v657 = vpop.f32.mrf.mxu0
        %658 = vmatprep.mubr.bf16.mxu0 0
        %659 = vmatmul.mubr.bf16.gmra.mxu0 %v524
        %v660 = vpop.f32.mrf.mxu0
        %v661 = vadd.f32 0.0, %v660
        %v662 = vpop.f32.mrf.mxu0
        %v663 = vpop.f32.mrf.mxu0
        %v664 = vadd.f32 0.0, %v663
        %v665 = vpop.f32.mrf.mxu0
        %666 = vmatprep.mubr.bf16.mxu0 0
        %667 = vmatmul.mubr.bf16.gmra.mxu0 %v527
        %v668 = vpop.f32.mrf.mxu0
        %v669 = vadd.f32 0.0, %v668
        %v670 = vpop.f32.mrf.mxu0
        %v671 = vpop.f32.mrf.mxu0
        %v672 = vadd.f32 0.0, %v671
        %v673 = vpop.f32.mrf.mxu0
        %674 = vmatprep.mubr.bf16.mxu0 0
        %675 = vmatmul.mubr.bf16.gmra.mxu0 %v530
        %v676 = vpop.f32.mrf.mxu0
        %v677 = vadd.f32 0.0, %v676
        %v678 = vpop.f32.mrf.mxu0
        %v679 = vpop.f32.mrf.mxu0
        %v680 = vadd.f32 0.0, %v679
        %v681 = vpop.f32.mrf.mxu0
        %682 = vmatprep.mubr.bf16.mxu0 0
        %683 = vmatmul.mubr.bf16.gmra.mxu0 %v533
        %v684 = vpop.f32.mrf.mxu0
        %v685 = vadd.f32 0.0, %v684
        %v686 = vpop.f32.mrf.mxu0
        %v687 = vpop.f32.mrf.mxu0
        %v688 = vadd.f32 0.0, %v687
        %v689 = vpop.f32.mrf.mxu0
        %690 = vmatprep.mubr.bf16.mxu0 0
        %691 = vmatmul.mubr.bf16.gmra.mxu0 %v536
        %v692 = vpop.f32.mrf.mxu0
        %v693 = vadd.f32 0.0, %v692
        %v694 = vpop.f32.mrf.mxu0
        %v695 = vpop.f32.mrf.mxu0
        %v696 = vadd.f32 0.0, %v695
        %v697 = vpop.f32.mrf.mxu0
        %698 = vdwg.mxu0
        %v731 = vunpack.c.l.b16 %v325
        %v732 = vunpack.c.l.b16 %v326
        %v733 = vunpack.c.l.b16 %v327
        %v734 = vunpack.c.l.b16 %v328
        %v735 = vunpack.c.l.b16 %v329
        %v736 = vunpack.c.l.b16 %v330
        %v737 = vunpack.c.l.b16 %v331
        %v738 = vunpack.c.l.b16 %v332
        %v739 = vunpack.c.l.b16 %v333
        %v740 = vunpack.c.l.b16 %v334
        %v741 = vunpack.c.l.b16 %v335
        %v742 = vunpack.c.l.b16 %v336
        %v743 = vunpack.c.l.b16 %v337
        %v744 = vunpack.c.l.b16 %v338
        %v745 = vunpack.c.l.b16 %v339
        %v746 = vunpack.c.l.b16 %v340
        %v747 = vunpack.c.l.b16 %v341
        %v748 = vunpack.c.l.b16 %v342
        %v749 = vunpack.c.l.b16 %v343
        %v750 = vunpack.c.l.b16 %v344
        %v751 = vunpack.c.l.b16 %v345
        %v752 = vunpack.c.l.b16 %v346
        %v753 = vunpack.c.l.b16 %v347
        %v754 = vunpack.c.l.b16 %v348
        %v755 = vunpack.c.l.b16 %v349
        %v756 = vunpack.c.l.b16 %v350
        %v757 = vunpack.c.l.b16 %v351
        %v758 = vunpack.c.l.b16 %v352
        %v759 = vunpack.c.l.b16 %v353
        %v760 = vunpack.c.l.b16 %v354
        %v761 = vunpack.c.l.b16 %v355
        %v762 = vunpack.c.l.b16 %v356
        %v763 = vpack.c.b16 %v732, %v731
        %v764 = vpack.c.b16 %v734, %v733
        %v765 = vpack.c.b16 %v736, %v735
        %v766 = vpack.c.b16 %v738, %v737
        %v767 = vpack.c.b16 %v740, %v739
        %v768 = vpack.c.b16 %v742, %v741
        %v769 = vpack.c.b16 %v744, %v743
        %v770 = vpack.c.b16 %v746, %v745
        %v771 = vpack.c.b16 %v748, %v747
        %v772 = vpack.c.b16 %v750, %v749
        %v773 = vpack.c.b16 %v752, %v751
        %v774 = vpack.c.b16 %v754, %v753
        %v775 = vpack.c.b16 %v756, %v755
        %v776 = vpack.c.b16 %v758, %v757
        %v777 = vpack.c.b16 %v760, %v759
        %v778 = vpack.c.b16 %v762, %v761
        %v783 = vunpack.c.l.b16 %v357
        %v784 = vunpack.c.l.b16 %v358
        %v785 = vunpack.c.l.b16 %v359
        %v786 = vunpack.c.l.b16 %v360
        %v787 = vpack.c.b16 %v784, %v783
        %v788 = vpack.c.b16 %v786, %v785
        %v792 = vsel %vm489, %v763, 0
        %v795 = vsel %vm489, %v764, 0
        %v798 = vsel %vm489, %v765, 0
        %v801 = vsel %vm489, %v766, 0
        %v804 = vsel %vm489, %v767, 0
        %v807 = vsel %vm489, %v768, 0
        %v810 = vsel %vm489, %v769, 0
        %v813 = vsel %vm489, %v770, 0
        %v816 = vsel %vm489, %v771, 0
        %v819 = vsel %vm489, %v772, 0
        %v822 = vsel %vm489, %v773, 0
        %v825 = vsel %vm489, %v774, 0
        %v828 = vsel %vm489, %v775, 0
        %v831 = vsel %vm489, %v776, 0
        %v834 = vsel %vm489, %v777, 0
        %v837 = vsel %vm489, %v778, 0
        %839 = vmatprep.subr.bf16.mxu0 0
        %840 = vmatpush1.bf16.msra.mxu0 0
        %841 = vmatprep.subr.bf16.mxu0 0
        %842 = vmatpush1.bf16.msra.mxu0 0
        %843 = vmatprep.subr.bf16.mxu0 0
        %844 = vmatpush1.bf16.msra.mxu0 0
        %845 = vmatprep.subr.bf16.mxu0 0
        %846 = vmatpush1.bf16.msra.mxu0 0
        %847 = vmatprep.subr.bf16.mxu0 0
        %848 = vmatpush1.bf16.msra.mxu0 0
        %849 = vmatprep.subr.bf16.mxu0 0
        %850 = vmatpush1.bf16.msra.mxu0 0
        %851 = vmatprep.subr.bf16.mxu0 0
        %852 = vmatpush1.bf16.msra.mxu0 %v788
        %853 = vmatprep.subr.bf16.mxu0 0
        %854 = vmatpush1.bf16.msra.mxu0 %v787
        %855 = vmatprep.subr.bf16.mxu0 0
        %856 = vmatpush2.bf16.msra.mxu0 0
        %857 = vmatprep.subr.bf16.mxu0 0
        %858 = vmatpush2.bf16.msra.mxu0 0
        %859 = vmatprep.subr.bf16.mxu0 0
        %860 = vmatpush2.bf16.msra.mxu0 0
        %861 = vmatprep.subr.bf16.mxu0 0
        %862 = vmatpush2.bf16.msra.mxu0 0
        %863 = vmatprep.subr.bf16.mxu0 0
        %864 = vmatpush2.bf16.msra.mxu0 0
        %865 = vmatprep.subr.bf16.mxu0 0
        %866 = vmatpush2.bf16.msra.mxu0 0
        %867 = vmatprep.subr.bf16.mxu0 0
        %868 = vmatpush2.bf16.msra.mxu0 0
        %869 = vmatprep.subr.bf16.mxu0 0
        %870 = vmatpush2.bf16.msra.mxu0 0
        %871 = vmatprep.mubr.bf16.mxu0 0
        %872 = vmatmul.mubr.bf16.gmra.mxu0 %v792
        %v873 = vpop.f32.mrf.mxu0
        %v874 = vadd.f32 %v573, %v873
        %v875 = vpop.f32.mrf.mxu0
        %v876 = vpop.f32.mrf.mxu0
        %v877 = vadd.f32 %v576, %v876
        %v878 = vpop.f32.mrf.mxu0
        %879 = vmatprep.mubr.bf16.mxu0 0
        %880 = vmatmul.mubr.bf16.gmra.mxu0 %v795
        %v881 = vpop.f32.mrf.mxu0
        %v882 = vadd.f32 %v581, %v881
        %v883 = vpop.f32.mrf.mxu0
        %v884 = vpop.f32.mrf.mxu0
        %v885 = vadd.f32 %v584, %v884
        %v886 = vpop.f32.mrf.mxu0
        %887 = vmatprep.mubr.bf16.mxu0 0
        %888 = vmatmul.mubr.bf16.gmra.mxu0 %v798
        %v889 = vpop.f32.mrf.mxu0
        %v890 = vadd.f32 %v589, %v889
        %v891 = vpop.f32.mrf.mxu0
        %v892 = vpop.f32.mrf.mxu0
        %v893 = vadd.f32 %v592, %v892
        %v894 = vpop.f32.mrf.mxu0
        %895 = vmatprep.mubr.bf16.mxu0 0
        %896 = vmatmul.mubr.bf16.gmra.mxu0 %v801
        %v897 = vpop.f32.mrf.mxu0
        %v898 = vadd.f32 %v597, %v897
        %v899 = vpop.f32.mrf.mxu0
        %v900 = vpop.f32.mrf.mxu0
        %v901 = vadd.f32 %v600, %v900
        %v902 = vpop.f32.mrf.mxu0
        %903 = vmatprep.mubr.bf16.mxu0 0
        %904 = vmatmul.mubr.bf16.gmra.mxu0 %v804
        %v905 = vpop.f32.mrf.mxu0
        %v906 = vadd.f32 %v605, %v905
        %v907 = vpop.f32.mrf.mxu0
        %v908 = vpop.f32.mrf.mxu0
        %v909 = vadd.f32 %v608, %v908
        %v910 = vpop.f32.mrf.mxu0
        %911 = vmatprep.mubr.bf16.mxu0 0
        %912 = vmatmul.mubr.bf16.gmra.mxu0 %v807
        %v913 = vpop.f32.mrf.mxu0
        %v914 = vadd.f32 %v613, %v913
        %v915 = vpop.f32.mrf.mxu0
        %v916 = vpop.f32.mrf.mxu0
        %v917 = vadd.f32 %v616, %v916
        %v918 = vpop.f32.mrf.mxu0
        %919 = vmatprep.mubr.bf16.mxu0 0
        %920 = vmatmul.mubr.bf16.gmra.mxu0 %v810
        %v921 = vpop.f32.mrf.mxu0
        %v922 = vadd.f32 %v621, %v921
        %v923 = vpop.f32.mrf.mxu0
        %v924 = vpop.f32.mrf.mxu0
        %v925 = vadd.f32 %v624, %v924
        %v926 = vpop.f32.mrf.mxu0
        %927 = vmatprep.mubr.bf16.mxu0 0
        %928 = vmatmul.mubr.bf16.gmra.mxu0 %v813
        %v929 = vpop.f32.mrf.mxu0
        %v930 = vadd.f32 %v629, %v929
        %v931 = vpop.f32.mrf.mxu0
        %v932 = vpop.f32.mrf.mxu0
        %v933 = vadd.f32 %v632, %v932
        %v934 = vpop.f32.mrf.mxu0
        %935 = vmatprep.mubr.bf16.mxu0 0
        %936 = vmatmul.mubr.bf16.gmra.mxu0 %v816
        %v937 = vpop.f32.mrf.mxu0
        %v938 = vadd.f32 %v637, %v937
        %v939 = vpop.f32.mrf.mxu0
        %v940 = vpop.f32.mrf.mxu0
        %v941 = vadd.f32 %v640, %v940
        %v942 = vpop.f32.mrf.mxu0
        %943 = vmatprep.mubr.bf16.mxu0 0
        %944 = vmatmul.mubr.bf16.gmra.mxu0 %v819
        %v945 = vpop.f32.mrf.mxu0
        %v946 = vadd.f32 %v645, %v945
        %v947 = vpop.f32.mrf.mxu0
        %v948 = vpop.f32.mrf.mxu0
        %v949 = vadd.f32 %v648, %v948
        %v950 = vpop.f32.mrf.mxu0
        %951 = vmatprep.mubr.bf16.mxu0 0
        %952 = vmatmul.mubr.bf16.gmra.mxu0 %v822
        %v953 = vpop.f32.mrf.mxu0
        %v954 = vadd.f32 %v653, %v953
        %v955 = vpop.f32.mrf.mxu0
        %v956 = vpop.f32.mrf.mxu0
        %v957 = vadd.f32 %v656, %v956
        %v958 = vpop.f32.mrf.mxu0
        %959 = vmatprep.mubr.bf16.mxu0 0
        %960 = vmatmul.mubr.bf16.gmra.mxu0 %v825
        %v961 = vpop.f32.mrf.mxu0
        %v962 = vadd.f32 %v661, %v961
        %v963 = vpop.f32.mrf.mxu0
        %v964 = vpop.f32.mrf.mxu0
        %v965 = vadd.f32 %v664, %v964
        %v966 = vpop.f32.mrf.mxu0
        %967 = vmatprep.mubr.bf16.mxu0 0
        %968 = vmatmul.mubr.bf16.gmra.mxu0 %v828
        %v969 = vpop.f32.mrf.mxu0
        %v970 = vadd.f32 %v669, %v969
        %v971 = vpop.f32.mrf.mxu0
        %v972 = vpop.f32.mrf.mxu0
        %v973 = vadd.f32 %v672, %v972
        %v974 = vpop.f32.mrf.mxu0
        %975 = vmatprep.mubr.bf16.mxu0 0
        %976 = vmatmul.mubr.bf16.gmra.mxu0 %v831
        %v977 = vpop.f32.mrf.mxu0
        %v978 = vadd.f32 %v677, %v977
        %v979 = vpop.f32.mrf.mxu0
        %v980 = vpop.f32.mrf.mxu0
        %v981 = vadd.f32 %v680, %v980
        %v982 = vpop.f32.mrf.mxu0
        %983 = vmatprep.mubr.bf16.mxu0 0
        %984 = vmatmul.mubr.bf16.gmra.mxu0 %v834
        %v985 = vpop.f32.mrf.mxu0
        %v986 = vadd.f32 %v685, %v985
        %v987 = vpop.f32.mrf.mxu0
        %v988 = vpop.f32.mrf.mxu0
        %v989 = vadd.f32 %v688, %v988
        %v990 = vpop.f32.mrf.mxu0
        %991 = vmatprep.mubr.bf16.mxu0 0
        %992 = vmatmul.mubr.bf16.gmra.mxu0 %v837
        %v993 = vpop.f32.mrf.mxu0
        %v994 = vadd.f32 %v693, %v993
        %v995 = vpop.f32.mrf.mxu0
        %v996 = vpop.f32.mrf.mxu0
        %v997 = vadd.f32 %v696, %v996
        %v998 = vpop.f32.mrf.mxu0
        %999 = vdwg.mxu0
        %v1000 = vld [vmem:[%s321] sm:$0xf]
        %v1001 = vld [vmem:[%s321 + $0x4] sm:$0xf]
        %v1002 = vld [vmem:[%s321 + $0x8] sm:$0xf]
        %v1003 = vld [vmem:[%s321 + $0xc] sm:$0xf]
        %v1004 = vld [vmem:[%s321 + $0x10] sm:$0xf]
        %v1005 = vld [vmem:[%s321 + $0x14] sm:$0xf]
        %v1006 = vld [vmem:[%s321 + $0x18] sm:$0xf]
        %v1007 = vld [vmem:[%s321 + $0x1c] sm:$0xf]
        %v1008 = vld [vmem:[%s321 + $0x20] sm:$0xf]
        %v1009 = vld [vmem:[%s321 + $0x24] sm:$0xf]
        %v1010 = vld [vmem:[%s321 + $0x28] sm:$0xf]
        %v1011 = vld [vmem:[%s321 + $0x2c] sm:$0xf]
        %v1012 = vld [vmem:[%s321 + $0x30] sm:$0xf]
        %v1013 = vld [vmem:[%s321 + $0x34] sm:$0xf]
        %v1014 = vld [vmem:[%s321 + $0x38] sm:$0xf]
        %v1015 = vld [vmem:[%s321 + $0x3c] sm:$0xf]
        %v1016 = vld [vmem:[%s321 + $0x40] sm:$0xf]
        %v1017 = vld [vmem:[%s321 + $0x44] sm:$0xf]
        %v1018 = vld [vmem:[%s321 + $0x48] sm:$0xf]
        %v1019 = vld [vmem:[%s321 + $0x4c] sm:$0xf]
        %v1020 = vld [vmem:[%s321 + $0x50] sm:$0xf]
        %v1021 = vld [vmem:[%s321 + $0x54] sm:$0xf]
        %v1022 = vld [vmem:[%s321 + $0x58] sm:$0xf]
        %v1023 = vld [vmem:[%s321 + $0x5c] sm:$0xf]
        %v1024 = vld [vmem:[%s321 + $0x60] sm:$0xf]
        %v1025 = vld [vmem:[%s321 + $0x64] sm:$0xf]
        %v1026 = vld [vmem:[%s321 + $0x68] sm:$0xf]
        %v1027 = vld [vmem:[%s321 + $0x6c] sm:$0xf]
        %v1028 = vld [vmem:[%s321 + $0x70] sm:$0xf]
        %v1029 = vld [vmem:[%s321 + $0x74] sm:$0xf]
        %v1030 = vld [vmem:[%s321 + $0x78] sm:$0xf]
        %v1031 = vld [vmem:[%s321 + $0x7c] sm:$0xf]
        %v1032 = vld [vmem:[%s5] sm:$0xf]
        %v1033 = vld [vmem:[%s5 + $0x4] sm:$0xf]
        %v1034 = vld [vmem:[%s5 + $0x8] sm:$0xf]
        %v1035 = vld [vmem:[%s5 + $0xc] sm:$0xf]
        %v1068 = vunpack.c.l.b16 %v1000
        %v1069 = vunpack.c.l.b16 %v1001
        %v1070 = vunpack.c.l.b16 %v1002
        %v1071 = vunpack.c.l.b16 %v1003
        %v1072 = vunpack.c.l.b16 %v1004
        %v1073 = vunpack.c.l.b16 %v1005
        %v1074 = vunpack.c.l.b16 %v1006
        %v1075 = vunpack.c.l.b16 %v1007
        %v1076 = vunpack.c.l.b16 %v1008
        %v1077 = vunpack.c.l.b16 %v1009
        %v1078 = vunpack.c.l.b16 %v1010
        %v1079 = vunpack.c.l.b16 %v1011
        %v1080 = vunpack.c.l.b16 %v1012
        %v1081 = vunpack.c.l.b16 %v1013
        %v1082 = vunpack.c.l.b16 %v1014
        %v1083 = vunpack.c.l.b16 %v1015
        %v1084 = vunpack.c.l.b16 %v1016
        %v1085 = vunpack.c.l.b16 %v1017
        %v1086 = vunpack.c.l.b16 %v1018
        %v1087 = vunpack.c.l.b16 %v1019
        %v1088 = vunpack.c.l.b16 %v1020
        %v1089 = vunpack.c.l.b16 %v1021
        %v1090 = vunpack.c.l.b16 %v1022
        %v1091 = vunpack.c.l.b16 %v1023
        %v1092 = vunpack.c.l.b16 %v1024
        %v1093 = vunpack.c.l.b16 %v1025
        %v1094 = vunpack.c.l.b16 %v1026
        %v1095 = vunpack.c.l.b16 %v1027
        %v1096 = vunpack.c.l.b16 %v1028
        %v1097 = vunpack.c.l.b16 %v1029
        %v1098 = vunpack.c.l.b16 %v1030
        %v1099 = vunpack.c.l.b16 %v1031
        %v1100 = vpack.c.b16 %v1069, %v1068
        %v1101 = vpack.c.b16 %v1071, %v1070
        %v1102 = vpack.c.b16 %v1073, %v1072
        %v1103 = vpack.c.b16 %v1075, %v1074
        %v1104 = vpack.c.b16 %v1077, %v1076
        %v1105 = vpack.c.b16 %v1079, %v1078
        %v1106 = vpack.c.b16 %v1081, %v1080
        %v1107 = vpack.c.b16 %v1083, %v1082
        %v1108 = vpack.c.b16 %v1085, %v1084
        %v1109 = vpack.c.b16 %v1087, %v1086
        %v1110 = vpack.c.b16 %v1089, %v1088
        %v1111 = vpack.c.b16 %v1091, %v1090
        %v1112 = vpack.c.b16 %v1093, %v1092
        %v1113 = vpack.c.b16 %v1095, %v1094
        %v1114 = vpack.c.b16 %v1097, %v1096
        %v1115 = vpack.c.b16 %v1099, %v1098
        %v1120 = vunpack.c.l.b16 %v1032
        %v1121 = vunpack.c.l.b16 %v1033
        %v1122 = vunpack.c.l.b16 %v1034
        %v1123 = vunpack.c.l.b16 %v1035
        %v1124 = vpack.c.b16 %v1121, %v1120
        %v1125 = vpack.c.b16 %v1123, %v1122
        %v1129 = vsel %vm489, %v1100, 0
        %v1132 = vsel %vm489, %v1101, 0
        %v1135 = vsel %vm489, %v1102, 0
        %v1138 = vsel %vm489, %v1103, 0
        %v1141 = vsel %vm489, %v1104, 0
        %v1144 = vsel %vm489, %v1105, 0
        %v1147 = vsel %vm489, %v1106, 0
        %v1150 = vsel %vm489, %v1107, 0
        %v1153 = vsel %vm489, %v1108, 0
        %v1156 = vsel %vm489, %v1109, 0
        %v1159 = vsel %vm489, %v1110, 0
        %v1162 = vsel %vm489, %v1111, 0
        %v1165 = vsel %vm489, %v1112, 0
        %v1168 = vsel %vm489, %v1113, 0
        %v1171 = vsel %vm489, %v1114, 0
        %v1174 = vsel %vm489, %v1115, 0
        %1176 = vmatprep.subr.bf16.mxu0 0
        %1177 = vmatpush1.bf16.msra.mxu0 0
        %1178 = vmatprep.subr.bf16.mxu0 0
        %1179 = vmatpush1.bf16.msra.mxu0 0
        %1180 = vmatprep.subr.bf16.mxu0 0
        %1181 = vmatpush1.bf16.msra.mxu0 0
        %1182 = vmatprep.subr.bf16.mxu0 0
        %1183 = vmatpush1.bf16.msra.mxu0 0
        %1184 = vmatprep.subr.bf16.mxu0 0
        %1185 = vmatpush1.bf16.msra.mxu0 0
        %1186 = vmatprep.subr.bf16.mxu0 0
        %1187 = vmatpush1.bf16.msra.mxu0 0
        %1188 = vmatprep.subr.bf16.mxu0 0
        %1189 = vmatpush1.bf16.msra.mxu0 %v1125
        %1190 = vmatprep.subr.bf16.mxu0 0
        %1191 = vmatpush1.bf16.msra.mxu0 %v1124
        %1192 = vmatprep.subr.bf16.mxu0 0
        %1193 = vmatpush2.bf16.msra.mxu0 0
        %1194 = vmatprep.subr.bf16.mxu0 0
        %1195 = vmatpush2.bf16.msra.mxu0 0
        %1196 = vmatprep.subr.bf16.mxu0 0
        %1197 = vmatpush2.bf16.msra.mxu0 0
        %1198 = vmatprep.subr.bf16.mxu0 0
        %1199 = vmatpush2.bf16.msra.mxu0 0
        %1200 = vmatprep.subr.bf16.mxu0 0
        %1201 = vmatpush2.bf16.msra.mxu0 0
        %1202 = vmatprep.subr.bf16.mxu0 0
        %1203 = vmatpush2.bf16.msra.mxu0 0
        %1204 = vmatprep.subr.bf16.mxu0 0
        %1205 = vmatpush2.bf16.msra.mxu0 0
        %1206 = vmatprep.subr.bf16.mxu0 0
        %1207 = vmatpush2.bf16.msra.mxu0 0
        %1208 = vmatprep.mubr.bf16.mxu0 0
        %1209 = vmatmul.mubr.bf16.gmra.mxu0 %v1129
        %v1210 = vpop.f32.mrf.mxu0
        %v1211 = vadd.f32 0.0, %v1210
        %v1212 = vpop.f32.mrf.mxu0
        %v1213 = vpop.f32.mrf.mxu0
        %v1214 = vadd.f32 0.0, %v1213
        %v1215 = vpop.f32.mrf.mxu0
        %1216 = vmatprep.mubr.bf16.mxu0 0
        %1217 = vmatmul.mubr.bf16.gmra.mxu0 %v1132
        %v1218 = vpop.f32.mrf.mxu0
        %v1219 = vadd.f32 0.0, %v1218
        %v1220 = vpop.f32.mrf.mxu0
        %v1221 = vpop.f32.mrf.mxu0
        %v1222 = vadd.f32 0.0, %v1221
        %v1223 = vpop.f32.mrf.mxu0
        %1224 = vmatprep.mubr.bf16.mxu0 0
        %1225 = vmatmul.mubr.bf16.gmra.mxu0 %v1135
        %v1226 = vpop.f32.mrf.mxu0
        %v1227 = vadd.f32 0.0, %v1226
        %v1228 = vpop.f32.mrf.mxu0
        %v1229 = vpop.f32.mrf.mxu0
        %v1230 = vadd.f32 0.0, %v1229
        %v1231 = vpop.f32.mrf.mxu0
        %1232 = vmatprep.mubr.bf16.mxu0 0
        %1233 = vmatmul.mubr.bf16.gmra.mxu0 %v1138
        %v1234 = vpop.f32.mrf.mxu0
        %v1235 = vadd.f32 0.0, %v1234
        %v1236 = vpop.f32.mrf.mxu0
        %v1237 = vpop.f32.mrf.mxu0
        %v1238 = vadd.f32 0.0, %v1237
        %v1239 = vpop.f32.mrf.mxu0
        %1240 = vmatprep.mubr.bf16.mxu0 0
        %1241 = vmatmul.mubr.bf16.gmra.mxu0 %v1141
        %v1242 = vpop.f32.mrf.mxu0
        %v1243 = vadd.f32 0.0, %v1242
        %v1244 = vpop.f32.mrf.mxu0
        %v1245 = vpop.f32.mrf.mxu0
        %v1246 = vadd.f32 0.0, %v1245
        %v1247 = vpop.f32.mrf.mxu0
        %1248 = vmatprep.mubr.bf16.mxu0 0
        %1249 = vmatmul.mubr.bf16.gmra.mxu0 %v1144
        %v1250 = vpop.f32.mrf.mxu0
        %v1251 = vadd.f32 0.0, %v1250
        %v1252 = vpop.f32.mrf.mxu0
        %v1253 = vpop.f32.mrf.mxu0
        %v1254 = vadd.f32 0.0, %v1253
        %v1255 = vpop.f32.mrf.mxu0
        %1256 = vmatprep.mubr.bf16.mxu0 0
        %1257 = vmatmul.mubr.bf16.gmra.mxu0 %v1147
        %v1258 = vpop.f32.mrf.mxu0
        %v1259 = vadd.f32 0.0, %v1258
        %v1260 = vpop.f32.mrf.mxu0
        %v1261 = vpop.f32.mrf.mxu0
        %v1262 = vadd.f32 0.0, %v1261
        %v1263 = vpop.f32.mrf.mxu0
        %1264 = vmatprep.mubr.bf16.mxu0 0
        %1265 = vmatmul.mubr.bf16.gmra.mxu0 %v1150
        %v1266 = vpop.f32.mrf.mxu0
        %v1267 = vadd.f32 0.0, %v1266
        %v1268 = vpop.f32.mrf.mxu0
        %v1269 = vpop.f32.mrf.mxu0
        %v1270 = vadd.f32 0.0, %v1269
        %v1271 = vpop.f32.mrf.mxu0
        %1272 = vmatprep.mubr.bf16.mxu0 0
        %1273 = vmatmul.mubr.bf16.gmra.mxu0 %v1153
        %v1274 = vpop.f32.mrf.mxu0
        %v1275 = vadd.f32 0.0, %v1274
        %v1276 = vpop.f32.mrf.mxu0
        %v1277 = vpop.f32.mrf.mxu0
        %v1278 = vadd.f32 0.0, %v1277
        %v1279 = vpop.f32.mrf.mxu0
        %1280 = vmatprep.mubr.bf16.mxu0 0
        %1281 = vmatmul.mubr.bf16.gmra.mxu0 %v1156
        %v1282 = vpop.f32.mrf.mxu0
        %v1283 = vadd.f32 0.0, %v1282
        %v1284 = vpop.f32.mrf.mxu0
        %v1285 = vpop.f32.mrf.mxu0
        %v1286 = vadd.f32 0.0, %v1285
        %v1287 = vpop.f32.mrf.mxu0
        %1288 = vmatprep.mubr.bf16.mxu0 0
        %1289 = vmatmul.mubr.bf16.gmra.mxu0 %v1159
        %v1290 = vpop.f32.mrf.mxu0
        %v1291 = vadd.f32 0.0, %v1290
        %v1292 = vpop.f32.mrf.mxu0
        %v1293 = vpop.f32.mrf.mxu0
        %v1294 = vadd.f32 0.0, %v1293
        %v1295 = vpop.f32.mrf.mxu0
        %1296 = vmatprep.mubr.bf16.mxu0 0
        %1297 = vmatmul.mubr.bf16.gmra.mxu0 %v1162
        %v1298 = vpop.f32.mrf.mxu0
        %v1299 = vadd.f32 0.0, %v1298
        %v1300 = vpop.f32.mrf.mxu0
        %v1301 = vpop.f32.mrf.mxu0
        %v1302 = vadd.f32 0.0, %v1301
        %v1303 = vpop.f32.mrf.mxu0
        %1304 = vmatprep.mubr.bf16.mxu0 0
        %1305 = vmatmul.mubr.bf16.gmra.mxu0 %v1165
        %v1306 = vpop.f32.mrf.mxu0
        %v1307 = vadd.f32 0.0, %v1306
        %v1308 = vpop.f32.mrf.mxu0
        %v1309 = vpop.f32.mrf.mxu0
        %v1310 = vadd.f32 0.0, %v1309
        %v1311 = vpop.f32.mrf.mxu0
        %1312 = vmatprep.mubr.bf16.mxu0 0
        %1313 = vmatmul.mubr.bf16.gmra.mxu0 %v1168
        %v1314 = vpop.f32.mrf.mxu0
        %v1315 = vadd.f32 0.0, %v1314
        %v1316 = vpop.f32.mrf.mxu0
        %v1317 = vpop.f32.mrf.mxu0
        %v1318 = vadd.f32 0.0, %v1317
        %v1319 = vpop.f32.mrf.mxu0
        %1320 = vmatprep.mubr.bf16.mxu0 0
        %1321 = vmatmul.mubr.bf16.gmra.mxu0 %v1171
        %v1322 = vpop.f32.mrf.mxu0
        %v1323 = vadd.f32 0.0, %v1322
        %v1324 = vpop.f32.mrf.mxu0
        %v1325 = vpop.f32.mrf.mxu0
        %v1326 = vadd.f32 0.0, %v1325
        %v1327 = vpop.f32.mrf.mxu0
        %1328 = vmatprep.mubr.bf16.mxu0 0
        %1329 = vmatmul.mubr.bf16.gmra.mxu0 %v1174
        %v1330 = vpop.f32.mrf.mxu0
        %v1331 = vadd.f32 0.0, %v1330
        %v1332 = vpop.f32.mrf.mxu0
        %v1333 = vpop.f32.mrf.mxu0
        %v1334 = vadd.f32 0.0, %v1333
        %v1335 = vpop.f32.mrf.mxu0
        %1336 = vdwg.mxu0
        %v1337 = vadd.f32 %v874, %v1211
        %v1338 = vadd.f32 %v877, %v1214
        %v1339 = vadd.f32 %v882, %v1219
        %v1340 = vadd.f32 %v885, %v1222
        %v1341 = vadd.f32 %v890, %v1227
        %v1342 = vadd.f32 %v893, %v1230
        %v1343 = vadd.f32 %v898, %v1235
        %v1344 = vadd.f32 %v901, %v1238
        %v1345 = vadd.f32 %v906, %v1243
        %v1346 = vadd.f32 %v909, %v1246
        %v1347 = vadd.f32 %v914, %v1251
        %v1348 = vadd.f32 %v917, %v1254
        %v1349 = vadd.f32 %v922, %v1259
        %v1350 = vadd.f32 %v925, %v1262
        %v1351 = vadd.f32 %v930, %v1267
        %v1352 = vadd.f32 %v933, %v1270
        %v1353 = vadd.f32 %v938, %v1275
        %v1354 = vadd.f32 %v941, %v1278
        %v1355 = vadd.f32 %v946, %v1283
        %v1356 = vadd.f32 %v949, %v1286
        %v1357 = vadd.f32 %v954, %v1291
        %v1358 = vadd.f32 %v957, %v1294
        %v1359 = vadd.f32 %v962, %v1299
        %v1360 = vadd.f32 %v965, %v1302
        %v1361 = vadd.f32 %v970, %v1307
        %v1362 = vadd.f32 %v973, %v1310
        %v1363 = vadd.f32 %v978, %v1315
        %v1364 = vadd.f32 %v981, %v1318
        %v1365 = vadd.f32 %v986, %v1323
        %v1366 = vadd.f32 %v989, %v1326
        %v1367 = vadd.f32 %v994, %v1331
        %v1368 = vadd.f32 %v997, %v1334
        %v1369 = vld [vmem:[%s6] sm:$0x1]
        %v1371 = vlaneseq
        %v1372 = vshrl.u32 %v1371, 7
        %v1373 = vsub.s32 0, %v1372
        %v1374 = vrot.slane %v1369, %v1373
        %v1376 = vadd.f32 %v1337, %v1374
        %v1377 = vadd.f32 %v1338, %v1374
        %v1378 = vadd.f32 %v1339, %v1374
        %v1379 = vadd.f32 %v1340, %v1374
        %v1380 = vadd.f32 %v1341, %v1374
        %v1381 = vadd.f32 %v1342, %v1374
        %v1382 = vadd.f32 %v1343, %v1374
        %v1383 = vadd.f32 %v1344, %v1374
        %v1384 = vadd.f32 %v1345, %v1374
        %v1385 = vadd.f32 %v1346, %v1374
        %v1386 = vadd.f32 %v1347, %v1374
        %v1387 = vadd.f32 %v1348, %v1374
        %v1388 = vadd.f32 %v1349, %v1374
        %v1389 = vadd.f32 %v1350, %v1374
        %v1390 = vadd.f32 %v1351, %v1374
        %v1391 = vadd.f32 %v1352, %v1374
        %v1392 = vadd.f32 %v1353, %v1374
        %v1393 = vadd.f32 %v1354, %v1374
        %v1394 = vadd.f32 %v1355, %v1374
        %v1395 = vadd.f32 %v1356, %v1374
        %v1396 = vadd.f32 %v1357, %v1374
        %v1397 = vadd.f32 %v1358, %v1374
        %v1398 = vadd.f32 %v1359, %v1374
        %v1399 = vadd.f32 %v1360, %v1374
        %v1400 = vadd.f32 %v1361, %v1374
        %v1401 = vadd.f32 %v1362, %v1374
        %v1402 = vadd.f32 %v1363, %v1374
        %v1403 = vadd.f32 %v1364, %v1374
        %v1404 = vadd.f32 %v1365, %v1374
        %v1405 = vadd.f32 %v1366, %v1374
        %v1406 = vadd.f32 %v1367, %v1374
        %v1407 = vadd.f32 %v1368, %v1374
        %v1408 = vsub.f32 0.0, %v1376
        %v1409 = vsub.f32 0.0, %v1377
        %v1410 = vsub.f32 0.0, %v1378
        %v1411 = vsub.f32 0.0, %v1379
        %v1412 = vsub.f32 0.0, %v1380
        %v1413 = vsub.f32 0.0, %v1381
        %v1414 = vsub.f32 0.0, %v1382
        %v1415 = vsub.f32 0.0, %v1383
        %v1416 = vsub.f32 0.0, %v1384
        %v1417 = vsub.f32 0.0, %v1385
        %v1418 = vsub.f32 0.0, %v1386
        %v1419 = vsub.f32 0.0, %v1387
        %v1420 = vsub.f32 0.0, %v1388
        %v1421 = vsub.f32 0.0, %v1389
        %v1422 = vsub.f32 0.0, %v1390
        %v1423 = vsub.f32 0.0, %v1391
        %v1424 = vsub.f32 0.0, %v1392
        %v1425 = vsub.f32 0.0, %v1393
        %v1426 = vsub.f32 0.0, %v1394
        %v1427 = vsub.f32 0.0, %v1395
        %v1428 = vsub.f32 0.0, %v1396
        %v1429 = vsub.f32 0.0, %v1397
        %v1430 = vsub.f32 0.0, %v1398
        %v1431 = vsub.f32 0.0, %v1399
        %v1432 = vsub.f32 0.0, %v1400
        %v1433 = vsub.f32 0.0, %v1401
        %v1434 = vsub.f32 0.0, %v1402
        %v1435 = vsub.f32 0.0, %v1403
        %v1436 = vsub.f32 0.0, %v1404
        %v1437 = vsub.f32 0.0, %v1405
        %v1438 = vsub.f32 0.0, %v1406
        %v1439 = vsub.f32 0.0, %v1407
        %v1440 = vmul.f32 %v1408, 1.442695
        %v1441 = vpow.pop %v1440
        %v1442 = vmul.f32 %v1409, 1.442695
        %v1443 = vpow.pop %v1442
        %v1444 = vmul.f32 %v1410, 1.442695
        %v1445 = vpow.pop %v1444
        %v1446 = vmul.f32 %v1411, 1.442695
        %v1447 = vpow.pop %v1446
        %v1448 = vmul.f32 %v1412, 1.442695
        %v1449 = vpow.pop %v1448
        %v1450 = vmul.f32 %v1413, 1.442695
        %v1451 = vpow.pop %v1450
        %v1452 = vmul.f32 %v1414, 1.442695
        %v1453 = vpow.pop %v1452
        %v1454 = vmul.f32 %v1415, 1.442695
        %v1455 = vpow.pop %v1454
        %v1456 = vmul.f32 %v1416, 1.442695
        %v1457 = vpow.pop %v1456
        %v1458 = vmul.f32 %v1417, 1.442695
        %v1459 = vpow.pop %v1458
        %v1460 = vmul.f32 %v1418, 1.442695
        %v1461 = vpow.pop %v1460
        %v1462 = vmul.f32 %v1419, 1.442695
        %v1463 = vpow.pop %v1462
        %v1464 = vmul.f32 %v1420, 1.442695
        %v1465 = vpow.pop %v1464
        %v1466 = vmul.f32 %v1421, 1.442695
        %v1467 = vpow.pop %v1466
        %v1468 = vmul.f32 %v1422, 1.442695
        %v1469 = vpow.pop %v1468
        %v1470 = vmul.f32 %v1423, 1.442695
        %v1471 = vpow.pop %v1470
        %v1472 = vmul.f32 %v1424, 1.442695
        %v1473 = vpow.pop %v1472
        %v1474 = vmul.f32 %v1425, 1.442695
        %v1475 = vpow.pop %v1474
        %v1476 = vmul.f32 %v1426, 1.442695
        %v1477 = vpow.pop %v1476
        %v1478 = vmul.f32 %v1427, 1.442695
        %v1479 = vpow.pop %v1478
        %v1480 = vmul.f32 %v1428, 1.442695
        %v1481 = vpow.pop %v1480
        %v1482 = vmul.f32 %v1429, 1.442695
        %v1483 = vpow.pop %v1482
        %v1484 = vmul.f32 %v1430, 1.442695
        %v1485 = vpow.pop %v1484
        %v1486 = vmul.f32 %v1431, 1.442695
        %v1487 = vpow.pop %v1486
        %v1488 = vmul.f32 %v1432, 1.442695
        %v1489 = vpow.pop %v1488
        %v1490 = vmul.f32 %v1433, 1.442695
        %v1491 = vpow.pop %v1490
        %v1492 = vmul.f32 %v1434, 1.442695
        %v1493 = vpow.pop %v1492
        %v1494 = vmul.f32 %v1435, 1.442695
        %v1495 = vpow.pop %v1494
        %v1496 = vmul.f32 %v1436, 1.442695
        %v1497 = vpow.pop %v1496
        %v1498 = vmul.f32 %v1437, 1.442695
        %v1499 = vpow.pop %v1498
        %v1500 = vmul.f32 %v1438, 1.442695
        %v1501 = vpow.pop %v1500
        %v1502 = vmul.f32 %v1439, 1.442695
        %v1503 = vpow.pop %v1502
        %v1504 = vadd.f32 %v1441, 1.0
        %v1505 = vadd.f32 %v1443, 1.0
        %v1506 = vadd.f32 %v1445, 1.0
        %v1507 = vadd.f32 %v1447, 1.0
        %v1508 = vadd.f32 %v1449, 1.0
        %v1509 = vadd.f32 %v1451, 1.0
        %v1510 = vadd.f32 %v1453, 1.0
        %v1511 = vadd.f32 %v1455, 1.0
        %v1512 = vadd.f32 %v1457, 1.0
        %v1513 = vadd.f32 %v1459, 1.0
        %v1514 = vadd.f32 %v1461, 1.0
        %v1515 = vadd.f32 %v1463, 1.0
        %v1516 = vadd.f32 %v1465, 1.0
        %v1517 = vadd.f32 %v1467, 1.0
        %v1518 = vadd.f32 %v1469, 1.0
        %v1519 = vadd.f32 %v1471, 1.0
        %v1520 = vadd.f32 %v1473, 1.0
        %v1521 = vadd.f32 %v1475, 1.0
        %v1522 = vadd.f32 %v1477, 1.0
        %v1523 = vadd.f32 %v1479, 1.0
        %v1524 = vadd.f32 %v1481, 1.0
        %v1525 = vadd.f32 %v1483, 1.0
        %v1526 = vadd.f32 %v1485, 1.0
        %v1527 = vadd.f32 %v1487, 1.0
        %v1528 = vadd.f32 %v1489, 1.0
        %v1529 = vadd.f32 %v1491, 1.0
        %v1530 = vadd.f32 %v1493, 1.0
        %v1531 = vadd.f32 %v1495, 1.0
        %v1532 = vadd.f32 %v1497, 1.0
        %v1533 = vadd.f32 %v1499, 1.0
        %v1534 = vadd.f32 %v1501, 1.0
        %v1535 = vadd.f32 %v1503, 1.0
        %v1536 = vrcp.pop %v1504
        %v1537 = vrcp.pop %v1505
        %v1538 = vrcp.pop %v1506
        %v1539 = vrcp.pop %v1507
        %v1540 = vrcp.pop %v1508
        %v1541 = vrcp.pop %v1509
        %v1542 = vrcp.pop %v1510
        %v1543 = vrcp.pop %v1511
        %v1544 = vrcp.pop %v1512
        %v1545 = vrcp.pop %v1513
        %v1546 = vrcp.pop %v1514
        %v1547 = vrcp.pop %v1515
        %v1548 = vrcp.pop %v1516
        %v1549 = vrcp.pop %v1517
        %v1550 = vrcp.pop %v1518
        %v1551 = vrcp.pop %v1519
        %v1552 = vrcp.pop %v1520
        %v1553 = vrcp.pop %v1521
        %v1554 = vrcp.pop %v1522
        %v1555 = vrcp.pop %v1523
        %v1556 = vrcp.pop %v1524
        %v1557 = vrcp.pop %v1525
        %v1558 = vrcp.pop %v1526
        %v1559 = vrcp.pop %v1527
        %v1560 = vrcp.pop %v1528
        %v1561 = vrcp.pop %v1529
        %v1562 = vrcp.pop %v1530
        %v1563 = vrcp.pop %v1531
        %v1564 = vrcp.pop %v1532
        %v1565 = vrcp.pop %v1533
        %v1566 = vrcp.pop %v1534
        %v1567 = vrcp.pop %v1535
        %v1568 = vmul.f32 %v1376, %v1536
        %v1569 = vmul.f32 %v1377, %v1537
        %v1570 = vmul.f32 %v1378, %v1538
        %v1571 = vmul.f32 %v1379, %v1539
        %v1572 = vmul.f32 %v1380, %v1540
        %v1573 = vmul.f32 %v1381, %v1541
        %v1574 = vmul.f32 %v1382, %v1542
        %v1575 = vmul.f32 %v1383, %v1543
        %v1576 = vmul.f32 %v1384, %v1544
        %v1577 = vmul.f32 %v1385, %v1545
        %v1578 = vmul.f32 %v1386, %v1546
        %v1579 = vmul.f32 %v1387, %v1547
        %v1580 = vmul.f32 %v1388, %v1548
        %v1581 = vmul.f32 %v1389, %v1549
        %v1582 = vmul.f32 %v1390, %v1550
        %v1583 = vmul.f32 %v1391, %v1551
        %v1584 = vmul.f32 %v1392, %v1552
        %v1585 = vmul.f32 %v1393, %v1553
        %v1586 = vmul.f32 %v1394, %v1554
        %v1587 = vmul.f32 %v1395, %v1555
        %v1588 = vmul.f32 %v1396, %v1556
        %v1589 = vmul.f32 %v1397, %v1557
        %v1590 = vmul.f32 %v1398, %v1558
        %v1591 = vmul.f32 %v1399, %v1559
        %v1592 = vmul.f32 %v1400, %v1560
        %v1593 = vmul.f32 %v1401, %v1561
        %v1594 = vmul.f32 %v1402, %v1562
        %v1595 = vmul.f32 %v1403, %v1563
        %v1596 = vmul.f32 %v1404, %v1564
        %v1597 = vmul.f32 %v1405, %v1565
        %v1598 = vmul.f32 %v1406, %v1566
        %v1599 = vmul.f32 %v1407, %v1567
        %vm1600 = vcmask 523264
        %1601 = vst.msk [vmem:[%s304] sm:$0xff] %vm1600, %v1568
        %1602 = vst.msk [vmem:[%s304 + $0x8] sm:$0xff] %vm1600, %v1569
        %1603 = vst.msk [vmem:[%s304 + $0x10] sm:$0xff] %vm1600, %v1570
        %1604 = vst.msk [vmem:[%s304 + $0x18] sm:$0xff] %vm1600, %v1571
        %1605 = vst.msk [vmem:[%s304 + $0x20] sm:$0xff] %vm1600, %v1572
        %1606 = vst.msk [vmem:[%s304 + $0x28] sm:$0xff] %vm1600, %v1573
        %1607 = vst.msk [vmem:[%s304 + $0x30] sm:$0xff] %vm1600, %v1574
        %1608 = vst.msk [vmem:[%s304 + $0x38] sm:$0xff] %vm1600, %v1575
        %1609 = vst.msk [vmem:[%s304 + $0x40] sm:$0xff] %vm1600, %v1576
        %1610 = vst.msk [vmem:[%s304 + $0x48] sm:$0xff] %vm1600, %v1577
        %1611 = vst.msk [vmem:[%s304 + $0x50] sm:$0xff] %vm1600, %v1578
        %1612 = vst.msk [vmem:[%s304 + $0x58] sm:$0xff] %vm1600, %v1579
        %1613 = vst.msk [vmem:[%s304 + $0x60] sm:$0xff] %vm1600, %v1580
        %1614 = vst.msk [vmem:[%s304 + $0x68] sm:$0xff] %vm1600, %v1581
        %1615 = vst.msk [vmem:[%s304 + $0x70] sm:$0xff] %vm1600, %v1582
        %1616 = vst.msk [vmem:[%s304 + $0x78] sm:$0xff] %vm1600, %v1583
        %1617 = vst.msk [vmem:[%s304 + $0x80] sm:$0xff] %vm1600, %v1584
        %1618 = vst.msk [vmem:[%s304 + $0x88] sm:$0xff] %vm1600, %v1585
        %1619 = vst.msk [vmem:[%s304 + $0x90] sm:$0xff] %vm1600, %v1586
        %1620 = vst.msk [vmem:[%s304 + $0x98] sm:$0xff] %vm1600, %v1587
        %1621 = vst.msk [vmem:[%s304 + $0xa0] sm:$0xff] %vm1600, %v1588
        %1622 = vst.msk [vmem:[%s304 + $0xa8] sm:$0xff] %vm1600, %v1589
        %1623 = vst.msk [vmem:[%s304 + $0xb0] sm:$0xff] %vm1600, %v1590
        %1624 = vst.msk [vmem:[%s304 + $0xb8] sm:$0xff] %vm1600, %v1591
        %1625 = vst.msk [vmem:[%s304 + $0xc0] sm:$0xff] %vm1600, %v1592
        %1626 = vst.msk [vmem:[%s304 + $0xc8] sm:$0xff] %vm1600, %v1593
        %1627 = vst.msk [vmem:[%s304 + $0xd0] sm:$0xff] %vm1600, %v1594
        %1628 = vst.msk [vmem:[%s304 + $0xd8] sm:$0xff] %vm1600, %v1595
        %1629 = vst.msk [vmem:[%s304 + $0xe0] sm:$0xff] %vm1600, %v1596
        %1630 = vst.msk [vmem:[%s304 + $0xe8] sm:$0xff] %vm1600, %v1597
        %1631 = vst.msk [vmem:[%s304 + $0xf0] sm:$0xff] %vm1600, %v1598
        %1632 = vst.msk [vmem:[%s304 + $0xf8] sm:$0xff] %vm1600, %v1599
        %s1633 = sand.u32 %s191, 1
        %s1634 = scalar_lea.sflag [#allocation3], %s1633
        %s1635 = sand.u32 %s191, 1
        %s1636 = smul.addr %s1635, 256
        %s1637 = scalar_lea.vmem [#allocation2], %s1636
        // Predicated region
        $region49: #{csp_stage_forward.11} parent=47 // pred_check
          %p1638 = pneg %p201
        $region50: #{csp_stage_forward.11} parent=47 // pred_check_branch
          %1640 = sbr.rel (%p1638) target = $region52
        $region51: #{csp_stage_forward.11} parent=47 // pred_region
          %s1641 = smul.u32 32, %s21
          %s1643 = ssub.s32 4096, 4096
          %1644 = vsyncadd %s1634, %s1643
          %s1645 = smul.addr %s1641, 128
          %s1646 = scalar_lea.hbm %s7, %s1645
          %s1647 = sshll.u32 %s1637, 4
          %s1648 = int_to_ptr.vmem [resolvable:$true] %s1647
          %1653 = dma.vmem_to_hbm [thread:$0]  %s1648, 4096, %s1646, %s1634, 128, 128, 8
        $region52: #{csp_stage_forward.11} parent=47 // pred_fallthru
          _
      $region48: #{csp_stage_forward.11} parent=5 // pred_fallthru
        _
      %p1654 = scmp.le.s32.totalorder 2, %s16
      // Predicated region
      $region53: #{csp_stage_forward.11} parent=5 // pred_check
        %p1655 = pneg %p1654
      $region54: #{csp_stage_forward.11} parent=5 // pred_check_branch
        %1657 = sbr.rel (%p1655) target = $region56
      $region55: #{csp_stage_forward.11} parent=5 // pred_region
        %s1658 = ssub.s32 %s16, 2
        // Predicated region
        $region57: #{csp_stage_forward.11} parent=55 // pred_check
          %p1659 = pneg %p207
        $region58: #{csp_stage_forward.11} parent=55 // pred_check_branch
          %1661 = sbr.rel (%p1659) target = $region60
        $region59: #{csp_stage_forward.11} parent=55 // pred_region
          %s1662 = sand.u32 %s192, 1
          %s1663 = scalar_lea.sflag [#allocation3], %s1662
          %s1664 = sand.u32 %s192, 1
          %s1665 = smul.addr %s1664, 256
          %s1666 = scalar_lea.vmem [#allocation2], %s1665
          %1667 = dma.done %s1663, 4096
        $region60: #{csp_stage_forward.11} parent=55 // pred_fallthru
          _
      $region56: #{csp_stage_forward.11} parent=5 // pred_fallthru
        _
    $region6: #{csp_stage_forward.11} parent=1 // loop_footer
      %s20 = sadd.s32 1, %s16
    $region7: #{csp_stage_forward.11} parent=1 // loop_footer_branch
      %15 = sbr.rel target = $region3
    $region8: #{csp_stage_forward.11} parent=1 // loop_exit
      _
    %1668 = vsyncpa [#allocation3], 1
    %s1669 = scalar_lea.sflag [#allocation3], 1
    %1670 = vsyncpa %s1669, 1

// kernel: csp_stage_forward.7
$region0: #{csp_stage_forward.7}
  #allocation0 [shape = 'u32[]', space=smem, size = 0x4, offset = 0x4, fixed_abs, tag = 'smem constant byte address 0x4 - core index']
  #allocation1 [shape = 'u32[144,128]{1,0:T(1,128)}', space=vmem, size = 0x12000, scoped, tag = 'internal scratch']
  #allocation2 [shape = 'f32[288,32]{1,0:T(8,128)}', space=vmem, size = 0x24000, scoped, tag = 'scratch operand']
  %s0 = inlined_call_operand.vmem [shape: bf16[2,342,32], index: 0, kind: input, shape index: {}]
  %s1 = inlined_call_operand.vmem [shape: bf16[9,32,32], index: 1, kind: input, shape index: {}]
  %s2 = inlined_call_operand.vmem [shape: f32[1,32], index: 2, kind: input, shape index: {}]
  %s3 = inlined_call_operand.vmem [shape: bf16[2,256,32], index: 3, kind: output, shape index: {}]
  %s4 = sld [smem:[#allocation0]]
  $region45: #{csp_stage_forward.7} parent=0
    _
  %s6 = ssub.s32 1, %s4
  %s7 = scalar_select 0, %s6, %s4
  loop: start=0, step=1, limit=4
  $region2: #{csp_stage_forward.7} parent=0 // loop_pre_header
    _
  $region3: #{csp_stage_forward.7} parent=0 // loop_header
    %s9 = sphi 0, %s13
    %p10 = scmp.ge.s32.totalorder %s9, 4
    %s19 = sphi 0, %s21
    %s22 = sphi 0, %s19
    %s23 = sphi 0, %s22
    %s39 = sphi 0, %s23
    %s43 = sphi 0, %s43
    %s45 = sphi 0, %s43
    %s46 = sphi 0, %s45
    %s60 = sphi 0, %s46
    %s64 = sphi 0, %s64
    %s66 = sphi 0, %s64
    %s67 = sphi 0, %s66
    %s81 = sphi 0, %s67
    %s87 = sphi 0, %s89
    %s90 = sphi 0, %s87
    %s91 = sphi 0, %s90
    %s107 = sphi 0, %s91
  $region4: #{csp_stage_forward.7} parent=0 // loop_header_branch
    %12 = sbr.rel (%p10) target = $region8
  $region5: #{csp_stage_forward.7} parent=0 // loop_body
    %s14 = ssub.s32 %s9, 1
    %s15 = ssub.s32 %s9, 2
    %s16 = sadd.s32 %s9, 1
    %s17 = ssub.s32 %s9, %s16
    %p18 = scmp.eq.s32.totalorder %s17, 0
    %s20 = sadd.s32 %s19, 1
    %s21 = scalar_select %p18, %s19, %s20
    %p24 = pneg %p18
    %p25 = scmp.eq.s32.totalorder %s9, 1
    %p26 = por %p24, %p25
    %p27 = scmp.ne.s32.totalorder %s19, %s22
    %p28 = scmp.eq.s32.totalorder %s9, 0
    %p29 = por %p27, %p28
    %p30 = scmp.ne.s32.totalorder %s19, %s22
    %p31 = scmp.eq.s32.totalorder %s14, 1
    %p32 = por %p30, %p31
    %p33 = scmp.ne.s32.totalorder %s22, %s23
    %p34 = scmp.eq.s32.totalorder %s14, 0
    %p35 = por %p33, %p34
    %p36 = scmp.ne.s32.totalorder %s22, %s23
    %p37 = scmp.eq.s32.totalorder %s15, 1
    %p38 = por %p36, %p37
    %p40 = scmp.ne.s32.totalorder %s23, %s39
    %p41 = scmp.eq.s32.totalorder %s15, 0
    %p42 = por %p40, %p41
    %s44 = sadd.s32 %s43, 1
    %p47 = scmp.eq.s32.totalorder %s9, 1
    %p48 = scmp.ne.s32.totalorder %s43, %s45
    %p49 = scmp.eq.s32.totalorder %s9, 0
    %p50 = por %p48, %p49
    %p51 = scmp.ne.s32.totalorder %s43, %s45
    %p52 = scmp.eq.s32.totalorder %s14, 1
    %p53 = por %p51, %p52
    %p54 = scmp.ne.s32.totalorder %s45, %s46
    %p55 = scmp.eq.s32.totalorder %s14, 0
    %p56 = por %p54, %p55
    %p57 = scmp.ne.s32.totalorder %s45, %s46
    %p58 = scmp.eq.s32.totalorder %s15, 1
    %p59 = por %p57, %p58
    %p61 = scmp.ne.s32.totalorder %s46, %s60
    %p62 = scmp.eq.s32.totalorder %s15, 0
    %p63 = por %p61, %p62
    %s65 = sadd.s32 %s64, 1
    %p68 = scmp.eq.s32.totalorder %s9, 1
    %p69 = scmp.ne.s32.totalorder %s64, %s66
    %p70 = scmp.eq.s32.totalorder %s9, 0
    %p71 = por %p69, %p70
    %p72 = scmp.ne.s32.totalorder %s64, %s66
    %p73 = scmp.eq.s32.totalorder %s14, 1
    %p74 = por %p72, %p73
    %p75 = scmp.ne.s32.totalorder %s66, %s67
    %p76 = scmp.eq.s32.totalorder %s14, 0
    %p77 = por %p75, %p76
    %p78 = scmp.ne.s32.totalorder %s66, %s67
    %p79 = scmp.eq.s32.totalorder %s15, 1
    %p80 = por %p78, %p79
    %p82 = scmp.ne.s32.totalorder %s67, %s81
    %p83 = scmp.eq.s32.totalorder %s15, 0
    %p84 = por %p82, %p83
    %s85 = ssub.s32 %s9, %s16
    %p86 = scmp.eq.s32.totalorder %s85, 0
    %s88 = sadd.s32 %s87, 1
    %s89 = scalar_select %p86, %s87, %s88
    %p92 = pneg %p86
    %p93 = scmp.eq.s32.totalorder %s9, 1
    %p94 = por %p92, %p93
    %p95 = scmp.ne.s32.totalorder %s87, %s90
    %p96 = scmp.eq.s32.totalorder %s9, 0
    %p97 = por %p95, %p96
    %p98 = scmp.ne.s32.totalorder %s87, %s90
    %p99 = scmp.eq.s32.totalorder %s14, 1
    %p100 = por %p98, %p99
    %p101 = scmp.ne.s32.totalorder %s90, %s91
    %p102 = scmp.eq.s32.totalorder %s14, 0
    %p103 = por %p101, %p102
    %p104 = scmp.ne.s32.totalorder %s90, %s91
    %p105 = scmp.eq.s32.totalorder %s15, 1
    %p106 = por %p104, %p105
    %p108 = scmp.ne.s32.totalorder %s91, %s107
    %p109 = scmp.eq.s32.totalorder %s15, 0
    %p110 = por %p108, %p109
    %p111 = scmp.le.s32.totalorder 1, %s9
    %p112 = scmp.lt.s32.totalorder %s9, 3
    %p113 = pnand %p111, %p112
    %p114 = pneg %p113
    // Predicated region
    $region9: #{csp_stage_forward.7} parent=5 // pred_check
      _
    $region10: #{csp_stage_forward.7} parent=5 // pred_check_branch
      %116 = sbr.rel (%p113) target = $region12
    $region11: #{csp_stage_forward.7} parent=5 // pred_region
      %s117 = ssub.s32 %s9, 1
      // Predicated region
      $region13: #{csp_stage_forward.7} parent=11 // pred_check
        %p118 = pneg %p56
      $region14: #{csp_stage_forward.7} parent=11 // pred_check_branch
        %120 = sbr.rel (%p118) target = $region16
      $region15: #{csp_stage_forward.7} parent=11 // pred_region
        _
      $region16: #{csp_stage_forward.7} parent=11 // pred_fallthru
        _
      // Predicated region
      $region17: #{csp_stage_forward.7} parent=11 // pred_check
        %p121 = pneg %p77
      $region18: #{csp_stage_forward.7} parent=11 // pred_check_branch
        %123 = sbr.rel (%p121) target = $region20
      $region19: #{csp_stage_forward.7} parent=11 // pred_region
        _
      $region20: #{csp_stage_forward.7} parent=11 // pred_fallthru
        _
    $region12: #{csp_stage_forward.7} parent=5 // pred_fallthru
      _
    %p124 = scmp.lt.s32.totalorder %s9, 2
    // Predicated region
    $region21: #{csp_stage_forward.7} parent=5 // pred_check
      %p125 = pneg %p124
    $region22: #{csp_stage_forward.7} parent=5 // pred_check_branch
      %127 = sbr.rel (%p125) target = $region24
    $region23: #{csp_stage_forward.7} parent=5 // pred_region
      // Predicated region
      $region25: #{csp_stage_forward.7} parent=23 // pred_check
        %p128 = pneg %p29
      $region26: #{csp_stage_forward.7} parent=23 // pred_check_branch
        %130 = sbr.rel (%p128) target = $region28
      $region27: #{csp_stage_forward.7} parent=23 // pred_region
        %p131 = scmp.lt.s32.totalorder %s9, 1
        %s132 = scalar_select %p131, %s9, 1
        %s133 = smul.addr %s132, 43
        %s134 = smul.addr %s133, 4
        %s135 = scalar_lea.vmem %s0, %s134
      $region28: #{csp_stage_forward.7} parent=23 // pred_fallthru
        _
    $region24: #{csp_stage_forward.7} parent=5 // pred_fallthru
      _
    %p136 = scmp.le.s32.totalorder 1, %s9
    %p137 = scmp.lt.s32.totalorder %s9, 3
    %p138 = pnand %p136, %p137
    %p139 = pneg %p138
    // Predicated region
    $region29: #{csp_stage_forward.7} parent=5 // pred_check
      _
    $region30: #{csp_stage_forward.7} parent=5 // pred_check_branch
      %141 = sbr.rel (%p138) target = $region32
    $region31: #{csp_stage_forward.7} parent=5 // pred_region
      %s142 = ssub.s32 %s9, 1
      %p143 = scmp.lt.s32.totalorder %s14, 1
      %s144 = scalar_select %p143, %s14, 1
      %s145 = smul.addr %s144, 43
      %s146 = smul.addr %s145, 4
      %s147 = scalar_lea.vmem %s0, %s146
      %p148 = pneg %p35
      %p149 = pneg %p32
      %p150 = pneg %p56
      %p151 = pneg %p53
      %p152 = pneg %p77
      %p153 = pneg %p74
      %p154 = pneg %p103
      %p155 = pneg %p100
      %p156 = scmp.lt.s32.totalorder %s14, 1
      %s157 = scalar_select %p156, %s14, 1
      %s158 = smul.addr %s157, 32
      %s159 = smul.addr %s158, 4
      %s160 = scalar_lea.vmem %s3, %s159
      %p161 = scmp.lt.s32.totalorder %s14, 1
      %s162 = scalar_select %p161, %s14, 1
      %s163 = smul.addr %s162, 43
      %s164 = smul.addr %s163, 4
      %s165 = scalar_lea.vmem %s0, %s164
      %p166 = scmp.lt.s32.totalorder %s14, 1
      %s167 = scalar_select %p166, %s14, 1
      %s168 = smul.addr %s167, 32
      %s169 = smul.addr %s168, 4
      %s170 = scalar_lea.vmem %s3, %s169
      %v172 = vld [vmem:[%s165] sm:$0xf]
      %v173 = vld [vmem:[%s165 + $0x4] sm:$0xf]
      %v174 = vld [vmem:[%s165 + $0x8] sm:$0xf]
      %v175 = vld [vmem:[%s165 + $0xc] sm:$0xf]
      %v176 = vld [vmem:[%s165 + $0x10] sm:$0xf]
      %v177 = vld [vmem:[%s165 + $0x14] sm:$0xf]
      %v178 = vld [vmem:[%s165 + $0x18] sm:$0xf]
      %v179 = vld [vmem:[%s165 + $0x1c] sm:$0xf]
      %v180 = vld [vmem:[%s165 + $0x20] sm:$0xf]
      %v181 = vld [vmem:[%s165 + $0x24] sm:$0xf]
      %v182 = vld [vmem:[%s165 + $0x28] sm:$0xf]
      %v183 = vld [vmem:[%s165 + $0x2c] sm:$0xf]
      %v184 = vld [vmem:[%s165 + $0x30] sm:$0xf]
      %v185 = vld [vmem:[%s165 + $0x34] sm:$0xf]
      %v186 = vld [vmem:[%s165 + $0x38] sm:$0xf]
      %v187 = vld [vmem:[%s165 + $0x3c] sm:$0xf]
      %v188 = vld [vmem:[%s165 + $0x40] sm:$0xf]
      %v189 = vld [vmem:[%s165 + $0x44] sm:$0xf]
      %v190 = vld [vmem:[%s165 + $0x48] sm:$0xf]
      %v191 = vld [vmem:[%s165 + $0x4c] sm:$0xf]
      %v192 = vld [vmem:[%s165 + $0x50] sm:$0xf]
      %v193 = vld [vmem:[%s165 + $0x54] sm:$0xf]
      %v194 = vld [vmem:[%s165 + $0x58] sm:$0xf]
      %v195 = vld [vmem:[%s165 + $0x5c] sm:$0xf]
      %v196 = vld [vmem:[%s165 + $0x60] sm:$0xf]
      %v197 = vld [vmem:[%s165 + $0x64] sm:$0xf]
      %v198 = vld [vmem:[%s165 + $0x68] sm:$0xf]
      %v199 = vld [vmem:[%s165 + $0x6c] sm:$0xf]
      %v200 = vld [vmem:[%s165 + $0x70] sm:$0xf]
      %v201 = vld [vmem:[%s165 + $0x74] sm:$0xf]
      %v202 = vld [vmem:[%s165 + $0x78] sm:$0xf]
      %v203 = vld [vmem:[%s165 + $0x7c] sm:$0xf]
      %v204 = vld [vmem:[%s165 + $0x80] sm:$0xf]
      %v205 = vld [vmem:[%s165 + $0x84] sm:$0xf]
      %v206 = vld [vmem:[%s165 + $0x88] sm:$0xf]
      %v207 = vld [vmem:[%s165 + $0x8c] sm:$0xf]
      %v208 = vld [vmem:[%s1] sm:$0xf]
      %v209 = vld [vmem:[%s1 + $0x4] sm:$0xf]
      %v210 = vld [vmem:[%s1 + $0x8] sm:$0xf]
      %v211 = vld [vmem:[%s1 + $0xc] sm:$0xf]
      %v212 = vld [vmem:[%s165 + $0x90] sm:$0x1]
      %s213 = scalar_lea.vmem %s1, 16
      %v214 = vld [vmem:[%s213] sm:$0xf]
      %v215 = vld [vmem:[%s213 + $0x4] sm:$0xf]
      %v216 = vld [vmem:[%s213 + $0x8] sm:$0xf]
      %v217 = vld [vmem:[%s213 + $0xc] sm:$0xf]
      %v255 = vunpack.c.l.b16 %v172
      %v256 = vunpack.c.l.b16 %v173
      %v257 = vunpack.c.l.b16 %v174
      %v258 = vunpack.c.l.b16 %v175
      %v259 = vunpack.c.l.b16 %v176
      %v260 = vunpack.c.l.b16 %v177
      %v261 = vunpack.c.l.b16 %v178
      %v262 = vunpack.c.l.b16 %v179
      %v263 = vunpack.c.l.b16 %v180
      %v264 = vunpack.c.l.b16 %v181
      %v265 = vunpack.c.l.b16 %v182
      %v266 = vunpack.c.l.b16 %v183
      %v267 = vunpack.c.l.b16 %v184
      %v268 = vunpack.c.l.b16 %v185
      %v269 = vunpack.c.l.b16 %v186
      %v270 = vunpack.c.l.b16 %v187
      %v271 = vunpack.c.l.b16 %v188
      %v272 = vunpack.c.l.b16 %v189
      %v273 = vunpack.c.l.b16 %v190
      %v274 = vunpack.c.l.b16 %v191
      %v275 = vunpack.c.l.b16 %v192
      %v276 = vunpack.c.l.b16 %v193
      %v277 = vunpack.c.l.b16 %v194
      %v278 = vunpack.c.l.b16 %v195
      %v279 = vunpack.c.l.b16 %v196
      %v280 = vunpack.c.l.b16 %v197
      %v281 = vunpack.c.l.b16 %v198
      %v282 = vunpack.c.l.b16 %v199
      %v283 = vunpack.c.l.b16 %v200
      %v284 = vunpack.c.l.b16 %v201
      %v285 = vunpack.c.l.b16 %v202
      %v286 = vunpack.c.l.b16 %v203
      %v287 = vunpack.c.l.b16 %v204
      %v288 = vunpack.c.l.b16 %v205
      %v289 = vunpack.c.l.b16 %v206
      %v290 = vunpack.c.l.b16 %v207
      %v291 = vunpack.c.l.b16 %v212
      %v292 = vpack.c.b16 %v256, %v255
      %v293 = vpack.c.b16 %v258, %v257
      %v294 = vpack.c.b16 %v260, %v259
      %v295 = vpack.c.b16 %v262, %v261
      %v296 = vpack.c.b16 %v264, %v263
      %v297 = vpack.c.b16 %v266, %v265
      %v298 = vpack.c.b16 %v268, %v267
      %v299 = vpack.c.b16 %v270, %v269
      %v300 = vpack.c.b16 %v272, %v271
      %v301 = vpack.c.b16 %v274, %v273
      %v302 = vpack.c.b16 %v276, %v275
      %v303 = vpack.c.b16 %v278, %v277
      %v304 = vpack.c.b16 %v280, %v279
      %v305 = vpack.c.b16 %v282, %v281
      %v306 = vpack.c.b16 %v284, %v283
      %v307 = vpack.c.b16 %v286, %v285
      %v308 = vpack.c.b16 %v288, %v287
      %v309 = vpack.c.b16 %v290, %v289
      %v310 = vpack.c.b16 %v291, %v291
      %vm311 = vsmask.f32 7424
      %v313 = vshrl.u32 %v292, 16
      %v315 = vshll.u32 %v292, 16
      %v317 = vrot.slane %v315, 1
      %v318 = vor.u32 %v313, %v317
      %v320 = vshll.u32 %v293, 16
      %v322 = vrot.slane %v320, 1
      %v323 = vsel %vm311, %v318, %v322
      %v324 = vshrl.u32 %v293, 16
      %v326 = vor.u32 %v324, %v322
      %v328 = vshll.u32 %v294, 16
      %v330 = vrot.slane %v328, 1
      %v331 = vsel %vm311, %v326, %v330
      %v332 = vshrl.u32 %v294, 16
      %v334 = vor.u32 %v332, %v330
      %v336 = vshll.u32 %v295, 16
      %v338 = vrot.slane %v336, 1
      %v339 = vsel %vm311, %v334, %v338
      %v340 = vshrl.u32 %v295, 16
      %v342 = vor.u32 %v340, %v338
      %v344 = vshll.u32 %v296, 16
      %v346 = vrot.slane %v344, 1
      %v347 = vsel %vm311, %v342, %v346
      %v348 = vshrl.u32 %v296, 16
      %v350 = vor.u32 %v348, %v346
      %v352 = vshll.u32 %v297, 16
      %v354 = vrot.slane %v352, 1
      %v355 = vsel %vm311, %v350, %v354
      %v356 = vshrl.u32 %v297, 16
      %v358 = vor.u32 %v356, %v354
      %v360 = vshll.u32 %v298, 16
      %v362 = vrot.slane %v360, 1
      %v363 = vsel %vm311, %v358, %v362
      %v364 = vshrl.u32 %v298, 16
      %v366 = vor.u32 %v364, %v362
      %v368 = vshll.u32 %v299, 16
      %v370 = vrot.slane %v368, 1
      %v371 = vsel %vm311, %v366, %v370
      %v372 = vshrl.u32 %v299, 16
      %v374 = vor.u32 %v372, %v370
      %v376 = vshll.u32 %v300, 16
      %v378 = vrot.slane %v376, 1
      %v379 = vsel %vm311, %v374, %v378
      %v380 = vshrl.u32 %v300, 16
      %v382 = vor.u32 %v380, %v378
      %v384 = vshll.u32 %v301, 16
      %v386 = vrot.slane %v384, 1
      %v387 = vsel %vm311, %v382, %v386
      %v388 = vshrl.u32 %v301, 16
      %v390 = vor.u32 %v388, %v386
      %v392 = vshll.u32 %v302, 16
      %v394 = vrot.slane %v392, 1
      %v395 = vsel %vm311, %v390, %v394
      %v396 = vshrl.u32 %v302, 16
      %v398 = vor.u32 %v396, %v394
      %v400 = vshll.u32 %v303, 16
      %v402 = vrot.slane %v400, 1
      %v403 = vsel %vm311, %v398, %v402
      %v404 = vshrl.u32 %v303, 16
      %v406 = vor.u32 %v404, %v402
      %v408 = vshll.u32 %v304, 16
      %v410 = vrot.slane %v408, 1
      %v411 = vsel %vm311, %v406, %v410
      %v412 = vshrl.u32 %v304, 16
      %v414 = vor.u32 %v412, %v410
      %v416 = vshll.u32 %v305, 16
      %v418 = vrot.slane %v416, 1
      %v419 = vsel %vm311, %v414, %v418
      %v420 = vshrl.u32 %v305, 16
      %v422 = vor.u32 %v420, %v418
      %v424 = vshll.u32 %v306, 16
      %v426 = vrot.slane %v424, 1
      %v427 = vsel %vm311, %v422, %v426
      %v428 = vshrl.u32 %v306, 16
      %v430 = vor.u32 %v428, %v426
      %v432 = vshll.u32 %v307, 16
      %v434 = vrot.slane %v432, 1
      %v435 = vsel %vm311, %v430, %v434
      %v436 = vshrl.u32 %v307, 16
      %v438 = vor.u32 %v436, %v434
      %v440 = vshll.u32 %v308, 16
      %v442 = vrot.slane %v440, 1
      %v443 = vsel %vm311, %v438, %v442
      %v444 = vshrl.u32 %v308, 16
      %v446 = vor.u32 %v444, %v442
      %v448 = vshll.u32 %v309, 16
      %v450 = vrot.slane %v448, 1
      %v451 = vsel %vm311, %v446, %v450
      %v452 = vshrl.u32 %v309, 16
      %v454 = vor.u32 %v452, %v450
      %v456 = vshll.u32 %v310, 16
      %v458 = vrot.slane %v456, 1
      %v459 = vsel %vm311, %v454, %v458
      %v464 = vunpack.c.l.b16 %v214
      %v465 = vunpack.c.l.b16 %v215
      %v466 = vunpack.c.l.b16 %v216
      %v467 = vunpack.c.l.b16 %v217
      %v468 = vpack.c.b16 %v465, %v464
      %v469 = vpack.c.b16 %v467, %v466
      %vm472 = vcmask 261120
      %v474 = vsel %vm472, %v323, 0
      %v477 = vsel %vm472, %v331, 0
      %v480 = vsel %vm472, %v339, 0
      %v483 = vsel %vm472, %v347, 0
      %v486 = vsel %vm472, %v355, 0
      %v489 = vsel %vm472, %v363, 0
      %v492 = vsel %vm472, %v371, 0
      %v495 = vsel %vm472, %v379, 0
      %v498 = vsel %vm472, %v387, 0
      %v501 = vsel %vm472, %v395, 0
      %v504 = vsel %vm472, %v403, 0
      %v507 = vsel %vm472, %v411, 0
      %v510 = vsel %vm472, %v419, 0
      %v513 = vsel %vm472, %v427, 0
      %v516 = vsel %vm472, %v435, 0
      %v519 = vsel %vm472, %v443, 0
      %v522 = vsel %vm472, %v451, 0
      %v525 = vsel %vm472, %v459, 0
      %527 = vmatprep.subr.bf16.mxu0 0
      %528 = vmatpush1.bf16.msra.mxu0 0
      %529 = vmatprep.subr.bf16.mxu0 0
      %530 = vmatpush1.bf16.msra.mxu0 0
      %531 = vmatprep.subr.bf16.mxu0 0
      %532 = vmatpush1.bf16.msra.mxu0 0
      %533 = vmatprep.subr.bf16.mxu0 0
      %534 = vmatpush1.bf16.msra.mxu0 0
      %535 = vmatprep.subr.bf16.mxu0 0
      %536 = vmatpush1.bf16.msra.mxu0 0
      %537 = vmatprep.subr.bf16.mxu0 0
      %538 = vmatpush1.bf16.msra.mxu0 0
      %539 = vmatprep.subr.bf16.mxu0 0
      %540 = vmatpush1.bf16.msra.mxu0 %v469
      %541 = vmatprep.subr.bf16.mxu0 0
      %542 = vmatpush1.bf16.msra.mxu0 %v468
      %543 = vmatprep.subr.bf16.mxu0 0
      %544 = vmatpush2.bf16.msra.mxu0 0
      %545 = vmatprep.subr.bf16.mxu0 0
      %546 = vmatpush2.bf16.msra.mxu0 0
      %547 = vmatprep.subr.bf16.mxu0 0
      %548 = vmatpush2.bf16.msra.mxu0 0
      %549 = vmatprep.subr.bf16.mxu0 0
      %550 = vmatpush2.bf16.msra.mxu0 0
      %551 = vmatprep.subr.bf16.mxu0 0
      %552 = vmatpush2.bf16.msra.mxu0 0
      %553 = vmatprep.subr.bf16.mxu0 0
      %554 = vmatpush2.bf16.msra.mxu0 0
      %555 = vmatprep.subr.bf16.mxu0 0
      %556 = vmatpush2.bf16.msra.mxu0 0
      %557 = vmatprep.subr.bf16.mxu0 0
      %558 = vmatpush2.bf16.msra.mxu0 0
      %559 = vmatprep.mubr.bf16.mxu0 0
      %560 = vmatmul.mubr.bf16.gmra.mxu0 %v474
      %v561 = vpop.f32.mrf.mxu0
      %v562 = vadd.f32 0.0, %v561
      %v563 = vpop.f32.mrf.mxu0
      %v564 = vpop.f32.mrf.mxu0
      %v565 = vadd.f32 0.0, %v564
      %v566 = vpop.f32.mrf.mxu0
      %567 = vmatprep.mubr.bf16.mxu0 0
      %568 = vmatmul.mubr.bf16.gmra.mxu0 %v477
      %v569 = vpop.f32.mrf.mxu0
      %v570 = vadd.f32 0.0, %v569
      %v571 = vpop.f32.mrf.mxu0
      %v572 = vpop.f32.mrf.mxu0
      %v573 = vadd.f32 0.0, %v572
      %v574 = vpop.f32.mrf.mxu0
      %575 = vmatprep.mubr.bf16.mxu0 0
      %576 = vmatmul.mubr.bf16.gmra.mxu0 %v480
      %v577 = vpop.f32.mrf.mxu0
      %v578 = vadd.f32 0.0, %v577
      %v579 = vpop.f32.mrf.mxu0
      %v580 = vpop.f32.mrf.mxu0
      %v581 = vadd.f32 0.0, %v580
      %v582 = vpop.f32.mrf.mxu0
      %583 = vmatprep.mubr.bf16.mxu0 0
      %584 = vmatmul.mubr.bf16.gmra.mxu0 %v483
      %v585 = vpop.f32.mrf.mxu0
      %v586 = vadd.f32 0.0, %v585
      %v587 = vpop.f32.mrf.mxu0
      %v588 = vpop.f32.mrf.mxu0
      %v589 = vadd.f32 0.0, %v588
      %v590 = vpop.f32.mrf.mxu0
      %591 = vmatprep.mubr.bf16.mxu0 0
      %592 = vmatmul.mubr.bf16.gmra.mxu0 %v486
      %v593 = vpop.f32.mrf.mxu0
      %v594 = vadd.f32 0.0, %v593
      %v595 = vpop.f32.mrf.mxu0
      %v596 = vpop.f32.mrf.mxu0
      %v597 = vadd.f32 0.0, %v596
      %v598 = vpop.f32.mrf.mxu0
      %599 = vmatprep.mubr.bf16.mxu0 0
      %600 = vmatmul.mubr.bf16.gmra.mxu0 %v489
      %v601 = vpop.f32.mrf.mxu0
      %v602 = vadd.f32 0.0, %v601
      %v603 = vpop.f32.mrf.mxu0
      %v604 = vpop.f32.mrf.mxu0
      %v605 = vadd.f32 0.0, %v604
      %v606 = vpop.f32.mrf.mxu0
      %607 = vmatprep.mubr.bf16.mxu0 0
      %608 = vmatmul.mubr.bf16.gmra.mxu0 %v492
      %v609 = vpop.f32.mrf.mxu0
      %v610 = vadd.f32 0.0, %v609
      %v611 = vpop.f32.mrf.mxu0
      %v612 = vpop.f32.mrf.mxu0
      %v613 = vadd.f32 0.0, %v612
      %v614 = vpop.f32.mrf.mxu0
      %615 = vmatprep.mubr.bf16.mxu0 0
      %616 = vmatmul.mubr.bf16.gmra.mxu0 %v495
      %v617 = vpop.f32.mrf.mxu0
      %v618 = vadd.f32 0.0, %v617
      %v619 = vpop.f32.mrf.mxu0
      %v620 = vpop.f32.mrf.mxu0
      %v621 = vadd.f32 0.0, %v620
      %v622 = vpop.f32.mrf.mxu0
      %623 = vmatprep.mubr.bf16.mxu0 0
      %624 = vmatmul.mubr.bf16.gmra.mxu0 %v498
      %v625 = vpop.f32.mrf.mxu0
      %v626 = vadd.f32 0.0, %v625
      %v627 = vpop.f32.mrf.mxu0
      %v628 = vpop.f32.mrf.mxu0
      %v629 = vadd.f32 0.0, %v628
      %v630 = vpop.f32.mrf.mxu0
      %631 = vmatprep.mubr.bf16.mxu0 0
      %632 = vmatmul.mubr.bf16.gmra.mxu0 %v501
      %v633 = vpop.f32.mrf.mxu0
      %v634 = vadd.f32 0.0, %v633
      %v635 = vpop.f32.mrf.mxu0
      %v636 = vpop.f32.mrf.mxu0
      %v637 = vadd.f32 0.0, %v636
      %v638 = vpop.f32.mrf.mxu0
      %639 = vmatprep.mubr.bf16.mxu0 0
      %640 = vmatmul.mubr.bf16.gmra.mxu0 %v504
      %v641 = vpop.f32.mrf.mxu0
      %v642 = vadd.f32 0.0, %v641
      %v643 = vpop.f32.mrf.mxu0
      %v644 = vpop.f32.mrf.mxu0
      %v645 = vadd.f32 0.0, %v644
      %v646 = vpop.f32.mrf.mxu0
      %647 = vmatprep.mubr.bf16.mxu0 0
      %648 = vmatmul.mubr.bf16.gmra.mxu0 %v507
      %v649 = vpop.f32.mrf.mxu0
      %v650 = vadd.f32 0.0, %v649
      %v651 = vpop.f32.mrf.mxu0
      %v652 = vpop.f32.mrf.mxu0
      %v653 = vadd.f32 0.0, %v652
      %v654 = vpop.f32.mrf.mxu0
      %655 = vmatprep.mubr.bf16.mxu0 0
      %656 = vmatmul.mubr.bf16.gmra.mxu0 %v510
      %v657 = vpop.f32.mrf.mxu0
      %v658 = vadd.f32 0.0, %v657
      %v659 = vpop.f32.mrf.mxu0
      %v660 = vpop.f32.mrf.mxu0
      %v661 = vadd.f32 0.0, %v660
      %v662 = vpop.f32.mrf.mxu0
      %663 = vmatprep.mubr.bf16.mxu0 0
      %664 = vmatmul.mubr.bf16.gmra.mxu0 %v513
      %v665 = vpop.f32.mrf.mxu0
      %v666 = vadd.f32 0.0, %v665
      %v667 = vpop.f32.mrf.mxu0
      %v668 = vpop.f32.mrf.mxu0
      %v669 = vadd.f32 0.0, %v668
      %v670 = vpop.f32.mrf.mxu0
      %671 = vmatprep.mubr.bf16.mxu0 0
      %672 = vmatmul.mubr.bf16.gmra.mxu0 %v516
      %v673 = vpop.f32.mrf.mxu0
      %v674 = vadd.f32 0.0, %v673
      %v675 = vpop.f32.mrf.mxu0
      %v676 = vpop.f32.mrf.mxu0
      %v677 = vadd.f32 0.0, %v676
      %v678 = vpop.f32.mrf.mxu0
      %679 = vmatprep.mubr.bf16.mxu0 0
      %680 = vmatmul.mubr.bf16.gmra.mxu0 %v519
      %v681 = vpop.f32.mrf.mxu0
      %v682 = vadd.f32 0.0, %v681
      %v683 = vpop.f32.mrf.mxu0
      %v684 = vpop.f32.mrf.mxu0
      %v685 = vadd.f32 0.0, %v684
      %v686 = vpop.f32.mrf.mxu0
      %687 = vmatprep.mubr.bf16.mxu0 0
      %688 = vmatmul.mubr.bf16.gmra.mxu0 %v522
      %v689 = vpop.f32.mrf.mxu0
      %v690 = vadd.f32 0.0, %v689
      %v691 = vpop.f32.mrf.mxu0
      %v692 = vpop.f32.mrf.mxu0
      %v693 = vadd.f32 0.0, %v692
      %v694 = vpop.f32.mrf.mxu0
      %695 = vmatprep.mubr.bf16.mxu0 0
      %696 = vmatmul.mubr.bf16.gmra.mxu0 %v525
      %v697 = vpop.f32.mrf.mxu0
      %v698 = vadd.f32 0.0, %v697
      %v699 = vpop.f32.mrf.mxu0
      %v700 = vpop.f32.mrf.mxu0
      %v701 = vadd.f32 0.0, %v700
      %v702 = vpop.f32.mrf.mxu0
      %703 = vdwg.mxu0
      %v708 = vunpack.c.l.b16 %v208
      %v709 = vunpack.c.l.b16 %v209
      %v710 = vunpack.c.l.b16 %v210
      %v711 = vunpack.c.l.b16 %v211
      %v712 = vpack.c.b16 %v709, %v708
      %v713 = vpack.c.b16 %v711, %v710
      %v716 = vsel %vm472, %v292, 0
      %v718 = vsel %vm472, %v293, 0
      %v720 = vsel %vm472, %v294, 0
      %v722 = vsel %vm472, %v295, 0
      %v724 = vsel %vm472, %v296, 0
      %v726 = vsel %vm472, %v297, 0
      %v728 = vsel %vm472, %v298, 0
      %v730 = vsel %vm472, %v299, 0
      %v732 = vsel %vm472, %v300, 0
      %v734 = vsel %vm472, %v301, 0
      %v736 = vsel %vm472, %v302, 0
      %v738 = vsel %vm472, %v303, 0
      %v740 = vsel %vm472, %v304, 0
      %v742 = vsel %vm472, %v305, 0
      %v744 = vsel %vm472, %v306, 0
      %v746 = vsel %vm472, %v307, 0
      %v748 = vsel %vm472, %v308, 0
      %v750 = vsel %vm472, %v309, 0
      %752 = vmatprep.subr.bf16.mxu0 0
      %753 = vmatpush1.bf16.msra.mxu0 0
      %754 = vmatprep.subr.bf16.mxu0 0
      %755 = vmatpush1.bf16.msra.mxu0 0
      %756 = vmatprep.subr.bf16.mxu0 0
      %757 = vmatpush1.bf16.msra.mxu0 0
      %758 = vmatprep.subr.bf16.mxu0 0
      %759 = vmatpush1.bf16.msra.mxu0 0
      %760 = vmatprep.subr.bf16.mxu0 0
      %761 = vmatpush1.bf16.msra.mxu0 0
      %762 = vmatprep.subr.bf16.mxu0 0
      %763 = vmatpush1.bf16.msra.mxu0 0
      %764 = vmatprep.subr.bf16.mxu0 0
      %765 = vmatpush1.bf16.msra.mxu0 %v713
      %766 = vmatprep.subr.bf16.mxu0 0
      %767 = vmatpush1.bf16.msra.mxu0 %v712
      %768 = vmatprep.subr.bf16.mxu0 0
      %769 = vmatpush2.bf16.msra.mxu0 0
      %770 = vmatprep.subr.bf16.mxu0 0
      %771 = vmatpush2.bf16.msra.mxu0 0
      %772 = vmatprep.subr.bf16.mxu0 0
      %773 = vmatpush2.bf16.msra.mxu0 0
      %774 = vmatprep.subr.bf16.mxu0 0
      %775 = vmatpush2.bf16.msra.mxu0 0
      %776 = vmatprep.subr.bf16.mxu0 0
      %777 = vmatpush2.bf16.msra.mxu0 0
      %778 = vmatprep.subr.bf16.mxu0 0
      %779 = vmatpush2.bf16.msra.mxu0 0
      %780 = vmatprep.subr.bf16.mxu0 0
      %781 = vmatpush2.bf16.msra.mxu0 0
      %782 = vmatprep.subr.bf16.mxu0 0
      %783 = vmatpush2.bf16.msra.mxu0 0
      %784 = vmatprep.mubr.bf16.mxu0 0
      %785 = vmatmul.mubr.bf16.gmra.mxu0 %v716
      %v786 = vpop.f32.mrf.mxu0
      %v787 = vadd.f32 %v562, %v786
      %v788 = vpop.f32.mrf.mxu0
      %v789 = vpop.f32.mrf.mxu0
      %v790 = vadd.f32 %v565, %v789
      %v791 = vpop.f32.mrf.mxu0
      %792 = vmatprep.mubr.bf16.mxu0 0
      %793 = vmatmul.mubr.bf16.gmra.mxu0 %v718
      %v794 = vpop.f32.mrf.mxu0
      %v795 = vadd.f32 %v570, %v794
      %v796 = vpop.f32.mrf.mxu0
      %v797 = vpop.f32.mrf.mxu0
      %v798 = vadd.f32 %v573, %v797
      %v799 = vpop.f32.mrf.mxu0
      %800 = vmatprep.mubr.bf16.mxu0 0
      %801 = vmatmul.mubr.bf16.gmra.mxu0 %v720
      %v802 = vpop.f32.mrf.mxu0
      %v803 = vadd.f32 %v578, %v802
      %v804 = vpop.f32.mrf.mxu0
      %v805 = vpop.f32.mrf.mxu0
      %v806 = vadd.f32 %v581, %v805
      %v807 = vpop.f32.mrf.mxu0
      %808 = vmatprep.mubr.bf16.mxu0 0
      %809 = vmatmul.mubr.bf16.gmra.mxu0 %v722
      %v810 = vpop.f32.mrf.mxu0
      %v811 = vadd.f32 %v586, %v810
      %v812 = vpop.f32.mrf.mxu0
      %v813 = vpop.f32.mrf.mxu0
      %v814 = vadd.f32 %v589, %v813
      %v815 = vpop.f32.mrf.mxu0
      %816 = vmatprep.mubr.bf16.mxu0 0
      %817 = vmatmul.mubr.bf16.gmra.mxu0 %v724
      %v818 = vpop.f32.mrf.mxu0
      %v819 = vadd.f32 %v594, %v818
      %v820 = vpop.f32.mrf.mxu0
      %v821 = vpop.f32.mrf.mxu0
      %v822 = vadd.f32 %v597, %v821
      %v823 = vpop.f32.mrf.mxu0
      %824 = vmatprep.mubr.bf16.mxu0 0
      %825 = vmatmul.mubr.bf16.gmra.mxu0 %v726
      %v826 = vpop.f32.mrf.mxu0
      %v827 = vadd.f32 %v602, %v826
      %v828 = vpop.f32.mrf.mxu0
      %v829 = vpop.f32.mrf.mxu0
      %v830 = vadd.f32 %v605, %v829
      %v831 = vpop.f32.mrf.mxu0
      %832 = vmatprep.mubr.bf16.mxu0 0
      %833 = vmatmul.mubr.bf16.gmra.mxu0 %v728
      %v834 = vpop.f32.mrf.mxu0
      %v835 = vadd.f32 %v610, %v834
      %v836 = vpop.f32.mrf.mxu0
      %v837 = vpop.f32.mrf.mxu0
      %v838 = vadd.f32 %v613, %v837
      %v839 = vpop.f32.mrf.mxu0
      %840 = vmatprep.mubr.bf16.mxu0 0
      %841 = vmatmul.mubr.bf16.gmra.mxu0 %v730
      %v842 = vpop.f32.mrf.mxu0
      %v843 = vadd.f32 %v618, %v842
      %v844 = vpop.f32.mrf.mxu0
      %v845 = vpop.f32.mrf.mxu0
      %v846 = vadd.f32 %v621, %v845
      %v847 = vpop.f32.mrf.mxu0
      %848 = vmatprep.mubr.bf16.mxu0 0
      %849 = vmatmul.mubr.bf16.gmra.mxu0 %v732
      %v850 = vpop.f32.mrf.mxu0
      %v851 = vadd.f32 %v626, %v850
      %v852 = vpop.f32.mrf.mxu0
      %v853 = vpop.f32.mrf.mxu0
      %v854 = vadd.f32 %v629, %v853
      %v855 = vpop.f32.mrf.mxu0
      %856 = vmatprep.mubr.bf16.mxu0 0
      %857 = vmatmul.mubr.bf16.gmra.mxu0 %v734
      %v858 = vpop.f32.mrf.mxu0
      %v859 = vadd.f32 %v634, %v858
      %v860 = vpop.f32.mrf.mxu0
      %v861 = vpop.f32.mrf.mxu0
      %v862 = vadd.f32 %v637, %v861
      %v863 = vpop.f32.mrf.mxu0
      %864 = vmatprep.mubr.bf16.mxu0 0
      %865 = vmatmul.mubr.bf16.gmra.mxu0 %v736
      %v866 = vpop.f32.mrf.mxu0
      %v867 = vadd.f32 %v642, %v866
      %v868 = vpop.f32.mrf.mxu0
      %v869 = vpop.f32.mrf.mxu0
      %v870 = vadd.f32 %v645, %v869
      %v871 = vpop.f32.mrf.mxu0
      %872 = vmatprep.mubr.bf16.mxu0 0
      %873 = vmatmul.mubr.bf16.gmra.mxu0 %v738
      %v874 = vpop.f32.mrf.mxu0
      %v875 = vadd.f32 %v650, %v874
      %v876 = vpop.f32.mrf.mxu0
      %v877 = vpop.f32.mrf.mxu0
      %v878 = vadd.f32 %v653, %v877
      %v879 = vpop.f32.mrf.mxu0
      %880 = vmatprep.mubr.bf16.mxu0 0
      %881 = vmatmul.mubr.bf16.gmra.mxu0 %v740
      %v882 = vpop.f32.mrf.mxu0
      %v883 = vadd.f32 %v658, %v882
      %v884 = vpop.f32.mrf.mxu0
      %v885 = vpop.f32.mrf.mxu0
      %v886 = vadd.f32 %v661, %v885
      %v887 = vpop.f32.mrf.mxu0
      %888 = vmatprep.mubr.bf16.mxu0 0
      %889 = vmatmul.mubr.bf16.gmra.mxu0 %v742
      %v890 = vpop.f32.mrf.mxu0
      %v891 = vadd.f32 %v666, %v890
      %v892 = vpop.f32.mrf.mxu0
      %v893 = vpop.f32.mrf.mxu0
      %v894 = vadd.f32 %v669, %v893
      %v895 = vpop.f32.mrf.mxu0
      %896 = vmatprep.mubr.bf16.mxu0 0
      %897 = vmatmul.mubr.bf16.gmra.mxu0 %v744
      %v898 = vpop.f32.mrf.mxu0
      %v899 = vadd.f32 %v674, %v898
      %v900 = vpop.f32.mrf.mxu0
      %v901 = vpop.f32.mrf.mxu0
      %v902 = vadd.f32 %v677, %v901
      %v903 = vpop.f32.mrf.mxu0
      %904 = vmatprep.mubr.bf16.mxu0 0
      %905 = vmatmul.mubr.bf16.gmra.mxu0 %v746
      %v906 = vpop.f32.mrf.mxu0
      %v907 = vadd.f32 %v682, %v906
      %v908 = vpop.f32.mrf.mxu0
      %v909 = vpop.f32.mrf.mxu0
      %v910 = vadd.f32 %v685, %v909
      %v911 = vpop.f32.mrf.mxu0
      %912 = vmatprep.mubr.bf16.mxu0 0
      %913 = vmatmul.mubr.bf16.gmra.mxu0 %v748
      %v914 = vpop.f32.mrf.mxu0
      %v915 = vadd.f32 %v690, %v914
      %v916 = vpop.f32.mrf.mxu0
      %v917 = vpop.f32.mrf.mxu0
      %v918 = vadd.f32 %v693, %v917
      %v919 = vpop.f32.mrf.mxu0
      %920 = vmatprep.mubr.bf16.mxu0 0
      %921 = vmatmul.mubr.bf16.gmra.mxu0 %v750
      %v922 = vpop.f32.mrf.mxu0
      %v923 = vadd.f32 %v698, %v922
      %v924 = vpop.f32.mrf.mxu0
      %v925 = vpop.f32.mrf.mxu0
      %v926 = vadd.f32 %v701, %v925
      %v927 = vpop.f32.mrf.mxu0
      %928 = vdwg.mxu0
      %v929 = vld [vmem:[%s165] sm:$0xe]
      %s930 = scalar_lea.vmem %s1, 32
      %v931 = vld [vmem:[%s930] sm:$0xf]
      %v932 = vld [vmem:[%s930 + $0x4] sm:$0xf]
      %v933 = vld [vmem:[%s930 + $0x8] sm:$0xf]
      %v934 = vld [vmem:[%s930 + $0xc] sm:$0xf]
      %v936 = vunpack.c.l.b16 %v929
      %v937 = vpack.c.b16 %v256, %v936
      %vm938 = vcmask 1046528
      %v939 = vrot.slane %v937, 1
      %v940 = vrot.slane %v293, 1
      %v941 = vsel %vm938, %v939, %v940
      %v942 = vrot.slane %v294, 1
      %v943 = vsel %vm938, %v940, %v942
      %v944 = vrot.slane %v295, 1
      %v945 = vsel %vm938, %v942, %v944
      %v946 = vrot.slane %v296, 1
      %v947 = vsel %vm938, %v944, %v946
      %v948 = vrot.slane %v297, 1
      %v949 = vsel %vm938, %v946, %v948
      %v950 = vrot.slane %v298, 1
      %v951 = vsel %vm938, %v948, %v950
      %v952 = vrot.slane %v299, 1
      %v953 = vsel %vm938, %v950, %v952
      %v954 = vrot.slane %v300, 1
      %v955 = vsel %vm938, %v952, %v954
      %v956 = vrot.slane %v301, 1
      %v957 = vsel %vm938, %v954, %v956
      %v958 = vrot.slane %v302, 1
      %v959 = vsel %vm938, %v956, %v958
      %v960 = vrot.slane %v303, 1
      %v961 = vsel %vm938, %v958, %v960
      %v962 = vrot.slane %v304, 1
      %v963 = vsel %vm938, %v960, %v962
      %v964 = vrot.slane %v305, 1
      %v965 = vsel %vm938, %v962, %v964
      %v966 = vrot.slane %v306, 1
      %v967 = vsel %vm938, %v964, %v966
      %v968 = vrot.slane %v307, 1
      %v969 = vsel %vm938, %v966, %v968
      %v970 = vrot.slane %v308, 1
      %v971 = vsel %vm938, %v968, %v970
      %v972 = vrot.slane %v309, 1
      %v973 = vsel %vm938, %v970, %v972
      %v974 = vrot.slane %v310, 1
      %v975 = vsel %vm938, %v972, %v974
      %v980 = vunpack.c.l.b16 %v931
      %v981 = vunpack.c.l.b16 %v932
      %v982 = vunpack.c.l.b16 %v933
      %v983 = vunpack.c.l.b16 %v934
      %v984 = vpack.c.b16 %v981, %v980
      %v985 = vpack.c.b16 %v983, %v982
      %v989 = vsel %vm472, %v941, 0
      %v992 = vsel %vm472, %v943, 0
      %v995 = vsel %vm472, %v945, 0
      %v998 = vsel %vm472, %v947, 0
      %v1001 = vsel %vm472, %v949, 0
      %v1004 = vsel %vm472, %v951, 0
      %v1007 = vsel %vm472, %v953, 0
      %v1010 = vsel %vm472, %v955, 0
      %v1013 = vsel %vm472, %v957, 0
      %v1016 = vsel %vm472, %v959, 0
      %v1019 = vsel %vm472, %v961, 0
      %v1022 = vsel %vm472, %v963, 0
      %v1025 = vsel %vm472, %v965, 0
      %v1028 = vsel %vm472, %v967, 0
      %v1031 = vsel %vm472, %v969, 0
      %v1034 = vsel %vm472, %v971, 0
      %v1037 = vsel %vm472, %v973, 0
      %v1040 = vsel %vm472, %v975, 0
      %1042 = vmatprep.subr.bf16.mxu0 0
      %1043 = vmatpush1.bf16.msra.mxu0 0
      %1044 = vmatprep.subr.bf16.mxu0 0
      %1045 = vmatpush1.bf16.msra.mxu0 0
      %1046 = vmatprep.subr.bf16.mxu0 0
      %1047 = vmatpush1.bf16.msra.mxu0 0
      %1048 = vmatprep.subr.bf16.mxu0 0
      %1049 = vmatpush1.bf16.msra.mxu0 0
      %1050 = vmatprep.subr.bf16.mxu0 0
      %1051 = vmatpush1.bf16.msra.mxu0 0
      %1052 = vmatprep.subr.bf16.mxu0 0
      %1053 = vmatpush1.bf16.msra.mxu0 0
      %1054 = vmatprep.subr.bf16.mxu0 0
      %1055 = vmatpush1.bf16.msra.mxu0 %v985
      %1056 = vmatprep.subr.bf16.mxu0 0
      %1057 = vmatpush1.bf16.msra.mxu0 %v984
      %1058 = vmatprep.subr.bf16.mxu0 0
      %1059 = vmatpush2.bf16.msra.mxu0 0
      %1060 = vmatprep.subr.bf16.mxu0 0
      %1061 = vmatpush2.bf16.msra.mxu0 0
      %1062 = vmatprep.subr.bf16.mxu0 0
      %1063 = vmatpush2.bf16.msra.mxu0 0
      %1064 = vmatprep.subr.bf16.mxu0 0
      %1065 = vmatpush2.bf16.msra.mxu0 0
      %1066 = vmatprep.subr.bf16.mxu0 0
      %1067 = vmatpush2.bf16.msra.mxu0 0
      %1068 = vmatprep.subr.bf16.mxu0 0
      %1069 = vmatpush2.bf16.msra.mxu0 0
      %1070 = vmatprep.subr.bf16.mxu0 0
      %1071 = vmatpush2.bf16.msra.mxu0 0
      %1072 = vmatprep.subr.bf16.mxu0 0
      %1073 = vmatpush2.bf16.msra.mxu0 0
      %1074 = vmatprep.mubr.bf16.mxu0 0
      %1075 = vmatmul.mubr.bf16.gmra.mxu0 %v989
      %v1076 = vpop.f32.mrf.mxu0
      %v1077 = vadd.f32 0.0, %v1076
      %v1078 = vpop.f32.mrf.mxu0
      %v1079 = vpop.f32.mrf.mxu0
      %v1080 = vadd.f32 0.0, %v1079
      %v1081 = vpop.f32.mrf.mxu0
      %1082 = vmatprep.mubr.bf16.mxu0 0
      %1083 = vmatmul.mubr.bf16.gmra.mxu0 %v992
      %v1084 = vpop.f32.mrf.mxu0
      %v1085 = vadd.f32 0.0, %v1084
      %v1086 = vpop.f32.mrf.mxu0
      %v1087 = vpop.f32.mrf.mxu0
      %v1088 = vadd.f32 0.0, %v1087
      %v1089 = vpop.f32.mrf.mxu0
      %1090 = vmatprep.mubr.bf16.mxu0 0
      %1091 = vmatmul.mubr.bf16.gmra.mxu0 %v995
      %v1092 = vpop.f32.mrf.mxu0
      %v1093 = vadd.f32 0.0, %v1092
      %v1094 = vpop.f32.mrf.mxu0
      %v1095 = vpop.f32.mrf.mxu0
      %v1096 = vadd.f32 0.0, %v1095
      %v1097 = vpop.f32.mrf.mxu0
      %1098 = vmatprep.mubr.bf16.mxu0 0
      %1099 = vmatmul.mubr.bf16.gmra.mxu0 %v998
      %v1100 = vpop.f32.mrf.mxu0
      %v1101 = vadd.f32 0.0, %v1100
      %v1102 = vpop.f32.mrf.mxu0
      %v1103 = vpop.f32.mrf.mxu0
      %v1104 = vadd.f32 0.0, %v1103
      %v1105 = vpop.f32.mrf.mxu0
      %1106 = vmatprep.mubr.bf16.mxu0 0
      %1107 = vmatmul.mubr.bf16.gmra.mxu0 %v1001
      %v1108 = vpop.f32.mrf.mxu0
      %v1109 = vadd.f32 0.0, %v1108
      %v1110 = vpop.f32.mrf.mxu0
      %v1111 = vpop.f32.mrf.mxu0
      %v1112 = vadd.f32 0.0, %v1111
      %v1113 = vpop.f32.mrf.mxu0
      %1114 = vmatprep.mubr.bf16.mxu0 0
      %1115 = vmatmul.mubr.bf16.gmra.mxu0 %v1004
      %v1116 = vpop.f32.mrf.mxu0
      %v1117 = vadd.f32 0.0, %v1116
      %v1118 = vpop.f32.mrf.mxu0
      %v1119 = vpop.f32.mrf.mxu0
      %v1120 = vadd.f32 0.0, %v1119
      %v1121 = vpop.f32.mrf.mxu0
      %1122 = vmatprep.mubr.bf16.mxu0 0
      %1123 = vmatmul.mubr.bf16.gmra.mxu0 %v1007
      %v1124 = vpop.f32.mrf.mxu0
      %v1125 = vadd.f32 0.0, %v1124
      %v1126 = vpop.f32.mrf.mxu0
      %v1127 = vpop.f32.mrf.mxu0
      %v1128 = vadd.f32 0.0, %v1127
      %v1129 = vpop.f32.mrf.mxu0
      %1130 = vmatprep.mubr.bf16.mxu0 0
      %1131 = vmatmul.mubr.bf16.gmra.mxu0 %v1010
      %v1132 = vpop.f32.mrf.mxu0
      %v1133 = vadd.f32 0.0, %v1132
      %v1134 = vpop.f32.mrf.mxu0
      %v1135 = vpop.f32.mrf.mxu0
      %v1136 = vadd.f32 0.0, %v1135
      %v1137 = vpop.f32.mrf.mxu0
      %1138 = vmatprep.mubr.bf16.mxu0 0
      %1139 = vmatmul.mubr.bf16.gmra.mxu0 %v1013
      %v1140 = vpop.f32.mrf.mxu0
      %v1141 = vadd.f32 0.0, %v1140
      %v1142 = vpop.f32.mrf.mxu0
      %v1143 = vpop.f32.mrf.mxu0
      %v1144 = vadd.f32 0.0, %v1143
      %v1145 = vpop.f32.mrf.mxu0
      %1146 = vmatprep.mubr.bf16.mxu0 0
      %1147 = vmatmul.mubr.bf16.gmra.mxu0 %v1016
      %v1148 = vpop.f32.mrf.mxu0
      %v1149 = vadd.f32 0.0, %v1148
      %v1150 = vpop.f32.mrf.mxu0
      %v1151 = vpop.f32.mrf.mxu0
      %v1152 = vadd.f32 0.0, %v1151
      %v1153 = vpop.f32.mrf.mxu0
      %1154 = vmatprep.mubr.bf16.mxu0 0
      %1155 = vmatmul.mubr.bf16.gmra.mxu0 %v1019
      %v1156 = vpop.f32.mrf.mxu0
      %v1157 = vadd.f32 0.0, %v1156
      %v1158 = vpop.f32.mrf.mxu0
      %v1159 = vpop.f32.mrf.mxu0
      %v1160 = vadd.f32 0.0, %v1159
      %v1161 = vpop.f32.mrf.mxu0
      %1162 = vmatprep.mubr.bf16.mxu0 0
      %1163 = vmatmul.mubr.bf16.gmra.mxu0 %v1022
      %v1164 = vpop.f32.mrf.mxu0
      %v1165 = vadd.f32 0.0, %v1164
      %v1166 = vpop.f32.mrf.mxu0
      %v1167 = vpop.f32.mrf.mxu0
      %v1168 = vadd.f32 0.0, %v1167
      %v1169 = vpop.f32.mrf.mxu0
      %1170 = vmatprep.mubr.bf16.mxu0 0
      %1171 = vmatmul.mubr.bf16.gmra.mxu0 %v1025
      %v1172 = vpop.f32.mrf.mxu0
      %v1173 = vadd.f32 0.0, %v1172
      %v1174 = vpop.f32.mrf.mxu0
      %v1175 = vpop.f32.mrf.mxu0
      %v1176 = vadd.f32 0.0, %v1175
      %v1177 = vpop.f32.mrf.mxu0
      %1178 = vmatprep.mubr.bf16.mxu0 0
      %1179 = vmatmul.mubr.bf16.gmra.mxu0 %v1028
      %v1180 = vpop.f32.mrf.mxu0
      %v1181 = vadd.f32 0.0, %v1180
      %v1182 = vpop.f32.mrf.mxu0
      %v1183 = vpop.f32.mrf.mxu0
      %v1184 = vadd.f32 0.0, %v1183
      %v1185 = vpop.f32.mrf.mxu0
      %1186 = vmatprep.mubr.bf16.mxu0 0
      %1187 = vmatmul.mubr.bf16.gmra.mxu0 %v1031
      %v1188 = vpop.f32.mrf.mxu0
      %v1189 = vadd.f32 0.0, %v1188
      %v1190 = vpop.f32.mrf.mxu0
      %v1191 = vpop.f32.mrf.mxu0
      %v1192 = vadd.f32 0.0, %v1191
      %v1193 = vpop.f32.mrf.mxu0
      %1194 = vmatprep.mubr.bf16.mxu0 0
      %1195 = vmatmul.mubr.bf16.gmra.mxu0 %v1034
      %v1196 = vpop.f32.mrf.mxu0
      %v1197 = vadd.f32 0.0, %v1196
      %v1198 = vpop.f32.mrf.mxu0
      %v1199 = vpop.f32.mrf.mxu0
      %v1200 = vadd.f32 0.0, %v1199
      %v1201 = vpop.f32.mrf.mxu0
      %1202 = vmatprep.mubr.bf16.mxu0 0
      %1203 = vmatmul.mubr.bf16.gmra.mxu0 %v1037
      %v1204 = vpop.f32.mrf.mxu0
      %v1205 = vadd.f32 0.0, %v1204
      %v1206 = vpop.f32.mrf.mxu0
      %v1207 = vpop.f32.mrf.mxu0
      %v1208 = vadd.f32 0.0, %v1207
      %v1209 = vpop.f32.mrf.mxu0
      %1210 = vmatprep.mubr.bf16.mxu0 0
      %1211 = vmatmul.mubr.bf16.gmra.mxu0 %v1040
      %v1212 = vpop.f32.mrf.mxu0
      %v1213 = vadd.f32 0.0, %v1212
      %v1214 = vpop.f32.mrf.mxu0
      %v1215 = vpop.f32.mrf.mxu0
      %v1216 = vadd.f32 0.0, %v1215
      %v1217 = vpop.f32.mrf.mxu0
      %1218 = vdwg.mxu0
      %v1219 = vadd.f32 %v787, %v1077
      %v1220 = vadd.f32 %v790, %v1080
      %v1221 = vadd.f32 %v795, %v1085
      %v1222 = vadd.f32 %v798, %v1088
      %v1223 = vadd.f32 %v803, %v1093
      %v1224 = vadd.f32 %v806, %v1096
      %v1225 = vadd.f32 %v811, %v1101
      %v1226 = vadd.f32 %v814, %v1104
      %v1227 = vadd.f32 %v819, %v1109
      %v1228 = vadd.f32 %v822, %v1112
      %v1229 = vadd.f32 %v827, %v1117
      %v1230 = vadd.f32 %v830, %v1120
      %v1231 = vadd.f32 %v835, %v1125
      %v1232 = vadd.f32 %v838, %v1128
      %v1233 = vadd.f32 %v843, %v1133
      %v1234 = vadd.f32 %v846, %v1136
      %v1235 = vadd.f32 %v851, %v1141
      %v1236 = vadd.f32 %v854, %v1144
      %v1237 = vadd.f32 %v859, %v1149
      %v1238 = vadd.f32 %v862, %v1152
      %v1239 = vadd.f32 %v867, %v1157
      %v1240 = vadd.f32 %v870, %v1160
      %v1241 = vadd.f32 %v875, %v1165
      %v1242 = vadd.f32 %v878, %v1168
      %v1243 = vadd.f32 %v883, %v1173
      %v1244 = vadd.f32 %v886, %v1176
      %v1245 = vadd.f32 %v891, %v1181
      %v1246 = vadd.f32 %v894, %v1184
      %v1247 = vadd.f32 %v899, %v1189
      %v1248 = vadd.f32 %v902, %v1192
      %v1249 = vadd.f32 %v907, %v1197
      %v1250 = vadd.f32 %v910, %v1200
      %v1251 = vadd.f32 %v915, %v1205
      %v1252 = vadd.f32 %v918, %v1208
      %v1253 = vadd.f32 %v923, %v1213
      %v1254 = vadd.f32 %v926, %v1216
      %v1255 = vld [vmem:[%s165 + $0x8] sm:$0xe]
      %v1256 = vld [vmem:[%s165 + $0xc] sm:$0xf]
      %v1257 = vld [vmem:[%s165 + $0x10] sm:$0xf]
      %v1258 = vld [vmem:[%s165 + $0x14] sm:$0xf]
      %v1259 = vld [vmem:[%s165 + $0x18] sm:$0xf]
      %v1260 = vld [vmem:[%s165 + $0x1c] sm:$0xf]
      %v1261 = vld [vmem:[%s165 + $0x20] sm:$0xf]
      %v1262 = vld [vmem:[%s165 + $0x24] sm:$0xf]
      %v1263 = vld [vmem:[%s165 + $0x28] sm:$0xf]
      %v1264 = vld [vmem:[%s165 + $0x2c] sm:$0xf]
      %v1265 = vld [vmem:[%s165 + $0x30] sm:$0xf]
      %v1266 = vld [vmem:[%s165 + $0x34] sm:$0xf]
      %v1267 = vld [vmem:[%s165 + $0x38] sm:$0xf]
      %v1268 = vld [vmem:[%s165 + $0x3c] sm:$0xf]
      %v1269 = vld [vmem:[%s165 + $0x40] sm:$0xf]
      %v1270 = vld [vmem:[%s165 + $0x44] sm:$0xf]
      %v1271 = vld [vmem:[%s165 + $0x48] sm:$0xf]
      %v1272 = vld [vmem:[%s165 + $0x4c] sm:$0xf]
      %v1273 = vld [vmem:[%s165 + $0x50] sm:$0xf]
      %v1274 = vld [vmem:[%s165 + $0x54] sm:$0xf]
      %v1275 = vld [vmem:[%s165 + $0x58] sm:$0xf]
      %v1276 = vld [vmem:[%s165 + $0x5c] sm:$0xf]
      %v1277 = vld [vmem:[%s165 + $0x60] sm:$0xf]
      %v1278 = vld [vmem:[%s165 + $0x64] sm:$0xf]
      %v1279 = vld [vmem:[%s165 + $0x68] sm:$0xf]
      %v1280 = vld [vmem:[%s165 + $0x6c] sm:$0xf]
      %v1281 = vld [vmem:[%s165 + $0x70] sm:$0xf]
      %v1282 = vld [vmem:[%s165 + $0x74] sm:$0xf]
      %v1283 = vld [vmem:[%s165 + $0x78] sm:$0xf]
      %v1284 = vld [vmem:[%s165 + $0x7c] sm:$0xf]
      %v1285 = vld [vmem:[%s165 + $0x80] sm:$0xf]
      %v1286 = vld [vmem:[%s165 + $0x84] sm:$0xf]
      %v1287 = vld [vmem:[%s165 + $0x88] sm:$0xf]
      %v1288 = vld [vmem:[%s165 + $0x8c] sm:$0xf]
      %v1289 = vld [vmem:[%s165 + $0x90] sm:$0xf]
      %v1290 = vld [vmem:[%s165 + $0x94] sm:$0xf]
      %v1291 = vld [vmem:[%s165 + $0x98] sm:$0x1]
      %s1292 = scalar_lea.vmem %s1, 48
      %v1293 = vld [vmem:[%s1292] sm:$0xf]
      %v1294 = vld [vmem:[%s1292 + $0x4] sm:$0xf]
      %v1295 = vld [vmem:[%s1292 + $0x8] sm:$0xf]
      %v1296 = vld [vmem:[%s1292 + $0xc] sm:$0xf]
      %v1334 = vunpack.c.l.b16 %v1255
      %v1335 = vunpack.c.l.b16 %v1256
      %v1336 = vunpack.c.l.b16 %v1257
      %v1337 = vunpack.c.l.b16 %v1258
      %v1338 = vunpack.c.l.b16 %v1259
      %v1339 = vunpack.c.l.b16 %v1260
      %v1340 = vunpack.c.l.b16 %v1261
      %v1341 = vunpack.c.l.b16 %v1262
      %v1342 = vunpack.c.l.b16 %v1263
      %v1343 = vunpack.c.l.b16 %v1264
      %v1344 = vunpack.c.l.b16 %v1265
      %v1345 = vunpack.c.l.b16 %v1266
      %v1346 = vunpack.c.l.b16 %v1267
      %v1347 = vunpack.c.l.b16 %v1268
      %v1348 = vunpack.c.l.b16 %v1269
      %v1349 = vunpack.c.l.b16 %v1270
      %v1350 = vunpack.c.l.b16 %v1271
      %v1351 = vunpack.c.l.b16 %v1272
      %v1352 = vunpack.c.l.b16 %v1273
      %v1353 = vunpack.c.l.b16 %v1274
      %v1354 = vunpack.c.l.b16 %v1275
      %v1355 = vunpack.c.l.b16 %v1276
      %v1356 = vunpack.c.l.b16 %v1277
      %v1357 = vunpack.c.l.b16 %v1278
      %v1358 = vunpack.c.l.b16 %v1279
      %v1359 = vunpack.c.l.b16 %v1280
      %v1360 = vunpack.c.l.b16 %v1281
      %v1361 = vunpack.c.l.b16 %v1282
      %v1362 = vunpack.c.l.b16 %v1283
      %v1363 = vunpack.c.l.b16 %v1284
      %v1364 = vunpack.c.l.b16 %v1285
      %v1365 = vunpack.c.l.b16 %v1286
      %v1366 = vunpack.c.l.b16 %v1287
      %v1367 = vunpack.c.l.b16 %v1288
      %v1368 = vunpack.c.l.b16 %v1289
      %v1369 = vunpack.c.l.b16 %v1290
      %v1370 = vunpack.c.l.b16 %v1291
      %v1371 = vpack.c.b16 %v1335, %v1334
      %v1372 = vpack.c.b16 %v1337, %v1336
      %v1373 = vpack.c.b16 %v1339, %v1338
      %v1374 = vpack.c.b16 %v1341, %v1340
      %v1375 = vpack.c.b16 %v1343, %v1342
      %v1376 = vpack.c.b16 %v1345, %v1344
      %v1377 = vpack.c.b16 %v1347, %v1346
      %v1378 = vpack.c.b16 %v1349, %v1348
      %v1379 = vpack.c.b16 %v1351, %v1350
      %v1380 = vpack.c.b16 %v1353, %v1352
      %v1381 = vpack.c.b16 %v1355, %v1354
      %v1382 = vpack.c.b16 %v1357, %v1356
      %v1383 = vpack.c.b16 %v1359, %v1358
      %v1384 = vpack.c.b16 %v1361, %v1360
      %v1385 = vpack.c.b16 %v1363, %v1362
      %v1386 = vpack.c.b16 %v1365, %v1364
      %v1387 = vpack.c.b16 %v1367, %v1366
      %v1388 = vpack.c.b16 %v1369, %v1368
      %v1389 = vpack.c.b16 %v1370, %v1370
      %v1390 = vrot.slane %v1371, 1
      %v1391 = vrot.slane %v1372, 1
      %v1392 = vsel %vm938, %v1390, %v1391
      %v1393 = vrot.slane %v1373, 1
      %v1394 = vsel %vm938, %v1391, %v1393
      %v1395 = vrot.slane %v1374, 1
      %v1396 = vsel %vm938, %v1393, %v1395
      %v1397 = vrot.slane %v1375, 1
      %v1398 = vsel %vm938, %v1395, %v1397
      %v1399 = vrot.slane %v1376, 1
      %v1400 = vsel %vm938, %v1397, %v1399
      %v1401 = vrot.slane %v1377, 1
      %v1402 = vsel %vm938, %v1399, %v1401
      %v1403 = vrot.slane %v1378, 1
      %v1404 = vsel %vm938, %v1401, %v1403
      %v1405 = vrot.slane %v1379, 1
      %v1406 = vsel %vm938, %v1403, %v1405
      %v1407 = vrot.slane %v1380, 1
      %v1408 = vsel %vm938, %v1405, %v1407
      %v1409 = vrot.slane %v1381, 1
      %v1410 = vsel %vm938, %v1407, %v1409
      %v1411 = vrot.slane %v1382, 1
      %v1412 = vsel %vm938, %v1409, %v1411
      %v1413 = vrot.slane %v1383, 1
      %v1414 = vsel %vm938, %v1411, %v1413
      %v1415 = vrot.slane %v1384, 1
      %v1416 = vsel %vm938, %v1413, %v1415
      %v1417 = vrot.slane %v1385, 1
      %v1418 = vsel %vm938, %v1415, %v1417
      %v1419 = vrot.slane %v1386, 1
      %v1420 = vsel %vm938, %v1417, %v1419
      %v1421 = vrot.slane %v1387, 1
      %v1422 = vsel %vm938, %v1419, %v1421
      %v1423 = vrot.slane %v1388, 1
      %v1424 = vsel %vm938, %v1421, %v1423
      %v1425 = vrot.slane %v1389, 1
      %v1426 = vsel %vm938, %v1423, %v1425
      %v1431 = vunpack.c.l.b16 %v1293
      %v1432 = vunpack.c.l.b16 %v1294
      %v1433 = vunpack.c.l.b16 %v1295
      %v1434 = vunpack.c.l.b16 %v1296
      %v1435 = vpack.c.b16 %v1432, %v1431
      %v1436 = vpack.c.b16 %v1434, %v1433
      %v1440 = vsel %vm472, %v1392, 0
      %v1443 = vsel %vm472, %v1394, 0
      %v1446 = vsel %vm472, %v1396, 0
      %v1449 = vsel %vm472, %v1398, 0
      %v1452 = vsel %vm472, %v1400, 0
      %v1455 = vsel %vm472, %v1402, 0
      %v1458 = vsel %vm472, %v1404, 0
      %v1461 = vsel %vm472, %v1406, 0
      %v1464 = vsel %vm472, %v1408, 0
      %v1467 = vsel %vm472, %v1410, 0
      %v1470 = vsel %vm472, %v1412, 0
      %v1473 = vsel %vm472, %v1414, 0
      %v1476 = vsel %vm472, %v1416, 0
      %v1479 = vsel %vm472, %v1418, 0
      %v1482 = vsel %vm472, %v1420, 0
      %v1485 = vsel %vm472, %v1422, 0
      %v1488 = vsel %vm472, %v1424, 0
      %v1491 = vsel %vm472, %v1426, 0
      %1493 = vmatprep.subr.bf16.mxu0 0
      %1494 = vmatpush1.bf16.msra.mxu0 0
      %1495 = vmatprep.subr.bf16.mxu0 0
      %1496 = vmatpush1.bf16.msra.mxu0 0
      %1497 = vmatprep.subr.bf16.mxu0 0
      %1498 = vmatpush1.bf16.msra.mxu0 0
      %1499 = vmatprep.subr.bf16.mxu0 0
      %1500 = vmatpush1.bf16.msra.mxu0 0
      %1501 = vmatprep.subr.bf16.mxu0 0
      %1502 = vmatpush1.bf16.msra.mxu0 0
      %1503 = vmatprep.subr.bf16.mxu0 0
      %1504 = vmatpush1.bf16.msra.mxu0 0
      %1505 = vmatprep.subr.bf16.mxu0 0
      %1506 = vmatpush1.bf16.msra.mxu0 %v1436
      %1507 = vmatprep.subr.bf16.mxu0 0
      %1508 = vmatpush1.bf16.msra.mxu0 %v1435
      %1509 = vmatprep.subr.bf16.mxu0 0
      %1510 = vmatpush2.bf16.msra.mxu0 0
      %1511 = vmatprep.subr.bf16.mxu0 0
      %1512 = vmatpush2.bf16.msra.mxu0 0
      %1513 = vmatprep.subr.bf16.mxu0 0
      %1514 = vmatpush2.bf16.msra.mxu0 0
      %1515 = vmatprep.subr.bf16.mxu0 0
      %1516 = vmatpush2.bf16.msra.mxu0 0
      %1517 = vmatprep.subr.bf16.mxu0 0
      %1518 = vmatpush2.bf16.msra.mxu0 0
      %1519 = vmatprep.subr.bf16.mxu0 0
      %1520 = vmatpush2.bf16.msra.mxu0 0
      %1521 = vmatprep.subr.bf16.mxu0 0
      %1522 = vmatpush2.bf16.msra.mxu0 0
      %1523 = vmatprep.subr.bf16.mxu0 0
      %1524 = vmatpush2.bf16.msra.mxu0 0
      %1525 = vmatprep.mubr.bf16.mxu0 0
      %1526 = vmatmul.mubr.bf16.gmra.mxu0 %v1440
      %v1527 = vpop.f32.mrf.mxu0
      %v1528 = vadd.f32 0.0, %v1527
      %v1529 = vpop.f32.mrf.mxu0
      %v1530 = vpop.f32.mrf.mxu0
      %v1531 = vadd.f32 0.0, %v1530
      %v1532 = vpop.f32.mrf.mxu0
      %1533 = vmatprep.mubr.bf16.mxu0 0
      %1534 = vmatmul.mubr.bf16.gmra.mxu0 %v1443
      %v1535 = vpop.f32.mrf.mxu0
      %v1536 = vadd.f32 0.0, %v1535
      %v1537 = vpop.f32.mrf.mxu0
      %v1538 = vpop.f32.mrf.mxu0
      %v1539 = vadd.f32 0.0, %v1538
      %v1540 = vpop.f32.mrf.mxu0
      %1541 = vmatprep.mubr.bf16.mxu0 0
      %1542 = vmatmul.mubr.bf16.gmra.mxu0 %v1446
      %v1543 = vpop.f32.mrf.mxu0
      %v1544 = vadd.f32 0.0, %v1543
      %v1545 = vpop.f32.mrf.mxu0
      %v1546 = vpop.f32.mrf.mxu0
      %v1547 = vadd.f32 0.0, %v1546
      %v1548 = vpop.f32.mrf.mxu0
      %1549 = vmatprep.mubr.bf16.mxu0 0
      %1550 = vmatmul.mubr.bf16.gmra.mxu0 %v1449
      %v1551 = vpop.f32.mrf.mxu0
      %v1552 = vadd.f32 0.0, %v1551
      %v1553 = vpop.f32.mrf.mxu0
      %v1554 = vpop.f32.mrf.mxu0
      %v1555 = vadd.f32 0.0, %v1554
      %v1556 = vpop.f32.mrf.mxu0
      %1557 = vmatprep.mubr.bf16.mxu0 0
      %1558 = vmatmul.mubr.bf16.gmra.mxu0 %v1452
      %v1559 = vpop.f32.mrf.mxu0
      %v1560 = vadd.f32 0.0, %v1559
      %v1561 = vpop.f32.mrf.mxu0
      %v1562 = vpop.f32.mrf.mxu0
      %v1563 = vadd.f32 0.0, %v1562
      %v1564 = vpop.f32.mrf.mxu0
      %1565 = vmatprep.mubr.bf16.mxu0 0
      %1566 = vmatmul.mubr.bf16.gmra.mxu0 %v1455
      %v1567 = vpop.f32.mrf.mxu0
      %v1568 = vadd.f32 0.0, %v1567
      %v1569 = vpop.f32.mrf.mxu0
      %v1570 = vpop.f32.mrf.mxu0
      %v1571 = vadd.f32 0.0, %v1570
      %v1572 = vpop.f32.mrf.mxu0
      %1573 = vmatprep.mubr.bf16.mxu0 0
      %1574 = vmatmul.mubr.bf16.gmra.mxu0 %v1458
      %v1575 = vpop.f32.mrf.mxu0
      %v1576 = vadd.f32 0.0, %v1575
      %v1577 = vpop.f32.mrf.mxu0
      %v1578 = vpop.f32.mrf.mxu0
      %v1579 = vadd.f32 0.0, %v1578
      %v1580 = vpop.f32.mrf.mxu0
      %1581 = vmatprep.mubr.bf16.mxu0 0
      %1582 = vmatmul.mubr.bf16.gmra.mxu0 %v1461
      %v1583 = vpop.f32.mrf.mxu0
      %v1584 = vadd.f32 0.0, %v1583
      %v1585 = vpop.f32.mrf.mxu0
      %v1586 = vpop.f32.mrf.mxu0
      %v1587 = vadd.f32 0.0, %v1586
      %v1588 = vpop.f32.mrf.mxu0
      %1589 = vmatprep.mubr.bf16.mxu0 0
      %1590 = vmatmul.mubr.bf16.gmra.mxu0 %v1464
      %v1591 = vpop.f32.mrf.mxu0
      %v1592 = vadd.f32 0.0, %v1591
      %v1593 = vpop.f32.mrf.mxu0
      %v1594 = vpop.f32.mrf.mxu0
      %v1595 = vadd.f32 0.0, %v1594
      %v1596 = vpop.f32.mrf.mxu0
      %1597 = vmatprep.mubr.bf16.mxu0 0
      %1598 = vmatmul.mubr.bf16.gmra.mxu0 %v1467
      %v1599 = vpop.f32.mrf.mxu0
      %v1600 = vadd.f32 0.0, %v1599
      %v1601 = vpop.f32.mrf.mxu0
      %v1602 = vpop.f32.mrf.mxu0
      %v1603 = vadd.f32 0.0, %v1602
      %v1604 = vpop.f32.mrf.mxu0
      %1605 = vmatprep.mubr.bf16.mxu0 0
      %1606 = vmatmul.mubr.bf16.gmra.mxu0 %v1470
      %v1607 = vpop.f32.mrf.mxu0
      %v1608 = vadd.f32 0.0, %v1607
      %v1609 = vpop.f32.mrf.mxu0
      %v1610 = vpop.f32.mrf.mxu0
      %v1611 = vadd.f32 0.0, %v1610
      %v1612 = vpop.f32.mrf.mxu0
      %1613 = vmatprep.mubr.bf16.mxu0 0
      %1614 = vmatmul.mubr.bf16.gmra.mxu0 %v1473
      %v1615 = vpop.f32.mrf.mxu0
      %v1616 = vadd.f32 0.0, %v1615
      %v1617 = vpop.f32.mrf.mxu0
      %v1618 = vpop.f32.mrf.mxu0
      %v1619 = vadd.f32 0.0, %v1618
      %v1620 = vpop.f32.mrf.mxu0
      %1621 = vmatprep.mubr.bf16.mxu0 0
      %1622 = vmatmul.mubr.bf16.gmra.mxu0 %v1476
      %v1623 = vpop.f32.mrf.mxu0
      %v1624 = vadd.f32 0.0, %v1623
      %v1625 = vpop.f32.mrf.mxu0
      %v1626 = vpop.f32.mrf.mxu0
      %v1627 = vadd.f32 0.0, %v1626
      %v1628 = vpop.f32.mrf.mxu0
      %1629 = vmatprep.mubr.bf16.mxu0 0
      %1630 = vmatmul.mubr.bf16.gmra.mxu0 %v1479
      %v1631 = vpop.f32.mrf.mxu0
      %v1632 = vadd.f32 0.0, %v1631
      %v1633 = vpop.f32.mrf.mxu0
      %v1634 = vpop.f32.mrf.mxu0
      %v1635 = vadd.f32 0.0, %v1634
      %v1636 = vpop.f32.mrf.mxu0
      %1637 = vmatprep.mubr.bf16.mxu0 0
      %1638 = vmatmul.mubr.bf16.gmra.mxu0 %v1482
      %v1639 = vpop.f32.mrf.mxu0
      %v1640 = vadd.f32 0.0, %v1639
      %v1641 = vpop.f32.mrf.mxu0
      %v1642 = vpop.f32.mrf.mxu0
      %v1643 = vadd.f32 0.0, %v1642
      %v1644 = vpop.f32.mrf.mxu0
      %1645 = vmatprep.mubr.bf16.mxu0 0
      %1646 = vmatmul.mubr.bf16.gmra.mxu0 %v1485
      %v1647 = vpop.f32.mrf.mxu0
      %v1648 = vadd.f32 0.0, %v1647
      %v1649 = vpop.f32.mrf.mxu0
      %v1650 = vpop.f32.mrf.mxu0
      %v1651 = vadd.f32 0.0, %v1650
      %v1652 = vpop.f32.mrf.mxu0
      %1653 = vmatprep.mubr.bf16.mxu0 0
      %1654 = vmatmul.mubr.bf16.gmra.mxu0 %v1488
      %v1655 = vpop.f32.mrf.mxu0
      %v1656 = vadd.f32 0.0, %v1655
      %v1657 = vpop.f32.mrf.mxu0
      %v1658 = vpop.f32.mrf.mxu0
      %v1659 = vadd.f32 0.0, %v1658
      %v1660 = vpop.f32.mrf.mxu0
      %1661 = vmatprep.mubr.bf16.mxu0 0
      %1662 = vmatmul.mubr.bf16.gmra.mxu0 %v1491
      %v1663 = vpop.f32.mrf.mxu0
      %v1664 = vadd.f32 0.0, %v1663
      %v1665 = vpop.f32.mrf.mxu0
      %v1666 = vpop.f32.mrf.mxu0
      %v1667 = vadd.f32 0.0, %v1666
      %v1668 = vpop.f32.mrf.mxu0
      %1669 = vdwg.mxu0
      %v1670 = vadd.f32 %v1219, %v1528
      %v1671 = vadd.f32 %v1220, %v1531
      %v1672 = vadd.f32 %v1221, %v1536
      %v1673 = vadd.f32 %v1222, %v1539
      %v1674 = vadd.f32 %v1223, %v1544
      %v1675 = vadd.f32 %v1224, %v1547
      %v1676 = vadd.f32 %v1225, %v1552
      %v1677 = vadd.f32 %v1226, %v1555
      %v1678 = vadd.f32 %v1227, %v1560
      %v1679 = vadd.f32 %v1228, %v1563
      %v1680 = vadd.f32 %v1229, %v1568
      %v1681 = vadd.f32 %v1230, %v1571
      %v1682 = vadd.f32 %v1231, %v1576
      %v1683 = vadd.f32 %v1232, %v1579
      %v1684 = vadd.f32 %v1233, %v1584
      %v1685 = vadd.f32 %v1234, %v1587
      %v1686 = vadd.f32 %v1235, %v1592
      %v1687 = vadd.f32 %v1236, %v1595
      %v1688 = vadd.f32 %v1237, %v1600
      %v1689 = vadd.f32 %v1238, %v1603
      %v1690 = vadd.f32 %v1239, %v1608
      %v1691 = vadd.f32 %v1240, %v1611
      %v1692 = vadd.f32 %v1241, %v1616
      %v1693 = vadd.f32 %v1242, %v1619
      %v1694 = vadd.f32 %v1243, %v1624
      %v1695 = vadd.f32 %v1244, %v1627
      %v1696 = vadd.f32 %v1245, %v1632
      %v1697 = vadd.f32 %v1246, %v1635
      %v1698 = vadd.f32 %v1247, %v1640
      %v1699 = vadd.f32 %v1248, %v1643
      %v1700 = vadd.f32 %v1249, %v1648
      %v1701 = vadd.f32 %v1250, %v1651
      %v1702 = vadd.f32 %v1251, %v1656
      %v1703 = vadd.f32 %v1252, %v1659
      %v1704 = vadd.f32 %v1253, %v1664
      %v1705 = vadd.f32 %v1254, %v1667
      %v1706 = vld [vmem:[%s165 + $0x98] sm:$0x3]
      %s1707 = scalar_lea.vmem %s1, 64
      %v1708 = vld [vmem:[%s1707] sm:$0xf]
      %v1709 = vld [vmem:[%s1707 + $0x4] sm:$0xf]
      %v1710 = vld [vmem:[%s1707 + $0x8] sm:$0xf]
      %v1711 = vld [vmem:[%s1707 + $0xc] sm:$0xf]
      %v1713 = vunpack.c.l.b16 %v1706
      %v1714 = vpack.c.b16 %v1713, %v1713
      %vm1715 = vsmask.f32 6400
      %v1717 = vshrl.u32 %v1371, 16
      %v1719 = vrot.slane %v1717, 1
      %v1720 = vshll.u32 %v1371, 16
      %v1722 = vrot.slane %v1720, 2
      %v1723 = vor.u32 %v1719, %v1722
      %v1725 = vshrl.u32 %v1372, 16
      %v1727 = vrot.slane %v1725, 1
      %v1728 = vshll.u32 %v1372, 16
      %v1730 = vrot.slane %v1728, 2
      %v1731 = vor.u32 %v1727, %v1730
      %v1732 = vsel %vm1715, %v1723, %v1731
      %v1734 = vshrl.u32 %v1373, 16
      %v1736 = vrot.slane %v1734, 1
      %v1737 = vshll.u32 %v1373, 16
      %v1739 = vrot.slane %v1737, 2
      %v1740 = vor.u32 %v1736, %v1739
      %v1741 = vsel %vm1715, %v1731, %v1740
      %v1743 = vshrl.u32 %v1374, 16
      %v1745 = vrot.slane %v1743, 1
      %v1746 = vshll.u32 %v1374, 16
      %v1748 = vrot.slane %v1746, 2
      %v1749 = vor.u32 %v1745, %v1748
      %v1750 = vsel %vm1715, %v1740, %v1749
      %v1752 = vshrl.u32 %v1375, 16
      %v1754 = vrot.slane %v1752, 1
      %v1755 = vshll.u32 %v1375, 16
      %v1757 = vrot.slane %v1755, 2
      %v1758 = vor.u32 %v1754, %v1757
      %v1759 = vsel %vm1715, %v1749, %v1758
      %v1761 = vshrl.u32 %v1376, 16
      %v1763 = vrot.slane %v1761, 1
      %v1764 = vshll.u32 %v1376, 16
      %v1766 = vrot.slane %v1764, 2
      %v1767 = vor.u32 %v1763, %v1766
      %v1768 = vsel %vm1715, %v1758, %v1767
      %v1770 = vshrl.u32 %v1377, 16
      %v1772 = vrot.slane %v1770, 1
      %v1773 = vshll.u32 %v1377, 16
      %v1775 = vrot.slane %v1773, 2
      %v1776 = vor.u32 %v1772, %v1775
      %v1777 = vsel %vm1715, %v1767, %v1776
      %v1779 = vshrl.u32 %v1378, 16
      %v1781 = vrot.slane %v1779, 1
      %v1782 = vshll.u32 %v1378, 16
      %v1784 = vrot.slane %v1782, 2
      %v1785 = vor.u32 %v1781, %v1784
      %v1786 = vsel %vm1715, %v1776, %v1785
      %v1788 = vshrl.u32 %v1379, 16
      %v1790 = vrot.slane %v1788, 1
      %v1791 = vshll.u32 %v1379, 16
      %v1793 = vrot.slane %v1791, 2
      %v1794 = vor.u32 %v1790, %v1793
      %v1795 = vsel %vm1715, %v1785, %v1794
      %v1797 = vshrl.u32 %v1380, 16
      %v1799 = vrot.slane %v1797, 1
      %v1800 = vshll.u32 %v1380, 16
      %v1802 = vrot.slane %v1800, 2
      %v1803 = vor.u32 %v1799, %v1802
      %v1804 = vsel %vm1715, %v1794, %v1803
      %v1806 = vshrl.u32 %v1381, 16
      %v1808 = vrot.slane %v1806, 1
      %v1809 = vshll.u32 %v1381, 16
      %v1811 = vrot.slane %v1809, 2
      %v1812 = vor.u32 %v1808, %v1811
      %v1813 = vsel %vm1715, %v1803, %v1812
      %v1815 = vshrl.u32 %v1382, 16
      %v1817 = vrot.slane %v1815, 1
      %v1818 = vshll.u32 %v1382, 16
      %v1820 = vrot.slane %v1818, 2
      %v1821 = vor.u32 %v1817, %v1820
      %v1822 = vsel %vm1715, %v1812, %v1821
      %v1824 = vshrl.u32 %v1383, 16
      %v1826 = vrot.slane %v1824, 1
      %v1827 = vshll.u32 %v1383, 16
      %v1829 = vrot.slane %v1827, 2
      %v1830 = vor.u32 %v1826, %v1829
      %v1831 = vsel %vm1715, %v1821, %v1830
      %v1833 = vshrl.u32 %v1384, 16
      %v1835 = vrot.slane %v1833, 1
      %v1836 = vshll.u32 %v1384, 16
      %v1838 = vrot.slane %v1836, 2
      %v1839 = vor.u32 %v1835, %v1838
      %v1840 = vsel %vm1715, %v1830, %v1839
      %v1842 = vshrl.u32 %v1385, 16
      %v1844 = vrot.slane %v1842, 1
      %v1845 = vshll.u32 %v1385, 16
      %v1847 = vrot.slane %v1845, 2
      %v1848 = vor.u32 %v1844, %v1847
      %v1849 = vsel %vm1715, %v1839, %v1848
      %v1851 = vshrl.u32 %v1386, 16
      %v1853 = vrot.slane %v1851, 1
      %v1854 = vshll.u32 %v1386, 16
      %v1856 = vrot.slane %v1854, 2
      %v1857 = vor.u32 %v1853, %v1856
      %v1858 = vsel %vm1715, %v1848, %v1857
      %v1860 = vshrl.u32 %v1387, 16
      %v1862 = vrot.slane %v1860, 1
      %v1863 = vshll.u32 %v1387, 16
      %v1865 = vrot.slane %v1863, 2
      %v1866 = vor.u32 %v1862, %v1865
      %v1867 = vsel %vm1715, %v1857, %v1866
      %v1869 = vshrl.u32 %v1388, 16
      %v1871 = vrot.slane %v1869, 1
      %v1872 = vshll.u32 %v1388, 16
      %v1874 = vrot.slane %v1872, 2
      %v1875 = vor.u32 %v1871, %v1874
      %v1876 = vsel %vm1715, %v1866, %v1875
      %v1878 = vshrl.u32 %v1714, 16
      %v1880 = vrot.slane %v1878, 1
      %v1881 = vshll.u32 %v1714, 16
      %v1883 = vrot.slane %v1881, 2
      %v1884 = vor.u32 %v1880, %v1883
      %v1885 = vsel %vm1715, %v1875, %v1884
      %v1890 = vunpack.c.l.b16 %v1708
      %v1891 = vunpack.c.l.b16 %v1709
      %v1892 = vunpack.c.l.b16 %v1710
      %v1893 = vunpack.c.l.b16 %v1711
      %v1894 = vpack.c.b16 %v1891, %v1890
      %v1895 = vpack.c.b16 %v1893, %v1892
      %v1899 = vsel %vm472, %v1732, 0
      %v1902 = vsel %vm472, %v1741, 0
      %v1905 = vsel %vm472, %v1750, 0
      %v1908 = vsel %vm472, %v1759, 0
      %v1911 = vsel %vm472, %v1768, 0
      %v1914 = vsel %vm472, %v1777, 0
      %v1917 = vsel %vm472, %v1786, 0
      %v1920 = vsel %vm472, %v1795, 0
      %v1923 = vsel %vm472, %v1804, 0
      %v1926 = vsel %vm472, %v1813, 0
      %v1929 = vsel %vm472, %v1822, 0
      %v1932 = vsel %vm472, %v1831, 0
      %v1935 = vsel %vm472, %v1840, 0
      %v1938 = vsel %vm472, %v1849, 0
      %v1941 = vsel %vm472, %v1858, 0
      %v1944 = vsel %vm472, %v1867, 0
      %v1947 = vsel %vm472, %v1876, 0
      %v1950 = vsel %vm472, %v1885, 0
      %1952 = vmatprep.subr.bf16.mxu0 0
      %1953 = vmatpush1.bf16.msra.mxu0 0
      %1954 = vmatprep.subr.bf16.mxu0 0
      %1955 = vmatpush1.bf16.msra.mxu0 0
      %1956 = vmatprep.subr.bf16.mxu0 0
      %1957 = vmatpush1.bf16.msra.mxu0 0
      %1958 = vmatprep.subr.bf16.mxu0 0
      %1959 = vmatpush1.bf16.msra.mxu0 0
      %1960 = vmatprep.subr.bf16.mxu0 0
      %1961 = vmatpush1.bf16.msra.mxu0 0
      %1962 = vmatprep.subr.bf16.mxu0 0
      %1963 = vmatpush1.bf16.msra.mxu0 0
      %1964 = vmatprep.subr.bf16.mxu0 0
      %1965 = vmatpush1.bf16.msra.mxu0 %v1895
      %1966 = vmatprep.subr.bf16.mxu0 0
      %1967 = vmatpush1.bf16.msra.mxu0 %v1894
      %1968 = vmatprep.subr.bf16.mxu0 0
      %1969 = vmatpush2.bf16.msra.mxu0 0
      %1970 = vmatprep.subr.bf16.mxu0 0
      %1971 = vmatpush2.bf16.msra.mxu0 0
      %1972 = vmatprep.subr.bf16.mxu0 0
      %1973 = vmatpush2.bf16.msra.mxu0 0
      %1974 = vmatprep.subr.bf16.mxu0 0
      %1975 = vmatpush2.bf16.msra.mxu0 0
      %1976 = vmatprep.subr.bf16.mxu0 0
      %1977 = vmatpush2.bf16.msra.mxu0 0
      %1978 = vmatprep.subr.bf16.mxu0 0
      %1979 = vmatpush2.bf16.msra.mxu0 0
      %1980 = vmatprep.subr.bf16.mxu0 0
      %1981 = vmatpush2.bf16.msra.mxu0 0
      %1982 = vmatprep.subr.bf16.mxu0 0
      %1983 = vmatpush2.bf16.msra.mxu0 0
      %1984 = vmatprep.mubr.bf16.mxu0 0
      %1985 = vmatmul.mubr.bf16.gmra.mxu0 %v1899
      %v1986 = vpop.f32.mrf.mxu0
      %v1987 = vadd.f32 0.0, %v1986
      %v1988 = vpop.f32.mrf.mxu0
      %v1989 = vpop.f32.mrf.mxu0
      %v1990 = vadd.f32 0.0, %v1989
      %v1991 = vpop.f32.mrf.mxu0
      %1992 = vmatprep.mubr.bf16.mxu0 0
      %1993 = vmatmul.mubr.bf16.gmra.mxu0 %v1902
      %v1994 = vpop.f32.mrf.mxu0
      %v1995 = vadd.f32 0.0, %v1994
      %v1996 = vpop.f32.mrf.mxu0
      %v1997 = vpop.f32.mrf.mxu0
      %v1998 = vadd.f32 0.0, %v1997
      %v1999 = vpop.f32.mrf.mxu0
      %2000 = vmatprep.mubr.bf16.mxu0 0
      %2001 = vmatmul.mubr.bf16.gmra.mxu0 %v1905
      %v2002 = vpop.f32.mrf.mxu0
      %v2003 = vadd.f32 0.0, %v2002
      %v2004 = vpop.f32.mrf.mxu0
      %v2005 = vpop.f32.mrf.mxu0
      %v2006 = vadd.f32 0.0, %v2005
      %v2007 = vpop.f32.mrf.mxu0
      %2008 = vmatprep.mubr.bf16.mxu0 0
      %2009 = vmatmul.mubr.bf16.gmra.mxu0 %v1908
      %v2010 = vpop.f32.mrf.mxu0
      %v2011 = vadd.f32 0.0, %v2010
      %v2012 = vpop.f32.mrf.mxu0
      %v2013 = vpop.f32.mrf.mxu0
      %v2014 = vadd.f32 0.0, %v2013
      %v2015 = vpop.f32.mrf.mxu0
      %2016 = vmatprep.mubr.bf16.mxu0 0
      %2017 = vmatmul.mubr.bf16.gmra.mxu0 %v1911
      %v2018 = vpop.f32.mrf.mxu0
      %v2019 = vadd.f32 0.0, %v2018
      %v2020 = vpop.f32.mrf.mxu0
      %v2021 = vpop.f32.mrf.mxu0
      %v2022 = vadd.f32 0.0, %v2021
      %v2023 = vpop.f32.mrf.mxu0
      %2024 = vmatprep.mubr.bf16.mxu0 0
      %2025 = vmatmul.mubr.bf16.gmra.mxu0 %v1914
      %v2026 = vpop.f32.mrf.mxu0
      %v2027 = vadd.f32 0.0, %v2026
      %v2028 = vpop.f32.mrf.mxu0
      %v2029 = vpop.f32.mrf.mxu0
      %v2030 = vadd.f32 0.0, %v2029
      %v2031 = vpop.f32.mrf.mxu0
      %2032 = vmatprep.mubr.bf16.mxu0 0
      %2033 = vmatmul.mubr.bf16.gmra.mxu0 %v1917
      %v2034 = vpop.f32.mrf.mxu0
      %v2035 = vadd.f32 0.0, %v2034
      %v2036 = vpop.f32.mrf.mxu0
      %v2037 = vpop.f32.mrf.mxu0
      %v2038 = vadd.f32 0.0, %v2037
      %v2039 = vpop.f32.mrf.mxu0
      %2040 = vmatprep.mubr.bf16.mxu0 0
      %2041 = vmatmul.mubr.bf16.gmra.mxu0 %v1920
      %v2042 = vpop.f32.mrf.mxu0
      %v2043 = vadd.f32 0.0, %v2042
      %v2044 = vpop.f32.mrf.mxu0
      %v2045 = vpop.f32.mrf.mxu0
      %v2046 = vadd.f32 0.0, %v2045
      %v2047 = vpop.f32.mrf.mxu0
      %2048 = vmatprep.mubr.bf16.mxu0 0
      %2049 = vmatmul.mubr.bf16.gmra.mxu0 %v1923
      %v2050 = vpop.f32.mrf.mxu0
      %v2051 = vadd.f32 0.0, %v2050
      %v2052 = vpop.f32.mrf.mxu0
      %v2053 = vpop.f32.mrf.mxu0
      %v2054 = vadd.f32 0.0, %v2053
      %v2055 = vpop.f32.mrf.mxu0
      %2056 = vmatprep.mubr.bf16.mxu0 0
      %2057 = vmatmul.mubr.bf16.gmra.mxu0 %v1926
      %v2058 = vpop.f32.mrf.mxu0
      %v2059 = vadd.f32 0.0, %v2058
      %v2060 = vpop.f32.mrf.mxu0
      %v2061 = vpop.f32.mrf.mxu0
      %v2062 = vadd.f32 0.0, %v2061
      %v2063 = vpop.f32.mrf.mxu0
      %2064 = vmatprep.mubr.bf16.mxu0 0
      %2065 = vmatmul.mubr.bf16.gmra.mxu0 %v1929
      %v2066 = vpop.f32.mrf.mxu0
      %v2067 = vadd.f32 0.0, %v2066
      %v2068 = vpop.f32.mrf.mxu0
      %v2069 = vpop.f32.mrf.mxu0
      %v2070 = vadd.f32 0.0, %v2069
      %v2071 = vpop.f32.mrf.mxu0
      %2072 = vmatprep.mubr.bf16.mxu0 0
      %2073 = vmatmul.mubr.bf16.gmra.mxu0 %v1932
      %v2074 = vpop.f32.mrf.mxu0
      %v2075 = vadd.f32 0.0, %v2074
      %v2076 = vpop.f32.mrf.mxu0
      %v2077 = vpop.f32.mrf.mxu0
      %v2078 = vadd.f32 0.0, %v2077
      %v2079 = vpop.f32.mrf.mxu0
      %2080 = vmatprep.mubr.bf16.mxu0 0
      %2081 = vmatmul.mubr.bf16.gmra.mxu0 %v1935
      %v2082 = vpop.f32.mrf.mxu0
      %v2083 = vadd.f32 0.0, %v2082
      %v2084 = vpop.f32.mrf.mxu0
      %v2085 = vpop.f32.mrf.mxu0
      %v2086 = vadd.f32 0.0, %v2085
      %v2087 = vpop.f32.mrf.mxu0
      %2088 = vmatprep.mubr.bf16.mxu0 0
      %2089 = vmatmul.mubr.bf16.gmra.mxu0 %v1938
      %v2090 = vpop.f32.mrf.mxu0
      %v2091 = vadd.f32 0.0, %v2090
      %v2092 = vpop.f32.mrf.mxu0
      %v2093 = vpop.f32.mrf.mxu0
      %v2094 = vadd.f32 0.0, %v2093
      %v2095 = vpop.f32.mrf.mxu0
      %2096 = vmatprep.mubr.bf16.mxu0 0
      %2097 = vmatmul.mubr.bf16.gmra.mxu0 %v1941
      %v2098 = vpop.f32.mrf.mxu0
      %v2099 = vadd.f32 0.0, %v2098
      %v2100 = vpop.f32.mrf.mxu0
      %v2101 = vpop.f32.mrf.mxu0
      %v2102 = vadd.f32 0.0, %v2101
      %v2103 = vpop.f32.mrf.mxu0
      %2104 = vmatprep.mubr.bf16.mxu0 0
      %2105 = vmatmul.mubr.bf16.gmra.mxu0 %v1944
      %v2106 = vpop.f32.mrf.mxu0
      %v2107 = vadd.f32 0.0, %v2106
      %v2108 = vpop.f32.mrf.mxu0
      %v2109 = vpop.f32.mrf.mxu0
      %v2110 = vadd.f32 0.0, %v2109
      %v2111 = vpop.f32.mrf.mxu0
      %2112 = vmatprep.mubr.bf16.mxu0 0
      %2113 = vmatmul.mubr.bf16.gmra.mxu0 %v1947
      %v2114 = vpop.f32.mrf.mxu0
      %v2115 = vadd.f32 0.0, %v2114
      %v2116 = vpop.f32.mrf.mxu0
      %v2117 = vpop.f32.mrf.mxu0
      %v2118 = vadd.f32 0.0, %v2117
      %v2119 = vpop.f32.mrf.mxu0
      %2120 = vmatprep.mubr.bf16.mxu0 0
      %2121 = vmatmul.mubr.bf16.gmra.mxu0 %v1950
      %v2122 = vpop.f32.mrf.mxu0
      %v2123 = vadd.f32 0.0, %v2122
      %v2124 = vpop.f32.mrf.mxu0
      %v2125 = vpop.f32.mrf.mxu0
      %v2126 = vadd.f32 0.0, %v2125
      %v2127 = vpop.f32.mrf.mxu0
      %2128 = vdwg.mxu0
      %v2129 = vadd.f32 %v1670, %v1987
      %v2130 = vadd.f32 %v1671, %v1990
      %v2131 = vadd.f32 %v1672, %v1995
      %v2132 = vadd.f32 %v1673, %v1998
      %v2133 = vadd.f32 %v1674, %v2003
      %v2134 = vadd.f32 %v1675, %v2006
      %v2135 = vadd.f32 %v1676, %v2011
      %v2136 = vadd.f32 %v1677, %v2014
      %v2137 = vadd.f32 %v1678, %v2019
      %v2138 = vadd.f32 %v1679, %v2022
      %v2139 = vadd.f32 %v1680, %v2027
      %v2140 = vadd.f32 %v1681, %v2030
      %v2141 = vadd.f32 %v1682, %v2035
      %v2142 = vadd.f32 %v1683, %v2038
      %v2143 = vadd.f32 %v1684, %v2043
      %v2144 = vadd.f32 %v1685, %v2046
      %v2145 = vadd.f32 %v1686, %v2051
      %v2146 = vadd.f32 %v1687, %v2054
      %v2147 = vadd.f32 %v1688, %v2059
      %v2148 = vadd.f32 %v1689, %v2062
      %v2149 = vadd.f32 %v1690, %v2067
      %v2150 = vadd.f32 %v1691, %v2070
      %v2151 = vadd.f32 %v1692, %v2075
      %v2152 = vadd.f32 %v1693, %v2078
      %v2153 = vadd.f32 %v1694, %v2083
      %v2154 = vadd.f32 %v1695, %v2086
      %v2155 = vadd.f32 %v1696, %v2091
      %v2156 = vadd.f32 %v1697, %v2094
      %v2157 = vadd.f32 %v1698, %v2099
      %v2158 = vadd.f32 %v1699, %v2102
      %v2159 = vadd.f32 %v1700, %v2107
      %v2160 = vadd.f32 %v1701, %v2110
      %v2161 = vadd.f32 %v1702, %v2115
      %v2162 = vadd.f32 %v1703, %v2118
      %v2163 = vadd.f32 %v1704, %v2123
      %v2164 = vadd.f32 %v1705, %v2126
      %v2165 = vld [vmem:[%s165 + $0x8] sm:$0xc]
      %s2166 = scalar_lea.vmem %s1, 80
      %v2167 = vld [vmem:[%s2166] sm:$0xf]
      %v2168 = vld [vmem:[%s2166 + $0x4] sm:$0xf]
      %v2169 = vld [vmem:[%s2166 + $0x8] sm:$0xf]
      %v2170 = vld [vmem:[%s2166 + $0xc] sm:$0xf]
      %v2172 = vunpack.c.l.b16 %v2165
      %v2173 = vpack.c.b16 %v1335, %v2172
      %vm2174 = vcmask 1045504
      %v2175 = vrot.slane %v2173, 2
      %v2176 = vrot.slane %v1372, 2
      %v2177 = vsel %vm2174, %v2175, %v2176
      %v2178 = vrot.slane %v1373, 2
      %v2179 = vsel %vm2174, %v2176, %v2178
      %v2180 = vrot.slane %v1374, 2
      %v2181 = vsel %vm2174, %v2178, %v2180
      %v2182 = vrot.slane %v1375, 2
      %v2183 = vsel %vm2174, %v2180, %v2182
      %v2184 = vrot.slane %v1376, 2
      %v2185 = vsel %vm2174, %v2182, %v2184
      %v2186 = vrot.slane %v1377, 2
      %v2187 = vsel %vm2174, %v2184, %v2186
      %v2188 = vrot.slane %v1378, 2
      %v2189 = vsel %vm2174, %v2186, %v2188
      %v2190 = vrot.slane %v1379, 2
      %v2191 = vsel %vm2174, %v2188, %v2190
      %v2192 = vrot.slane %v1380, 2
      %v2193 = vsel %vm2174, %v2190, %v2192
      %v2194 = vrot.slane %v1381, 2
      %v2195 = vsel %vm2174, %v2192, %v2194
      %v2196 = vrot.slane %v1382, 2
      %v2197 = vsel %vm2174, %v2194, %v2196
      %v2198 = vrot.slane %v1383, 2
      %v2199 = vsel %vm2174, %v2196, %v2198
      %v2200 = vrot.slane %v1384, 2
      %v2201 = vsel %vm2174, %v2198, %v2200
      %v2202 = vrot.slane %v1385, 2
      %v2203 = vsel %vm2174, %v2200, %v2202
      %v2204 = vrot.slane %v1386, 2
      %v2205 = vsel %vm2174, %v2202, %v2204
      %v2206 = vrot.slane %v1387, 2
      %v2207 = vsel %vm2174, %v2204, %v2206
      %v2208 = vrot.slane %v1388, 2
      %v2209 = vsel %vm2174, %v2206, %v2208
      %v2210 = vrot.slane %v1714, 2
      %v2211 = vsel %vm2174, %v2208, %v2210
      %v2216 = vunpack.c.l.b16 %v2167
      %v2217 = vunpack.c.l.b16 %v2168
      %v2218 = vunpack.c.l.b16 %v2169
      %v2219 = vunpack.c.l.b16 %v2170
      %v2220 = vpack.c.b16 %v2217, %v2216
      %v2221 = vpack.c.b16 %v2219, %v2218
      %v2225 = vsel %vm472, %v2177, 0
      %v2228 = vsel %vm472, %v2179, 0
      %v2231 = vsel %vm472, %v2181, 0
      %v2234 = vsel %vm472, %v2183, 0
      %v2237 = vsel %vm472, %v2185, 0
      %v2240 = vsel %vm472, %v2187, 0
      %v2243 = vsel %vm472, %v2189, 0
      %v2246 = vsel %vm472, %v2191, 0
      %v2249 = vsel %vm472, %v2193, 0
      %v2252 = vsel %vm472, %v2195, 0
      %v2255 = vsel %vm472, %v2197, 0
      %v2258 = vsel %vm472, %v2199, 0
      %v2261 = vsel %vm472, %v2201, 0
      %v2264 = vsel %vm472, %v2203, 0
      %v2267 = vsel %vm472, %v2205, 0
      %v2270 = vsel %vm472, %v2207, 0
      %v2273 = vsel %vm472, %v2209, 0
      %v2276 = vsel %vm472, %v2211, 0
      %2278 = vmatprep.subr.bf16.mxu0 0
      %2279 = vmatpush1.bf16.msra.mxu0 0
      %2280 = vmatprep.subr.bf16.mxu0 0
      %2281 = vmatpush1.bf16.msra.mxu0 0
      %2282 = vmatprep.subr.bf16.mxu0 0
      %2283 = vmatpush1.bf16.msra.mxu0 0
      %2284 = vmatprep.subr.bf16.mxu0 0
      %2285 = vmatpush1.bf16.msra.mxu0 0
      %2286 = vmatprep.subr.bf16.mxu0 0
      %2287 = vmatpush1.bf16.msra.mxu0 0
      %2288 = vmatprep.subr.bf16.mxu0 0
      %2289 = vmatpush1.bf16.msra.mxu0 0
      %2290 = vmatprep.subr.bf16.mxu0 0
      %2291 = vmatpush1.bf16.msra.mxu0 %v2221
      %2292 = vmatprep.subr.bf16.mxu0 0
      %2293 = vmatpush1.bf16.msra.mxu0 %v2220
      %2294 = vmatprep.subr.bf16.mxu0 0
      %2295 = vmatpush2.bf16.msra.mxu0 0
      %2296 = vmatprep.subr.bf16.mxu0 0
      %2297 = vmatpush2.bf16.msra.mxu0 0
      %2298 = vmatprep.subr.bf16.mxu0 0
      %2299 = vmatpush2.bf16.msra.mxu0 0
      %2300 = vmatprep.subr.bf16.mxu0 0
      %2301 = vmatpush2.bf16.msra.mxu0 0
      %2302 = vmatprep.subr.bf16.mxu0 0
      %2303 = vmatpush2.bf16.msra.mxu0 0
      %2304 = vmatprep.subr.bf16.mxu0 0
      %2305 = vmatpush2.bf16.msra.mxu0 0
      %2306 = vmatprep.subr.bf16.mxu0 0
      %2307 = vmatpush2.bf16.msra.mxu0 0
      %2308 = vmatprep.subr.bf16.mxu0 0
      %2309 = vmatpush2.bf16.msra.mxu0 0
      %2310 = vmatprep.mubr.bf16.mxu0 0
      %2311 = vmatmul.mubr.bf16.gmra.mxu0 %v2225
      %v2312 = vpop.f32.mrf.mxu0
      %v2313 = vadd.f32 0.0, %v2312
      %v2314 = vpop.f32.mrf.mxu0
      %v2315 = vpop.f32.mrf.mxu0
      %v2316 = vadd.f32 0.0, %v2315
      %v2317 = vpop.f32.mrf.mxu0
      %2318 = vmatprep.mubr.bf16.mxu0 0
      %2319 = vmatmul.mubr.bf16.gmra.mxu0 %v2228
      %v2320 = vpop.f32.mrf.mxu0
      %v2321 = vadd.f32 0.0, %v2320
      %v2322 = vpop.f32.mrf.mxu0
      %v2323 = vpop.f32.mrf.mxu0
      %v2324 = vadd.f32 0.0, %v2323
      %v2325 = vpop.f32.mrf.mxu0
      %2326 = vmatprep.mubr.bf16.mxu0 0
      %2327 = vmatmul.mubr.bf16.gmra.mxu0 %v2231
      %v2328 = vpop.f32.mrf.mxu0
      %v2329 = vadd.f32 0.0, %v2328
      %v2330 = vpop.f32.mrf.mxu0
      %v2331 = vpop.f32.mrf.mxu0
      %v2332 = vadd.f32 0.0, %v2331
      %v2333 = vpop.f32.mrf.mxu0
      %2334 = vmatprep.mubr.bf16.mxu0 0
      %2335 = vmatmul.mubr.bf16.gmra.mxu0 %v2234
      %v2336 = vpop.f32.mrf.mxu0
      %v2337 = vadd.f32 0.0, %v2336
      %v2338 = vpop.f32.mrf.mxu0
      %v2339 = vpop.f32.mrf.mxu0
      %v2340 = vadd.f32 0.0, %v2339
      %v2341 = vpop.f32.mrf.mxu0
      %2342 = vmatprep.mubr.bf16.mxu0 0
      %2343 = vmatmul.mubr.bf16.gmra.mxu0 %v2237
      %v2344 = vpop.f32.mrf.mxu0
      %v2345 = vadd.f32 0.0, %v2344
      %v2346 = vpop.f32.mrf.mxu0
      %v2347 = vpop.f32.mrf.mxu0
      %v2348 = vadd.f32 0.0, %v2347
      %v2349 = vpop.f32.mrf.mxu0
      %2350 = vmatprep.mubr.bf16.mxu0 0
      %2351 = vmatmul.mubr.bf16.gmra.mxu0 %v2240
      %v2352 = vpop.f32.mrf.mxu0
      %v2353 = vadd.f32 0.0, %v2352
      %v2354 = vpop.f32.mrf.mxu0
      %v2355 = vpop.f32.mrf.mxu0
      %v2356 = vadd.f32 0.0, %v2355
      %v2357 = vpop.f32.mrf.mxu0
      %2358 = vmatprep.mubr.bf16.mxu0 0
      %2359 = vmatmul.mubr.bf16.gmra.mxu0 %v2243
      %v2360 = vpop.f32.mrf.mxu0
      %v2361 = vadd.f32 0.0, %v2360
      %v2362 = vpop.f32.mrf.mxu0
      %v2363 = vpop.f32.mrf.mxu0
      %v2364 = vadd.f32 0.0, %v2363
      %v2365 = vpop.f32.mrf.mxu0
      %2366 = vmatprep.mubr.bf16.mxu0 0
      %2367 = vmatmul.mubr.bf16.gmra.mxu0 %v2246
      %v2368 = vpop.f32.mrf.mxu0
      %v2369 = vadd.f32 0.0, %v2368
      %v2370 = vpop.f32.mrf.mxu0
      %v2371 = vpop.f32.mrf.mxu0
      %v2372 = vadd.f32 0.0, %v2371
      %v2373 = vpop.f32.mrf.mxu0
      %2374 = vmatprep.mubr.bf16.mxu0 0
      %2375 = vmatmul.mubr.bf16.gmra.mxu0 %v2249
      %v2376 = vpop.f32.mrf.mxu0
      %v2377 = vadd.f32 0.0, %v2376
      %v2378 = vpop.f32.mrf.mxu0
      %v2379 = vpop.f32.mrf.mxu0
      %v2380 = vadd.f32 0.0, %v2379
      %v2381 = vpop.f32.mrf.mxu0
      %2382 = vmatprep.mubr.bf16.mxu0 0
      %2383 = vmatmul.mubr.bf16.gmra.mxu0 %v2252
      %v2384 = vpop.f32.mrf.mxu0
      %v2385 = vadd.f32 0.0, %v2384
      %v2386 = vpop.f32.mrf.mxu0
      %v2387 = vpop.f32.mrf.mxu0
      %v2388 = vadd.f32 0.0, %v2387
      %v2389 = vpop.f32.mrf.mxu0
      %2390 = vmatprep.mubr.bf16.mxu0 0
      %2391 = vmatmul.mubr.bf16.gmra.mxu0 %v2255
      %v2392 = vpop.f32.mrf.mxu0
      %v2393 = vadd.f32 0.0, %v2392
      %v2394 = vpop.f32.mrf.mxu0
      %v2395 = vpop.f32.mrf.mxu0
      %v2396 = vadd.f32 0.0, %v2395
      %v2397 = vpop.f32.mrf.mxu0
      %2398 = vmatprep.mubr.bf16.mxu0 0
      %2399 = vmatmul.mubr.bf16.gmra.mxu0 %v2258
      %v2400 = vpop.f32.mrf.mxu0
      %v2401 = vadd.f32 0.0, %v2400
      %v2402 = vpop.f32.mrf.mxu0
      %v2403 = vpop.f32.mrf.mxu0
      %v2404 = vadd.f32 0.0, %v2403
      %v2405 = vpop.f32.mrf.mxu0
      %2406 = vmatprep.mubr.bf16.mxu0 0
      %2407 = vmatmul.mubr.bf16.gmra.mxu0 %v2261
      %v2408 = vpop.f32.mrf.mxu0
      %v2409 = vadd.f32 0.0, %v2408
      %v2410 = vpop.f32.mrf.mxu0
      %v2411 = vpop.f32.mrf.mxu0
      %v2412 = vadd.f32 0.0, %v2411
      %v2413 = vpop.f32.mrf.mxu0
      %2414 = vmatprep.mubr.bf16.mxu0 0
      %2415 = vmatmul.mubr.bf16.gmra.mxu0 %v2264
      %v2416 = vpop.f32.mrf.mxu0
      %v2417 = vadd.f32 0.0, %v2416
      %v2418 = vpop.f32.mrf.mxu0
      %v2419 = vpop.f32.mrf.mxu0
      %v2420 = vadd.f32 0.0, %v2419
      %v2421 = vpop.f32.mrf.mxu0
      %2422 = vmatprep.mubr.bf16.mxu0 0
      %2423 = vmatmul.mubr.bf16.gmra.mxu0 %v2267
      %v2424 = vpop.f32.mrf.mxu0
      %v2425 = vadd.f32 0.0, %v2424
      %v2426 = vpop.f32.mrf.mxu0
      %v2427 = vpop.f32.mrf.mxu0
      %v2428 = vadd.f32 0.0, %v2427
      %v2429 = vpop.f32.mrf.mxu0
      %2430 = vmatprep.mubr.bf16.mxu0 0
      %2431 = vmatmul.mubr.bf16.gmra.mxu0 %v2270
      %v2432 = vpop.f32.mrf.mxu0
      %v2433 = vadd.f32 0.0, %v2432
      %v2434 = vpop.f32.mrf.mxu0
      %v2435 = vpop.f32.mrf.mxu0
      %v2436 = vadd.f32 0.0, %v2435
      %v2437 = vpop.f32.mrf.mxu0
      %2438 = vmatprep.mubr.bf16.mxu0 0
      %2439 = vmatmul.mubr.bf16.gmra.mxu0 %v2273
      %v2440 = vpop.f32.mrf.mxu0
      %v2441 = vadd.f32 0.0, %v2440
      %v2442 = vpop.f32.mrf.mxu0
      %v2443 = vpop.f32.mrf.mxu0
      %v2444 = vadd.f32 0.0, %v2443
      %v2445 = vpop.f32.mrf.mxu0
      %2446 = vmatprep.mubr.bf16.mxu0 0
      %2447 = vmatmul.mubr.bf16.gmra.mxu0 %v2276
      %v2448 = vpop.f32.mrf.mxu0
      %v2449 = vadd.f32 0.0, %v2448
      %v2450 = vpop.f32.mrf.mxu0
      %v2451 = vpop.f32.mrf.mxu0
      %v2452 = vadd.f32 0.0, %v2451
      %v2453 = vpop.f32.mrf.mxu0
      %2454 = vdwg.mxu0
      %v2455 = vadd.f32 %v2129, %v2313
      %v2456 = vadd.f32 %v2130, %v2316
      %v2457 = vadd.f32 %v2131, %v2321
      %v2458 = vadd.f32 %v2132, %v2324
      %v2459 = vadd.f32 %v2133, %v2329
      %v2460 = vadd.f32 %v2134, %v2332
      %v2461 = vadd.f32 %v2135, %v2337
      %v2462 = vadd.f32 %v2136, %v2340
      %v2463 = vadd.f32 %v2137, %v2345
      %v2464 = vadd.f32 %v2138, %v2348
      %v2465 = vadd.f32 %v2139, %v2353
      %v2466 = vadd.f32 %v2140, %v2356
      %v2467 = vadd.f32 %v2141, %v2361
      %v2468 = vadd.f32 %v2142, %v2364
      %v2469 = vadd.f32 %v2143, %v2369
      %v2470 = vadd.f32 %v2144, %v2372
      %v2471 = vadd.f32 %v2145, %v2377
      %v2472 = vadd.f32 %v2146, %v2380
      %v2473 = vadd.f32 %v2147, %v2385
      %v2474 = vadd.f32 %v2148, %v2388
      %v2475 = vadd.f32 %v2149, %v2393
      %v2476 = vadd.f32 %v2150, %v2396
      %v2477 = vadd.f32 %v2151, %v2401
      %v2478 = vadd.f32 %v2152, %v2404
      %v2479 = vadd.f32 %v2153, %v2409
      %v2480 = vadd.f32 %v2154, %v2412
      %v2481 = vadd.f32 %v2155, %v2417
      %v2482 = vadd.f32 %v2156, %v2420
      %v2483 = vadd.f32 %v2157, %v2425
      %v2484 = vadd.f32 %v2158, %v2428
      %v2485 = vadd.f32 %v2159, %v2433
      %v2486 = vadd.f32 %v2160, %v2436
      %v2487 = vadd.f32 %v2161, %v2441
      %v2488 = vadd.f32 %v2162, %v2444
      %v2489 = vadd.f32 %v2163, %v2449
      %v2490 = vadd.f32 %v2164, %v2452
      %v2491 = vld [vmem:[%s165 + $0x10] sm:$0xc]
      %v2492 = vld [vmem:[%s165 + $0x14] sm:$0xf]
      %v2493 = vld [vmem:[%s165 + $0x18] sm:$0xf]
      %v2494 = vld [vmem:[%s165 + $0x1c] sm:$0xf]
      %v2495 = vld [vmem:[%s165 + $0x20] sm:$0xf]
      %v2496 = vld [vmem:[%s165 + $0x24] sm:$0xf]
      %v2497 = vld [vmem:[%s165 + $0x28] sm:$0xf]
      %v2498 = vld [vmem:[%s165 + $0x2c] sm:$0xf]
      %v2499 = vld [vmem:[%s165 + $0x30] sm:$0xf]
      %v2500 = vld [vmem:[%s165 + $0x34] sm:$0xf]
      %v2501 = vld [vmem:[%s165 + $0x38] sm:$0xf]
      %v2502 = vld [vmem:[%s165 + $0x3c] sm:$0xf]
      %v2503 = vld [vmem:[%s165 + $0x40] sm:$0xf]
      %v2504 = vld [vmem:[%s165 + $0x44] sm:$0xf]
      %v2505 = vld [vmem:[%s165 + $0x48] sm:$0xf]
      %v2506 = vld [vmem:[%s165 + $0x4c] sm:$0xf]
      %v2507 = vld [vmem:[%s165 + $0x50] sm:$0xf]
      %v2508 = vld [vmem:[%s165 + $0x54] sm:$0xf]
      %v2509 = vld [vmem:[%s165 + $0x58] sm:$0xf]
      %v2510 = vld [vmem:[%s165 + $0x5c] sm:$0xf]
      %v2511 = vld [vmem:[%s165 + $0x60] sm:$0xf]
      %v2512 = vld [vmem:[%s165 + $0x64] sm:$0xf]
      %v2513 = vld [vmem:[%s165 + $0x68] sm:$0xf]
      %v2514 = vld [vmem:[%s165 + $0x6c] sm:$0xf]
      %v2515 = vld [vmem:[%s165 + $0x70] sm:$0xf]
      %v2516 = vld [vmem:[%s165 + $0x74] sm:$0xf]
      %v2517 = vld [vmem:[%s165 + $0x78] sm:$0xf]
      %v2518 = vld [vmem:[%s165 + $0x7c] sm:$0xf]
      %v2519 = vld [vmem:[%s165 + $0x80] sm:$0xf]
      %v2520 = vld [vmem:[%s165 + $0x84] sm:$0xf]
      %v2521 = vld [vmem:[%s165 + $0x88] sm:$0xf]
      %v2522 = vld [vmem:[%s165 + $0x8c] sm:$0xf]
      %v2523 = vld [vmem:[%s165 + $0x90] sm:$0xf]
      %v2524 = vld [vmem:[%s165 + $0x94] sm:$0xf]
      %v2525 = vld [vmem:[%s165 + $0x98] sm:$0xf]
      %v2526 = vld [vmem:[%s165 + $0x9c] sm:$0xf]
      %v2527 = vld [vmem:[%s165 + $0xa0] sm:$0x3]
      %s2528 = scalar_lea.vmem %s1, 96
      %v2529 = vld [vmem:[%s2528] sm:$0xf]
      %v2530 = vld [vmem:[%s2528 + $0x4] sm:$0xf]
      %v2531 = vld [vmem:[%s2528 + $0x8] sm:$0xf]
      %v2532 = vld [vmem:[%s2528 + $0xc] sm:$0xf]
      %v2570 = vunpack.c.l.b16 %v2491
      %v2571 = vunpack.c.l.b16 %v2492
      %v2572 = vunpack.c.l.b16 %v2493
      %v2573 = vunpack.c.l.b16 %v2494
      %v2574 = vunpack.c.l.b16 %v2495
      %v2575 = vunpack.c.l.b16 %v2496
      %v2576 = vunpack.c.l.b16 %v2497
      %v2577 = vunpack.c.l.b16 %v2498
      %v2578 = vunpack.c.l.b16 %v2499
      %v2579 = vunpack.c.l.b16 %v2500
      %v2580 = vunpack.c.l.b16 %v2501
      %v2581 = vunpack.c.l.b16 %v2502
      %v2582 = vunpack.c.l.b16 %v2503
      %v2583 = vunpack.c.l.b16 %v2504
      %v2584 = vunpack.c.l.b16 %v2505
      %v2585 = vunpack.c.l.b16 %v2506
      %v2586 = vunpack.c.l.b16 %v2507
      %v2587 = vunpack.c.l.b16 %v2508
      %v2588 = vunpack.c.l.b16 %v2509
      %v2589 = vunpack.c.l.b16 %v2510
      %v2590 = vunpack.c.l.b16 %v2511
      %v2591 = vunpack.c.l.b16 %v2512
      %v2592 = vunpack.c.l.b16 %v2513
      %v2593 = vunpack.c.l.b16 %v2514
      %v2594 = vunpack.c.l.b16 %v2515
      %v2595 = vunpack.c.l.b16 %v2516
      %v2596 = vunpack.c.l.b16 %v2517
      %v2597 = vunpack.c.l.b16 %v2518
      %v2598 = vunpack.c.l.b16 %v2519
      %v2599 = vunpack.c.l.b16 %v2520
      %v2600 = vunpack.c.l.b16 %v2521
      %v2601 = vunpack.c.l.b16 %v2522
      %v2602 = vunpack.c.l.b16 %v2523
      %v2603 = vunpack.c.l.b16 %v2524
      %v2604 = vunpack.c.l.b16 %v2525
      %v2605 = vunpack.c.l.b16 %v2526
      %v2606 = vunpack.c.l.b16 %v2527
      %v2607 = vpack.c.b16 %v2571, %v2570
      %v2608 = vpack.c.b16 %v2573, %v2572
      %v2609 = vpack.c.b16 %v2575, %v2574
      %v2610 = vpack.c.b16 %v2577, %v2576
      %v2611 = vpack.c.b16 %v2579, %v2578
      %v2612 = vpack.c.b16 %v2581, %v2580
      %v2613 = vpack.c.b16 %v2583, %v2582
      %v2614 = vpack.c.b16 %v2585, %v2584
      %v2615 = vpack.c.b16 %v2587, %v2586
      %v2616 = vpack.c.b16 %v2589, %v2588
      %v2617 = vpack.c.b16 %v2591, %v2590
      %v2618 = vpack.c.b16 %v2593, %v2592
      %v2619 = vpack.c.b16 %v2595, %v2594
      %v2620 = vpack.c.b16 %v2597, %v2596
      %v2621 = vpack.c.b16 %v2599, %v2598
      %v2622 = vpack.c.b16 %v2601, %v2600
      %v2623 = vpack.c.b16 %v2603, %v2602
      %v2624 = vpack.c.b16 %v2605, %v2604
      %v2625 = vpack.c.b16 %v2606, %v2606
      %v2626 = vrot.slane %v2607, 2
      %v2627 = vrot.slane %v2608, 2
      %v2628 = vsel %vm2174, %v2626, %v2627
      %v2629 = vrot.slane %v2609, 2
      %v2630 = vsel %vm2174, %v2627, %v2629
      %v2631 = vrot.slane %v2610, 2
      %v2632 = vsel %vm2174, %v2629, %v2631
      %v2633 = vrot.slane %v2611, 2
      %v2634 = vsel %vm2174, %v2631, %v2633
      %v2635 = vrot.slane %v2612, 2
      %v2636 = vsel %vm2174, %v2633, %v2635
      %v2637 = vrot.slane %v2613, 2
      %v2638 = vsel %vm2174, %v2635, %v2637
      %v2639 = vrot.slane %v2614, 2
      %v2640 = vsel %vm2174, %v2637, %v2639
      %v2641 = vrot.slane %v2615, 2
      %v2642 = vsel %vm2174, %v2639, %v2641
      %v2643 = vrot.slane %v2616, 2
      %v2644 = vsel %vm2174, %v2641, %v2643
      %v2645 = vrot.slane %v2617, 2
      %v2646 = vsel %vm2174, %v2643, %v2645
      %v2647 = vrot.slane %v2618, 2
      %v2648 = vsel %vm2174, %v2645, %v2647
      %v2649 = vrot.slane %v2619, 2
      %v2650 = vsel %vm2174, %v2647, %v2649
      %v2651 = vrot.slane %v2620, 2
      %v2652 = vsel %vm2174, %v2649, %v2651
      %v2653 = vrot.slane %v2621, 2
      %v2654 = vsel %vm2174, %v2651, %v2653
      %v2655 = vrot.slane %v2622, 2
      %v2656 = vsel %vm2174, %v2653, %v2655
      %v2657 = vrot.slane %v2623, 2
      %v2658 = vsel %vm2174, %v2655, %v2657
      %v2659 = vrot.slane %v2624, 2
      %v2660 = vsel %vm2174, %v2657, %v2659
      %v2661 = vrot.slane %v2625, 2
      %v2662 = vsel %vm2174, %v2659, %v2661
      %v2667 = vunpack.c.l.b16 %v2529
      %v2668 = vunpack.c.l.b16 %v2530
      %v2669 = vunpack.c.l.b16 %v2531
      %v2670 = vunpack.c.l.b16 %v2532
      %v2671 = vpack.c.b16 %v2668, %v2667
      %v2672 = vpack.c.b16 %v2670, %v2669
      %v2676 = vsel %vm472, %v2628, 0
      %v2679 = vsel %vm472, %v2630, 0
      %v2682 = vsel %vm472, %v2632, 0
      %v2685 = vsel %vm472, %v2634, 0
      %v2688 = vsel %vm472, %v2636, 0
      %v2691 = vsel %vm472, %v2638, 0
      %v2694 = vsel %vm472, %v2640, 0
      %v2697 = vsel %vm472, %v2642, 0
      %v2700 = vsel %vm472, %v2644, 0
      %v2703 = vsel %vm472, %v2646, 0
      %v2706 = vsel %vm472, %v2648, 0
      %v2709 = vsel %vm472, %v2650, 0
      %v2712 = vsel %vm472, %v2652, 0
      %v2715 = vsel %vm472, %v2654, 0
      %v2718 = vsel %vm472, %v2656, 0
      %v2721 = vsel %vm472, %v2658, 0
      %v2724 = vsel %vm472, %v2660, 0
      %v2727 = vsel %vm472, %v2662, 0
      %2729 = vmatprep.subr.bf16.mxu0 0
      %2730 = vmatpush1.bf16.msra.mxu0 0
      %2731 = vmatprep.subr.bf16.mxu0 0
      %2732 = vmatpush1.bf16.msra.mxu0 0
      %2733 = vmatprep.subr.bf16.mxu0 0
      %2734 = vmatpush1.bf16.msra.mxu0 0
      %2735 = vmatprep.subr.bf16.mxu0 0
      %2736 = vmatpush1.bf16.msra.mxu0 0
      %2737 = vmatprep.subr.bf16.mxu0 0
      %2738 = vmatpush1.bf16.msra.mxu0 0
      %2739 = vmatprep.subr.bf16.mxu0 0
      %2740 = vmatpush1.bf16.msra.mxu0 0
      %2741 = vmatprep.subr.bf16.mxu0 0
      %2742 = vmatpush1.bf16.msra.mxu0 %v2672
      %2743 = vmatprep.subr.bf16.mxu0 0
      %2744 = vmatpush1.bf16.msra.mxu0 %v2671
      %2745 = vmatprep.subr.bf16.mxu0 0
      %2746 = vmatpush2.bf16.msra.mxu0 0
      %2747 = vmatprep.subr.bf16.mxu0 0
      %2748 = vmatpush2.bf16.msra.mxu0 0
      %2749 = vmatprep.subr.bf16.mxu0 0
      %2750 = vmatpush2.bf16.msra.mxu0 0
      %2751 = vmatprep.subr.bf16.mxu0 0
      %2752 = vmatpush2.bf16.msra.mxu0 0
      %2753 = vmatprep.subr.bf16.mxu0 0
      %2754 = vmatpush2.bf16.msra.mxu0 0
      %2755 = vmatprep.subr.bf16.mxu0 0
      %2756 = vmatpush2.bf16.msra.mxu0 0
      %2757 = vmatprep.subr.bf16.mxu0 0
      %2758 = vmatpush2.bf16.msra.mxu0 0
      %2759 = vmatprep.subr.bf16.mxu0 0
      %2760 = vmatpush2.bf16.msra.mxu0 0
      %2761 = vmatprep.mubr.bf16.mxu0 0
      %2762 = vmatmul.mubr.bf16.gmra.mxu0 %v2676
      %v2763 = vpop.f32.mrf.mxu0
      %v2764 = vadd.f32 0.0, %v2763
      %v2765 = vpop.f32.mrf.mxu0
      %v2766 = vpop.f32.mrf.mxu0
      %v2767 = vadd.f32 0.0, %v2766
      %v2768 = vpop.f32.mrf.mxu0
      %2769 = vmatprep.mubr.bf16.mxu0 0
      %2770 = vmatmul.mubr.bf16.gmra.mxu0 %v2679
      %v2771 = vpop.f32.mrf.mxu0
      %v2772 = vadd.f32 0.0, %v2771
      %v2773 = vpop.f32.mrf.mxu0
      %v2774 = vpop.f32.mrf.mxu0
      %v2775 = vadd.f32 0.0, %v2774
      %v2776 = vpop.f32.mrf.mxu0
      %2777 = vmatprep.mubr.bf16.mxu0 0
      %2778 = vmatmul.mubr.bf16.gmra.mxu0 %v2682
      %v2779 = vpop.f32.mrf.mxu0
      %v2780 = vadd.f32 0.0, %v2779
      %v2781 = vpop.f32.mrf.mxu0
      %v2782 = vpop.f32.mrf.mxu0
      %v2783 = vadd.f32 0.0, %v2782
      %v2784 = vpop.f32.mrf.mxu0
      %2785 = vmatprep.mubr.bf16.mxu0 0
      %2786 = vmatmul.mubr.bf16.gmra.mxu0 %v2685
      %v2787 = vpop.f32.mrf.mxu0
      %v2788 = vadd.f32 0.0, %v2787
      %v2789 = vpop.f32.mrf.mxu0
      %v2790 = vpop.f32.mrf.mxu0
      %v2791 = vadd.f32 0.0, %v2790
      %v2792 = vpop.f32.mrf.mxu0
      %2793 = vmatprep.mubr.bf16.mxu0 0
      %2794 = vmatmul.mubr.bf16.gmra.mxu0 %v2688
      %v2795 = vpop.f32.mrf.mxu0
      %v2796 = vadd.f32 0.0, %v2795
      %v2797 = vpop.f32.mrf.mxu0
      %v2798 = vpop.f32.mrf.mxu0
      %v2799 = vadd.f32 0.0, %v2798
      %v2800 = vpop.f32.mrf.mxu0
      %2801 = vmatprep.mubr.bf16.mxu0 0
      %2802 = vmatmul.mubr.bf16.gmra.mxu0 %v2691
      %v2803 = vpop.f32.mrf.mxu0
      %v2804 = vadd.f32 0.0, %v2803
      %v2805 = vpop.f32.mrf.mxu0
      %v2806 = vpop.f32.mrf.mxu0
      %v2807 = vadd.f32 0.0, %v2806
      %v2808 = vpop.f32.mrf.mxu0
      %2809 = vmatprep.mubr.bf16.mxu0 0
      %2810 = vmatmul.mubr.bf16.gmra.mxu0 %v2694
      %v2811 = vpop.f32.mrf.mxu0
      %v2812 = vadd.f32 0.0, %v2811
      %v2813 = vpop.f32.mrf.mxu0
      %v2814 = vpop.f32.mrf.mxu0
      %v2815 = vadd.f32 0.0, %v2814
      %v2816 = vpop.f32.mrf.mxu0
      %2817 = vmatprep.mubr.bf16.mxu0 0
      %2818 = vmatmul.mubr.bf16.gmra.mxu0 %v2697
      %v2819 = vpop.f32.mrf.mxu0
      %v2820 = vadd.f32 0.0, %v2819
      %v2821 = vpop.f32.mrf.mxu0
      %v2822 = vpop.f32.mrf.mxu0
      %v2823 = vadd.f32 0.0, %v2822
      %v2824 = vpop.f32.mrf.mxu0
      %2825 = vmatprep.mubr.bf16.mxu0 0
      %2826 = vmatmul.mubr.bf16.gmra.mxu0 %v2700
      %v2827 = vpop.f32.mrf.mxu0
      %v2828 = vadd.f32 0.0, %v2827
      %v2829 = vpop.f32.mrf.mxu0
      %v2830 = vpop.f32.mrf.mxu0
      %v2831 = vadd.f32 0.0, %v2830
      %v2832 = vpop.f32.mrf.mxu0
      %2833 = vmatprep.mubr.bf16.mxu0 0
      %2834 = vmatmul.mubr.bf16.gmra.mxu0 %v2703
      %v2835 = vpop.f32.mrf.mxu0
      %v2836 = vadd.f32 0.0, %v2835
      %v2837 = vpop.f32.mrf.mxu0
      %v2838 = vpop.f32.mrf.mxu0
      %v2839 = vadd.f32 0.0, %v2838
      %v2840 = vpop.f32.mrf.mxu0
      %2841 = vmatprep.mubr.bf16.mxu0 0
      %2842 = vmatmul.mubr.bf16.gmra.mxu0 %v2706
      %v2843 = vpop.f32.mrf.mxu0
      %v2844 = vadd.f32 0.0, %v2843
      %v2845 = vpop.f32.mrf.mxu0
      %v2846 = vpop.f32.mrf.mxu0
      %v2847 = vadd.f32 0.0, %v2846
      %v2848 = vpop.f32.mrf.mxu0
      %2849 = vmatprep.mubr.bf16.mxu0 0
      %2850 = vmatmul.mubr.bf16.gmra.mxu0 %v2709
      %v2851 = vpop.f32.mrf.mxu0
      %v2852 = vadd.f32 0.0, %v2851
      %v2853 = vpop.f32.mrf.mxu0
      %v2854 = vpop.f32.mrf.mxu0
      %v2855 = vadd.f32 0.0, %v2854
      %v2856 = vpop.f32.mrf.mxu0
      %2857 = vmatprep.mubr.bf16.mxu0 0
      %2858 = vmatmul.mubr.bf16.gmra.mxu0 %v2712
      %v2859 = vpop.f32.mrf.mxu0
      %v2860 = vadd.f32 0.0, %v2859
      %v2861 = vpop.f32.mrf.mxu0
      %v2862 = vpop.f32.mrf.mxu0
      %v2863 = vadd.f32 0.0, %v2862
      %v2864 = vpop.f32.mrf.mxu0
      %2865 = vmatprep.mubr.bf16.mxu0 0
      %2866 = vmatmul.mubr.bf16.gmra.mxu0 %v2715
      %v2867 = vpop.f32.mrf.mxu0
      %v2868 = vadd.f32 0.0, %v2867
      %v2869 = vpop.f32.mrf.mxu0
      %v2870 = vpop.f32.mrf.mxu0
      %v2871 = vadd.f32 0.0, %v2870
      %v2872 = vpop.f32.mrf.mxu0
      %2873 = vmatprep.mubr.bf16.mxu0 0
      %2874 = vmatmul.mubr.bf16.gmra.mxu0 %v2718
      %v2875 = vpop.f32.mrf.mxu0
      %v2876 = vadd.f32 0.0, %v2875
      %v2877 = vpop.f32.mrf.mxu0
      %v2878 = vpop.f32.mrf.mxu0
      %v2879 = vadd.f32 0.0, %v2878
      %v2880 = vpop.f32.mrf.mxu0
      %2881 = vmatprep.mubr.bf16.mxu0 0
      %2882 = vmatmul.mubr.bf16.gmra.mxu0 %v2721
      %v2883 = vpop.f32.mrf.mxu0
      %v2884 = vadd.f32 0.0, %v2883
      %v2885 = vpop.f32.mrf.mxu0
      %v2886 = vpop.f32.mrf.mxu0
      %v2887 = vadd.f32 0.0, %v2886
      %v2888 = vpop.f32.mrf.mxu0
      %2889 = vmatprep.mubr.bf16.mxu0 0
      %2890 = vmatmul.mubr.bf16.gmra.mxu0 %v2724
      %v2891 = vpop.f32.mrf.mxu0
      %v2892 = vadd.f32 0.0, %v2891
      %v2893 = vpop.f32.mrf.mxu0
      %v2894 = vpop.f32.mrf.mxu0
      %v2895 = vadd.f32 0.0, %v2894
      %v2896 = vpop.f32.mrf.mxu0
      %2897 = vmatprep.mubr.bf16.mxu0 0
      %2898 = vmatmul.mubr.bf16.gmra.mxu0 %v2727
      %v2899 = vpop.f32.mrf.mxu0
      %v2900 = vadd.f32 0.0, %v2899
      %v2901 = vpop.f32.mrf.mxu0
      %v2902 = vpop.f32.mrf.mxu0
      %v2903 = vadd.f32 0.0, %v2902
      %v2904 = vpop.f32.mrf.mxu0
      %2905 = vdwg.mxu0
      %v2906 = vadd.f32 %v2455, %v2764
      %v2907 = vadd.f32 %v2456, %v2767
      %v2908 = vadd.f32 %v2457, %v2772
      %v2909 = vadd.f32 %v2458, %v2775
      %v2910 = vadd.f32 %v2459, %v2780
      %v2911 = vadd.f32 %v2460, %v2783
      %v2912 = vadd.f32 %v2461, %v2788
      %v2913 = vadd.f32 %v2462, %v2791
      %v2914 = vadd.f32 %v2463, %v2796
      %v2915 = vadd.f32 %v2464, %v2799
      %v2916 = vadd.f32 %v2465, %v2804
      %v2917 = vadd.f32 %v2466, %v2807
      %v2918 = vadd.f32 %v2467, %v2812
      %v2919 = vadd.f32 %v2468, %v2815
      %v2920 = vadd.f32 %v2469, %v2820
      %v2921 = vadd.f32 %v2470, %v2823
      %v2922 = vadd.f32 %v2471, %v2828
      %v2923 = vadd.f32 %v2472, %v2831
      %v2924 = vadd.f32 %v2473, %v2836
      %v2925 = vadd.f32 %v2474, %v2839
      %v2926 = vadd.f32 %v2475, %v2844
      %v2927 = vadd.f32 %v2476, %v2847
      %v2928 = vadd.f32 %v2477, %v2852
      %v2929 = vadd.f32 %v2478, %v2855
      %v2930 = vadd.f32 %v2479, %v2860
      %v2931 = vadd.f32 %v2480, %v2863
      %v2932 = vadd.f32 %v2481, %v2868
      %v2933 = vadd.f32 %v2482, %v2871
      %v2934 = vadd.f32 %v2483, %v2876
      %v2935 = vadd.f32 %v2484, %v2879
      %v2936 = vadd.f32 %v2485, %v2884
      %v2937 = vadd.f32 %v2486, %v2887
      %v2938 = vadd.f32 %v2487, %v2892
      %v2939 = vadd.f32 %v2488, %v2895
      %v2940 = vadd.f32 %v2489, %v2900
      %v2941 = vadd.f32 %v2490, %v2903
      %v2942 = vld [vmem:[%s165 + $0xa0] sm:$0x7]
      %s2943 = scalar_lea.vmem %s1, 112
      %v2944 = vld [vmem:[%s2943] sm:$0xf]
      %v2945 = vld [vmem:[%s2943 + $0x4] sm:$0xf]
      %v2946 = vld [vmem:[%s2943 + $0x8] sm:$0xf]
      %v2947 = vld [vmem:[%s2943 + $0xc] sm:$0xf]
      %v2949 = vunpack.c.l.b16 %v2942
      %v2950 = vpack.c.b16 %v2949, %v2949
      %vm2951 = vsmask.f32 5376
      %v2953 = vshrl.u32 %v2607, 16
      %v2955 = vrot.slane %v2953, 2
      %v2956 = vshll.u32 %v2607, 16
      %v2958 = vrot.slane %v2956, 3
      %v2959 = vor.u32 %v2955, %v2958
      %v2961 = vshrl.u32 %v2608, 16
      %v2963 = vrot.slane %v2961, 2
      %v2964 = vshll.u32 %v2608, 16
      %v2966 = vrot.slane %v2964, 3
      %v2967 = vor.u32 %v2963, %v2966
      %v2968 = vsel %vm2951, %v2959, %v2967
      %v2970 = vshrl.u32 %v2609, 16
      %v2972 = vrot.slane %v2970, 2
      %v2973 = vshll.u32 %v2609, 16
      %v2975 = vrot.slane %v2973, 3
      %v2976 = vor.u32 %v2972, %v2975
      %v2977 = vsel %vm2951, %v2967, %v2976
      %v2979 = vshrl.u32 %v2610, 16
      %v2981 = vrot.slane %v2979, 2
      %v2982 = vshll.u32 %v2610, 16
      %v2984 = vrot.slane %v2982, 3
      %v2985 = vor.u32 %v2981, %v2984
      %v2986 = vsel %vm2951, %v2976, %v2985
      %v2988 = vshrl.u32 %v2611, 16
      %v2990 = vrot.slane %v2988, 2
      %v2991 = vshll.u32 %v2611, 16
      %v2993 = vrot.slane %v2991, 3
      %v2994 = vor.u32 %v2990, %v2993
      %v2995 = vsel %vm2951, %v2985, %v2994
      %v2997 = vshrl.u32 %v2612, 16
      %v2999 = vrot.slane %v2997, 2
      %v3000 = vshll.u32 %v2612, 16
      %v3002 = vrot.slane %v3000, 3
      %v3003 = vor.u32 %v2999, %v3002
      %v3004 = vsel %vm2951, %v2994, %v3003
      %v3006 = vshrl.u32 %v2613, 16
      %v3008 = vrot.slane %v3006, 2
      %v3009 = vshll.u32 %v2613, 16
      %v3011 = vrot.slane %v3009, 3
      %v3012 = vor.u32 %v3008, %v3011
      %v3013 = vsel %vm2951, %v3003, %v3012
      %v3015 = vshrl.u32 %v2614, 16
      %v3017 = vrot.slane %v3015, 2
      %v3018 = vshll.u32 %v2614, 16
      %v3020 = vrot.slane %v3018, 3
      %v3021 = vor.u32 %v3017, %v3020
      %v3022 = vsel %vm2951, %v3012, %v3021
      %v3024 = vshrl.u32 %v2615, 16
      %v3026 = vrot.slane %v3024, 2
      %v3027 = vshll.u32 %v2615, 16
      %v3029 = vrot.slane %v3027, 3
      %v3030 = vor.u32 %v3026, %v3029
      %v3031 = vsel %vm2951, %v3021, %v3030
      %v3033 = vshrl.u32 %v2616, 16
      %v3035 = vrot.slane %v3033, 2
      %v3036 = vshll.u32 %v2616, 16
      %v3038 = vrot.slane %v3036, 3
      %v3039 = vor.u32 %v3035, %v3038
      %v3040 = vsel %vm2951, %v3030, %v3039
      %v3042 = vshrl.u32 %v2617, 16
      %v3044 = vrot.slane %v3042, 2
      %v3045 = vshll.u32 %v2617, 16
      %v3047 = vrot.slane %v3045, 3
      %v3048 = vor.u32 %v3044, %v3047
      %v3049 = vsel %vm2951, %v3039, %v3048
      %v3051 = vshrl.u32 %v2618, 16
      %v3053 = vrot.slane %v3051, 2
      %v3054 = vshll.u32 %v2618, 16
      %v3056 = vrot.slane %v3054, 3
      %v3057 = vor.u32 %v3053, %v3056
      %v3058 = vsel %vm2951, %v3048, %v3057
      %v3060 = vshrl.u32 %v2619, 16
      %v3062 = vrot.slane %v3060, 2
      %v3063 = vshll.u32 %v2619, 16
      %v3065 = vrot.slane %v3063, 3
      %v3066 = vor.u32 %v3062, %v3065
      %v3067 = vsel %vm2951, %v3057, %v3066
      %v3069 = vshrl.u32 %v2620, 16
      %v3071 = vrot.slane %v3069, 2
      %v3072 = vshll.u32 %v2620, 16
      %v3074 = vrot.slane %v3072, 3
      %v3075 = vor.u32 %v3071, %v3074
      %v3076 = vsel %vm2951, %v3066, %v3075
      %v3078 = vshrl.u32 %v2621, 16
      %v3080 = vrot.slane %v3078, 2
      %v3081 = vshll.u32 %v2621, 16
      %v3083 = vrot.slane %v3081, 3
      %v3084 = vor.u32 %v3080, %v3083
      %v3085 = vsel %vm2951, %v3075, %v3084
      %v3087 = vshrl.u32 %v2622, 16
      %v3089 = vrot.slane %v3087, 2
      %v3090 = vshll.u32 %v2622, 16
      %v3092 = vrot.slane %v3090, 3
      %v3093 = vor.u32 %v3089, %v3092
      %v3094 = vsel %vm2951, %v3084, %v3093
      %v3096 = vshrl.u32 %v2623, 16
      %v3098 = vrot.slane %v3096, 2
      %v3099 = vshll.u32 %v2623, 16
      %v3101 = vrot.slane %v3099, 3
      %v3102 = vor.u32 %v3098, %v3101
      %v3103 = vsel %vm2951, %v3093, %v3102
      %v3105 = vshrl.u32 %v2624, 16
      %v3107 = vrot.slane %v3105, 2
      %v3108 = vshll.u32 %v2624, 16
      %v3110 = vrot.slane %v3108, 3
      %v3111 = vor.u32 %v3107, %v3110
      %v3112 = vsel %vm2951, %v3102, %v3111
      %v3114 = vshrl.u32 %v2950, 16
      %v3116 = vrot.slane %v3114, 2
      %v3117 = vshll.u32 %v2950, 16
      %v3119 = vrot.slane %v3117, 3
      %v3120 = vor.u32 %v3116, %v3119
      %v3121 = vsel %vm2951, %v3111, %v3120
      %v3126 = vunpack.c.l.b16 %v2944
      %v3127 = vunpack.c.l.b16 %v2945
      %v3128 = vunpack.c.l.b16 %v2946
      %v3129 = vunpack.c.l.b16 %v2947
      %v3130 = vpack.c.b16 %v3127, %v3126
      %v3131 = vpack.c.b16 %v3129, %v3128
      %v3135 = vsel %vm472, %v2968, 0
      %v3138 = vsel %vm472, %v2977, 0
      %v3141 = vsel %vm472, %v2986, 0
      %v3144 = vsel %vm472, %v2995, 0
      %v3147 = vsel %vm472, %v3004, 0
      %v3150 = vsel %vm472, %v3013, 0
      %v3153 = vsel %vm472, %v3022, 0
      %v3156 = vsel %vm472, %v3031, 0
      %v3159 = vsel %vm472, %v3040, 0
      %v3162 = vsel %vm472, %v3049, 0
      %v3165 = vsel %vm472, %v3058, 0
      %v3168 = vsel %vm472, %v3067, 0
      %v3171 = vsel %vm472, %v3076, 0
      %v3174 = vsel %vm472, %v3085, 0
      %v3177 = vsel %vm472, %v3094, 0
      %v3180 = vsel %vm472, %v3103, 0
      %v3183 = vsel %vm472, %v3112, 0
      %v3186 = vsel %vm472, %v3121, 0
      %3188 = vmatprep.subr.bf16.mxu0 0
      %3189 = vmatpush1.bf16.msra.mxu0 0
      %3190 = vmatprep.subr.bf16.mxu0 0
      %3191 = vmatpush1.bf16.msra.mxu0 0
      %3192 = vmatprep.subr.bf16.mxu0 0
      %3193 = vmatpush1.bf16.msra.mxu0 0
      %3194 = vmatprep.subr.bf16.mxu0 0
      %3195 = vmatpush1.bf16.msra.mxu0 0
      %3196 = vmatprep.subr.bf16.mxu0 0
      %3197 = vmatpush1.bf16.msra.mxu0 0
      %3198 = vmatprep.subr.bf16.mxu0 0
      %3199 = vmatpush1.bf16.msra.mxu0 0
      %3200 = vmatprep.subr.bf16.mxu0 0
      %3201 = vmatpush1.bf16.msra.mxu0 %v3131
      %3202 = vmatprep.subr.bf16.mxu0 0
      %3203 = vmatpush1.bf16.msra.mxu0 %v3130
      %3204 = vmatprep.subr.bf16.mxu0 0
      %3205 = vmatpush2.bf16.msra.mxu0 0
      %3206 = vmatprep.subr.bf16.mxu0 0
      %3207 = vmatpush2.bf16.msra.mxu0 0
      %3208 = vmatprep.subr.bf16.mxu0 0
      %3209 = vmatpush2.bf16.msra.mxu0 0
      %3210 = vmatprep.subr.bf16.mxu0 0
      %3211 = vmatpush2.bf16.msra.mxu0 0
      %3212 = vmatprep.subr.bf16.mxu0 0
      %3213 = vmatpush2.bf16.msra.mxu0 0
      %3214 = vmatprep.subr.bf16.mxu0 0
      %3215 = vmatpush2.bf16.msra.mxu0 0
      %3216 = vmatprep.subr.bf16.mxu0 0
      %3217 = vmatpush2.bf16.msra.mxu0 0
      %3218 = vmatprep.subr.bf16.mxu0 0
      %3219 = vmatpush2.bf16.msra.mxu0 0
      %3220 = vmatprep.mubr.bf16.mxu0 0
      %3221 = vmatmul.mubr.bf16.gmra.mxu0 %v3135
      %v3222 = vpop.f32.mrf.mxu0
      %v3223 = vadd.f32 0.0, %v3222
      %v3224 = vpop.f32.mrf.mxu0
      %v3225 = vpop.f32.mrf.mxu0
      %v3226 = vadd.f32 0.0, %v3225
      %v3227 = vpop.f32.mrf.mxu0
      %3228 = vmatprep.mubr.bf16.mxu0 0
      %3229 = vmatmul.mubr.bf16.gmra.mxu0 %v3138
      %v3230 = vpop.f32.mrf.mxu0
      %v3231 = vadd.f32 0.0, %v3230
      %v3232 = vpop.f32.mrf.mxu0
      %v3233 = vpop.f32.mrf.mxu0
      %v3234 = vadd.f32 0.0, %v3233
      %v3235 = vpop.f32.mrf.mxu0
      %3236 = vmatprep.mubr.bf16.mxu0 0
      %3237 = vmatmul.mubr.bf16.gmra.mxu0 %v3141
      %v3238 = vpop.f32.mrf.mxu0
      %v3239 = vadd.f32 0.0, %v3238
      %v3240 = vpop.f32.mrf.mxu0
      %v3241 = vpop.f32.mrf.mxu0
      %v3242 = vadd.f32 0.0, %v3241
      %v3243 = vpop.f32.mrf.mxu0
      %3244 = vmatprep.mubr.bf16.mxu0 0
      %3245 = vmatmul.mubr.bf16.gmra.mxu0 %v3144
      %v3246 = vpop.f32.mrf.mxu0
      %v3247 = vadd.f32 0.0, %v3246
      %v3248 = vpop.f32.mrf.mxu0
      %v3249 = vpop.f32.mrf.mxu0
      %v3250 = vadd.f32 0.0, %v3249
      %v3251 = vpop.f32.mrf.mxu0
      %3252 = vmatprep.mubr.bf16.mxu0 0
      %3253 = vmatmul.mubr.bf16.gmra.mxu0 %v3147
      %v3254 = vpop.f32.mrf.mxu0
      %v3255 = vadd.f32 0.0, %v3254
      %v3256 = vpop.f32.mrf.mxu0
      %v3257 = vpop.f32.mrf.mxu0
      %v3258 = vadd.f32 0.0, %v3257
      %v3259 = vpop.f32.mrf.mxu0
      %3260 = vmatprep.mubr.bf16.mxu0 0
      %3261 = vmatmul.mubr.bf16.gmra.mxu0 %v3150
      %v3262 = vpop.f32.mrf.mxu0
      %v3263 = vadd.f32 0.0, %v3262
      %v3264 = vpop.f32.mrf.mxu0
      %v3265 = vpop.f32.mrf.mxu0
      %v3266 = vadd.f32 0.0, %v3265
      %v3267 = vpop.f32.mrf.mxu0
      %3268 = vmatprep.mubr.bf16.mxu0 0
      %3269 = vmatmul.mubr.bf16.gmra.mxu0 %v3153
      %v3270 = vpop.f32.mrf.mxu0
      %v3271 = vadd.f32 0.0, %v3270
      %v3272 = vpop.f32.mrf.mxu0
      %v3273 = vpop.f32.mrf.mxu0
      %v3274 = vadd.f32 0.0, %v3273
      %v3275 = vpop.f32.mrf.mxu0
      %3276 = vmatprep.mubr.bf16.mxu0 0
      %3277 = vmatmul.mubr.bf16.gmra.mxu0 %v3156
      %v3278 = vpop.f32.mrf.mxu0
      %v3279 = vadd.f32 0.0, %v3278
      %v3280 = vpop.f32.mrf.mxu0
      %v3281 = vpop.f32.mrf.mxu0
      %v3282 = vadd.f32 0.0, %v3281
      %v3283 = vpop.f32.mrf.mxu0
      %3284 = vmatprep.mubr.bf16.mxu0 0
      %3285 = vmatmul.mubr.bf16.gmra.mxu0 %v3159
      %v3286 = vpop.f32.mrf.mxu0
      %v3287 = vadd.f32 0.0, %v3286
      %v3288 = vpop.f32.mrf.mxu0
      %v3289 = vpop.f32.mrf.mxu0
      %v3290 = vadd.f32 0.0, %v3289
      %v3291 = vpop.f32.mrf.mxu0
      %3292 = vmatprep.mubr.bf16.mxu0 0
      %3293 = vmatmul.mubr.bf16.gmra.mxu0 %v3162
      %v3294 = vpop.f32.mrf.mxu0
      %v3295 = vadd.f32 0.0, %v3294
      %v3296 = vpop.f32.mrf.mxu0
      %v3297 = vpop.f32.mrf.mxu0
      %v3298 = vadd.f32 0.0, %v3297
      %v3299 = vpop.f32.mrf.mxu0
      %3300 = vmatprep.mubr.bf16.mxu0 0
      %3301 = vmatmul.mubr.bf16.gmra.mxu0 %v3165
      %v3302 = vpop.f32.mrf.mxu0
      %v3303 = vadd.f32 0.0, %v3302
      %v3304 = vpop.f32.mrf.mxu0
      %v3305 = vpop.f32.mrf.mxu0
      %v3306 = vadd.f32 0.0, %v3305
      %v3307 = vpop.f32.mrf.mxu0
      %3308 = vmatprep.mubr.bf16.mxu0 0
      %3309 = vmatmul.mubr.bf16.gmra.mxu0 %v3168
      %v3310 = vpop.f32.mrf.mxu0
      %v3311 = vadd.f32 0.0, %v3310
      %v3312 = vpop.f32.mrf.mxu0
      %v3313 = vpop.f32.mrf.mxu0
      %v3314 = vadd.f32 0.0, %v3313
      %v3315 = vpop.f32.mrf.mxu0
      %3316 = vmatprep.mubr.bf16.mxu0 0
      %3317 = vmatmul.mubr.bf16.gmra.mxu0 %v3171
      %v3318 = vpop.f32.mrf.mxu0
      %v3319 = vadd.f32 0.0, %v3318
      %v3320 = vpop.f32.mrf.mxu0
      %v3321 = vpop.f32.mrf.mxu0
      %v3322 = vadd.f32 0.0, %v3321
      %v3323 = vpop.f32.mrf.mxu0
      %3324 = vmatprep.mubr.bf16.mxu0 0
      %3325 = vmatmul.mubr.bf16.gmra.mxu0 %v3174
      %v3326 = vpop.f32.mrf.mxu0
      %v3327 = vadd.f32 0.0, %v3326
      %v3328 = vpop.f32.mrf.mxu0
      %v3329 = vpop.f32.mrf.mxu0
      %v3330 = vadd.f32 0.0, %v3329
      %v3331 = vpop.f32.mrf.mxu0
      %3332 = vmatprep.mubr.bf16.mxu0 0
      %3333 = vmatmul.mubr.bf16.gmra.mxu0 %v3177
      %v3334 = vpop.f32.mrf.mxu0
      %v3335 = vadd.f32 0.0, %v3334
      %v3336 = vpop.f32.mrf.mxu0
      %v3337 = vpop.f32.mrf.mxu0
      %v3338 = vadd.f32 0.0, %v3337
      %v3339 = vpop.f32.mrf.mxu0
      %3340 = vmatprep.mubr.bf16.mxu0 0
      %3341 = vmatmul.mubr.bf16.gmra.mxu0 %v3180
      %v3342 = vpop.f32.mrf.mxu0
      %v3343 = vadd.f32 0.0, %v3342
      %v3344 = vpop.f32.mrf.mxu0
      %v3345 = vpop.f32.mrf.mxu0
      %v3346 = vadd.f32 0.0, %v3345
      %v3347 = vpop.f32.mrf.mxu0
      %3348 = vmatprep.mubr.bf16.mxu0 0
      %3349 = vmatmul.mubr.bf16.gmra.mxu0 %v3183
      %v3350 = vpop.f32.mrf.mxu0
      %v3351 = vadd.f32 0.0, %v3350
      %v3352 = vpop.f32.mrf.mxu0
      %v3353 = vpop.f32.mrf.mxu0
      %v3354 = vadd.f32 0.0, %v3353
      %v3355 = vpop.f32.mrf.mxu0
      %3356 = vmatprep.mubr.bf16.mxu0 0
      %3357 = vmatmul.mubr.bf16.gmra.mxu0 %v3186
      %v3358 = vpop.f32.mrf.mxu0
      %v3359 = vadd.f32 0.0, %v3358
      %v3360 = vpop.f32.mrf.mxu0
      %v3361 = vpop.f32.mrf.mxu0
      %v3362 = vadd.f32 0.0, %v3361
      %v3363 = vpop.f32.mrf.mxu0
      %3364 = vdwg.mxu0
      %v3365 = vadd.f32 %v2906, %v3223
      %v3366 = vadd.f32 %v2907, %v3226
      %v3367 = vadd.f32 %v2908, %v3231
      %v3368 = vadd.f32 %v2909, %v3234
      %v3369 = vadd.f32 %v2910, %v3239
      %v3370 = vadd.f32 %v2911, %v3242
      %v3371 = vadd.f32 %v2912, %v3247
      %v3372 = vadd.f32 %v2913, %v3250
      %v3373 = vadd.f32 %v2914, %v3255
      %v3374 = vadd.f32 %v2915, %v3258
      %v3375 = vadd.f32 %v2916, %v3263
      %v3376 = vadd.f32 %v2917, %v3266
      %v3377 = vadd.f32 %v2918, %v3271
      %v3378 = vadd.f32 %v2919, %v3274
      %v3379 = vadd.f32 %v2920, %v3279
      %v3380 = vadd.f32 %v2921, %v3282
      %v3381 = vadd.f32 %v2922, %v3287
      %v3382 = vadd.f32 %v2923, %v3290
      %v3383 = vadd.f32 %v2924, %v3295
      %v3384 = vadd.f32 %v2925, %v3298
      %v3385 = vadd.f32 %v2926, %v3303
      %v3386 = vadd.f32 %v2927, %v3306
      %v3387 = vadd.f32 %v2928, %v3311
      %v3388 = vadd.f32 %v2929, %v3314
      %v3389 = vadd.f32 %v2930, %v3319
      %v3390 = vadd.f32 %v2931, %v3322
      %v3391 = vadd.f32 %v2932, %v3327
      %v3392 = vadd.f32 %v2933, %v3330
      %v3393 = vadd.f32 %v2934, %v3335
      %v3394 = vadd.f32 %v2935, %v3338
      %v3395 = vadd.f32 %v2936, %v3343
      %v3396 = vadd.f32 %v2937, %v3346
      %v3397 = vadd.f32 %v2938, %v3351
      %v3398 = vadd.f32 %v2939, %v3354
      %v3399 = vadd.f32 %v2940, %v3359
      %v3400 = vadd.f32 %v2941, %v3362
      %v3401 = vld [vmem:[%s165 + $0x10] sm:$0x8]
      %s3402 = scalar_lea.vmem %s1, 128
      %v3403 = vld [vmem:[%s3402] sm:$0xf]
      %v3404 = vld [vmem:[%s3402 + $0x4] sm:$0xf]
      %v3405 = vld [vmem:[%s3402 + $0x8] sm:$0xf]
      %v3406 = vld [vmem:[%s3402 + $0xc] sm:$0xf]
      %v3408 = vunpack.c.l.b16 %v3401
      %v3409 = vpack.c.b16 %v2571, %v3408
      %vm3410 = vcmask 1044480
      %v3411 = vrot.slane %v3409, 3
      %v3412 = vrot.slane %v2608, 3
      %v3413 = vsel %vm3410, %v3411, %v3412
      %v3414 = vrot.slane %v2609, 3
      %v3415 = vsel %vm3410, %v3412, %v3414
      %v3416 = vrot.slane %v2610, 3
      %v3417 = vsel %vm3410, %v3414, %v3416
      %v3418 = vrot.slane %v2611, 3
      %v3419 = vsel %vm3410, %v3416, %v3418
      %v3420 = vrot.slane %v2612, 3
      %v3421 = vsel %vm3410, %v3418, %v3420
      %v3422 = vrot.slane %v2613, 3
      %v3423 = vsel %vm3410, %v3420, %v3422
      %v3424 = vrot.slane %v2614, 3
      %v3425 = vsel %vm3410, %v3422, %v3424
      %v3426 = vrot.slane %v2615, 3
      %v3427 = vsel %vm3410, %v3424, %v3426
      %v3428 = vrot.slane %v2616, 3
      %v3429 = vsel %vm3410, %v3426, %v3428
      %v3430 = vrot.slane %v2617, 3
      %v3431 = vsel %vm3410, %v3428, %v3430
      %v3432 = vrot.slane %v2618, 3
      %v3433 = vsel %vm3410, %v3430, %v3432
      %v3434 = vrot.slane %v2619, 3
      %v3435 = vsel %vm3410, %v3432, %v3434
      %v3436 = vrot.slane %v2620, 3
      %v3437 = vsel %vm3410, %v3434, %v3436
      %v3438 = vrot.slane %v2621, 3
      %v3439 = vsel %vm3410, %v3436, %v3438
      %v3440 = vrot.slane %v2622, 3
      %v3441 = vsel %vm3410, %v3438, %v3440
      %v3442 = vrot.slane %v2623, 3
      %v3443 = vsel %vm3410, %v3440, %v3442
      %v3444 = vrot.slane %v2624, 3
      %v3445 = vsel %vm3410, %v3442, %v3444
      %v3446 = vrot.slane %v2950, 3
      %v3447 = vsel %vm3410, %v3444, %v3446
      %v3452 = vunpack.c.l.b16 %v3403
      %v3453 = vunpack.c.l.b16 %v3404
      %v3454 = vunpack.c.l.b16 %v3405
      %v3455 = vunpack.c.l.b16 %v3406
      %v3456 = vpack.c.b16 %v3453, %v3452
      %v3457 = vpack.c.b16 %v3455, %v3454
      %v3461 = vsel %vm472, %v3413, 0
      %v3464 = vsel %vm472, %v3415, 0
      %v3467 = vsel %vm472, %v3417, 0
      %v3470 = vsel %vm472, %v3419, 0
      %v3473 = vsel %vm472, %v3421, 0
      %v3476 = vsel %vm472, %v3423, 0
      %v3479 = vsel %vm472, %v3425, 0
      %v3482 = vsel %vm472, %v3427, 0
      %v3485 = vsel %vm472, %v3429, 0
      %v3488 = vsel %vm472, %v3431, 0
      %v3491 = vsel %vm472, %v3433, 0
      %v3494 = vsel %vm472, %v3435, 0
      %v3497 = vsel %vm472, %v3437, 0
      %v3500 = vsel %vm472, %v3439, 0
      %v3503 = vsel %vm472, %v3441, 0
      %v3506 = vsel %vm472, %v3443, 0
      %v3509 = vsel %vm472, %v3445, 0
      %v3512 = vsel %vm472, %v3447, 0
      %3514 = vmatprep.subr.bf16.mxu0 0
      %3515 = vmatpush1.bf16.msra.mxu0 0
      %3516 = vmatprep.subr.bf16.mxu0 0
      %3517 = vmatpush1.bf16.msra.mxu0 0
      %3518 = vmatprep.subr.bf16.mxu0 0
      %3519 = vmatpush1.bf16.msra.mxu0 0
      %3520 = vmatprep.subr.bf16.mxu0 0
      %3521 = vmatpush1.bf16.msra.mxu0 0
      %3522 = vmatprep.subr.bf16.mxu0 0
      %3523 = vmatpush1.bf16.msra.mxu0 0
      %3524 = vmatprep.subr.bf16.mxu0 0
      %3525 = vmatpush1.bf16.msra.mxu0 0
      %3526 = vmatprep.subr.bf16.mxu0 0
      %3527 = vmatpush1.bf16.msra.mxu0 %v3457
      %3528 = vmatprep.subr.bf16.mxu0 0
      %3529 = vmatpush1.bf16.msra.mxu0 %v3456
      %3530 = vmatprep.subr.bf16.mxu0 0
      %3531 = vmatpush2.bf16.msra.mxu0 0
      %3532 = vmatprep.subr.bf16.mxu0 0
      %3533 = vmatpush2.bf16.msra.mxu0 0
      %3534 = vmatprep.subr.bf16.mxu0 0
      %3535 = vmatpush2.bf16.msra.mxu0 0
      %3536 = vmatprep.subr.bf16.mxu0 0
      %3537 = vmatpush2.bf16.msra.mxu0 0
      %3538 = vmatprep.subr.bf16.mxu0 0
      %3539 = vmatpush2.bf16.msra.mxu0 0
      %3540 = vmatprep.subr.bf16.mxu0 0
      %3541 = vmatpush2.bf16.msra.mxu0 0
      %3542 = vmatprep.subr.bf16.mxu0 0
      %3543 = vmatpush2.bf16.msra.mxu0 0
      %3544 = vmatprep.subr.bf16.mxu0 0
      %3545 = vmatpush2.bf16.msra.mxu0 0
      %3546 = vmatprep.mubr.bf16.mxu0 0
      %3547 = vmatmul.mubr.bf16.gmra.mxu0 %v3461
      %v3548 = vpop.f32.mrf.mxu0
      %v3549 = vadd.f32 0.0, %v3548
      %v3550 = vpop.f32.mrf.mxu0
      %v3551 = vpop.f32.mrf.mxu0
      %v3552 = vadd.f32 0.0, %v3551
      %v3553 = vpop.f32.mrf.mxu0
      %3554 = vmatprep.mubr.bf16.mxu0 0
      %3555 = vmatmul.mubr.bf16.gmra.mxu0 %v3464
      %v3556 = vpop.f32.mrf.mxu0
      %v3557 = vadd.f32 0.0, %v3556
      %v3558 = vpop.f32.mrf.mxu0
      %v3559 = vpop.f32.mrf.mxu0
      %v3560 = vadd.f32 0.0, %v3559
      %v3561 = vpop.f32.mrf.mxu0
      %3562 = vmatprep.mubr.bf16.mxu0 0
      %3563 = vmatmul.mubr.bf16.gmra.mxu0 %v3467
      %v3564 = vpop.f32.mrf.mxu0
      %v3565 = vadd.f32 0.0, %v3564
      %v3566 = vpop.f32.mrf.mxu0
      %v3567 = vpop.f32.mrf.mxu0
      %v3568 = vadd.f32 0.0, %v3567
      %v3569 = vpop.f32.mrf.mxu0
      %3570 = vmatprep.mubr.bf16.mxu0 0
      %3571 = vmatmul.mubr.bf16.gmra.mxu0 %v3470
      %v3572 = vpop.f32.mrf.mxu0
      %v3573 = vadd.f32 0.0, %v3572
      %v3574 = vpop.f32.mrf.mxu0
      %v3575 = vpop.f32.mrf.mxu0
      %v3576 = vadd.f32 0.0, %v3575
      %v3577 = vpop.f32.mrf.mxu0
      %3578 = vmatprep.mubr.bf16.mxu0 0
      %3579 = vmatmul.mubr.bf16.gmra.mxu0 %v3473
      %v3580 = vpop.f32.mrf.mxu0
      %v3581 = vadd.f32 0.0, %v3580
      %v3582 = vpop.f32.mrf.mxu0
      %v3583 = vpop.f32.mrf.mxu0
      %v3584 = vadd.f32 0.0, %v3583
      %v3585 = vpop.f32.mrf.mxu0
      %3586 = vmatprep.mubr.bf16.mxu0 0
      %3587 = vmatmul.mubr.bf16.gmra.mxu0 %v3476
      %v3588 = vpop.f32.mrf.mxu0
      %v3589 = vadd.f32 0.0, %v3588
      %v3590 = vpop.f32.mrf.mxu0
      %v3591 = vpop.f32.mrf.mxu0
      %v3592 = vadd.f32 0.0, %v3591
      %v3593 = vpop.f32.mrf.mxu0
      %3594 = vmatprep.mubr.bf16.mxu0 0
      %3595 = vmatmul.mubr.bf16.gmra.mxu0 %v3479
      %v3596 = vpop.f32.mrf.mxu0
      %v3597 = vadd.f32 0.0, %v3596
      %v3598 = vpop.f32.mrf.mxu0
      %v3599 = vpop.f32.mrf.mxu0
      %v3600 = vadd.f32 0.0, %v3599
      %v3601 = vpop.f32.mrf.mxu0
      %3602 = vmatprep.mubr.bf16.mxu0 0
      %3603 = vmatmul.mubr.bf16.gmra.mxu0 %v3482
      %v3604 = vpop.f32.mrf.mxu0
      %v3605 = vadd.f32 0.0, %v3604
      %v3606 = vpop.f32.mrf.mxu0
      %v3607 = vpop.f32.mrf.mxu0
      %v3608 = vadd.f32 0.0, %v3607
      %v3609 = vpop.f32.mrf.mxu0
      %3610 = vmatprep.mubr.bf16.mxu0 0
      %3611 = vmatmul.mubr.bf16.gmra.mxu0 %v3485
      %v3612 = vpop.f32.mrf.mxu0
      %v3613 = vadd.f32 0.0, %v3612
      %v3614 = vpop.f32.mrf.mxu0
      %v3615 = vpop.f32.mrf.mxu0
      %v3616 = vadd.f32 0.0, %v3615
      %v3617 = vpop.f32.mrf.mxu0
      %3618 = vmatprep.mubr.bf16.mxu0 0
      %3619 = vmatmul.mubr.bf16.gmra.mxu0 %v3488
      %v3620 = vpop.f32.mrf.mxu0
      %v3621 = vadd.f32 0.0, %v3620
      %v3622 = vpop.f32.mrf.mxu0
      %v3623 = vpop.f32.mrf.mxu0
      %v3624 = vadd.f32 0.0, %v3623
      %v3625 = vpop.f32.mrf.mxu0
      %3626 = vmatprep.mubr.bf16.mxu0 0
      %3627 = vmatmul.mubr.bf16.gmra.mxu0 %v3491
      %v3628 = vpop.f32.mrf.mxu0
      %v3629 = vadd.f32 0.0, %v3628
      %v3630 = vpop.f32.mrf.mxu0
      %v3631 = vpop.f32.mrf.mxu0
      %v3632 = vadd.f32 0.0, %v3631
      %v3633 = vpop.f32.mrf.mxu0
      %3634 = vmatprep.mubr.bf16.mxu0 0
      %3635 = vmatmul.mubr.bf16.gmra.mxu0 %v3494
      %v3636 = vpop.f32.mrf.mxu0
      %v3637 = vadd.f32 0.0, %v3636
      %v3638 = vpop.f32.mrf.mxu0
      %v3639 = vpop.f32.mrf.mxu0
      %v3640 = vadd.f32 0.0, %v3639
      %v3641 = vpop.f32.mrf.mxu0
      %3642 = vmatprep.mubr.bf16.mxu0 0
      %3643 = vmatmul.mubr.bf16.gmra.mxu0 %v3497
      %v3644 = vpop.f32.mrf.mxu0
      %v3645 = vadd.f32 0.0, %v3644
      %v3646 = vpop.f32.mrf.mxu0
      %v3647 = vpop.f32.mrf.mxu0
      %v3648 = vadd.f32 0.0, %v3647
      %v3649 = vpop.f32.mrf.mxu0
      %3650 = vmatprep.mubr.bf16.mxu0 0
      %3651 = vmatmul.mubr.bf16.gmra.mxu0 %v3500
      %v3652 = vpop.f32.mrf.mxu0
      %v3653 = vadd.f32 0.0, %v3652
      %v3654 = vpop.f32.mrf.mxu0
      %v3655 = vpop.f32.mrf.mxu0
      %v3656 = vadd.f32 0.0, %v3655
      %v3657 = vpop.f32.mrf.mxu0
      %3658 = vmatprep.mubr.bf16.mxu0 0
      %3659 = vmatmul.mubr.bf16.gmra.mxu0 %v3503
      %v3660 = vpop.f32.mrf.mxu0
      %v3661 = vadd.f32 0.0, %v3660
      %v3662 = vpop.f32.mrf.mxu0
      %v3663 = vpop.f32.mrf.mxu0
      %v3664 = vadd.f32 0.0, %v3663
      %v3665 = vpop.f32.mrf.mxu0
      %3666 = vmatprep.mubr.bf16.mxu0 0
      %3667 = vmatmul.mubr.bf16.gmra.mxu0 %v3506
      %v3668 = vpop.f32.mrf.mxu0
      %v3669 = vadd.f32 0.0, %v3668
      %v3670 = vpop.f32.mrf.mxu0
      %v3671 = vpop.f32.mrf.mxu0
      %v3672 = vadd.f32 0.0, %v3671
      %v3673 = vpop.f32.mrf.mxu0
      %3674 = vmatprep.mubr.bf16.mxu0 0
      %3675 = vmatmul.mubr.bf16.gmra.mxu0 %v3509
      %v3676 = vpop.f32.mrf.mxu0
      %v3677 = vadd.f32 0.0, %v3676
      %v3678 = vpop.f32.mrf.mxu0
      %v3679 = vpop.f32.mrf.mxu0
      %v3680 = vadd.f32 0.0, %v3679
      %v3681 = vpop.f32.mrf.mxu0
      %3682 = vmatprep.mubr.bf16.mxu0 0
      %3683 = vmatmul.mubr.bf16.gmra.mxu0 %v3512
      %v3684 = vpop.f32.mrf.mxu0
      %v3685 = vadd.f32 0.0, %v3684
      %v3686 = vpop.f32.mrf.mxu0
      %v3687 = vpop.f32.mrf.mxu0
      %v3688 = vadd.f32 0.0, %v3687
      %v3689 = vpop.f32.mrf.mxu0
      %3690 = vdwg.mxu0
      %v3691 = vadd.f32 %v3365, %v3549
      %v3692 = vadd.f32 %v3366, %v3552
      %v3693 = vadd.f32 %v3367, %v3557
      %v3694 = vadd.f32 %v3368, %v3560
      %v3695 = vadd.f32 %v3369, %v3565
      %v3696 = vadd.f32 %v3370, %v3568
      %v3697 = vadd.f32 %v3371, %v3573
      %v3698 = vadd.f32 %v3372, %v3576
      %v3699 = vadd.f32 %v3373, %v3581
      %v3700 = vadd.f32 %v3374, %v3584
      %v3701 = vadd.f32 %v3375, %v3589
      %v3702 = vadd.f32 %v3376, %v3592
      %v3703 = vadd.f32 %v3377, %v3597
      %v3704 = vadd.f32 %v3378, %v3600
      %v3705 = vadd.f32 %v3379, %v3605
      %v3706 = vadd.f32 %v3380, %v3608
      %v3707 = vadd.f32 %v3381, %v3613
      %v3708 = vadd.f32 %v3382, %v3616
      %v3709 = vadd.f32 %v3383, %v3621
      %v3710 = vadd.f32 %v3384, %v3624
      %v3711 = vadd.f32 %v3385, %v3629
      %v3712 = vadd.f32 %v3386, %v3632
      %v3713 = vadd.f32 %v3387, %v3637
      %v3714 = vadd.f32 %v3388, %v3640
      %v3715 = vadd.f32 %v3389, %v3645
      %v3716 = vadd.f32 %v3390, %v3648
      %v3717 = vadd.f32 %v3391, %v3653
      %v3718 = vadd.f32 %v3392, %v3656
      %v3719 = vadd.f32 %v3393, %v3661
      %v3720 = vadd.f32 %v3394, %v3664
      %v3721 = vadd.f32 %v3395, %v3669
      %v3722 = vadd.f32 %v3396, %v3672
      %v3723 = vadd.f32 %v3397, %v3677
      %v3724 = vadd.f32 %v3398, %v3680
      %v3725 = vadd.f32 %v3399, %v3685
      %v3726 = vadd.f32 %v3400, %v3688
      %v3727 = vld [vmem:[%s2] sm:$0x1]
      %v3729 = vlaneseq
      %v3730 = vshrl.u32 %v3729, 7
      %v3731 = vsub.s32 0, %v3730
      %v3732 = vrot.slane %v3727, %v3731
      %v3734 = vadd.f32 %v3691, %v3732
      %v3735 = vadd.f32 %v3692, %v3732
      %v3736 = vadd.f32 %v3693, %v3732
      %v3737 = vadd.f32 %v3694, %v3732
      %v3738 = vadd.f32 %v3695, %v3732
      %v3739 = vadd.f32 %v3696, %v3732
      %v3740 = vadd.f32 %v3697, %v3732
      %v3741 = vadd.f32 %v3698, %v3732
      %v3742 = vadd.f32 %v3699, %v3732
      %v3743 = vadd.f32 %v3700, %v3732
      %v3744 = vadd.f32 %v3701, %v3732
      %v3745 = vadd.f32 %v3702, %v3732
      %v3746 = vadd.f32 %v3703, %v3732
      %v3747 = vadd.f32 %v3704, %v3732
      %v3748 = vadd.f32 %v3705, %v3732
      %v3749 = vadd.f32 %v3706, %v3732
      %v3750 = vadd.f32 %v3707, %v3732
      %v3751 = vadd.f32 %v3708, %v3732
      %v3752 = vadd.f32 %v3709, %v3732
      %v3753 = vadd.f32 %v3710, %v3732
      %v3754 = vadd.f32 %v3711, %v3732
      %v3755 = vadd.f32 %v3712, %v3732
      %v3756 = vadd.f32 %v3713, %v3732
      %v3757 = vadd.f32 %v3714, %v3732
      %v3758 = vadd.f32 %v3715, %v3732
      %v3759 = vadd.f32 %v3716, %v3732
      %v3760 = vadd.f32 %v3717, %v3732
      %v3761 = vadd.f32 %v3718, %v3732
      %v3762 = vadd.f32 %v3719, %v3732
      %v3763 = vadd.f32 %v3720, %v3732
      %v3764 = vadd.f32 %v3721, %v3732
      %v3765 = vadd.f32 %v3722, %v3732
      %v3766 = vadd.f32 %v3723, %v3732
      %v3767 = vadd.f32 %v3724, %v3732
      %v3768 = vadd.f32 %v3725, %v3732
      %v3769 = vadd.f32 %v3726, %v3732
      %v3770 = vsub.f32 0.0, %v3734
      %v3771 = vsub.f32 0.0, %v3735
      %v3772 = vsub.f32 0.0, %v3736
      %v3773 = vsub.f32 0.0, %v3737
      %v3774 = vsub.f32 0.0, %v3738
      %v3775 = vsub.f32 0.0, %v3739
      %v3776 = vsub.f32 0.0, %v3740
      %v3777 = vsub.f32 0.0, %v3741
      %v3778 = vsub.f32 0.0, %v3742
      %v3779 = vsub.f32 0.0, %v3743
      %v3780 = vsub.f32 0.0, %v3744
      %v3781 = vsub.f32 0.0, %v3745
      %v3782 = vsub.f32 0.0, %v3746
      %v3783 = vsub.f32 0.0, %v3747
      %v3784 = vsub.f32 0.0, %v3748
      %v3785 = vsub.f32 0.0, %v3749
      %v3786 = vsub.f32 0.0, %v3750
      %v3787 = vsub.f32 0.0, %v3751
      %v3788 = vsub.f32 0.0, %v3752
      %v3789 = vsub.f32 0.0, %v3753
      %v3790 = vsub.f32 0.0, %v3754
      %v3791 = vsub.f32 0.0, %v3755
      %v3792 = vsub.f32 0.0, %v3756
      %v3793 = vsub.f32 0.0, %v3757
      %v3794 = vsub.f32 0.0, %v3758
      %v3795 = vsub.f32 0.0, %v3759
      %v3796 = vsub.f32 0.0, %v3760
      %v3797 = vsub.f32 0.0, %v3761
      %v3798 = vsub.f32 0.0, %v3762
      %v3799 = vsub.f32 0.0, %v3763
      %v3800 = vsub.f32 0.0, %v3764
      %v3801 = vsub.f32 0.0, %v3765
      %v3802 = vsub.f32 0.0, %v3766
      %v3803 = vsub.f32 0.0, %v3767
      %v3804 = vsub.f32 0.0, %v3768
      %v3805 = vsub.f32 0.0, %v3769
      %v3806 = vmul.f32 %v3770, 1.442695
      %v3807 = vpow.pop %v3806
      %v3808 = vmul.f32 %v3771, 1.442695
      %v3809 = vpow.pop %v3808
      %v3810 = vmul.f32 %v3772, 1.442695
      %v3811 = vpow.pop %v3810
      %v3812 = vmul.f32 %v3773, 1.442695
      %v3813 = vpow.pop %v3812
      %v3814 = vmul.f32 %v3774, 1.442695
      %v3815 = vpow.pop %v3814
      %v3816 = vmul.f32 %v3775, 1.442695
      %v3817 = vpow.pop %v3816
      %v3818 = vmul.f32 %v3776, 1.442695
      %v3819 = vpow.pop %v3818
      %v3820 = vmul.f32 %v3777, 1.442695
      %v3821 = vpow.pop %v3820
      %v3822 = vmul.f32 %v3778, 1.442695
      %v3823 = vpow.pop %v3822
      %v3824 = vmul.f32 %v3779, 1.442695
      %v3825 = vpow.pop %v3824
      %v3826 = vmul.f32 %v3780, 1.442695
      %v3827 = vpow.pop %v3826
      %v3828 = vmul.f32 %v3781, 1.442695
      %v3829 = vpow.pop %v3828
      %v3830 = vmul.f32 %v3782, 1.442695
      %v3831 = vpow.pop %v3830
      %v3832 = vmul.f32 %v3783, 1.442695
      %v3833 = vpow.pop %v3832
      %v3834 = vmul.f32 %v3784, 1.442695
      %v3835 = vpow.pop %v3834
      %v3836 = vmul.f32 %v3785, 1.442695
      %v3837 = vpow.pop %v3836
      %v3838 = vmul.f32 %v3786, 1.442695
      %v3839 = vpow.pop %v3838
      %v3840 = vmul.f32 %v3787, 1.442695
      %v3841 = vpow.pop %v3840
      %v3842 = vmul.f32 %v3788, 1.442695
      %v3843 = vpow.pop %v3842
      %v3844 = vmul.f32 %v3789, 1.442695
      %v3845 = vpow.pop %v3844
      %v3846 = vmul.f32 %v3790, 1.442695
      %v3847 = vpow.pop %v3846
      %v3848 = vmul.f32 %v3791, 1.442695
      %v3849 = vpow.pop %v3848
      %v3850 = vmul.f32 %v3792, 1.442695
      %v3851 = vpow.pop %v3850
      %v3852 = vmul.f32 %v3793, 1.442695
      %v3853 = vpow.pop %v3852
      %v3854 = vmul.f32 %v3794, 1.442695
      %v3855 = vpow.pop %v3854
      %v3856 = vmul.f32 %v3795, 1.442695
      %v3857 = vpow.pop %v3856
      %v3858 = vmul.f32 %v3796, 1.442695
      %v3859 = vpow.pop %v3858
      %v3860 = vmul.f32 %v3797, 1.442695
      %v3861 = vpow.pop %v3860
      %v3862 = vmul.f32 %v3798, 1.442695
      %v3863 = vpow.pop %v3862
      %v3864 = vmul.f32 %v3799, 1.442695
      %v3865 = vpow.pop %v3864
      %v3866 = vmul.f32 %v3800, 1.442695
      %v3867 = vpow.pop %v3866
      %v3868 = vmul.f32 %v3801, 1.442695
      %v3869 = vpow.pop %v3868
      %v3870 = vmul.f32 %v3802, 1.442695
      %v3871 = vpow.pop %v3870
      %v3872 = vmul.f32 %v3803, 1.442695
      %v3873 = vpow.pop %v3872
      %v3874 = vmul.f32 %v3804, 1.442695
      %v3875 = vpow.pop %v3874
      %v3876 = vmul.f32 %v3805, 1.442695
      %v3877 = vpow.pop %v3876
      %v3878 = vadd.f32 %v3807, 1.0
      %v3879 = vadd.f32 %v3809, 1.0
      %v3880 = vadd.f32 %v3811, 1.0
      %v3881 = vadd.f32 %v3813, 1.0
      %v3882 = vadd.f32 %v3815, 1.0
      %v3883 = vadd.f32 %v3817, 1.0
      %v3884 = vadd.f32 %v3819, 1.0
      %v3885 = vadd.f32 %v3821, 1.0
      %v3886 = vadd.f32 %v3823, 1.0
      %v3887 = vadd.f32 %v3825, 1.0
      %v3888 = vadd.f32 %v3827, 1.0
      %v3889 = vadd.f32 %v3829, 1.0
      %v3890 = vadd.f32 %v3831, 1.0
      %v3891 = vadd.f32 %v3833, 1.0
      %v3892 = vadd.f32 %v3835, 1.0
      %v3893 = vadd.f32 %v3837, 1.0
      %v3894 = vadd.f32 %v3839, 1.0
      %v3895 = vadd.f32 %v3841, 1.0
      %v3896 = vadd.f32 %v3843, 1.0
      %v3897 = vadd.f32 %v3845, 1.0
      %v3898 = vadd.f32 %v3847, 1.0
      %v3899 = vadd.f32 %v3849, 1.0
      %v3900 = vadd.f32 %v3851, 1.0
      %v3901 = vadd.f32 %v3853, 1.0
      %v3902 = vadd.f32 %v3855, 1.0
      %v3903 = vadd.f32 %v3857, 1.0
      %v3904 = vadd.f32 %v3859, 1.0
      %v3905 = vadd.f32 %v3861, 1.0
      %v3906 = vadd.f32 %v3863, 1.0
      %v3907 = vadd.f32 %v3865, 1.0
      %v3908 = vadd.f32 %v3867, 1.0
      %v3909 = vadd.f32 %v3869, 1.0
      %v3910 = vadd.f32 %v3871, 1.0
      %v3911 = vadd.f32 %v3873, 1.0
      %v3912 = vadd.f32 %v3875, 1.0
      %v3913 = vadd.f32 %v3877, 1.0
      %v3914 = vrcp.pop %v3878
      %v3915 = vrcp.pop %v3879
      %v3916 = vrcp.pop %v3880
      %v3917 = vrcp.pop %v3881
      %v3918 = vrcp.pop %v3882
      %v3919 = vrcp.pop %v3883
      %v3920 = vrcp.pop %v3884
      %v3921 = vrcp.pop %v3885
      %v3922 = vrcp.pop %v3886
      %v3923 = vrcp.pop %v3887
      %v3924 = vrcp.pop %v3888
      %v3925 = vrcp.pop %v3889
      %v3926 = vrcp.pop %v3890
      %v3927 = vrcp.pop %v3891
      %v3928 = vrcp.pop %v3892
      %v3929 = vrcp.pop %v3893
      %v3930 = vrcp.pop %v3894
      %v3931 = vrcp.pop %v3895
      %v3932 = vrcp.pop %v3896
      %v3933 = vrcp.pop %v3897
      %v3934 = vrcp.pop %v3898
      %v3935 = vrcp.pop %v3899
      %v3936 = vrcp.pop %v3900
      %v3937 = vrcp.pop %v3901
      %v3938 = vrcp.pop %v3902
      %v3939 = vrcp.pop %v3903
      %v3940 = vrcp.pop %v3904
      %v3941 = vrcp.pop %v3905
      %v3942 = vrcp.pop %v3906
      %v3943 = vrcp.pop %v3907
      %v3944 = vrcp.pop %v3908
      %v3945 = vrcp.pop %v3909
      %v3946 = vrcp.pop %v3910
      %v3947 = vrcp.pop %v3911
      %v3948 = vrcp.pop %v3912
      %v3949 = vrcp.pop %v3913
      %v3950 = vmul.f32 %v3734, %v3914
      %v3951 = vmul.f32 %v3735, %v3915
      %v3952 = vmul.f32 %v3736, %v3916
      %v3953 = vmul.f32 %v3737, %v3917
      %v3954 = vmul.f32 %v3738, %v3918
      %v3955 = vmul.f32 %v3739, %v3919
      %v3956 = vmul.f32 %v3740, %v3920
      %v3957 = vmul.f32 %v3741, %v3921
      %v3958 = vmul.f32 %v3742, %v3922
      %v3959 = vmul.f32 %v3743, %v3923
      %v3960 = vmul.f32 %v3744, %v3924
      %v3961 = vmul.f32 %v3745, %v3925
      %v3962 = vmul.f32 %v3746, %v3926
      %v3963 = vmul.f32 %v3747, %v3927
      %v3964 = vmul.f32 %v3748, %v3928
      %v3965 = vmul.f32 %v3749, %v3929
      %v3966 = vmul.f32 %v3750, %v3930
      %v3967 = vmul.f32 %v3751, %v3931
      %v3968 = vmul.f32 %v3752, %v3932
      %v3969 = vmul.f32 %v3753, %v3933
      %v3970 = vmul.f32 %v3754, %v3934
      %v3971 = vmul.f32 %v3755, %v3935
      %v3972 = vmul.f32 %v3756, %v3936
      %v3973 = vmul.f32 %v3757, %v3937
      %v3974 = vmul.f32 %v3758, %v3938
      %v3975 = vmul.f32 %v3759, %v3939
      %v3976 = vmul.f32 %v3760, %v3940
      %v3977 = vmul.f32 %v3761, %v3941
      %v3978 = vmul.f32 %v3762, %v3942
      %v3979 = vmul.f32 %v3763, %v3943
      %v3980 = vmul.f32 %v3764, %v3944
      %v3981 = vmul.f32 %v3765, %v3945
      %v3982 = vmul.f32 %v3766, %v3946
      %v3983 = vmul.f32 %v3767, %v3947
      %v3984 = vmul.f32 %v3768, %v3948
      %v3985 = vmul.f32 %v3769, %v3949
      %3986 = vst.msk [vmem:[#allocation2] sm:$0xff] %vm472, %v3950
      %3987 = vst.msk [vmem:[#allocation2 + $0x8] sm:$0xff] %vm472, %v3951
      %3988 = vst.msk [vmem:[#allocation2 + $0x10] sm:$0xff] %vm472, %v3952
      %3989 = vst.msk [vmem:[#allocation2 + $0x18] sm:$0xff] %vm472, %v3953
      %3990 = vst.msk [vmem:[#allocation2 + $0x20] sm:$0xff] %vm472, %v3954
      %3991 = vst.msk [vmem:[#allocation2 + $0x28] sm:$0xff] %vm472, %v3955
      %3992 = vst.msk [vmem:[#allocation2 + $0x30] sm:$0xff] %vm472, %v3956
      %3993 = vst.msk [vmem:[#allocation2 + $0x38] sm:$0xff] %vm472, %v3957
      %3994 = vst.msk [vmem:[#allocation2 + $0x40] sm:$0xff] %vm472, %v3958
      %3995 = vst.msk [vmem:[#allocation2 + $0x48] sm:$0xff] %vm472, %v3959
      %3996 = vst.msk [vmem:[#allocation2 + $0x50] sm:$0xff] %vm472, %v3960
      %3997 = vst.msk [vmem:[#allocation2 + $0x58] sm:$0xff] %vm472, %v3961
      %3998 = vst.msk [vmem:[#allocation2 + $0x60] sm:$0xff] %vm472, %v3962
      %3999 = vst.msk [vmem:[#allocation2 + $0x68] sm:$0xff] %vm472, %v3963
      %4000 = vst.msk [vmem:[#allocation2 + $0x70] sm:$0xff] %vm472, %v3964
      %4001 = vst.msk [vmem:[#allocation2 + $0x78] sm:$0xff] %vm472, %v3965
      %4002 = vst.msk [vmem:[#allocation2 + $0x80] sm:$0xff] %vm472, %v3966
      %4003 = vst.msk [vmem:[#allocation2 + $0x88] sm:$0xff] %vm472, %v3967
      %4004 = vst.msk [vmem:[#allocation2 + $0x90] sm:$0xff] %vm472, %v3968
      %4005 = vst.msk [vmem:[#allocation2 + $0x98] sm:$0xff] %vm472, %v3969
      %4006 = vst.msk [vmem:[#allocation2 + $0xa0] sm:$0xff] %vm472, %v3970
      %4007 = vst.msk [vmem:[#allocation2 + $0xa8] sm:$0xff] %vm472, %v3971
      %4008 = vst.msk [vmem:[#allocation2 + $0xb0] sm:$0xff] %vm472, %v3972
      %4009 = vst.msk [vmem:[#allocation2 + $0xb8] sm:$0xff] %vm472, %v3973
      %4010 = vst.msk [vmem:[#allocation2 + $0xc0] sm:$0xff] %vm472, %v3974
      %4011 = vst.msk [vmem:[#allocation2 + $0xc8] sm:$0xff] %vm472, %v3975
      %4012 = vst.msk [vmem:[#allocation2 + $0xd0] sm:$0xff] %vm472, %v3976
      %4013 = vst.msk [vmem:[#allocation2 + $0xd8] sm:$0xff] %vm472, %v3977
      %4014 = vst.msk [vmem:[#allocation2 + $0xe0] sm:$0xff] %vm472, %v3978
      %4015 = vst.msk [vmem:[#allocation2 + $0xe8] sm:$0xff] %vm472, %v3979
      %4016 = vst.msk [vmem:[#allocation2 + $0xf0] sm:$0xff] %vm472, %v3980
      %4017 = vst.msk [vmem:[#allocation2 + $0xf8] sm:$0xff] %vm472, %v3981
      %4018 = vst.msk [vmem:[#allocation2 + $0x100] sm:$0xff] %vm472, %v3982
      %4019 = vst.msk [vmem:[#allocation2 + $0x108] sm:$0xff] %vm472, %v3983
      %4020 = vst.msk [vmem:[#allocation2 + $0x110] sm:$0xff] %vm472, %v3984
      %4021 = vst.msk [vmem:[#allocation2 + $0x118] sm:$0xff] %vm472, %v3985
      %v4022 = vld [vmem:[#allocation2] sm:$0xff]
      %v4023 = vld [vmem:[#allocation2 + $0x8] sm:$0xff]
      %v4024 = vld [vmem:[#allocation2 + $0x12] sm:$0xff]
      %v4025 = vld [vmem:[#allocation2 + $0x1a] sm:$0xff]
      %v4026 = vld [vmem:[#allocation2 + $0x24] sm:$0xff]
      %v4027 = vld [vmem:[#allocation2 + $0x2c] sm:$0xff]
      %v4028 = vld [vmem:[#allocation2 + $0x36] sm:$0xff]
      %v4029 = vld [vmem:[#allocation2 + $0x3e] sm:$0xff]
      %v4030 = vld [vmem:[#allocation2 + $0x48] sm:$0xff]
      %v4031 = vld [vmem:[#allocation2 + $0x50] sm:$0xff]
      %v4032 = vld [vmem:[#allocation2 + $0x5a] sm:$0xff]
      %v4033 = vld [vmem:[#allocation2 + $0x62] sm:$0xff]
      %v4034 = vld [vmem:[#allocation2 + $0x6c] sm:$0xff]
      %v4035 = vld [vmem:[#allocation2 + $0x74] sm:$0xff]
      %v4036 = vld [vmem:[#allocation2 + $0x7e] sm:$0xff]
      %v4037 = vld [vmem:[#allocation2 + $0x86] sm:$0xff]
      %v4038 = vld [vmem:[#allocation2 + $0x90] sm:$0xff]
      %v4039 = vld [vmem:[#allocation2 + $0x98] sm:$0xff]
      %v4040 = vld [vmem:[#allocation2 + $0xa2] sm:$0xff]
      %v4041 = vld [vmem:[#allocation2 + $0xaa] sm:$0xff]
      %v4042 = vld [vmem:[#allocation2 + $0xb4] sm:$0xff]
      %v4043 = vld [vmem:[#allocation2 + $0xbc] sm:$0xff]
      %v4044 = vld [vmem:[#allocation2 + $0xc6] sm:$0xff]
      %v4045 = vld [vmem:[#allocation2 + $0xce] sm:$0xff]
      %v4046 = vld [vmem:[#allocation2 + $0xd8] sm:$0xff]
      %v4047 = vld [vmem:[#allocation2 + $0xe0] sm:$0xff]
      %v4048 = vld [vmem:[#allocation2 + $0xea] sm:$0xff]
      %v4049 = vld [vmem:[#allocation2 + $0xf2] sm:$0xff]
      %v4050 = vld [vmem:[#allocation2 + $0xfc] sm:$0xff]
      %v4051 = vld [vmem:[#allocation2 + $0x104] sm:$0xff]
      %v4052 = vld [vmem:[#allocation2 + $0x10e] sm:$0xff]
      %v4053 = vld [vmem:[#allocation2 + $0x116] sm:$0xff]
      %v4054 = vpack.c.bf16 %v4023, %v4022
      %v4055 = vpack.c.bf16 %v4025, %v4024
      %v4056 = vpack.c.bf16 %v4027, %v4026
      %v4057 = vpack.c.bf16 %v4029, %v4028
      %v4058 = vpack.c.bf16 %v4031, %v4030
      %v4059 = vpack.c.bf16 %v4033, %v4032
      %v4060 = vpack.c.bf16 %v4035, %v4034
      %v4061 = vpack.c.bf16 %v4037, %v4036
      %v4062 = vpack.c.bf16 %v4039, %v4038
      %v4063 = vpack.c.bf16 %v4041, %v4040
      %v4064 = vpack.c.bf16 %v4043, %v4042
      %v4065 = vpack.c.bf16 %v4045, %v4044
      %v4066 = vpack.c.bf16 %v4047, %v4046
      %v4067 = vpack.c.bf16 %v4049, %v4048
      %v4068 = vpack.c.bf16 %v4051, %v4050
      %v4069 = vpack.c.bf16 %v4053, %v4052
      %v4086 = vunpack.c.l.b16 %v4054
      %v4087 = vunpack.c.h.b16 %v4054
      %v4088 = vunpack.c.l.b16 %v4055
      %v4089 = vunpack.c.h.b16 %v4055
      %v4090 = vunpack.c.l.b16 %v4056
      %v4091 = vunpack.c.h.b16 %v4056
      %v4092 = vunpack.c.l.b16 %v4057
      %v4093 = vunpack.c.h.b16 %v4057
      %v4094 = vunpack.c.l.b16 %v4058
      %v4095 = vunpack.c.h.b16 %v4058
      %v4096 = vunpack.c.l.b16 %v4059
      %v4097 = vunpack.c.h.b16 %v4059
      %v4098 = vunpack.c.l.b16 %v4060
      %v4099 = vunpack.c.h.b16 %v4060
      %v4100 = vunpack.c.l.b16 %v4061
      %v4101 = vunpack.c.h.b16 %v4061
      %v4102 = vunpack.c.l.b16 %v4062
      %v4103 = vunpack.c.h.b16 %v4062
      %v4104 = vunpack.c.l.b16 %v4063
      %v4105 = vunpack.c.h.b16 %v4063
      %v4106 = vunpack.c.l.b16 %v4064
      %v4107 = vunpack.c.h.b16 %v4064
      %v4108 = vunpack.c.l.b16 %v4065
      %v4109 = vunpack.c.h.b16 %v4065
      %v4110 = vunpack.c.l.b16 %v4066
      %v4111 = vunpack.c.h.b16 %v4066
      %v4112 = vunpack.c.l.b16 %v4067
      %v4113 = vunpack.c.h.b16 %v4067
      %v4114 = vunpack.c.l.b16 %v4068
      %v4115 = vunpack.c.h.b16 %v4068
      %v4116 = vunpack.c.l.b16 %v4069
      %v4117 = vunpack.c.h.b16 %v4069
      %v4118 = vpack.c.b16 %v4086, %v4086
      %v4119 = vpack.c.b16 %v4087, %v4087
      %v4120 = vpack.c.b16 %v4088, %v4088
      %v4121 = vpack.c.b16 %v4089, %v4089
      %v4122 = vpack.c.b16 %v4090, %v4090
      %v4123 = vpack.c.b16 %v4091, %v4091
      %v4124 = vpack.c.b16 %v4092, %v4092
      %v4125 = vpack.c.b16 %v4093, %v4093
      %v4126 = vpack.c.b16 %v4094, %v4094
      %v4127 = vpack.c.b16 %v4095, %v4095
      %v4128 = vpack.c.b16 %v4096, %v4096
      %v4129 = vpack.c.b16 %v4097, %v4097
      %v4130 = vpack.c.b16 %v4098, %v4098
      %v4131 = vpack.c.b16 %v4099, %v4099
      %v4132 = vpack.c.b16 %v4100, %v4100
      %v4133 = vpack.c.b16 %v4101, %v4101
      %v4134 = vpack.c.b16 %v4102, %v4102
      %v4135 = vpack.c.b16 %v4103, %v4103
      %v4136 = vpack.c.b16 %v4104, %v4104
      %v4137 = vpack.c.b16 %v4105, %v4105
      %v4138 = vpack.c.b16 %v4106, %v4106
      %v4139 = vpack.c.b16 %v4107, %v4107
      %v4140 = vpack.c.b16 %v4108, %v4108
      %v4141 = vpack.c.b16 %v4109, %v4109
      %v4142 = vpack.c.b16 %v4110, %v4110
      %v4143 = vpack.c.b16 %v4111, %v4111
      %v4144 = vpack.c.b16 %v4112, %v4112
      %v4145 = vpack.c.b16 %v4113, %v4113
      %v4146 = vpack.c.b16 %v4114, %v4114
      %v4147 = vpack.c.b16 %v4115, %v4115
      %v4148 = vpack.c.b16 %v4116, %v4116
      %v4149 = vpack.c.b16 %v4117, %v4117
      %vm4182 = vcmask 257024
      %4183 = vst.msk [vmem:[%s170] sm:$0xf] %vm4182, %v4118
      %4184 = vst.msk [vmem:[%s170 + $0x4] sm:$0xf] %vm4182, %v4119
      %4185 = vst.msk [vmem:[%s170 + $0x8] sm:$0xf] %vm4182, %v4120
      %4186 = vst.msk [vmem:[%s170 + $0xc] sm:$0xf] %vm4182, %v4121
      %4187 = vst.msk [vmem:[%s170 + $0x10] sm:$0xf] %vm4182, %v4122
      %4188 = vst.msk [vmem:[%s170 + $0x14] sm:$0xf] %vm4182, %v4123
      %4189 = vst.msk [vmem:[%s170 + $0x18] sm:$0xf] %vm4182, %v4124
      %4190 = vst.msk [vmem:[%s170 + $0x1c] sm:$0xf] %vm4182, %v4125
      %4191 = vst.msk [vmem:[%s170 + $0x20] sm:$0xf] %vm4182, %v4126
      %4192 = vst.msk [vmem:[%s170 + $0x24] sm:$0xf] %vm4182, %v4127
      %4193 = vst.msk [vmem:[%s170 + $0x28] sm:$0xf] %vm4182, %v4128
      %4194 = vst.msk [vmem:[%s170 + $0x2c] sm:$0xf] %vm4182, %v4129
      %4195 = vst.msk [vmem:[%s170 + $0x30] sm:$0xf] %vm4182, %v4130
      %4196 = vst.msk [vmem:[%s170 + $0x34] sm:$0xf] %vm4182, %v4131
      %4197 = vst.msk [vmem:[%s170 + $0x38] sm:$0xf] %vm4182, %v4132
      %4198 = vst.msk [vmem:[%s170 + $0x3c] sm:$0xf] %vm4182, %v4133
      %4199 = vst.msk [vmem:[%s170 + $0x40] sm:$0xf] %vm4182, %v4134
      %4200 = vst.msk [vmem:[%s170 + $0x44] sm:$0xf] %vm4182, %v4135
      %4201 = vst.msk [vmem:[%s170 + $0x48] sm:$0xf] %vm4182, %v4136
      %4202 = vst.msk [vmem:[%s170 + $0x4c] sm:$0xf] %vm4182, %v4137
      %4203 = vst.msk [vmem:[%s170 + $0x50] sm:$0xf] %vm4182, %v4138
      %4204 = vst.msk [vmem:[%s170 + $0x54] sm:$0xf] %vm4182, %v4139
      %4205 = vst.msk [vmem:[%s170 + $0x58] sm:$0xf] %vm4182, %v4140
      %4206 = vst.msk [vmem:[%s170 + $0x5c] sm:$0xf] %vm4182, %v4141
      %4207 = vst.msk [vmem:[%s170 + $0x60] sm:$0xf] %vm4182, %v4142
      %4208 = vst.msk [vmem:[%s170 + $0x64] sm:$0xf] %vm4182, %v4143
      %4209 = vst.msk [vmem:[%s170 + $0x68] sm:$0xf] %vm4182, %v4144
      %4210 = vst.msk [vmem:[%s170 + $0x6c] sm:$0xf] %vm4182, %v4145
      %4211 = vst.msk [vmem:[%s170 + $0x70] sm:$0xf] %vm4182, %v4146
      %4212 = vst.msk [vmem:[%s170 + $0x74] sm:$0xf] %vm4182, %v4147
      %4213 = vst.msk [vmem:[%s170 + $0x78] sm:$0xf] %vm4182, %v4148
      %4214 = vst.msk [vmem:[%s170 + $0x7c] sm:$0xf] %vm4182, %v4149
      %p4215 = scmp.lt.s32.totalorder %s14, 1
      %s4216 = scalar_select %p4215, %s14, 1
      %s4217 = smul.addr %s4216, 32
      %s4218 = smul.addr %s4217, 4
      %s4219 = scalar_lea.vmem %s3, %s4218
      // Predicated region
      $region33: #{csp_stage_forward.7} parent=31 // pred_check
        %p4220 = pneg %p100
      $region34: #{csp_stage_forward.7} parent=31 // pred_check_branch
        %4222 = sbr.rel (%p4220) target = $region36
      $region35: #{csp_stage_forward.7} parent=31 // pred_region
        _
      $region36: #{csp_stage_forward.7} parent=31 // pred_fallthru
        _
    $region32: #{csp_stage_forward.7} parent=5 // pred_fallthru
      _
    %p4223 = scmp.le.s32.totalorder 2, %s9
    // Predicated region
    $region37: #{csp_stage_forward.7} parent=5 // pred_check
      %p4224 = pneg %p4223
    $region38: #{csp_stage_forward.7} parent=5 // pred_check_branch
      %4226 = sbr.rel (%p4224) target = $region40
    $region39: #{csp_stage_forward.7} parent=5 // pred_region
      %s4227 = ssub.s32 %s9, 2
      // Predicated region
      $region41: #{csp_stage_forward.7} parent=39 // pred_check
        %p4228 = pneg %p106
      $region42: #{csp_stage_forward.7} parent=39 // pred_check_branch
        %4230 = sbr.rel (%p4228) target = $region44
      $region43: #{csp_stage_forward.7} parent=39 // pred_region
        %p4231 = scmp.lt.s32.totalorder %s15, 1
        %s4232 = scalar_select %p4231, %s15, 1
        %s4233 = smul.addr %s4232, 32
        %s4234 = smul.addr %s4233, 4
        %s4235 = scalar_lea.vmem %s3, %s4234
      $region44: #{csp_stage_forward.7} parent=39 // pred_fallthru
        _
    $region40: #{csp_stage_forward.7} parent=5 // pred_fallthru
      _
  $region6: #{csp_stage_forward.7} parent=0 // loop_footer
    %s13 = sadd.s32 1, %s9
  $region7: #{csp_stage_forward.7} parent=0 // loop_footer_branch
    %8 = sbr.rel target = $region3
  $region8: #{csp_stage_forward.7} parent=0 // loop_exit
    _

// kernel: csp_stage_forward.8
$region0: #{csp_stage_forward.8}
  #allocation0 [shape = 'u32[]', space=smem, size = 0x4, offset = 0x4, fixed_abs, tag = 'smem constant byte address 0x4 - core index']
  #allocation1 [shape = 'u32[144,128]{1,0:T(1,128)}', space=vmem, size = 0x12000, scoped, tag = 'internal scratch']
  #allocation2 [shape = 'f32[288,32]{1,0:T(8,128)}', space=vmem, size = 0x24000, scoped, tag = 'scratch operand']
  %s0 = inlined_call_operand.vmem [shape: bf16[2,342,32], index: 0, kind: input, shape index: {}]
  %s1 = inlined_call_operand.vmem [shape: bf16[9,32,32], index: 1, kind: input, shape index: {}]
  %s2 = inlined_call_operand.vmem [shape: f32[1,32], index: 2, kind: input, shape index: {}]
  %s3 = inlined_call_operand.vmem [shape: bf16[2,256,32], index: 3, kind: input, shape index: {}]
  %s4 = inlined_call_operand.vmem [shape: bf16[2,256,32], index: 4, kind: output, shape index: {}]
  %s5 = sld [smem:[#allocation0]]
  $region49: #{csp_stage_forward.8} parent=0
    _
  %s7 = ssub.s32 1, %s5
  %s8 = scalar_select 0, %s7, %s5
  loop: start=0, step=1, limit=4
  $region2: #{csp_stage_forward.8} parent=0 // loop_pre_header
    _
  $region3: #{csp_stage_forward.8} parent=0 // loop_header
    %s10 = sphi 0, %s14
    %p11 = scmp.ge.s32.totalorder %s10, 4
    %s20 = sphi 0, %s22
    %s23 = sphi 0, %s20
    %s24 = sphi 0, %s23
    %s40 = sphi 0, %s24
    %s44 = sphi 0, %s44
    %s46 = sphi 0, %s44
    %s47 = sphi 0, %s46
    %s61 = sphi 0, %s47
    %s65 = sphi 0, %s65
    %s67 = sphi 0, %s65
    %s68 = sphi 0, %s67
    %s82 = sphi 0, %s68
    %s88 = sphi 0, %s90
    %s91 = sphi 0, %s88
    %s92 = sphi 0, %s91
    %s108 = sphi 0, %s92
    %s114 = sphi 0, %s116
    %s117 = sphi 0, %s114
    %s118 = sphi 0, %s117
    %s134 = sphi 0, %s118
  $region4: #{csp_stage_forward.8} parent=0 // loop_header_branch
    %13 = sbr.rel (%p11) target = $region8
  $region5: #{csp_stage_forward.8} parent=0 // loop_body
    %s15 = ssub.s32 %s10, 1
    %s16 = ssub.s32 %s10, 2
    %s17 = sadd.s32 %s10, 1
    %s18 = ssub.s32 %s10, %s17
    %p19 = scmp.eq.s32.totalorder %s18, 0
    %s21 = sadd.s32 %s20, 1
    %s22 = scalar_select %p19, %s20, %s21
    %p25 = pneg %p19
    %p26 = scmp.eq.s32.totalorder %s10, 1
    %p27 = por %p25, %p26
    %p28 = scmp.ne.s32.totalorder %s20, %s23
    %p29 = scmp.eq.s32.totalorder %s10, 0
    %p30 = por %p28, %p29
    %p31 = scmp.ne.s32.totalorder %s20, %s23
    %p32 = scmp.eq.s32.totalorder %s15, 1
    %p33 = por %p31, %p32
    %p34 = scmp.ne.s32.totalorder %s23, %s24
    %p35 = scmp.eq.s32.totalorder %s15, 0
    %p36 = por %p34, %p35
    %p37 = scmp.ne.s32.totalorder %s23, %s24
    %p38 = scmp.eq.s32.totalorder %s16, 1
    %p39 = por %p37, %p38
    %p41 = scmp.ne.s32.totalorder %s24, %s40
    %p42 = scmp.eq.s32.totalorder %s16, 0
    %p43 = por %p41, %p42
    %s45 = sadd.s32 %s44, 1
    %p48 = scmp.eq.s32.totalorder %s10, 1
    %p49 = scmp.ne.s32.totalorder %s44, %s46
    %p50 = scmp.eq.s32.totalorder %s10, 0
    %p51 = por %p49, %p50
    %p52 = scmp.ne.s32.totalorder %s44, %s46
    %p53 = scmp.eq.s32.totalorder %s15, 1
    %p54 = por %p52, %p53
    %p55 = scmp.ne.s32.totalorder %s46, %s47
    %p56 = scmp.eq.s32.totalorder %s15, 0
    %p57 = por %p55, %p56
    %p58 = scmp.ne.s32.totalorder %s46, %s47
    %p59 = scmp.eq.s32.totalorder %s16, 1
    %p60 = por %p58, %p59
    %p62 = scmp.ne.s32.totalorder %s47, %s61
    %p63 = scmp.eq.s32.totalorder %s16, 0
    %p64 = por %p62, %p63
    %s66 = sadd.s32 %s65, 1
    %p69 = scmp.eq.s32.totalorder %s10, 1
    %p70 = scmp.ne.s32.totalorder %s65, %s67
    %p71 = scmp.eq.s32.totalorder %s10, 0
    %p72 = por %p70, %p71
    %p73 = scmp.ne.s32.totalorder %s65, %s67
    %p74 = scmp.eq.s32.totalorder %s15, 1
    %p75 = por %p73, %p74
    %p76 = scmp.ne.s32.totalorder %s67, %s68
    %p77 = scmp.eq.s32.totalorder %s15, 0
    %p78 = por %p76, %p77
    %p79 = scmp.ne.s32.totalorder %s67, %s68
    %p80 = scmp.eq.s32.totalorder %s16, 1
    %p81 = por %p79, %p80
    %p83 = scmp.ne.s32.totalorder %s68, %s82
    %p84 = scmp.eq.s32.totalorder %s16, 0
    %p85 = por %p83, %p84
    %s86 = ssub.s32 %s10, %s17
    %p87 = scmp.eq.s32.totalorder %s86, 0
    %s89 = sadd.s32 %s88, 1
    %s90 = scalar_select %p87, %s88, %s89
    %p93 = pneg %p87
    %p94 = scmp.eq.s32.totalorder %s10, 1
    %p95 = por %p93, %p94
    %p96 = scmp.ne.s32.totalorder %s88, %s91
    %p97 = scmp.eq.s32.totalorder %s10, 0
    %p98 = por %p96, %p97
    %p99 = scmp.ne.s32.totalorder %s88, %s91
    %p100 = scmp.eq.s32.totalorder %s15, 1
    %p101 = por %p99, %p100
    %p102 = scmp.ne.s32.totalorder %s91, %s92
    %p103 = scmp.eq.s32.totalorder %s15, 0
    %p104 = por %p102, %p103
    %p105 = scmp.ne.s32.totalorder %s91, %s92
    %p106 = scmp.eq.s32.totalorder %s16, 1
    %p107 = por %p105, %p106
    %p109 = scmp.ne.s32.totalorder %s92, %s108
    %p110 = scmp.eq.s32.totalorder %s16, 0
    %p111 = por %p109, %p110
    %s112 = ssub.s32 %s10, %s17
    %p113 = scmp.eq.s32.totalorder %s112, 0
    %s115 = sadd.s32 %s114, 1
    %s116 = scalar_select %p113, %s114, %s115
    %p119 = pneg %p113
    %p120 = scmp.eq.s32.totalorder %s10, 1
    %p121 = por %p119, %p120
    %p122 = scmp.ne.s32.totalorder %s114, %s117
    %p123 = scmp.eq.s32.totalorder %s10, 0
    %p124 = por %p122, %p123
    %p125 = scmp.ne.s32.totalorder %s114, %s117
    %p126 = scmp.eq.s32.totalorder %s15, 1
    %p127 = por %p125, %p126
    %p128 = scmp.ne.s32.totalorder %s117, %s118
    %p129 = scmp.eq.s32.totalorder %s15, 0
    %p130 = por %p128, %p129
    %p131 = scmp.ne.s32.totalorder %s117, %s118
    %p132 = scmp.eq.s32.totalorder %s16, 1
    %p133 = por %p131, %p132
    %p135 = scmp.ne.s32.totalorder %s118, %s134
    %p136 = scmp.eq.s32.totalorder %s16, 0
    %p137 = por %p135, %p136
    %p138 = scmp.le.s32.totalorder 1, %s10
    %p139 = scmp.lt.s32.totalorder %s10, 3
    %p140 = pnand %p138, %p139
    %p141 = pneg %p140
    // Predicated region
    $region9: #{csp_stage_forward.8} parent=5 // pred_check
      _
    $region10: #{csp_stage_forward.8} parent=5 // pred_check_branch
      %143 = sbr.rel (%p140) target = $region12
    $region11: #{csp_stage_forward.8} parent=5 // pred_region
      %s144 = ssub.s32 %s10, 1
      // Predicated region
      $region13: #{csp_stage_forward.8} parent=11 // pred_check
        %p145 = pneg %p57
      $region14: #{csp_stage_forward.8} parent=11 // pred_check_branch
        %147 = sbr.rel (%p145) target = $region16
      $region15: #{csp_stage_forward.8} parent=11 // pred_region
        _
      $region16: #{csp_stage_forward.8} parent=11 // pred_fallthru
        _
      // Predicated region
      $region17: #{csp_stage_forward.8} parent=11 // pred_check
        %p148 = pneg %p78
      $region18: #{csp_stage_forward.8} parent=11 // pred_check_branch
        %150 = sbr.rel (%p148) target = $region20
      $region19: #{csp_stage_forward.8} parent=11 // pred_region
        _
      $region20: #{csp_stage_forward.8} parent=11 // pred_fallthru
        _
    $region12: #{csp_stage_forward.8} parent=5 // pred_fallthru
      _
    %p151 = scmp.lt.s32.totalorder %s10, 2
    // Predicated region
    $region21: #{csp_stage_forward.8} parent=5 // pred_check
      %p152 = pneg %p151
    $region22: #{csp_stage_forward.8} parent=5 // pred_check_branch
      %154 = sbr.rel (%p152) target = $region24
    $region23: #{csp_stage_forward.8} parent=5 // pred_region
      // Predicated region
      $region25: #{csp_stage_forward.8} parent=23 // pred_check
        %p155 = pneg %p30
      $region26: #{csp_stage_forward.8} parent=23 // pred_check_branch
        %157 = sbr.rel (%p155) target = $region28
      $region27: #{csp_stage_forward.8} parent=23 // pred_region
        %p158 = scmp.lt.s32.totalorder %s10, 1
        %s159 = scalar_select %p158, %s10, 1
        %s160 = smul.addr %s159, 43
        %s161 = smul.addr %s160, 4
        %s162 = scalar_lea.vmem %s0, %s161
      $region28: #{csp_stage_forward.8} parent=23 // pred_fallthru
        _
      // Predicated region
      $region29: #{csp_stage_forward.8} parent=23 // pred_check
        %p163 = pneg %p98
      $region30: #{csp_stage_forward.8} parent=23 // pred_check_branch
        %165 = sbr.rel (%p163) target = $region32
      $region31: #{csp_stage_forward.8} parent=23 // pred_region
        %p166 = scmp.lt.s32.totalorder %s10, 1
        %s167 = scalar_select %p166, %s10, 1
        %s168 = smul.addr %s167, 32
        %s169 = smul.addr %s168, 4
        %s170 = scalar_lea.vmem %s3, %s169
      $region32: #{csp_stage_forward.8} parent=23 // pred_fallthru
        _
    $region24: #{csp_stage_forward.8} parent=5 // pred_fallthru
      _
    %p171 = scmp.le.s32.totalorder 1, %s10
    %p172 = scmp.lt.s32.totalorder %s10, 3
    %p173 = pnand %p171, %p172
    %p174 = pneg %p173
    // Predicated region
    $region33: #{csp_stage_forward.8} parent=5 // pred_check
      _
    $region34: #{csp_stage_forward.8} parent=5 // pred_check_branch
      %176 = sbr.rel (%p173) target = $region36
    $region35: #{csp_stage_forward.8} parent=5 // pred_region
      %s177 = ssub.s32 %s10, 1
      %p178 = scmp.lt.s32.totalorder %s15, 1
      %s179 = scalar_select %p178, %s15, 1
      %s180 = smul.addr %s179, 43
      %s181 = smul.addr %s180, 4
      %s182 = scalar_lea.vmem %s0, %s181
      %p183 = pneg %p36
      %p184 = pneg %p33
      %p185 = pneg %p57
      %p186 = pneg %p54
      %p187 = pneg %p78
      %p188 = pneg %p75
      %p189 = scmp.lt.s32.totalorder %s15, 1
      %s190 = scalar_select %p189, %s15, 1
      %s191 = smul.addr %s190, 32
      %s192 = smul.addr %s191, 4
      %s193 = scalar_lea.vmem %s3, %s192
      %p194 = pneg %p104
      %p195 = pneg %p101
      %p196 = pneg %p130
      %p197 = pneg %p127
      %p198 = scmp.lt.s32.totalorder %s15, 1
      %s199 = scalar_select %p198, %s15, 1
      %s200 = smul.addr %s199, 32
      %s201 = smul.addr %s200, 4
      %s202 = scalar_lea.vmem %s4, %s201
      %p203 = scmp.lt.s32.totalorder %s15, 1
      %s204 = scalar_select %p203, %s15, 1
      %s205 = smul.addr %s204, 43
      %s206 = smul.addr %s205, 4
      %s207 = scalar_lea.vmem %s0, %s206
      %p208 = scmp.lt.s32.totalorder %s15, 1
      %s209 = scalar_select %p208, %s15, 1
      %s210 = smul.addr %s209, 32
      %s211 = smul.addr %s210, 4
      %s212 = scalar_lea.vmem %s3, %s211
      %p213 = scmp.lt.s32.totalorder %s15, 1
      %s214 = scalar_select %p213, %s15, 1
      %s215 = smul.addr %s214, 32
      %s216 = smul.addr %s215, 4
      %s217 = scalar_lea.vmem %s4, %s216
      %v219 = vld [vmem:[%s207] sm:$0xf]
      %v220 = vld [vmem:[%s207 + $0x4] sm:$0xf]
      %v221 = vld [vmem:[%s207 + $0x8] sm:$0xf]
      %v222 = vld [vmem:[%s207 + $0xc] sm:$0xf]
      %v223 = vld [vmem:[%s207 + $0x10] sm:$0xf]
      %v224 = vld [vmem:[%s207 + $0x14] sm:$0xf]
      %v225 = vld [vmem:[%s207 + $0x18] sm:$0xf]
      %v226 = vld [vmem:[%s207 + $0x1c] sm:$0xf]
      %v227 = vld [vmem:[%s207 + $0x20] sm:$0xf]
      %v228 = vld [vmem:[%s207 + $0x24] sm:$0xf]
      %v229 = vld [vmem:[%s207 + $0x28] sm:$0xf]
      %v230 = vld [vmem:[%s207 + $0x2c] sm:$0xf]
      %v231 = vld [vmem:[%s207 + $0x30] sm:$0xf]
      %v232 = vld [vmem:[%s207 + $0x34] sm:$0xf]
      %v233 = vld [vmem:[%s207 + $0x38] sm:$0xf]
      %v234 = vld [vmem:[%s207 + $0x3c] sm:$0xf]
      %v235 = vld [vmem:[%s207 + $0x40] sm:$0xf]
      %v236 = vld [vmem:[%s207 + $0x44] sm:$0xf]
      %v237 = vld [vmem:[%s207 + $0x48] sm:$0xf]
      %v238 = vld [vmem:[%s207 + $0x4c] sm:$0xf]
      %v239 = vld [vmem:[%s207 + $0x50] sm:$0xf]
      %v240 = vld [vmem:[%s207 + $0x54] sm:$0xf]
      %v241 = vld [vmem:[%s207 + $0x58] sm:$0xf]
      %v242 = vld [vmem:[%s207 + $0x5c] sm:$0xf]
      %v243 = vld [vmem:[%s207 + $0x60] sm:$0xf]
      %v244 = vld [vmem:[%s207 + $0x64] sm:$0xf]
      %v245 = vld [vmem:[%s207 + $0x68] sm:$0xf]
      %v246 = vld [vmem:[%s207 + $0x6c] sm:$0xf]
      %v247 = vld [vmem:[%s207 + $0x70] sm:$0xf]
      %v248 = vld [vmem:[%s207 + $0x74] sm:$0xf]
      %v249 = vld [vmem:[%s207 + $0x78] sm:$0xf]
      %v250 = vld [vmem:[%s207 + $0x7c] sm:$0xf]
      %v251 = vld [vmem:[%s207 + $0x80] sm:$0xf]
      %v252 = vld [vmem:[%s207 + $0x84] sm:$0xf]
      %v253 = vld [vmem:[%s207 + $0x88] sm:$0xf]
      %v254 = vld [vmem:[%s207 + $0x8c] sm:$0xf]
      %v255 = vld [vmem:[%s1] sm:$0xf]
      %v256 = vld [vmem:[%s1 + $0x4] sm:$0xf]
      %v257 = vld [vmem:[%s1 + $0x8] sm:$0xf]
      %v258 = vld [vmem:[%s1 + $0xc] sm:$0xf]
      %v259 = vld [vmem:[%s207 + $0x90] sm:$0x1]
      %s260 = scalar_lea.vmem %s1, 16
      %v261 = vld [vmem:[%s260] sm:$0xf]
      %v262 = vld [vmem:[%s260 + $0x4] sm:$0xf]
      %v263 = vld [vmem:[%s260 + $0x8] sm:$0xf]
      %v264 = vld [vmem:[%s260 + $0xc] sm:$0xf]
      %v302 = vunpack.c.l.b16 %v219
      %v303 = vunpack.c.l.b16 %v220
      %v304 = vunpack.c.l.b16 %v221
      %v305 = vunpack.c.l.b16 %v222
      %v306 = vunpack.c.l.b16 %v223
      %v307 = vunpack.c.l.b16 %v224
      %v308 = vunpack.c.l.b16 %v225
      %v309 = vunpack.c.l.b16 %v226
      %v310 = vunpack.c.l.b16 %v227
      %v311 = vunpack.c.l.b16 %v228
      %v312 = vunpack.c.l.b16 %v229
      %v313 = vunpack.c.l.b16 %v230
      %v314 = vunpack.c.l.b16 %v231
      %v315 = vunpack.c.l.b16 %v232
      %v316 = vunpack.c.l.b16 %v233
      %v317 = vunpack.c.l.b16 %v234
      %v318 = vunpack.c.l.b16 %v235
      %v319 = vunpack.c.l.b16 %v236
      %v320 = vunpack.c.l.b16 %v237
      %v321 = vunpack.c.l.b16 %v238
      %v322 = vunpack.c.l.b16 %v239
      %v323 = vunpack.c.l.b16 %v240
      %v324 = vunpack.c.l.b16 %v241
      %v325 = vunpack.c.l.b16 %v242
      %v326 = vunpack.c.l.b16 %v243
      %v327 = vunpack.c.l.b16 %v244
      %v328 = vunpack.c.l.b16 %v245
      %v329 = vunpack.c.l.b16 %v246
      %v330 = vunpack.c.l.b16 %v247
      %v331 = vunpack.c.l.b16 %v248
      %v332 = vunpack.c.l.b16 %v249
      %v333 = vunpack.c.l.b16 %v250
      %v334 = vunpack.c.l.b16 %v251
      %v335 = vunpack.c.l.b16 %v252
      %v336 = vunpack.c.l.b16 %v253
      %v337 = vunpack.c.l.b16 %v254
      %v338 = vunpack.c.l.b16 %v259
      %v339 = vpack.c.b16 %v303, %v302
      %v340 = vpack.c.b16 %v305, %v304
      %v341 = vpack.c.b16 %v307, %v306
      %v342 = vpack.c.b16 %v309, %v308
      %v343 = vpack.c.b16 %v311, %v310
      %v344 = vpack.c.b16 %v313, %v312
      %v345 = vpack.c.b16 %v315, %v314
      %v346 = vpack.c.b16 %v317, %v316
      %v347 = vpack.c.b16 %v319, %v318
      %v348 = vpack.c.b16 %v321, %v320
      %v349 = vpack.c.b16 %v323, %v322
      %v350 = vpack.c.b16 %v325, %v324
      %v351 = vpack.c.b16 %v327, %v326
      %v352 = vpack.c.b16 %v329, %v328
      %v353 = vpack.c.b16 %v331, %v330
      %v354 = vpack.c.b16 %v333, %v332
      %v355 = vpack.c.b16 %v335, %v334
      %v356 = vpack.c.b16 %v337, %v336
      %v357 = vpack.c.b16 %v338, %v338
      %vm358 = vsmask.f32 7424
      %v360 = vshrl.u32 %v339, 16
      %v362 = vshll.u32 %v339, 16
      %v364 = vrot.slane %v362, 1
      %v365 = vor.u32 %v360, %v364
      %v367 = vshll.u32 %v340, 16
      %v369 = vrot.slane %v367, 1
      %v370 = vsel %vm358, %v365, %v369
      %v371 = vshrl.u32 %v340, 16
      %v373 = vor.u32 %v371, %v369
      %v375 = vshll.u32 %v341, 16
      %v377 = vrot.slane %v375, 1
      %v378 = vsel %vm358, %v373, %v377
      %v379 = vshrl.u32 %v341, 16
      %v381 = vor.u32 %v379, %v377
      %v383 = vshll.u32 %v342, 16
      %v385 = vrot.slane %v383, 1
      %v386 = vsel %vm358, %v381, %v385
      %v387 = vshrl.u32 %v342, 16
      %v389 = vor.u32 %v387, %v385
      %v391 = vshll.u32 %v343, 16
      %v393 = vrot.slane %v391, 1
      %v394 = vsel %vm358, %v389, %v393
      %v395 = vshrl.u32 %v343, 16
      %v397 = vor.u32 %v395, %v393
      %v399 = vshll.u32 %v344, 16
      %v401 = vrot.slane %v399, 1
      %v402 = vsel %vm358, %v397, %v401
      %v403 = vshrl.u32 %v344, 16
      %v405 = vor.u32 %v403, %v401
      %v407 = vshll.u32 %v345, 16
      %v409 = vrot.slane %v407, 1
      %v410 = vsel %vm358, %v405, %v409
      %v411 = vshrl.u32 %v345, 16
      %v413 = vor.u32 %v411, %v409
      %v415 = vshll.u32 %v346, 16
      %v417 = vrot.slane %v415, 1
      %v418 = vsel %vm358, %v413, %v417
      %v419 = vshrl.u32 %v346, 16
      %v421 = vor.u32 %v419, %v417
      %v423 = vshll.u32 %v347, 16
      %v425 = vrot.slane %v423, 1
      %v426 = vsel %vm358, %v421, %v425
      %v427 = vshrl.u32 %v347, 16
      %v429 = vor.u32 %v427, %v425
      %v431 = vshll.u32 %v348, 16
      %v433 = vrot.slane %v431, 1
      %v434 = vsel %vm358, %v429, %v433
      %v435 = vshrl.u32 %v348, 16
      %v437 = vor.u32 %v435, %v433
      %v439 = vshll.u32 %v349, 16
      %v441 = vrot.slane %v439, 1
      %v442 = vsel %vm358, %v437, %v441
      %v443 = vshrl.u32 %v349, 16
      %v445 = vor.u32 %v443, %v441
      %v447 = vshll.u32 %v350, 16
      %v449 = vrot.slane %v447, 1
      %v450 = vsel %vm358, %v445, %v449
      %v451 = vshrl.u32 %v350, 16
      %v453 = vor.u32 %v451, %v449
      %v455 = vshll.u32 %v351, 16
      %v457 = vrot.slane %v455, 1
      %v458 = vsel %vm358, %v453, %v457
      %v459 = vshrl.u32 %v351, 16
      %v461 = vor.u32 %v459, %v457
      %v463 = vshll.u32 %v352, 16
      %v465 = vrot.slane %v463, 1
      %v466 = vsel %vm358, %v461, %v465
      %v467 = vshrl.u32 %v352, 16
      %v469 = vor.u32 %v467, %v465
      %v471 = vshll.u32 %v353, 16
      %v473 = vrot.slane %v471, 1
      %v474 = vsel %vm358, %v469, %v473
      %v475 = vshrl.u32 %v353, 16
      %v477 = vor.u32 %v475, %v473
      %v479 = vshll.u32 %v354, 16
      %v481 = vrot.slane %v479, 1
      %v482 = vsel %vm358, %v477, %v481
      %v483 = vshrl.u32 %v354, 16
      %v485 = vor.u32 %v483, %v481
      %v487 = vshll.u32 %v355, 16
      %v489 = vrot.slane %v487, 1
      %v490 = vsel %vm358, %v485, %v489
      %v491 = vshrl.u32 %v355, 16
      %v493 = vor.u32 %v491, %v489
      %v495 = vshll.u32 %v356, 16
      %v497 = vrot.slane %v495, 1
      %v498 = vsel %vm358, %v493, %v497
      %v499 = vshrl.u32 %v356, 16
      %v501 = vor.u32 %v499, %v497
      %v503 = vshll.u32 %v357, 16
      %v505 = vrot.slane %v503, 1
      %v506 = vsel %vm358, %v501, %v505
      %v511 = vunpack.c.l.b16 %v261
      %v512 = vunpack.c.l.b16 %v262
      %v513 = vunpack.c.l.b16 %v263
      %v514 = vunpack.c.l.b16 %v264
      %v515 = vpack.c.b16 %v512, %v511
      %v516 = vpack.c.b16 %v514, %v513
      %vm519 = vcmask 261120
      %v521 = vsel %vm519, %v370, 0
      %v524 = vsel %vm519, %v378, 0
      %v527 = vsel %vm519, %v386, 0
      %v530 = vsel %vm519, %v394, 0
      %v533 = vsel %vm519, %v402, 0
      %v536 = vsel %vm519, %v410, 0
      %v539 = vsel %vm519, %v418, 0
      %v542 = vsel %vm519, %v426, 0
      %v545 = vsel %vm519, %v434, 0
      %v548 = vsel %vm519, %v442, 0
      %v551 = vsel %vm519, %v450, 0
      %v554 = vsel %vm519, %v458, 0
      %v557 = vsel %vm519, %v466, 0
      %v560 = vsel %vm519, %v474, 0
      %v563 = vsel %vm519, %v482, 0
      %v566 = vsel %vm519, %v490, 0
      %v569 = vsel %vm519, %v498, 0
      %v572 = vsel %vm519, %v506, 0
      %574 = vmatprep.subr.bf16.mxu0 0
      %575 = vmatpush1.bf16.msra.mxu0 0
      %576 = vmatprep.subr.bf16.mxu0 0
      %577 = vmatpush1.bf16.msra.mxu0 0
      %578 = vmatprep.subr.bf16.mxu0 0
      %579 = vmatpush1.bf16.msra.mxu0 0
      %580 = vmatprep.subr.bf16.mxu0 0
      %581 = vmatpush1.bf16.msra.mxu0 0
      %582 = vmatprep.subr.bf16.mxu0 0
      %583 = vmatpush1.bf16.msra.mxu0 0
      %584 = vmatprep.subr.bf16.mxu0 0
      %585 = vmatpush1.bf16.msra.mxu0 0
      %586 = vmatprep.subr.bf16.mxu0 0
      %587 = vmatpush1.bf16.msra.mxu0 %v516
      %588 = vmatprep.subr.bf16.mxu0 0
      %589 = vmatpush1.bf16.msra.mxu0 %v515
      %590 = vmatprep.subr.bf16.mxu0 0
      %591 = vmatpush2.bf16.msra.mxu0 0
      %592 = vmatprep.subr.bf16.mxu0 0
      %593 = vmatpush2.bf16.msra.mxu0 0
      %594 = vmatprep.subr.bf16.mxu0 0
      %595 = vmatpush2.bf16.msra.mxu0 0
      %596 = vmatprep.subr.bf16.mxu0 0
      %597 = vmatpush2.bf16.msra.mxu0 0
      %598 = vmatprep.subr.bf16.mxu0 0
      %599 = vmatpush2.bf16.msra.mxu0 0
      %600 = vmatprep.subr.bf16.mxu0 0
      %601 = vmatpush2.bf16.msra.mxu0 0
      %602 = vmatprep.subr.bf16.mxu0 0
      %603 = vmatpush2.bf16.msra.mxu0 0
      %604 = vmatprep.subr.bf16.mxu0 0
      %605 = vmatpush2.bf16.msra.mxu0 0
      %606 = vmatprep.mubr.bf16.mxu0 0
      %607 = vmatmul.mubr.bf16.gmra.mxu0 %v521
      %v608 = vpop.f32.mrf.mxu0
      %v609 = vadd.f32 0.0, %v608
      %v610 = vpop.f32.mrf.mxu0
      %v611 = vpop.f32.mrf.mxu0
      %v612 = vadd.f32 0.0, %v611
      %v613 = vpop.f32.mrf.mxu0
      %614 = vmatprep.mubr.bf16.mxu0 0
      %615 = vmatmul.mubr.bf16.gmra.mxu0 %v524
      %v616 = vpop.f32.mrf.mxu0
      %v617 = vadd.f32 0.0, %v616
      %v618 = vpop.f32.mrf.mxu0
      %v619 = vpop.f32.mrf.mxu0
      %v620 = vadd.f32 0.0, %v619
      %v621 = vpop.f32.mrf.mxu0
      %622 = vmatprep.mubr.bf16.mxu0 0
      %623 = vmatmul.mubr.bf16.gmra.mxu0 %v527
      %v624 = vpop.f32.mrf.mxu0
      %v625 = vadd.f32 0.0, %v624
      %v626 = vpop.f32.mrf.mxu0
      %v627 = vpop.f32.mrf.mxu0
      %v628 = vadd.f32 0.0, %v627
      %v629 = vpop.f32.mrf.mxu0
      %630 = vmatprep.mubr.bf16.mxu0 0
      %631 = vmatmul.mubr.bf16.gmra.mxu0 %v530
      %v632 = vpop.f32.mrf.mxu0
      %v633 = vadd.f32 0.0, %v632
      %v634 = vpop.f32.mrf.mxu0
      %v635 = vpop.f32.mrf.mxu0
      %v636 = vadd.f32 0.0, %v635
      %v637 = vpop.f32.mrf.mxu0
      %638 = vmatprep.mubr.bf16.mxu0 0
      %639 = vmatmul.mubr.bf16.gmra.mxu0 %v533
      %v640 = vpop.f32.mrf.mxu0
      %v641 = vadd.f32 0.0, %v640
      %v642 = vpop.f32.mrf.mxu0
      %v643 = vpop.f32.mrf.mxu0
      %v644 = vadd.f32 0.0, %v643
      %v645 = vpop.f32.mrf.mxu0
      %646 = vmatprep.mubr.bf16.mxu0 0
      %647 = vmatmul.mubr.bf16.gmra.mxu0 %v536
      %v648 = vpop.f32.mrf.mxu0
      %v649 = vadd.f32 0.0, %v648
      %v650 = vpop.f32.mrf.mxu0
      %v651 = vpop.f32.mrf.mxu0
      %v652 = vadd.f32 0.0, %v651
      %v653 = vpop.f32.mrf.mxu0
      %654 = vmatprep.mubr.bf16.mxu0 0
      %655 = vmatmul.mubr.bf16.gmra.mxu0 %v539
      %v656 = vpop.f32.mrf.mxu0
      %v657 = vadd.f32 0.0, %v656
      %v658 = vpop.f32.mrf.mxu0
      %v659 = vpop.f32.mrf.mxu0
      %v660 = vadd.f32 0.0, %v659
      %v661 = vpop.f32.mrf.mxu0
      %662 = vmatprep.mubr.bf16.mxu0 0
      %663 = vmatmul.mubr.bf16.gmra.mxu0 %v542
      %v664 = vpop.f32.mrf.mxu0
      %v665 = vadd.f32 0.0, %v664
      %v666 = vpop.f32.mrf.mxu0
      %v667 = vpop.f32.mrf.mxu0
      %v668 = vadd.f32 0.0, %v667
      %v669 = vpop.f32.mrf.mxu0
      %670 = vmatprep.mubr.bf16.mxu0 0
      %671 = vmatmul.mubr.bf16.gmra.mxu0 %v545
      %v672 = vpop.f32.mrf.mxu0
      %v673 = vadd.f32 0.0, %v672
      %v674 = vpop.f32.mrf.mxu0
      %v675 = vpop.f32.mrf.mxu0
      %v676 = vadd.f32 0.0, %v675
      %v677 = vpop.f32.mrf.mxu0
      %678 = vmatprep.mubr.bf16.mxu0 0
      %679 = vmatmul.mubr.bf16.gmra.mxu0 %v548
      %v680 = vpop.f32.mrf.mxu0
      %v681 = vadd.f32 0.0, %v680
      %v682 = vpop.f32.mrf.mxu0
      %v683 = vpop.f32.mrf.mxu0
      %v684 = vadd.f32 0.0, %v683
      %v685 = vpop.f32.mrf.mxu0
      %686 = vmatprep.mubr.bf16.mxu0 0
      %687 = vmatmul.mubr.bf16.gmra.mxu0 %v551
      %v688 = vpop.f32.mrf.mxu0
      %v689 = vadd.f32 0.0, %v688
      %v690 = vpop.f32.mrf.mxu0
      %v691 = vpop.f32.mrf.mxu0
      %v692 = vadd.f32 0.0, %v691
      %v693 = vpop.f32.mrf.mxu0
      %694 = vmatprep.mubr.bf16.mxu0 0
      %695 = vmatmul.mubr.bf16.gmra.mxu0 %v554
      %v696 = vpop.f32.mrf.mxu0
      %v697 = vadd.f32 0.0, %v696
      %v698 = vpop.f32.mrf.mxu0
      %v699 = vpop.f32.mrf.mxu0
      %v700 = vadd.f32 0.0, %v699
      %v701 = vpop.f32.mrf.mxu0
      %702 = vmatprep.mubr.bf16.mxu0 0
      %703 = vmatmul.mubr.bf16.gmra.mxu0 %v557
      %v704 = vpop.f32.mrf.mxu0
      %v705 = vadd.f32 0.0, %v704
      %v706 = vpop.f32.mrf.mxu0
      %v707 = vpop.f32.mrf.mxu0
      %v708 = vadd.f32 0.0, %v707
      %v709 = vpop.f32.mrf.mxu0
      %710 = vmatprep.mubr.bf16.mxu0 0
      %711 = vmatmul.mubr.bf16.gmra.mxu0 %v560
      %v712 = vpop.f32.mrf.mxu0
      %v713 = vadd.f32 0.0, %v712
      %v714 = vpop.f32.mrf.mxu0
      %v715 = vpop.f32.mrf.mxu0
      %v716 = vadd.f32 0.0, %v715
      %v717 = vpop.f32.mrf.mxu0
      %718 = vmatprep.mubr.bf16.mxu0 0
      %719 = vmatmul.mubr.bf16.gmra.mxu0 %v563
      %v720 = vpop.f32.mrf.mxu0
      %v721 = vadd.f32 0.0, %v720
      %v722 = vpop.f32.mrf.mxu0
      %v723 = vpop.f32.mrf.mxu0
      %v724 = vadd.f32 0.0, %v723
      %v725 = vpop.f32.mrf.mxu0
      %726 = vmatprep.mubr.bf16.mxu0 0
      %727 = vmatmul.mubr.bf16.gmra.mxu0 %v566
      %v728 = vpop.f32.mrf.mxu0
      %v729 = vadd.f32 0.0, %v728
      %v730 = vpop.f32.mrf.mxu0
      %v731 = vpop.f32.mrf.mxu0
      %v732 = vadd.f32 0.0, %v731
      %v733 = vpop.f32.mrf.mxu0
      %734 = vmatprep.mubr.bf16.mxu0 0
      %735 = vmatmul.mubr.bf16.gmra.mxu0 %v569
      %v736 = vpop.f32.mrf.mxu0
      %v737 = vadd.f32 0.0, %v736
      %v738 = vpop.f32.mrf.mxu0
      %v739 = vpop.f32.mrf.mxu0
      %v740 = vadd.f32 0.0, %v739
      %v741 = vpop.f32.mrf.mxu0
      %742 = vmatprep.mubr.bf16.mxu0 0
      %743 = vmatmul.mubr.bf16.gmra.mxu0 %v572
      %v744 = vpop.f32.mrf.mxu0
      %v745 = vadd.f32 0.0, %v744
      %v746 = vpop.f32.mrf.mxu0
      %v747 = vpop.f32.mrf.mxu0
      %v748 = vadd.f32 0.0, %v747
      %v749 = vpop.f32.mrf.mxu0
      %750 = vdwg.mxu0
      %v755 = vunpack.c.l.b16 %v255
      %v756 = vunpack.c.l.b16 %v256
      %v757 = vunpack.c.l.b16 %v257
      %v758 = vunpack.c.l.b16 %v258
      %v759 = vpack.c.b16 %v756, %v755
      %v760 = vpack.c.b16 %v758, %v757
      %v763 = vsel %vm519, %v339, 0
      %v765 = vsel %vm519, %v340, 0
      %v767 = vsel %vm519, %v341, 0
      %v769 = vsel %vm519, %v342, 0
      %v771 = vsel %vm519, %v343, 0
      %v773 = vsel %vm519, %v344, 0
      %v775 = vsel %vm519, %v345, 0
      %v777 = vsel %vm519, %v346, 0
      %v779 = vsel %vm519, %v347, 0
      %v781 = vsel %vm519, %v348, 0
      %v783 = vsel %vm519, %v349, 0
      %v785 = vsel %vm519, %v350, 0
      %v787 = vsel %vm519, %v351, 0
      %v789 = vsel %vm519, %v352, 0
      %v791 = vsel %vm519, %v353, 0
      %v793 = vsel %vm519, %v354, 0
      %v795 = vsel %vm519, %v355, 0
      %v797 = vsel %vm519, %v356, 0
      %799 = vmatprep.subr.bf16.mxu0 0
      %800 = vmatpush1.bf16.msra.mxu0 0
      %801 = vmatprep.subr.bf16.mxu0 0
      %802 = vmatpush1.bf16.msra.mxu0 0
      %803 = vmatprep.subr.bf16.mxu0 0
      %804 = vmatpush1.bf16.msra.mxu0 0
      %805 = vmatprep.subr.bf16.mxu0 0
      %806 = vmatpush1.bf16.msra.mxu0 0
      %807 = vmatprep.subr.bf16.mxu0 0
      %808 = vmatpush1.bf16.msra.mxu0 0
      %809 = vmatprep.subr.bf16.mxu0 0
      %810 = vmatpush1.bf16.msra.mxu0 0
      %811 = vmatprep.subr.bf16.mxu0 0
      %812 = vmatpush1.bf16.msra.mxu0 %v760
      %813 = vmatprep.subr.bf16.mxu0 0
      %814 = vmatpush1.bf16.msra.mxu0 %v759
      %815 = vmatprep.subr.bf16.mxu0 0
      %816 = vmatpush2.bf16.msra.mxu0 0
      %817 = vmatprep.subr.bf16.mxu0 0
      %818 = vmatpush2.bf16.msra.mxu0 0
      %819 = vmatprep.subr.bf16.mxu0 0
      %820 = vmatpush2.bf16.msra.mxu0 0
      %821 = vmatprep.subr.bf16.mxu0 0
      %822 = vmatpush2.bf16.msra.mxu0 0
      %823 = vmatprep.subr.bf16.mxu0 0
      %824 = vmatpush2.bf16.msra.mxu0 0
      %825 = vmatprep.subr.bf16.mxu0 0
      %826 = vmatpush2.bf16.msra.mxu0 0
      %827 = vmatprep.subr.bf16.mxu0 0
      %828 = vmatpush2.bf16.msra.mxu0 0
      %829 = vmatprep.subr.bf16.mxu0 0
      %830 = vmatpush2.bf16.msra.mxu0 0
      %831 = vmatprep.mubr.bf16.mxu0 0
      %832 = vmatmul.mubr.bf16.gmra.mxu0 %v763
      %v833 = vpop.f32.mrf.mxu0
      %v834 = vadd.f32 %v609, %v833
      %v835 = vpop.f32.mrf.mxu0
      %v836 = vpop.f32.mrf.mxu0
      %v837 = vadd.f32 %v612, %v836
      %v838 = vpop.f32.mrf.mxu0
      %839 = vmatprep.mubr.bf16.mxu0 0
      %840 = vmatmul.mubr.bf16.gmra.mxu0 %v765
      %v841 = vpop.f32.mrf.mxu0
      %v842 = vadd.f32 %v617, %v841
      %v843 = vpop.f32.mrf.mxu0
      %v844 = vpop.f32.mrf.mxu0
      %v845 = vadd.f32 %v620, %v844
      %v846 = vpop.f32.mrf.mxu0
      %847 = vmatprep.mubr.bf16.mxu0 0
      %848 = vmatmul.mubr.bf16.gmra.mxu0 %v767
      %v849 = vpop.f32.mrf.mxu0
      %v850 = vadd.f32 %v625, %v849
      %v851 = vpop.f32.mrf.mxu0
      %v852 = vpop.f32.mrf.mxu0
      %v853 = vadd.f32 %v628, %v852
      %v854 = vpop.f32.mrf.mxu0
      %855 = vmatprep.mubr.bf16.mxu0 0
      %856 = vmatmul.mubr.bf16.gmra.mxu0 %v769
      %v857 = vpop.f32.mrf.mxu0
      %v858 = vadd.f32 %v633, %v857
      %v859 = vpop.f32.mrf.mxu0
      %v860 = vpop.f32.mrf.mxu0
      %v861 = vadd.f32 %v636, %v860
      %v862 = vpop.f32.mrf.mxu0
      %863 = vmatprep.mubr.bf16.mxu0 0
      %864 = vmatmul.mubr.bf16.gmra.mxu0 %v771
      %v865 = vpop.f32.mrf.mxu0
      %v866 = vadd.f32 %v641, %v865
      %v867 = vpop.f32.mrf.mxu0
      %v868 = vpop.f32.mrf.mxu0
      %v869 = vadd.f32 %v644, %v868
      %v870 = vpop.f32.mrf.mxu0
      %871 = vmatprep.mubr.bf16.mxu0 0
      %872 = vmatmul.mubr.bf16.gmra.mxu0 %v773
      %v873 = vpop.f32.mrf.mxu0
      %v874 = vadd.f32 %v649, %v873
      %v875 = vpop.f32.mrf.mxu0
      %v876 = vpop.f32.mrf.mxu0
      %v877 = vadd.f32 %v652, %v876
      %v878 = vpop.f32.mrf.mxu0
      %879 = vmatprep.mubr.bf16.mxu0 0
      %880 = vmatmul.mubr.bf16.gmra.mxu0 %v775
      %v881 = vpop.f32.mrf.mxu0
      %v882 = vadd.f32 %v657, %v881
      %v883 = vpop.f32.mrf.mxu0
      %v884 = vpop.f32.mrf.mxu0
      %v885 = vadd.f32 %v660, %v884
      %v886 = vpop.f32.mrf.mxu0
      %887 = vmatprep.mubr.bf16.mxu0 0
      %888 = vmatmul.mubr.bf16.gmra.mxu0 %v777
      %v889 = vpop.f32.mrf.mxu0
      %v890 = vadd.f32 %v665, %v889
      %v891 = vpop.f32.mrf.mxu0
      %v892 = vpop.f32.mrf.mxu0
      %v893 = vadd.f32 %v668, %v892
      %v894 = vpop.f32.mrf.mxu0
      %895 = vmatprep.mubr.bf16.mxu0 0
      %896 = vmatmul.mubr.bf16.gmra.mxu0 %v779
      %v897 = vpop.f32.mrf.mxu0
      %v898 = vadd.f32 %v673, %v897
      %v899 = vpop.f32.mrf.mxu0
      %v900 = vpop.f32.mrf.mxu0
      %v901 = vadd.f32 %v676, %v900
      %v902 = vpop.f32.mrf.mxu0
      %903 = vmatprep.mubr.bf16.mxu0 0
      %904 = vmatmul.mubr.bf16.gmra.mxu0 %v781
      %v905 = vpop.f32.mrf.mxu0
      %v906 = vadd.f32 %v681, %v905
      %v907 = vpop.f32.mrf.mxu0
      %v908 = vpop.f32.mrf.mxu0
      %v909 = vadd.f32 %v684, %v908
      %v910 = vpop.f32.mrf.mxu0
      %911 = vmatprep.mubr.bf16.mxu0 0
      %912 = vmatmul.mubr.bf16.gmra.mxu0 %v783
      %v913 = vpop.f32.mrf.mxu0
      %v914 = vadd.f32 %v689, %v913
      %v915 = vpop.f32.mrf.mxu0
      %v916 = vpop.f32.mrf.mxu0
      %v917 = vadd.f32 %v692, %v916
      %v918 = vpop.f32.mrf.mxu0
      %919 = vmatprep.mubr.bf16.mxu0 0
      %920 = vmatmul.mubr.bf16.gmra.mxu0 %v785
      %v921 = vpop.f32.mrf.mxu0
      %v922 = vadd.f32 %v697, %v921
      %v923 = vpop.f32.mrf.mxu0
      %v924 = vpop.f32.mrf.mxu0
      %v925 = vadd.f32 %v700, %v924
      %v926 = vpop.f32.mrf.mxu0
      %927 = vmatprep.mubr.bf16.mxu0 0
      %928 = vmatmul.mubr.bf16.gmra.mxu0 %v787
      %v929 = vpop.f32.mrf.mxu0
      %v930 = vadd.f32 %v705, %v929
      %v931 = vpop.f32.mrf.mxu0
      %v932 = vpop.f32.mrf.mxu0
      %v933 = vadd.f32 %v708, %v932
      %v934 = vpop.f32.mrf.mxu0
      %935 = vmatprep.mubr.bf16.mxu0 0
      %936 = vmatmul.mubr.bf16.gmra.mxu0 %v789
      %v937 = vpop.f32.mrf.mxu0
      %v938 = vadd.f32 %v713, %v937
      %v939 = vpop.f32.mrf.mxu0
      %v940 = vpop.f32.mrf.mxu0
      %v941 = vadd.f32 %v716, %v940
      %v942 = vpop.f32.mrf.mxu0
      %943 = vmatprep.mubr.bf16.mxu0 0
      %944 = vmatmul.mubr.bf16.gmra.mxu0 %v791
      %v945 = vpop.f32.mrf.mxu0
      %v946 = vadd.f32 %v721, %v945
      %v947 = vpop.f32.mrf.mxu0
      %v948 = vpop.f32.mrf.mxu0
      %v949 = vadd.f32 %v724, %v948
      %v950 = vpop.f32.mrf.mxu0
      %951 = vmatprep.mubr.bf16.mxu0 0
      %952 = vmatmul.mubr.bf16.gmra.mxu0 %v793
      %v953 = vpop.f32.mrf.mxu0
      %v954 = vadd.f32 %v729, %v953
      %v955 = vpop.f32.mrf.mxu0
      %v956 = vpop.f32.mrf.mxu0
      %v957 = vadd.f32 %v732, %v956
      %v958 = vpop.f32.mrf.mxu0
      %959 = vmatprep.mubr.bf16.mxu0 0
      %960 = vmatmul.mubr.bf16.gmra.mxu0 %v795
      %v961 = vpop.f32.mrf.mxu0
      %v962 = vadd.f32 %v737, %v961
      %v963 = vpop.f32.mrf.mxu0
      %v964 = vpop.f32.mrf.mxu0
      %v965 = vadd.f32 %v740, %v964
      %v966 = vpop.f32.mrf.mxu0
      %967 = vmatprep.mubr.bf16.mxu0 0
      %968 = vmatmul.mubr.bf16.gmra.mxu0 %v797
      %v969 = vpop.f32.mrf.mxu0
      %v970 = vadd.f32 %v745, %v969
      %v971 = vpop.f32.mrf.mxu0
      %v972 = vpop.f32.mrf.mxu0
      %v973 = vadd.f32 %v748, %v972
      %v974 = vpop.f32.mrf.mxu0
      %975 = vdwg.mxu0
      %v976 = vld [vmem:[%s207] sm:$0xe]
      %s977 = scalar_lea.vmem %s1, 32
      %v978 = vld [vmem:[%s977] sm:$0xf]
      %v979 = vld [vmem:[%s977 + $0x4] sm:$0xf]
      %v980 = vld [vmem:[%s977 + $0x8] sm:$0xf]
      %v981 = vld [vmem:[%s977 + $0xc] sm:$0xf]
      %v983 = vunpack.c.l.b16 %v976
      %v984 = vpack.c.b16 %v303, %v983
      %vm985 = vcmask 1046528
      %v986 = vrot.slane %v984, 1
      %v987 = vrot.slane %v340, 1
      %v988 = vsel %vm985, %v986, %v987
      %v989 = vrot.slane %v341, 1
      %v990 = vsel %vm985, %v987, %v989
      %v991 = vrot.slane %v342, 1
      %v992 = vsel %vm985, %v989, %v991
      %v993 = vrot.slane %v343, 1
      %v994 = vsel %vm985, %v991, %v993
      %v995 = vrot.slane %v344, 1
      %v996 = vsel %vm985, %v993, %v995
      %v997 = vrot.slane %v345, 1
      %v998 = vsel %vm985, %v995, %v997
      %v999 = vrot.slane %v346, 1
      %v1000 = vsel %vm985, %v997, %v999
      %v1001 = vrot.slane %v347, 1
      %v1002 = vsel %vm985, %v999, %v1001
      %v1003 = vrot.slane %v348, 1
      %v1004 = vsel %vm985, %v1001, %v1003
      %v1005 = vrot.slane %v349, 1
      %v1006 = vsel %vm985, %v1003, %v1005
      %v1007 = vrot.slane %v350, 1
      %v1008 = vsel %vm985, %v1005, %v1007
      %v1009 = vrot.slane %v351, 1
      %v1010 = vsel %vm985, %v1007, %v1009
      %v1011 = vrot.slane %v352, 1
      %v1012 = vsel %vm985, %v1009, %v1011
      %v1013 = vrot.slane %v353, 1
      %v1014 = vsel %vm985, %v1011, %v1013
      %v1015 = vrot.slane %v354, 1
      %v1016 = vsel %vm985, %v1013, %v1015
      %v1017 = vrot.slane %v355, 1
      %v1018 = vsel %vm985, %v1015, %v1017
      %v1019 = vrot.slane %v356, 1
      %v1020 = vsel %vm985, %v1017, %v1019
      %v1021 = vrot.slane %v357, 1
      %v1022 = vsel %vm985, %v1019, %v1021
      %v1027 = vunpack.c.l.b16 %v978
      %v1028 = vunpack.c.l.b16 %v979
      %v1029 = vunpack.c.l.b16 %v980
      %v1030 = vunpack.c.l.b16 %v981
      %v1031 = vpack.c.b16 %v1028, %v1027
      %v1032 = vpack.c.b16 %v1030, %v1029
      %v1036 = vsel %vm519, %v988, 0
      %v1039 = vsel %vm519, %v990, 0
      %v1042 = vsel %vm519, %v992, 0
      %v1045 = vsel %vm519, %v994, 0
      %v1048 = vsel %vm519, %v996, 0
      %v1051 = vsel %vm519, %v998, 0
      %v1054 = vsel %vm519, %v1000, 0
      %v1057 = vsel %vm519, %v1002, 0
      %v1060 = vsel %vm519, %v1004, 0
      %v1063 = vsel %vm519, %v1006, 0
      %v1066 = vsel %vm519, %v1008, 0
      %v1069 = vsel %vm519, %v1010, 0
      %v1072 = vsel %vm519, %v1012, 0
      %v1075 = vsel %vm519, %v1014, 0
      %v1078 = vsel %vm519, %v1016, 0
      %v1081 = vsel %vm519, %v1018, 0
      %v1084 = vsel %vm519, %v1020, 0
      %v1087 = vsel %vm519, %v1022, 0
      %1089 = vmatprep.subr.bf16.mxu0 0
      %1090 = vmatpush1.bf16.msra.mxu0 0
      %1091 = vmatprep.subr.bf16.mxu0 0
      %1092 = vmatpush1.bf16.msra.mxu0 0
      %1093 = vmatprep.subr.bf16.mxu0 0
      %1094 = vmatpush1.bf16.msra.mxu0 0
      %1095 = vmatprep.subr.bf16.mxu0 0
      %1096 = vmatpush1.bf16.msra.mxu0 0
      %1097 = vmatprep.subr.bf16.mxu0 0
      %1098 = vmatpush1.bf16.msra.mxu0 0
      %1099 = vmatprep.subr.bf16.mxu0 0
      %1100 = vmatpush1.bf16.msra.mxu0 0
      %1101 = vmatprep.subr.bf16.mxu0 0
      %1102 = vmatpush1.bf16.msra.mxu0 %v1032
      %1103 = vmatprep.subr.bf16.mxu0 0
      %1104 = vmatpush1.bf16.msra.mxu0 %v1031
      %1105 = vmatprep.subr.bf16.mxu0 0
      %1106 = vmatpush2.bf16.msra.mxu0 0
      %1107 = vmatprep.subr.bf16.mxu0 0
      %1108 = vmatpush2.bf16.msra.mxu0 0
      %1109 = vmatprep.subr.bf16.mxu0 0
      %1110 = vmatpush2.bf16.msra.mxu0 0
      %1111 = vmatprep.subr.bf16.mxu0 0
      %1112 = vmatpush2.bf16.msra.mxu0 0
      %1113 = vmatprep.subr.bf16.mxu0 0
      %1114 = vmatpush2.bf16.msra.mxu0 0
      %1115 = vmatprep.subr.bf16.mxu0 0
      %1116 = vmatpush2.bf16.msra.mxu0 0
      %1117 = vmatprep.subr.bf16.mxu0 0
      %1118 = vmatpush2.bf16.msra.mxu0 0
      %1119 = vmatprep.subr.bf16.mxu0 0
      %1120 = vmatpush2.bf16.msra.mxu0 0
      %1121 = vmatprep.mubr.bf16.mxu0 0
      %1122 = vmatmul.mubr.bf16.gmra.mxu0 %v1036
      %v1123 = vpop.f32.mrf.mxu0
      %v1124 = vadd.f32 0.0, %v1123
      %v1125 = vpop.f32.mrf.mxu0
      %v1126 = vpop.f32.mrf.mxu0
      %v1127 = vadd.f32 0.0, %v1126
      %v1128 = vpop.f32.mrf.mxu0
      %1129 = vmatprep.mubr.bf16.mxu0 0
      %1130 = vmatmul.mubr.bf16.gmra.mxu0 %v1039
      %v1131 = vpop.f32.mrf.mxu0
      %v1132 = vadd.f32 0.0, %v1131
      %v1133 = vpop.f32.mrf.mxu0
      %v1134 = vpop.f32.mrf.mxu0
      %v1135 = vadd.f32 0.0, %v1134
      %v1136 = vpop.f32.mrf.mxu0
      %1137 = vmatprep.mubr.bf16.mxu0 0
      %1138 = vmatmul.mubr.bf16.gmra.mxu0 %v1042
      %v1139 = vpop.f32.mrf.mxu0
      %v1140 = vadd.f32 0.0, %v1139
      %v1141 = vpop.f32.mrf.mxu0
      %v1142 = vpop.f32.mrf.mxu0
      %v1143 = vadd.f32 0.0, %v1142
      %v1144 = vpop.f32.mrf.mxu0
      %1145 = vmatprep.mubr.bf16.mxu0 0
      %1146 = vmatmul.mubr.bf16.gmra.mxu0 %v1045
      %v1147 = vpop.f32.mrf.mxu0
      %v1148 = vadd.f32 0.0, %v1147
      %v1149 = vpop.f32.mrf.mxu0
      %v1150 = vpop.f32.mrf.mxu0
      %v1151 = vadd.f32 0.0, %v1150
      %v1152 = vpop.f32.mrf.mxu0
      %1153 = vmatprep.mubr.bf16.mxu0 0
      %1154 = vmatmul.mubr.bf16.gmra.mxu0 %v1048
      %v1155 = vpop.f32.mrf.mxu0
      %v1156 = vadd.f32 0.0, %v1155
      %v1157 = vpop.f32.mrf.mxu0
      %v1158 = vpop.f32.mrf.mxu0
      %v1159 = vadd.f32 0.0, %v1158
      %v1160 = vpop.f32.mrf.mxu0
      %1161 = vmatprep.mubr.bf16.mxu0 0
      %1162 = vmatmul.mubr.bf16.gmra.mxu0 %v1051
      %v1163 = vpop.f32.mrf.mxu0
      %v1164 = vadd.f32 0.0, %v1163
      %v1165 = vpop.f32.mrf.mxu0
      %v1166 = vpop.f32.mrf.mxu0
      %v1167 = vadd.f32 0.0, %v1166
      %v1168 = vpop.f32.mrf.mxu0
      %1169 = vmatprep.mubr.bf16.mxu0 0
      %1170 = vmatmul.mubr.bf16.gmra.mxu0 %v1054
      %v1171 = vpop.f32.mrf.mxu0
      %v1172 = vadd.f32 0.0, %v1171
      %v1173 = vpop.f32.mrf.mxu0
      %v1174 = vpop.f32.mrf.mxu0
      %v1175 = vadd.f32 0.0, %v1174
      %v1176 = vpop.f32.mrf.mxu0
      %1177 = vmatprep.mubr.bf16.mxu0 0
      %1178 = vmatmul.mubr.bf16.gmra.mxu0 %v1057
      %v1179 = vpop.f32.mrf.mxu0
      %v1180 = vadd.f32 0.0, %v1179
      %v1181 = vpop.f32.mrf.mxu0
      %v1182 = vpop.f32.mrf.mxu0
      %v1183 = vadd.f32 0.0, %v1182
      %v1184 = vpop.f32.mrf.mxu0
      %1185 = vmatprep.mubr.bf16.mxu0 0
      %1186 = vmatmul.mubr.bf16.gmra.mxu0 %v1060
      %v1187 = vpop.f32.mrf.mxu0
      %v1188 = vadd.f32 0.0, %v1187
      %v1189 = vpop.f32.mrf.mxu0
      %v1190 = vpop.f32.mrf.mxu0
      %v1191 = vadd.f32 0.0, %v1190
      %v1192 = vpop.f32.mrf.mxu0
      %1193 = vmatprep.mubr.bf16.mxu0 0
      %1194 = vmatmul.mubr.bf16.gmra.mxu0 %v1063
      %v1195 = vpop.f32.mrf.mxu0
      %v1196 = vadd.f32 0.0, %v1195
      %v1197 = vpop.f32.mrf.mxu0
      %v1198 = vpop.f32.mrf.mxu0
      %v1199 = vadd.f32 0.0, %v1198
      %v1200 = vpop.f32.mrf.mxu0
      %1201 = vmatprep.mubr.bf16.mxu0 0
      %1202 = vmatmul.mubr.bf16.gmra.mxu0 %v1066
      %v1203 = vpop.f32.mrf.mxu0
      %v1204 = vadd.f32 0.0, %v1203
      %v1205 = vpop.f32.mrf.mxu0
      %v1206 = vpop.f32.mrf.mxu0
      %v1207 = vadd.f32 0.0, %v1206
      %v1208 = vpop.f32.mrf.mxu0
      %1209 = vmatprep.mubr.bf16.mxu0 0
      %1210 = vmatmul.mubr.bf16.gmra.mxu0 %v1069
      %v1211 = vpop.f32.mrf.mxu0
      %v1212 = vadd.f32 0.0, %v1211
      %v1213 = vpop.f32.mrf.mxu0
      %v1214 = vpop.f32.mrf.mxu0
      %v1215 = vadd.f32 0.0, %v1214
      %v1216 = vpop.f32.mrf.mxu0
      %1217 = vmatprep.mubr.bf16.mxu0 0
      %1218 = vmatmul.mubr.bf16.gmra.mxu0 %v1072
      %v1219 = vpop.f32.mrf.mxu0
      %v1220 = vadd.f32 0.0, %v1219
      %v1221 = vpop.f32.mrf.mxu0
      %v1222 = vpop.f32.mrf.mxu0
      %v1223 = vadd.f32 0.0, %v1222
      %v1224 = vpop.f32.mrf.mxu0
      %1225 = vmatprep.mubr.bf16.mxu0 0
      %1226 = vmatmul.mubr.bf16.gmra.mxu0 %v1075
      %v1227 = vpop.f32.mrf.mxu0
      %v1228 = vadd.f32 0.0, %v1227
      %v1229 = vpop.f32.mrf.mxu0
      %v1230 = vpop.f32.mrf.mxu0
      %v1231 = vadd.f32 0.0, %v1230
      %v1232 = vpop.f32.mrf.mxu0
      %1233 = vmatprep.mubr.bf16.mxu0 0
      %1234 = vmatmul.mubr.bf16.gmra.mxu0 %v1078
      %v1235 = vpop.f32.mrf.mxu0
      %v1236 = vadd.f32 0.0, %v1235
      %v1237 = vpop.f32.mrf.mxu0
      %v1238 = vpop.f32.mrf.mxu0
      %v1239 = vadd.f32 0.0, %v1238
      %v1240 = vpop.f32.mrf.mxu0
      %1241 = vmatprep.mubr.bf16.mxu0 0
      %1242 = vmatmul.mubr.bf16.gmra.mxu0 %v1081
      %v1243 = vpop.f32.mrf.mxu0
      %v1244 = vadd.f32 0.0, %v1243
      %v1245 = vpop.f32.mrf.mxu0
      %v1246 = vpop.f32.mrf.mxu0
      %v1247 = vadd.f32 0.0, %v1246
      %v1248 = vpop.f32.mrf.mxu0
      %1249 = vmatprep.mubr.bf16.mxu0 0
      %1250 = vmatmul.mubr.bf16.gmra.mxu0 %v1084
      %v1251 = vpop.f32.mrf.mxu0
      %v1252 = vadd.f32 0.0, %v1251
      %v1253 = vpop.f32.mrf.mxu0
      %v1254 = vpop.f32.mrf.mxu0
      %v1255 = vadd.f32 0.0, %v1254
      %v1256 = vpop.f32.mrf.mxu0
      %1257 = vmatprep.mubr.bf16.mxu0 0
      %1258 = vmatmul.mubr.bf16.gmra.mxu0 %v1087
      %v1259 = vpop.f32.mrf.mxu0
      %v1260 = vadd.f32 0.0, %v1259
      %v1261 = vpop.f32.mrf.mxu0
      %v1262 = vpop.f32.mrf.mxu0
      %v1263 = vadd.f32 0.0, %v1262
      %v1264 = vpop.f32.mrf.mxu0
      %1265 = vdwg.mxu0
      %v1266 = vadd.f32 %v834, %v1124
      %v1267 = vadd.f32 %v837, %v1127
      %v1268 = vadd.f32 %v842, %v1132
      %v1269 = vadd.f32 %v845, %v1135
      %v1270 = vadd.f32 %v850, %v1140
      %v1271 = vadd.f32 %v853, %v1143
      %v1272 = vadd.f32 %v858, %v1148
      %v1273 = vadd.f32 %v861, %v1151
      %v1274 = vadd.f32 %v866, %v1156
      %v1275 = vadd.f32 %v869, %v1159
      %v1276 = vadd.f32 %v874, %v1164
      %v1277 = vadd.f32 %v877, %v1167
      %v1278 = vadd.f32 %v882, %v1172
      %v1279 = vadd.f32 %v885, %v1175
      %v1280 = vadd.f32 %v890, %v1180
      %v1281 = vadd.f32 %v893, %v1183
      %v1282 = vadd.f32 %v898, %v1188
      %v1283 = vadd.f32 %v901, %v1191
      %v1284 = vadd.f32 %v906, %v1196
      %v1285 = vadd.f32 %v909, %v1199
      %v1286 = vadd.f32 %v914, %v1204
      %v1287 = vadd.f32 %v917, %v1207
      %v1288 = vadd.f32 %v922, %v1212
      %v1289 = vadd.f32 %v925, %v1215
      %v1290 = vadd.f32 %v930, %v1220
      %v1291 = vadd.f32 %v933, %v1223
      %v1292 = vadd.f32 %v938, %v1228
      %v1293 = vadd.f32 %v941, %v1231
      %v1294 = vadd.f32 %v946, %v1236
      %v1295 = vadd.f32 %v949, %v1239
      %v1296 = vadd.f32 %v954, %v1244
      %v1297 = vadd.f32 %v957, %v1247
      %v1298 = vadd.f32 %v962, %v1252
      %v1299 = vadd.f32 %v965, %v1255
      %v1300 = vadd.f32 %v970, %v1260
      %v1301 = vadd.f32 %v973, %v1263
      %v1302 = vld [vmem:[%s207 + $0x8] sm:$0xe]
      %v1303 = vld [vmem:[%s207 + $0xc] sm:$0xf]
      %v1304 = vld [vmem:[%s207 + $0x10] sm:$0xf]
      %v1305 = vld [vmem:[%s207 + $0x14] sm:$0xf]
      %v1306 = vld [vmem:[%s207 + $0x18] sm:$0xf]
      %v1307 = vld [vmem:[%s207 + $0x1c] sm:$0xf]
      %v1308 = vld [vmem:[%s207 + $0x20] sm:$0xf]
      %v1309 = vld [vmem:[%s207 + $0x24] sm:$0xf]
      %v1310 = vld [vmem:[%s207 + $0x28] sm:$0xf]
      %v1311 = vld [vmem:[%s207 + $0x2c] sm:$0xf]
      %v1312 = vld [vmem:[%s207 + $0x30] sm:$0xf]
      %v1313 = vld [vmem:[%s207 + $0x34] sm:$0xf]
      %v1314 = vld [vmem:[%s207 + $0x38] sm:$0xf]
      %v1315 = vld [vmem:[%s207 + $0x3c] sm:$0xf]
      %v1316 = vld [vmem:[%s207 + $0x40] sm:$0xf]
      %v1317 = vld [vmem:[%s207 + $0x44] sm:$0xf]
      %v1318 = vld [vmem:[%s207 + $0x48] sm:$0xf]
      %v1319 = vld [vmem:[%s207 + $0x4c] sm:$0xf]
      %v1320 = vld [vmem:[%s207 + $0x50] sm:$0xf]
      %v1321 = vld [vmem:[%s207 + $0x54] sm:$0xf]
      %v1322 = vld [vmem:[%s207 + $0x58] sm:$0xf]
      %v1323 = vld [vmem:[%s207 + $0x5c] sm:$0xf]
      %v1324 = vld [vmem:[%s207 + $0x60] sm:$0xf]
      %v1325 = vld [vmem:[%s207 + $0x64] sm:$0xf]
      %v1326 = vld [vmem:[%s207 + $0x68] sm:$0xf]
      %v1327 = vld [vmem:[%s207 + $0x6c] sm:$0xf]
      %v1328 = vld [vmem:[%s207 + $0x70] sm:$0xf]
      %v1329 = vld [vmem:[%s207 + $0x74] sm:$0xf]
      %v1330 = vld [vmem:[%s207 + $0x78] sm:$0xf]
      %v1331 = vld [vmem:[%s207 + $0x7c] sm:$0xf]
      %v1332 = vld [vmem:[%s207 + $0x80] sm:$0xf]
      %v1333 = vld [vmem:[%s207 + $0x84] sm:$0xf]
      %v1334 = vld [vmem:[%s207 + $0x88] sm:$0xf]
      %v1335 = vld [vmem:[%s207 + $0x8c] sm:$0xf]
      %v1336 = vld [vmem:[%s207 + $0x90] sm:$0xf]
      %v1337 = vld [vmem:[%s207 + $0x94] sm:$0xf]
      %v1338 = vld [vmem:[%s207 + $0x98] sm:$0x1]
      %s1339 = scalar_lea.vmem %s1, 48
      %v1340 = vld [vmem:[%s1339] sm:$0xf]
      %v1341 = vld [vmem:[%s1339 + $0x4] sm:$0xf]
      %v1342 = vld [vmem:[%s1339 + $0x8] sm:$0xf]
      %v1343 = vld [vmem:[%s1339 + $0xc] sm:$0xf]
      %v1381 = vunpack.c.l.b16 %v1302
      %v1382 = vunpack.c.l.b16 %v1303
      %v1383 = vunpack.c.l.b16 %v1304
      %v1384 = vunpack.c.l.b16 %v1305
      %v1385 = vunpack.c.l.b16 %v1306
      %v1386 = vunpack.c.l.b16 %v1307
      %v1387 = vunpack.c.l.b16 %v1308
      %v1388 = vunpack.c.l.b16 %v1309
      %v1389 = vunpack.c.l.b16 %v1310
      %v1390 = vunpack.c.l.b16 %v1311
      %v1391 = vunpack.c.l.b16 %v1312
      %v1392 = vunpack.c.l.b16 %v1313
      %v1393 = vunpack.c.l.b16 %v1314
      %v1394 = vunpack.c.l.b16 %v1315
      %v1395 = vunpack.c.l.b16 %v1316
      %v1396 = vunpack.c.l.b16 %v1317
      %v1397 = vunpack.c.l.b16 %v1318
      %v1398 = vunpack.c.l.b16 %v1319
      %v1399 = vunpack.c.l.b16 %v1320
      %v1400 = vunpack.c.l.b16 %v1321
      %v1401 = vunpack.c.l.b16 %v1322
      %v1402 = vunpack.c.l.b16 %v1323
      %v1403 = vunpack.c.l.b16 %v1324
      %v1404 = vunpack.c.l.b16 %v1325
      %v1405 = vunpack.c.l.b16 %v1326
      %v1406 = vunpack.c.l.b16 %v1327
      %v1407 = vunpack.c.l.b16 %v1328
      %v1408 = vunpack.c.l.b16 %v1329
      %v1409 = vunpack.c.l.b16 %v1330
      %v1410 = vunpack.c.l.b16 %v1331
      %v1411 = vunpack.c.l.b16 %v1332
      %v1412 = vunpack.c.l.b16 %v1333
      %v1413 = vunpack.c.l.b16 %v1334
      %v1414 = vunpack.c.l.b16 %v1335
      %v1415 = vunpack.c.l.b16 %v1336
      %v1416 = vunpack.c.l.b16 %v1337
      %v1417 = vunpack.c.l.b16 %v1338
      %v1418 = vpack.c.b16 %v1382, %v1381
      %v1419 = vpack.c.b16 %v1384, %v1383
      %v1420 = vpack.c.b16 %v1386, %v1385
      %v1421 = vpack.c.b16 %v1388, %v1387
      %v1422 = vpack.c.b16 %v1390, %v1389
      %v1423 = vpack.c.b16 %v1392, %v1391
      %v1424 = vpack.c.b16 %v1394, %v1393
      %v1425 = vpack.c.b16 %v1396, %v1395
      %v1426 = vpack.c.b16 %v1398, %v1397
      %v1427 = vpack.c.b16 %v1400, %v1399
      %v1428 = vpack.c.b16 %v1402, %v1401
      %v1429 = vpack.c.b16 %v1404, %v1403
      %v1430 = vpack.c.b16 %v1406, %v1405
      %v1431 = vpack.c.b16 %v1408, %v1407
      %v1432 = vpack.c.b16 %v1410, %v1409
      %v1433 = vpack.c.b16 %v1412, %v1411
      %v1434 = vpack.c.b16 %v1414, %v1413
      %v1435 = vpack.c.b16 %v1416, %v1415
      %v1436 = vpack.c.b16 %v1417, %v1417
      %v1437 = vrot.slane %v1418, 1
      %v1438 = vrot.slane %v1419, 1
      %v1439 = vsel %vm985, %v1437, %v1438
      %v1440 = vrot.slane %v1420, 1
      %v1441 = vsel %vm985, %v1438, %v1440
      %v1442 = vrot.slane %v1421, 1
      %v1443 = vsel %vm985, %v1440, %v1442
      %v1444 = vrot.slane %v1422, 1
      %v1445 = vsel %vm985, %v1442, %v1444
      %v1446 = vrot.slane %v1423, 1
      %v1447 = vsel %vm985, %v1444, %v1446
      %v1448 = vrot.slane %v1424, 1
      %v1449 = vsel %vm985, %v1446, %v1448
      %v1450 = vrot.slane %v1425, 1
      %v1451 = vsel %vm985, %v1448, %v1450
      %v1452 = vrot.slane %v1426, 1
      %v1453 = vsel %vm985, %v1450, %v1452
      %v1454 = vrot.slane %v1427, 1
      %v1455 = vsel %vm985, %v1452, %v1454
      %v1456 = vrot.slane %v1428, 1
      %v1457 = vsel %vm985, %v1454, %v1456
      %v1458 = vrot.slane %v1429, 1
      %v1459 = vsel %vm985, %v1456, %v1458
      %v1460 = vrot.slane %v1430, 1
      %v1461 = vsel %vm985, %v1458, %v1460
      %v1462 = vrot.slane %v1431, 1
      %v1463 = vsel %vm985, %v1460, %v1462
      %v1464 = vrot.slane %v1432, 1
      %v1465 = vsel %vm985, %v1462, %v1464
      %v1466 = vrot.slane %v1433, 1
      %v1467 = vsel %vm985, %v1464, %v1466
      %v1468 = vrot.slane %v1434, 1
      %v1469 = vsel %vm985, %v1466, %v1468
      %v1470 = vrot.slane %v1435, 1
      %v1471 = vsel %vm985, %v1468, %v1470
      %v1472 = vrot.slane %v1436, 1
      %v1473 = vsel %vm985, %v1470, %v1472
      %v1478 = vunpack.c.l.b16 %v1340
      %v1479 = vunpack.c.l.b16 %v1341
      %v1480 = vunpack.c.l.b16 %v1342
      %v1481 = vunpack.c.l.b16 %v1343
      %v1482 = vpack.c.b16 %v1479, %v1478
      %v1483 = vpack.c.b16 %v1481, %v1480
      %v1487 = vsel %vm519, %v1439, 0
      %v1490 = vsel %vm519, %v1441, 0
      %v1493 = vsel %vm519, %v1443, 0
      %v1496 = vsel %vm519, %v1445, 0
      %v1499 = vsel %vm519, %v1447, 0
      %v1502 = vsel %vm519, %v1449, 0
      %v1505 = vsel %vm519, %v1451, 0
      %v1508 = vsel %vm519, %v1453, 0
      %v1511 = vsel %vm519, %v1455, 0
      %v1514 = vsel %vm519, %v1457, 0
      %v1517 = vsel %vm519, %v1459, 0
      %v1520 = vsel %vm519, %v1461, 0
      %v1523 = vsel %vm519, %v1463, 0
      %v1526 = vsel %vm519, %v1465, 0
      %v1529 = vsel %vm519, %v1467, 0
      %v1532 = vsel %vm519, %v1469, 0
      %v1535 = vsel %vm519, %v1471, 0
      %v1538 = vsel %vm519, %v1473, 0
      %1540 = vmatprep.subr.bf16.mxu0 0
      %1541 = vmatpush1.bf16.msra.mxu0 0
      %1542 = vmatprep.subr.bf16.mxu0 0
      %1543 = vmatpush1.bf16.msra.mxu0 0
      %1544 = vmatprep.subr.bf16.mxu0 0
      %1545 = vmatpush1.bf16.msra.mxu0 0
      %1546 = vmatprep.subr.bf16.mxu0 0
      %1547 = vmatpush1.bf16.msra.mxu0 0
      %1548 = vmatprep.subr.bf16.mxu0 0
      %1549 = vmatpush1.bf16.msra.mxu0 0
      %1550 = vmatprep.subr.bf16.mxu0 0
      %1551 = vmatpush1.bf16.msra.mxu0 0
      %1552 = vmatprep.subr.bf16.mxu0 0
      %1553 = vmatpush1.bf16.msra.mxu0 %v1483
      %1554 = vmatprep.subr.bf16.mxu0 0
      %1555 = vmatpush1.bf16.msra.mxu0 %v1482
      %1556 = vmatprep.subr.bf16.mxu0 0
      %1557 = vmatpush2.bf16.msra.mxu0 0
      %1558 = vmatprep.subr.bf16.mxu0 0
      %1559 = vmatpush2.bf16.msra.mxu0 0
      %1560 = vmatprep.subr.bf16.mxu0 0
      %1561 = vmatpush2.bf16.msra.mxu0 0
      %1562 = vmatprep.subr.bf16.mxu0 0
      %1563 = vmatpush2.bf16.msra.mxu0 0
      %1564 = vmatprep.subr.bf16.mxu0 0
      %1565 = vmatpush2.bf16.msra.mxu0 0
      %1566 = vmatprep.subr.bf16.mxu0 0
      %1567 = vmatpush2.bf16.msra.mxu0 0
      %1568 = vmatprep.subr.bf16.mxu0 0
      %1569 = vmatpush2.bf16.msra.mxu0 0
      %1570 = vmatprep.subr.bf16.mxu0 0
      %1571 = vmatpush2.bf16.msra.mxu0 0
      %1572 = vmatprep.mubr.bf16.mxu0 0
      %1573 = vmatmul.mubr.bf16.gmra.mxu0 %v1487
      %v1574 = vpop.f32.mrf.mxu0
      %v1575 = vadd.f32 0.0, %v1574
      %v1576 = vpop.f32.mrf.mxu0
      %v1577 = vpop.f32.mrf.mxu0
      %v1578 = vadd.f32 0.0, %v1577
      %v1579 = vpop.f32.mrf.mxu0
      %1580 = vmatprep.mubr.bf16.mxu0 0
      %1581 = vmatmul.mubr.bf16.gmra.mxu0 %v1490
      %v1582 = vpop.f32.mrf.mxu0
      %v1583 = vadd.f32 0.0, %v1582
      %v1584 = vpop.f32.mrf.mxu0
      %v1585 = vpop.f32.mrf.mxu0
      %v1586 = vadd.f32 0.0, %v1585
      %v1587 = vpop.f32.mrf.mxu0
      %1588 = vmatprep.mubr.bf16.mxu0 0
      %1589 = vmatmul.mubr.bf16.gmra.mxu0 %v1493
      %v1590 = vpop.f32.mrf.mxu0
      %v1591 = vadd.f32 0.0, %v1590
      %v1592 = vpop.f32.mrf.mxu0
      %v1593 = vpop.f32.mrf.mxu0
      %v1594 = vadd.f32 0.0, %v1593
      %v1595 = vpop.f32.mrf.mxu0
      %1596 = vmatprep.mubr.bf16.mxu0 0
      %1597 = vmatmul.mubr.bf16.gmra.mxu0 %v1496
      %v1598 = vpop.f32.mrf.mxu0
      %v1599 = vadd.f32 0.0, %v1598
      %v1600 = vpop.f32.mrf.mxu0
      %v1601 = vpop.f32.mrf.mxu0
      %v1602 = vadd.f32 0.0, %v1601
      %v1603 = vpop.f32.mrf.mxu0
      %1604 = vmatprep.mubr.bf16.mxu0 0
      %1605 = vmatmul.mubr.bf16.gmra.mxu0 %v1499
      %v1606 = vpop.f32.mrf.mxu0
      %v1607 = vadd.f32 0.0, %v1606
      %v1608 = vpop.f32.mrf.mxu0
      %v1609 = vpop.f32.mrf.mxu0
      %v1610 = vadd.f32 0.0, %v1609
      %v1611 = vpop.f32.mrf.mxu0
      %1612 = vmatprep.mubr.bf16.mxu0 0
      %1613 = vmatmul.mubr.bf16.gmra.mxu0 %v1502
      %v1614 = vpop.f32.mrf.mxu0
      %v1615 = vadd.f32 0.0, %v1614
      %v1616 = vpop.f32.mrf.mxu0
      %v1617 = vpop.f32.mrf.mxu0
      %v1618 = vadd.f32 0.0, %v1617
      %v1619 = vpop.f32.mrf.mxu0
      %1620 = vmatprep.mubr.bf16.mxu0 0
      %1621 = vmatmul.mubr.bf16.gmra.mxu0 %v1505
      %v1622 = vpop.f32.mrf.mxu0
      %v1623 = vadd.f32 0.0, %v1622
      %v1624 = vpop.f32.mrf.mxu0
      %v1625 = vpop.f32.mrf.mxu0
      %v1626 = vadd.f32 0.0, %v1625
      %v1627 = vpop.f32.mrf.mxu0
      %1628 = vmatprep.mubr.bf16.mxu0 0
      %1629 = vmatmul.mubr.bf16.gmra.mxu0 %v1508
      %v1630 = vpop.f32.mrf.mxu0
      %v1631 = vadd.f32 0.0, %v1630
      %v1632 = vpop.f32.mrf.mxu0
      %v1633 = vpop.f32.mrf.mxu0
      %v1634 = vadd.f32 0.0, %v1633
      %v1635 = vpop.f32.mrf.mxu0
      %1636 = vmatprep.mubr.bf16.mxu0 0
      %1637 = vmatmul.mubr.bf16.gmra.mxu0 %v1511
      %v1638 = vpop.f32.mrf.mxu0
      %v1639 = vadd.f32 0.0, %v1638
      %v1640 = vpop.f32.mrf.mxu0
      %v1641 = vpop.f32.mrf.mxu0
      %v1642 = vadd.f32 0.0, %v1641
      %v1643 = vpop.f32.mrf.mxu0
      %1644 = vmatprep.mubr.bf16.mxu0 0
      %1645 = vmatmul.mubr.bf16.gmra.mxu0 %v1514
      %v1646 = vpop.f32.mrf.mxu0
      %v1647 = vadd.f32 0.0, %v1646
      %v1648 = vpop.f32.mrf.mxu0
      %v1649 = vpop.f32.mrf.mxu0
      %v1650 = vadd.f32 0.0, %v1649
      %v1651 = vpop.f32.mrf.mxu0
      %1652 = vmatprep.mubr.bf16.mxu0 0
      %1653 = vmatmul.mubr.bf16.gmra.mxu0 %v1517
      %v1654 = vpop.f32.mrf.mxu0
      %v1655 = vadd.f32 0.0, %v1654
      %v1656 = vpop.f32.mrf.mxu0
      %v1657 = vpop.f32.mrf.mxu0
      %v1658 = vadd.f32 0.0, %v1657
      %v1659 = vpop.f32.mrf.mxu0
      %1660 = vmatprep.mubr.bf16.mxu0 0
      %1661 = vmatmul.mubr.bf16.gmra.mxu0 %v1520
      %v1662 = vpop.f32.mrf.mxu0
      %v1663 = vadd.f32 0.0, %v1662
      %v1664 = vpop.f32.mrf.mxu0
      %v1665 = vpop.f32.mrf.mxu0
      %v1666 = vadd.f32 0.0, %v1665
      %v1667 = vpop.f32.mrf.mxu0
      %1668 = vmatprep.mubr.bf16.mxu0 0
      %1669 = vmatmul.mubr.bf16.gmra.mxu0 %v1523
      %v1670 = vpop.f32.mrf.mxu0
      %v1671 = vadd.f32 0.0, %v1670
      %v1672 = vpop.f32.mrf.mxu0
      %v1673 = vpop.f32.mrf.mxu0
      %v1674 = vadd.f32 0.0, %v1673
      %v1675 = vpop.f32.mrf.mxu0
      %1676 = vmatprep.mubr.bf16.mxu0 0
      %1677 = vmatmul.mubr.bf16.gmra.mxu0 %v1526
      %v1678 = vpop.f32.mrf.mxu0
      %v1679 = vadd.f32 0.0, %v1678
      %v1680 = vpop.f32.mrf.mxu0
      %v1681 = vpop.f32.mrf.mxu0
      %v1682 = vadd.f32 0.0, %v1681
      %v1683 = vpop.f32.mrf.mxu0
      %1684 = vmatprep.mubr.bf16.mxu0 0
      %1685 = vmatmul.mubr.bf16.gmra.mxu0 %v1529
      %v1686 = vpop.f32.mrf.mxu0
      %v1687 = vadd.f32 0.0, %v1686
      %v1688 = vpop.f32.mrf.mxu0
      %v1689 = vpop.f32.mrf.mxu0
      %v1690 = vadd.f32 0.0, %v1689
      %v1691 = vpop.f32.mrf.mxu0
      %1692 = vmatprep.mubr.bf16.mxu0 0
      %1693 = vmatmul.mubr.bf16.gmra.mxu0 %v1532
      %v1694 = vpop.f32.mrf.mxu0
      %v1695 = vadd.f32 0.0, %v1694
      %v1696 = vpop.f32.mrf.mxu0
      %v1697 = vpop.f32.mrf.mxu0
      %v1698 = vadd.f32 0.0, %v1697
      %v1699 = vpop.f32.mrf.mxu0
      %1700 = vmatprep.mubr.bf16.mxu0 0
      %1701 = vmatmul.mubr.bf16.gmra.mxu0 %v1535
      %v1702 = vpop.f32.mrf.mxu0
      %v1703 = vadd.f32 0.0, %v1702
      %v1704 = vpop.f32.mrf.mxu0
      %v1705 = vpop.f32.mrf.mxu0
      %v1706 = vadd.f32 0.0, %v1705
      %v1707 = vpop.f32.mrf.mxu0
      %1708 = vmatprep.mubr.bf16.mxu0 0
      %1709 = vmatmul.mubr.bf16.gmra.mxu0 %v1538
      %v1710 = vpop.f32.mrf.mxu0
      %v1711 = vadd.f32 0.0, %v1710
      %v1712 = vpop.f32.mrf.mxu0
      %v1713 = vpop.f32.mrf.mxu0
      %v1714 = vadd.f32 0.0, %v1713
      %v1715 = vpop.f32.mrf.mxu0
      %1716 = vdwg.mxu0
      %v1717 = vadd.f32 %v1266, %v1575
      %v1718 = vadd.f32 %v1267, %v1578
      %v1719 = vadd.f32 %v1268, %v1583
      %v1720 = vadd.f32 %v1269, %v1586
      %v1721 = vadd.f32 %v1270, %v1591
      %v1722 = vadd.f32 %v1271, %v1594
      %v1723 = vadd.f32 %v1272, %v1599
      %v1724 = vadd.f32 %v1273, %v1602
      %v1725 = vadd.f32 %v1274, %v1607
      %v1726 = vadd.f32 %v1275, %v1610
      %v1727 = vadd.f32 %v1276, %v1615
      %v1728 = vadd.f32 %v1277, %v1618
      %v1729 = vadd.f32 %v1278, %v1623
      %v1730 = vadd.f32 %v1279, %v1626
      %v1731 = vadd.f32 %v1280, %v1631
      %v1732 = vadd.f32 %v1281, %v1634
      %v1733 = vadd.f32 %v1282, %v1639
      %v1734 = vadd.f32 %v1283, %v1642
      %v1735 = vadd.f32 %v1284, %v1647
      %v1736 = vadd.f32 %v1285, %v1650
      %v1737 = vadd.f32 %v1286, %v1655
      %v1738 = vadd.f32 %v1287, %v1658
      %v1739 = vadd.f32 %v1288, %v1663
      %v1740 = vadd.f32 %v1289, %v1666
      %v1741 = vadd.f32 %v1290, %v1671
      %v1742 = vadd.f32 %v1291, %v1674
      %v1743 = vadd.f32 %v1292, %v1679
      %v1744 = vadd.f32 %v1293, %v1682
      %v1745 = vadd.f32 %v1294, %v1687
      %v1746 = vadd.f32 %v1295, %v1690
      %v1747 = vadd.f32 %v1296, %v1695
      %v1748 = vadd.f32 %v1297, %v1698
      %v1749 = vadd.f32 %v1298, %v1703
      %v1750 = vadd.f32 %v1299, %v1706
      %v1751 = vadd.f32 %v1300, %v1711
      %v1752 = vadd.f32 %v1301, %v1714
      %v1753 = vld [vmem:[%s207 + $0x98] sm:$0x3]
      %s1754 = scalar_lea.vmem %s1, 64
      %v1755 = vld [vmem:[%s1754] sm:$0xf]
      %v1756 = vld [vmem:[%s1754 + $0x4] sm:$0xf]
      %v1757 = vld [vmem:[%s1754 + $0x8] sm:$0xf]
      %v1758 = vld [vmem:[%s1754 + $0xc] sm:$0xf]
      %v1760 = vunpack.c.l.b16 %v1753
      %v1761 = vpack.c.b16 %v1760, %v1760
      %vm1762 = vsmask.f32 6400
      %v1764 = vshrl.u32 %v1418, 16
      %v1766 = vrot.slane %v1764, 1
      %v1767 = vshll.u32 %v1418, 16
      %v1769 = vrot.slane %v1767, 2
      %v1770 = vor.u32 %v1766, %v1769
      %v1772 = vshrl.u32 %v1419, 16
      %v1774 = vrot.slane %v1772, 1
      %v1775 = vshll.u32 %v1419, 16
      %v1777 = vrot.slane %v1775, 2
      %v1778 = vor.u32 %v1774, %v1777
      %v1779 = vsel %vm1762, %v1770, %v1778
      %v1781 = vshrl.u32 %v1420, 16
      %v1783 = vrot.slane %v1781, 1
      %v1784 = vshll.u32 %v1420, 16
      %v1786 = vrot.slane %v1784, 2
      %v1787 = vor.u32 %v1783, %v1786
      %v1788 = vsel %vm1762, %v1778, %v1787
      %v1790 = vshrl.u32 %v1421, 16
      %v1792 = vrot.slane %v1790, 1
      %v1793 = vshll.u32 %v1421, 16
      %v1795 = vrot.slane %v1793, 2
      %v1796 = vor.u32 %v1792, %v1795
      %v1797 = vsel %vm1762, %v1787, %v1796
      %v1799 = vshrl.u32 %v1422, 16
      %v1801 = vrot.slane %v1799, 1
      %v1802 = vshll.u32 %v1422, 16
      %v1804 = vrot.slane %v1802, 2
      %v1805 = vor.u32 %v1801, %v1804
      %v1806 = vsel %vm1762, %v1796, %v1805
      %v1808 = vshrl.u32 %v1423, 16
      %v1810 = vrot.slane %v1808, 1
      %v1811 = vshll.u32 %v1423, 16
      %v1813 = vrot.slane %v1811, 2
      %v1814 = vor.u32 %v1810, %v1813
      %v1815 = vsel %vm1762, %v1805, %v1814
      %v1817 = vshrl.u32 %v1424, 16
      %v1819 = vrot.slane %v1817, 1
      %v1820 = vshll.u32 %v1424, 16
      %v1822 = vrot.slane %v1820, 2
      %v1823 = vor.u32 %v1819, %v1822
      %v1824 = vsel %vm1762, %v1814, %v1823
      %v1826 = vshrl.u32 %v1425, 16
      %v1828 = vrot.slane %v1826, 1
      %v1829 = vshll.u32 %v1425, 16
      %v1831 = vrot.slane %v1829, 2
      %v1832 = vor.u32 %v1828, %v1831
      %v1833 = vsel %vm1762, %v1823, %v1832
      %v1835 = vshrl.u32 %v1426, 16
      %v1837 = vrot.slane %v1835, 1
      %v1838 = vshll.u32 %v1426, 16
      %v1840 = vrot.slane %v1838, 2
      %v1841 = vor.u32 %v1837, %v1840
      %v1842 = vsel %vm1762, %v1832, %v1841
      %v1844 = vshrl.u32 %v1427, 16
      %v1846 = vrot.slane %v1844, 1
      %v1847 = vshll.u32 %v1427, 16
      %v1849 = vrot.slane %v1847, 2
      %v1850 = vor.u32 %v1846, %v1849
      %v1851 = vsel %vm1762, %v1841, %v1850
      %v1853 = vshrl.u32 %v1428, 16
      %v1855 = vrot.slane %v1853, 1
      %v1856 = vshll.u32 %v1428, 16
      %v1858 = vrot.slane %v1856, 2
      %v1859 = vor.u32 %v1855, %v1858
      %v1860 = vsel %vm1762, %v1850, %v1859
      %v1862 = vshrl.u32 %v1429, 16
      %v1864 = vrot.slane %v1862, 1
      %v1865 = vshll.u32 %v1429, 16
      %v1867 = vrot.slane %v1865, 2
      %v1868 = vor.u32 %v1864, %v1867
      %v1869 = vsel %vm1762, %v1859, %v1868
      %v1871 = vshrl.u32 %v1430, 16
      %v1873 = vrot.slane %v1871, 1
      %v1874 = vshll.u32 %v1430, 16
      %v1876 = vrot.slane %v1874, 2
      %v1877 = vor.u32 %v1873, %v1876
      %v1878 = vsel %vm1762, %v1868, %v1877
      %v1880 = vshrl.u32 %v1431, 16
      %v1882 = vrot.slane %v1880, 1
      %v1883 = vshll.u32 %v1431, 16
      %v1885 = vrot.slane %v1883, 2
      %v1886 = vor.u32 %v1882, %v1885
      %v1887 = vsel %vm1762, %v1877, %v1886
      %v1889 = vshrl.u32 %v1432, 16
      %v1891 = vrot.slane %v1889, 1
      %v1892 = vshll.u32 %v1432, 16
      %v1894 = vrot.slane %v1892, 2
      %v1895 = vor.u32 %v1891, %v1894
      %v1896 = vsel %vm1762, %v1886, %v1895
      %v1898 = vshrl.u32 %v1433, 16
      %v1900 = vrot.slane %v1898, 1
      %v1901 = vshll.u32 %v1433, 16
      %v1903 = vrot.slane %v1901, 2
      %v1904 = vor.u32 %v1900, %v1903
      %v1905 = vsel %vm1762, %v1895, %v1904
      %v1907 = vshrl.u32 %v1434, 16
      %v1909 = vrot.slane %v1907, 1
      %v1910 = vshll.u32 %v1434, 16
      %v1912 = vrot.slane %v1910, 2
      %v1913 = vor.u32 %v1909, %v1912
      %v1914 = vsel %vm1762, %v1904, %v1913
      %v1916 = vshrl.u32 %v1435, 16
      %v1918 = vrot.slane %v1916, 1
      %v1919 = vshll.u32 %v1435, 16
      %v1921 = vrot.slane %v1919, 2
      %v1922 = vor.u32 %v1918, %v1921
      %v1923 = vsel %vm1762, %v1913, %v1922
      %v1925 = vshrl.u32 %v1761, 16
      %v1927 = vrot.slane %v1925, 1
      %v1928 = vshll.u32 %v1761, 16
      %v1930 = vrot.slane %v1928, 2
      %v1931 = vor.u32 %v1927, %v1930
      %v1932 = vsel %vm1762, %v1922, %v1931
      %v1937 = vunpack.c.l.b16 %v1755
      %v1938 = vunpack.c.l.b16 %v1756
      %v1939 = vunpack.c.l.b16 %v1757
      %v1940 = vunpack.c.l.b16 %v1758
      %v1941 = vpack.c.b16 %v1938, %v1937
      %v1942 = vpack.c.b16 %v1940, %v1939
      %v1946 = vsel %vm519, %v1779, 0
      %v1949 = vsel %vm519, %v1788, 0
      %v1952 = vsel %vm519, %v1797, 0
      %v1955 = vsel %vm519, %v1806, 0
      %v1958 = vsel %vm519, %v1815, 0
      %v1961 = vsel %vm519, %v1824, 0
      %v1964 = vsel %vm519, %v1833, 0
      %v1967 = vsel %vm519, %v1842, 0
      %v1970 = vsel %vm519, %v1851, 0
      %v1973 = vsel %vm519, %v1860, 0
      %v1976 = vsel %vm519, %v1869, 0
      %v1979 = vsel %vm519, %v1878, 0
      %v1982 = vsel %vm519, %v1887, 0
      %v1985 = vsel %vm519, %v1896, 0
      %v1988 = vsel %vm519, %v1905, 0
      %v1991 = vsel %vm519, %v1914, 0
      %v1994 = vsel %vm519, %v1923, 0
      %v1997 = vsel %vm519, %v1932, 0
      %1999 = vmatprep.subr.bf16.mxu0 0
      %2000 = vmatpush1.bf16.msra.mxu0 0
      %2001 = vmatprep.subr.bf16.mxu0 0
      %2002 = vmatpush1.bf16.msra.mxu0 0
      %2003 = vmatprep.subr.bf16.mxu0 0
      %2004 = vmatpush1.bf16.msra.mxu0 0
      %2005 = vmatprep.subr.bf16.mxu0 0
      %2006 = vmatpush1.bf16.msra.mxu0 0
      %2007 = vmatprep.subr.bf16.mxu0 0
      %2008 = vmatpush1.bf16.msra.mxu0 0
      %2009 = vmatprep.subr.bf16.mxu0 0
      %2010 = vmatpush1.bf16.msra.mxu0 0
      %2011 = vmatprep.subr.bf16.mxu0 0
      %2012 = vmatpush1.bf16.msra.mxu0 %v1942
      %2013 = vmatprep.subr.bf16.mxu0 0
      %2014 = vmatpush1.bf16.msra.mxu0 %v1941
      %2015 = vmatprep.subr.bf16.mxu0 0
      %2016 = vmatpush2.bf16.msra.mxu0 0
      %2017 = vmatprep.subr.bf16.mxu0 0
      %2018 = vmatpush2.bf16.msra.mxu0 0
      %2019 = vmatprep.subr.bf16.mxu0 0
      %2020 = vmatpush2.bf16.msra.mxu0 0
      %2021 = vmatprep.subr.bf16.mxu0 0
      %2022 = vmatpush2.bf16.msra.mxu0 0
      %2023 = vmatprep.subr.bf16.mxu0 0
      %2024 = vmatpush2.bf16.msra.mxu0 0
      %2025 = vmatprep.subr.bf16.mxu0 0
      %2026 = vmatpush2.bf16.msra.mxu0 0
      %2027 = vmatprep.subr.bf16.mxu0 0
      %2028 = vmatpush2.bf16.msra.mxu0 0
      %2029 = vmatprep.subr.bf16.mxu0 0
      %2030 = vmatpush2.bf16.msra.mxu0 0
      %2031 = vmatprep.mubr.bf16.mxu0 0
      %2032 = vmatmul.mubr.bf16.gmra.mxu0 %v1946
      %v2033 = vpop.f32.mrf.mxu0
      %v2034 = vadd.f32 0.0, %v2033
      %v2035 = vpop.f32.mrf.mxu0
      %v2036 = vpop.f32.mrf.mxu0
      %v2037 = vadd.f32 0.0, %v2036
      %v2038 = vpop.f32.mrf.mxu0
      %2039 = vmatprep.mubr.bf16.mxu0 0
      %2040 = vmatmul.mubr.bf16.gmra.mxu0 %v1949
      %v2041 = vpop.f32.mrf.mxu0
      %v2042 = vadd.f32 0.0, %v2041
      %v2043 = vpop.f32.mrf.mxu0
      %v2044 = vpop.f32.mrf.mxu0
      %v2045 = vadd.f32 0.0, %v2044
      %v2046 = vpop.f32.mrf.mxu0
      %2047 = vmatprep.mubr.bf16.mxu0 0
      %2048 = vmatmul.mubr.bf16.gmra.mxu0 %v1952
      %v2049 = vpop.f32.mrf.mxu0
      %v2050 = vadd.f32 0.0, %v2049
      %v2051 = vpop.f32.mrf.mxu0
      %v2052 = vpop.f32.mrf.mxu0
      %v2053 = vadd.f32 0.0, %v2052
      %v2054 = vpop.f32.mrf.mxu0
      %2055 = vmatprep.mubr.bf16.mxu0 0
      %2056 = vmatmul.mubr.bf16.gmra.mxu0 %v1955
      %v2057 = vpop.f32.mrf.mxu0
      %v2058 = vadd.f32 0.0, %v2057
      %v2059 = vpop.f32.mrf.mxu0
      %v2060 = vpop.f32.mrf.mxu0
      %v2061 = vadd.f32 0.0, %v2060
      %v2062 = vpop.f32.mrf.mxu0
      %2063 = vmatprep.mubr.bf16.mxu0 0
      %2064 = vmatmul.mubr.bf16.gmra.mxu0 %v1958
      %v2065 = vpop.f32.mrf.mxu0
      %v2066 = vadd.f32 0.0, %v2065
      %v2067 = vpop.f32.mrf.mxu0
      %v2068 = vpop.f32.mrf.mxu0
      %v2069 = vadd.f32 0.0, %v2068
      %v2070 = vpop.f32.mrf.mxu0
      %2071 = vmatprep.mubr.bf16.mxu0 0
      %2072 = vmatmul.mubr.bf16.gmra.mxu0 %v1961
      %v2073 = vpop.f32.mrf.mxu0
      %v2074 = vadd.f32 0.0, %v2073
      %v2075 = vpop.f32.mrf.mxu0
      %v2076 = vpop.f32.mrf.mxu0
      %v2077 = vadd.f32 0.0, %v2076
      %v2078 = vpop.f32.mrf.mxu0
      %2079 = vmatprep.mubr.bf16.mxu0 0
      %2080 = vmatmul.mubr.bf16.gmra.mxu0 %v1964
      %v2081 = vpop.f32.mrf.mxu0
      %v2082 = vadd.f32 0.0, %v2081
      %v2083 = vpop.f32.mrf.mxu0
      %v2084 = vpop.f32.mrf.mxu0
      %v2085 = vadd.f32 0.0, %v2084
      %v2086 = vpop.f32.mrf.mxu0
      %2087 = vmatprep.mubr.bf16.mxu0 0
      %2088 = vmatmul.mubr.bf16.gmra.mxu0 %v1967
      %v2089 = vpop.f32.mrf.mxu0
      %v2090 = vadd.f32 0.0, %v2089
      %v2091 = vpop.f32.mrf.mxu0
      %v2092 = vpop.f32.mrf.mxu0
      %v2093 = vadd.f32 0.0, %v2092
      %v2094 = vpop.f32.mrf.mxu0
      %2095 = vmatprep.mubr.bf16.mxu0 0
      %2096 = vmatmul.mubr.bf16.gmra.mxu0 %v1970
      %v2097 = vpop.f32.mrf.mxu0
      %v2098 = vadd.f32 0.0, %v2097
      %v2099 = vpop.f32.mrf.mxu0
      %v2100 = vpop.f32.mrf.mxu0
      %v2101 = vadd.f32 0.0, %v2100
      %v2102 = vpop.f32.mrf.mxu0
      %2103 = vmatprep.mubr.bf16.mxu0 0
      %2104 = vmatmul.mubr.bf16.gmra.mxu0 %v1973
      %v2105 = vpop.f32.mrf.mxu0
      %v2106 = vadd.f32 0.0, %v2105
      %v2107 = vpop.f32.mrf.mxu0
      %v2108 = vpop.f32.mrf.mxu0
      %v2109 = vadd.f32 0.0, %v2108
      %v2110 = vpop.f32.mrf.mxu0
      %2111 = vmatprep.mubr.bf16.mxu0 0
      %2112 = vmatmul.mubr.bf16.gmra.mxu0 %v1976
      %v2113 = vpop.f32.mrf.mxu0
      %v2114 = vadd.f32 0.0, %v2113
      %v2115 = vpop.f32.mrf.mxu0
      %v2116 = vpop.f32.mrf.mxu0
      %v2117 = vadd.f32 0.0, %v2116
      %v2118 = vpop.f32.mrf.mxu0
      %2119 = vmatprep.mubr.bf16.mxu0 0
      %2120 = vmatmul.mubr.bf16.gmra.mxu0 %v1979
      %v2121 = vpop.f32.mrf.mxu0
      %v2122 = vadd.f32 0.0, %v2121
      %v2123 = vpop.f32.mrf.mxu0
      %v2124 = vpop.f32.mrf.mxu0
      %v2125 = vadd.f32 0.0, %v2124
      %v2126 = vpop.f32.mrf.mxu0
      %2127 = vmatprep.mubr.bf16.mxu0 0
      %2128 = vmatmul.mubr.bf16.gmra.mxu0 %v1982
      %v2129 = vpop.f32.mrf.mxu0
      %v2130 = vadd.f32 0.0, %v2129
      %v2131 = vpop.f32.mrf.mxu0
      %v2132 = vpop.f32.mrf.mxu0
      %v2133 = vadd.f32 0.0, %v2132
      %v2134 = vpop.f32.mrf.mxu0
      %2135 = vmatprep.mubr.bf16.mxu0 0
      %2136 = vmatmul.mubr.bf16.gmra.mxu0 %v1985
      %v2137 = vpop.f32.mrf.mxu0
      %v2138 = vadd.f32 0.0, %v2137
      %v2139 = vpop.f32.mrf.mxu0
      %v2140 = vpop.f32.mrf.mxu0
      %v2141 = vadd.f32 0.0, %v2140
      %v2142 = vpop.f32.mrf.mxu0
      %2143 = vmatprep.mubr.bf16.mxu0 0
      %2144 = vmatmul.mubr.bf16.gmra.mxu0 %v1988
      %v2145 = vpop.f32.mrf.mxu0
      %v2146 = vadd.f32 0.0, %v2145
      %v2147 = vpop.f32.mrf.mxu0
      %v2148 = vpop.f32.mrf.mxu0
      %v2149 = vadd.f32 0.0, %v2148
      %v2150 = vpop.f32.mrf.mxu0
      %2151 = vmatprep.mubr.bf16.mxu0 0
      %2152 = vmatmul.mubr.bf16.gmra.mxu0 %v1991
      %v2153 = vpop.f32.mrf.mxu0
      %v2154 = vadd.f32 0.0, %v2153
      %v2155 = vpop.f32.mrf.mxu0
      %v2156 = vpop.f32.mrf.mxu0
      %v2157 = vadd.f32 0.0, %v2156
      %v2158 = vpop.f32.mrf.mxu0
      %2159 = vmatprep.mubr.bf16.mxu0 0
      %2160 = vmatmul.mubr.bf16.gmra.mxu0 %v1994
      %v2161 = vpop.f32.mrf.mxu0
      %v2162 = vadd.f32 0.0, %v2161
      %v2163 = vpop.f32.mrf.mxu0
      %v2164 = vpop.f32.mrf.mxu0
      %v2165 = vadd.f32 0.0, %v2164
      %v2166 = vpop.f32.mrf.mxu0
      %2167 = vmatprep.mubr.bf16.mxu0 0
      %2168 = vmatmul.mubr.bf16.gmra.mxu0 %v1997
      %v2169 = vpop.f32.mrf.mxu0
      %v2170 = vadd.f32 0.0, %v2169
      %v2171 = vpop.f32.mrf.mxu0
      %v2172 = vpop.f32.mrf.mxu0
      %v2173 = vadd.f32 0.0, %v2172
      %v2174 = vpop.f32.mrf.mxu0
      %2175 = vdwg.mxu0
      %v2176 = vadd.f32 %v1717, %v2034
      %v2177 = vadd.f32 %v1718, %v2037
      %v2178 = vadd.f32 %v1719, %v2042
      %v2179 = vadd.f32 %v1720, %v2045
      %v2180 = vadd.f32 %v1721, %v2050
      %v2181 = vadd.f32 %v1722, %v2053
      %v2182 = vadd.f32 %v1723, %v2058
      %v2183 = vadd.f32 %v1724, %v2061
      %v2184 = vadd.f32 %v1725, %v2066
      %v2185 = vadd.f32 %v1726, %v2069
      %v2186 = vadd.f32 %v1727, %v2074
      %v2187 = vadd.f32 %v1728, %v2077
      %v2188 = vadd.f32 %v1729, %v2082
      %v2189 = vadd.f32 %v1730, %v2085
      %v2190 = vadd.f32 %v1731, %v2090
      %v2191 = vadd.f32 %v1732, %v2093
      %v2192 = vadd.f32 %v1733, %v2098
      %v2193 = vadd.f32 %v1734, %v2101
      %v2194 = vadd.f32 %v1735, %v2106
      %v2195 = vadd.f32 %v1736, %v2109
      %v2196 = vadd.f32 %v1737, %v2114
      %v2197 = vadd.f32 %v1738, %v2117
      %v2198 = vadd.f32 %v1739, %v2122
      %v2199 = vadd.f32 %v1740, %v2125
      %v2200 = vadd.f32 %v1741, %v2130
      %v2201 = vadd.f32 %v1742, %v2133
      %v2202 = vadd.f32 %v1743, %v2138
      %v2203 = vadd.f32 %v1744, %v2141
      %v2204 = vadd.f32 %v1745, %v2146
      %v2205 = vadd.f32 %v1746, %v2149
      %v2206 = vadd.f32 %v1747, %v2154
      %v2207 = vadd.f32 %v1748, %v2157
      %v2208 = vadd.f32 %v1749, %v2162
      %v2209 = vadd.f32 %v1750, %v2165
      %v2210 = vadd.f32 %v1751, %v2170
      %v2211 = vadd.f32 %v1752, %v2173
      %v2212 = vld [vmem:[%s207 + $0x8] sm:$0xc]
      %s2213 = scalar_lea.vmem %s1, 80
      %v2214 = vld [vmem:[%s2213] sm:$0xf]
      %v2215 = vld [vmem:[%s2213 + $0x4] sm:$0xf]
      %v2216 = vld [vmem:[%s2213 + $0x8] sm:$0xf]
      %v2217 = vld [vmem:[%s2213 + $0xc] sm:$0xf]
      %v2219 = vunpack.c.l.b16 %v2212
      %v2220 = vpack.c.b16 %v1382, %v2219
      %vm2221 = vcmask 1045504
      %v2222 = vrot.slane %v2220, 2
      %v2223 = vrot.slane %v1419, 2
      %v2224 = vsel %vm2221, %v2222, %v2223
      %v2225 = vrot.slane %v1420, 2
      %v2226 = vsel %vm2221, %v2223, %v2225
      %v2227 = vrot.slane %v1421, 2
      %v2228 = vsel %vm2221, %v2225, %v2227
      %v2229 = vrot.slane %v1422, 2
      %v2230 = vsel %vm2221, %v2227, %v2229
      %v2231 = vrot.slane %v1423, 2
      %v2232 = vsel %vm2221, %v2229, %v2231
      %v2233 = vrot.slane %v1424, 2
      %v2234 = vsel %vm2221, %v2231, %v2233
      %v2235 = vrot.slane %v1425, 2
      %v2236 = vsel %vm2221, %v2233, %v2235
      %v2237 = vrot.slane %v1426, 2
      %v2238 = vsel %vm2221, %v2235, %v2237
      %v2239 = vrot.slane %v1427, 2
      %v2240 = vsel %vm2221, %v2237, %v2239
      %v2241 = vrot.slane %v1428, 2
      %v2242 = vsel %vm2221, %v2239, %v2241
      %v2243 = vrot.slane %v1429, 2
      %v2244 = vsel %vm2221, %v2241, %v2243
      %v2245 = vrot.slane %v1430, 2
      %v2246 = vsel %vm2221, %v2243, %v2245
      %v2247 = vrot.slane %v1431, 2
      %v2248 = vsel %vm2221, %v2245, %v2247
      %v2249 = vrot.slane %v1432, 2
      %v2250 = vsel %vm2221, %v2247, %v2249
      %v2251 = vrot.slane %v1433, 2
      %v2252 = vsel %vm2221, %v2249, %v2251
      %v2253 = vrot.slane %v1434, 2
      %v2254 = vsel %vm2221, %v2251, %v2253
      %v2255 = vrot.slane %v1435, 2
      %v2256 = vsel %vm2221, %v2253, %v2255
      %v2257 = vrot.slane %v1761, 2
      %v2258 = vsel %vm2221, %v2255, %v2257
      %v2263 = vunpack.c.l.b16 %v2214
      %v2264 = vunpack.c.l.b16 %v2215
      %v2265 = vunpack.c.l.b16 %v2216
      %v2266 = vunpack.c.l.b16 %v2217
      %v2267 = vpack.c.b16 %v2264, %v2263
      %v2268 = vpack.c.b16 %v2266, %v2265
      %v2272 = vsel %vm519, %v2224, 0
      %v2275 = vsel %vm519, %v2226, 0
      %v2278 = vsel %vm519, %v2228, 0
      %v2281 = vsel %vm519, %v2230, 0
      %v2284 = vsel %vm519, %v2232, 0
      %v2287 = vsel %vm519, %v2234, 0
      %v2290 = vsel %vm519, %v2236, 0
      %v2293 = vsel %vm519, %v2238, 0
      %v2296 = vsel %vm519, %v2240, 0
      %v2299 = vsel %vm519, %v2242, 0
      %v2302 = vsel %vm519, %v2244, 0
      %v2305 = vsel %vm519, %v2246, 0
      %v2308 = vsel %vm519, %v2248, 0
      %v2311 = vsel %vm519, %v2250, 0
      %v2314 = vsel %vm519, %v2252, 0
      %v2317 = vsel %vm519, %v2254, 0
      %v2320 = vsel %vm519, %v2256, 0
      %v2323 = vsel %vm519, %v2258, 0
      %2325 = vmatprep.subr.bf16.mxu0 0
      %2326 = vmatpush1.bf16.msra.mxu0 0
      %2327 = vmatprep.subr.bf16.mxu0 0
      %2328 = vmatpush1.bf16.msra.mxu0 0
      %2329 = vmatprep.subr.bf16.mxu0 0
      %2330 = vmatpush1.bf16.msra.mxu0 0
      %2331 = vmatprep.subr.bf16.mxu0 0
      %2332 = vmatpush1.bf16.msra.mxu0 0
      %2333 = vmatprep.subr.bf16.mxu0 0
      %2334 = vmatpush1.bf16.msra.mxu0 0
      %2335 = vmatprep.subr.bf16.mxu0 0
      %2336 = vmatpush1.bf16.msra.mxu0 0
      %2337 = vmatprep.subr.bf16.mxu0 0
      %2338 = vmatpush1.bf16.msra.mxu0 %v2268
      %2339 = vmatprep.subr.bf16.mxu0 0
      %2340 = vmatpush1.bf16.msra.mxu0 %v2267
      %2341 = vmatprep.subr.bf16.mxu0 0
      %2342 = vmatpush2.bf16.msra.mxu0 0
      %2343 = vmatprep.subr.bf16.mxu0 0
      %2344 = vmatpush2.bf16.msra.mxu0 0
      %2345 = vmatprep.subr.bf16.mxu0 0
      %2346 = vmatpush2.bf16.msra.mxu0 0
      %2347 = vmatprep.subr.bf16.mxu0 0
      %2348 = vmatpush2.bf16.msra.mxu0 0
      %2349 = vmatprep.subr.bf16.mxu0 0
      %2350 = vmatpush2.bf16.msra.mxu0 0
      %2351 = vmatprep.subr.bf16.mxu0 0
      %2352 = vmatpush2.bf16.msra.mxu0 0
      %2353 = vmatprep.subr.bf16.mxu0 0
      %2354 = vmatpush2.bf16.msra.mxu0 0
      %2355 = vmatprep.subr.bf16.mxu0 0
      %2356 = vmatpush2.bf16.msra.mxu0 0
      %2357 = vmatprep.mubr.bf16.mxu0 0
      %2358 = vmatmul.mubr.bf16.gmra.mxu0 %v2272
      %v2359 = vpop.f32.mrf.mxu0
      %v2360 = vadd.f32 0.0, %v2359
      %v2361 = vpop.f32.mrf.mxu0
      %v2362 = vpop.f32.mrf.mxu0
      %v2363 = vadd.f32 0.0, %v2362
      %v2364 = vpop.f32.mrf.mxu0
      %2365 = vmatprep.mubr.bf16.mxu0 0
      %2366 = vmatmul.mubr.bf16.gmra.mxu0 %v2275
      %v2367 = vpop.f32.mrf.mxu0
      %v2368 = vadd.f32 0.0, %v2367
      %v2369 = vpop.f32.mrf.mxu0
      %v2370 = vpop.f32.mrf.mxu0
      %v2371 = vadd.f32 0.0, %v2370
      %v2372 = vpop.f32.mrf.mxu0
      %2373 = vmatprep.mubr.bf16.mxu0 0
      %2374 = vmatmul.mubr.bf16.gmra.mxu0 %v2278
      %v2375 = vpop.f32.mrf.mxu0
      %v2376 = vadd.f32 0.0, %v2375
      %v2377 = vpop.f32.mrf.mxu0
      %v2378 = vpop.f32.mrf.mxu0
      %v2379 = vadd.f32 0.0, %v2378
      %v2380 = vpop.f32.mrf.mxu0
      %2381 = vmatprep.mubr.bf16.mxu0 0
      %2382 = vmatmul.mubr.bf16.gmra.mxu0 %v2281
      %v2383 = vpop.f32.mrf.mxu0
      %v2384 = vadd.f32 0.0, %v2383
      %v2385 = vpop.f32.mrf.mxu0
      %v2386 = vpop.f32.mrf.mxu0
      %v2387 = vadd.f32 0.0, %v2386
      %v2388 = vpop.f32.mrf.mxu0
      %2389 = vmatprep.mubr.bf16.mxu0 0
      %2390 = vmatmul.mubr.bf16.gmra.mxu0 %v2284
      %v2391 = vpop.f32.mrf.mxu0
      %v2392 = vadd.f32 0.0, %v2391
      %v2393 = vpop.f32.mrf.mxu0
      %v2394 = vpop.f32.mrf.mxu0
      %v2395 = vadd.f32 0.0, %v2394
      %v2396 = vpop.f32.mrf.mxu0
      %2397 = vmatprep.mubr.bf16.mxu0 0
      %2398 = vmatmul.mubr.bf16.gmra.mxu0 %v2287
      %v2399 = vpop.f32.mrf.mxu0
      %v2400 = vadd.f32 0.0, %v2399
      %v2401 = vpop.f32.mrf.mxu0
      %v2402 = vpop.f32.mrf.mxu0
      %v2403 = vadd.f32 0.0, %v2402
      %v2404 = vpop.f32.mrf.mxu0
      %2405 = vmatprep.mubr.bf16.mxu0 0
      %2406 = vmatmul.mubr.bf16.gmra.mxu0 %v2290
      %v2407 = vpop.f32.mrf.mxu0
      %v2408 = vadd.f32 0.0, %v2407
      %v2409 = vpop.f32.mrf.mxu0
      %v2410 = vpop.f32.mrf.mxu0
      %v2411 = vadd.f32 0.0, %v2410
      %v2412 = vpop.f32.mrf.mxu0
      %2413 = vmatprep.mubr.bf16.mxu0 0
      %2414 = vmatmul.mubr.bf16.gmra.mxu0 %v2293
      %v2415 = vpop.f32.mrf.mxu0
      %v2416 = vadd.f32 0.0, %v2415
      %v2417 = vpop.f32.mrf.mxu0
      %v2418 = vpop.f32.mrf.mxu0
      %v2419 = vadd.f32 0.0, %v2418
      %v2420 = vpop.f32.mrf.mxu0
      %2421 = vmatprep.mubr.bf16.mxu0 0
      %2422 = vmatmul.mubr.bf16.gmra.mxu0 %v2296
      %v2423 = vpop.f32.mrf.mxu0
      %v2424 = vadd.f32 0.0, %v2423
      %v2425 = vpop.f32.mrf.mxu0
      %v2426 = vpop.f32.mrf.mxu0
      %v2427 = vadd.f32 0.0, %v2426
      %v2428 = vpop.f32.mrf.mxu0
      %2429 = vmatprep.mubr.bf16.mxu0 0
      %2430 = vmatmul.mubr.bf16.gmra.mxu0 %v2299
      %v2431 = vpop.f32.mrf.mxu0
      %v2432 = vadd.f32 0.0, %v2431
      %v2433 = vpop.f32.mrf.mxu0
      %v2434 = vpop.f32.mrf.mxu0
      %v2435 = vadd.f32 0.0, %v2434
      %v2436 = vpop.f32.mrf.mxu0
      %2437 = vmatprep.mubr.bf16.mxu0 0
      %2438 = vmatmul.mubr.bf16.gmra.mxu0 %v2302
      %v2439 = vpop.f32.mrf.mxu0
      %v2440 = vadd.f32 0.0, %v2439
      %v2441 = vpop.f32.mrf.mxu0
      %v2442 = vpop.f32.mrf.mxu0
      %v2443 = vadd.f32 0.0, %v2442
      %v2444 = vpop.f32.mrf.mxu0
      %2445 = vmatprep.mubr.bf16.mxu0 0
      %2446 = vmatmul.mubr.bf16.gmra.mxu0 %v2305
      %v2447 = vpop.f32.mrf.mxu0
      %v2448 = vadd.f32 0.0, %v2447
      %v2449 = vpop.f32.mrf.mxu0
      %v2450 = vpop.f32.mrf.mxu0
      %v2451 = vadd.f32 0.0, %v2450
      %v2452 = vpop.f32.mrf.mxu0
      %2453 = vmatprep.mubr.bf16.mxu0 0
      %2454 = vmatmul.mubr.bf16.gmra.mxu0 %v2308
      %v2455 = vpop.f32.mrf.mxu0
      %v2456 = vadd.f32 0.0, %v2455
      %v2457 = vpop.f32.mrf.mxu0
      %v2458 = vpop.f32.mrf.mxu0
      %v2459 = vadd.f32 0.0, %v2458
      %v2460 = vpop.f32.mrf.mxu0
      %2461 = vmatprep.mubr.bf16.mxu0 0
      %2462 = vmatmul.mubr.bf16.gmra.mxu0 %v2311
      %v2463 = vpop.f32.mrf.mxu0
      %v2464 = vadd.f32 0.0, %v2463
      %v2465 = vpop.f32.mrf.mxu0
      %v2466 = vpop.f32.mrf.mxu0
      %v2467 = vadd.f32 0.0, %v2466
      %v2468 = vpop.f32.mrf.mxu0
      %2469 = vmatprep.mubr.bf16.mxu0 0
      %2470 = vmatmul.mubr.bf16.gmra.mxu0 %v2314
      %v2471 = vpop.f32.mrf.mxu0
      %v2472 = vadd.f32 0.0, %v2471
      %v2473 = vpop.f32.mrf.mxu0
      %v2474 = vpop.f32.mrf.mxu0
      %v2475 = vadd.f32 0.0, %v2474
      %v2476 = vpop.f32.mrf.mxu0
      %2477 = vmatprep.mubr.bf16.mxu0 0
      %2478 = vmatmul.mubr.bf16.gmra.mxu0 %v2317
      %v2479 = vpop.f32.mrf.mxu0
      %v2480 = vadd.f32 0.0, %v2479
      %v2481 = vpop.f32.mrf.mxu0
      %v2482 = vpop.f32.mrf.mxu0
      %v2483 = vadd.f32 0.0, %v2482
      %v2484 = vpop.f32.mrf.mxu0
      %2485 = vmatprep.mubr.bf16.mxu0 0
      %2486 = vmatmul.mubr.bf16.gmra.mxu0 %v2320
      %v2487 = vpop.f32.mrf.mxu0
      %v2488 = vadd.f32 0.0, %v2487
      %v2489 = vpop.f32.mrf.mxu0
      %v2490 = vpop.f32.mrf.mxu0
      %v2491 = vadd.f32 0.0, %v2490
      %v2492 = vpop.f32.mrf.mxu0
      %2493 = vmatprep.mubr.bf16.mxu0 0
      %2494 = vmatmul.mubr.bf16.gmra.mxu0 %v2323
      %v2495 = vpop.f32.mrf.mxu0
      %v2496 = vadd.f32 0.0, %v2495
      %v2497 = vpop.f32.mrf.mxu0
      %v2498 = vpop.f32.mrf.mxu0
      %v2499 = vadd.f32 0.0, %v2498
      %v2500 = vpop.f32.mrf.mxu0
      %2501 = vdwg.mxu0
      %v2502 = vadd.f32 %v2176, %v2360
      %v2503 = vadd.f32 %v2177, %v2363
      %v2504 = vadd.f32 %v2178, %v2368
      %v2505 = vadd.f32 %v2179, %v2371
      %v2506 = vadd.f32 %v2180, %v2376
      %v2507 = vadd.f32 %v2181, %v2379
      %v2508 = vadd.f32 %v2182, %v2384
      %v2509 = vadd.f32 %v2183, %v2387
      %v2510 = vadd.f32 %v2184, %v2392
      %v2511 = vadd.f32 %v2185, %v2395
      %v2512 = vadd.f32 %v2186, %v2400
      %v2513 = vadd.f32 %v2187, %v2403
      %v2514 = vadd.f32 %v2188, %v2408
      %v2515 = vadd.f32 %v2189, %v2411
      %v2516 = vadd.f32 %v2190, %v2416
      %v2517 = vadd.f32 %v2191, %v2419
      %v2518 = vadd.f32 %v2192, %v2424
      %v2519 = vadd.f32 %v2193, %v2427
      %v2520 = vadd.f32 %v2194, %v2432
      %v2521 = vadd.f32 %v2195, %v2435
      %v2522 = vadd.f32 %v2196, %v2440
      %v2523 = vadd.f32 %v2197, %v2443
      %v2524 = vadd.f32 %v2198, %v2448
      %v2525 = vadd.f32 %v2199, %v2451
      %v2526 = vadd.f32 %v2200, %v2456
      %v2527 = vadd.f32 %v2201, %v2459
      %v2528 = vadd.f32 %v2202, %v2464
      %v2529 = vadd.f32 %v2203, %v2467
      %v2530 = vadd.f32 %v2204, %v2472
      %v2531 = vadd.f32 %v2205, %v2475
      %v2532 = vadd.f32 %v2206, %v2480
      %v2533 = vadd.f32 %v2207, %v2483
      %v2534 = vadd.f32 %v2208, %v2488
      %v2535 = vadd.f32 %v2209, %v2491
      %v2536 = vadd.f32 %v2210, %v2496
      %v2537 = vadd.f32 %v2211, %v2499
      %v2538 = vld [vmem:[%s207 + $0x10] sm:$0xc]
      %v2539 = vld [vmem:[%s207 + $0x14] sm:$0xf]
      %v2540 = vld [vmem:[%s207 + $0x18] sm:$0xf]
      %v2541 = vld [vmem:[%s207 + $0x1c] sm:$0xf]
      %v2542 = vld [vmem:[%s207 + $0x20] sm:$0xf]
      %v2543 = vld [vmem:[%s207 + $0x24] sm:$0xf]
      %v2544 = vld [vmem:[%s207 + $0x28] sm:$0xf]
      %v2545 = vld [vmem:[%s207 + $0x2c] sm:$0xf]
      %v2546 = vld [vmem:[%s207 + $0x30] sm:$0xf]
      %v2547 = vld [vmem:[%s207 + $0x34] sm:$0xf]
      %v2548 = vld [vmem:[%s207 + $0x38] sm:$0xf]
      %v2549 = vld [vmem:[%s207 + $0x3c] sm:$0xf]
      %v2550 = vld [vmem:[%s207 + $0x40] sm:$0xf]
      %v2551 = vld [vmem:[%s207 + $0x44] sm:$0xf]
      %v2552 = vld [vmem:[%s207 + $0x48] sm:$0xf]
      %v2553 = vld [vmem:[%s207 + $0x4c] sm:$0xf]
      %v2554 = vld [vmem:[%s207 + $0x50] sm:$0xf]
      %v2555 = vld [vmem:[%s207 + $0x54] sm:$0xf]
      %v2556 = vld [vmem:[%s207 + $0x58] sm:$0xf]
      %v2557 = vld [vmem:[%s207 + $0x5c] sm:$0xf]
      %v2558 = vld [vmem:[%s207 + $0x60] sm:$0xf]
      %v2559 = vld [vmem:[%s207 + $0x64] sm:$0xf]
      %v2560 = vld [vmem:[%s207 + $0x68] sm:$0xf]
      %v2561 = vld [vmem:[%s207 + $0x6c] sm:$0xf]
      %v2562 = vld [vmem:[%s207 + $0x70] sm:$0xf]
      %v2563 = vld [vmem:[%s207 + $0x74] sm:$0xf]
      %v2564 = vld [vmem:[%s207 + $0x78] sm:$0xf]
      %v2565 = vld [vmem:[%s207 + $0x7c] sm:$0xf]
      %v2566 = vld [vmem:[%s207 + $0x80] sm:$0xf]
      %v2567 = vld [vmem:[%s207 + $0x84] sm:$0xf]
      %v2568 = vld [vmem:[%s207 + $0x88] sm:$0xf]
      %v2569 = vld [vmem:[%s207 + $0x8c] sm:$0xf]
      %v2570 = vld [vmem:[%s207 + $0x90] sm:$0xf]
      %v2571 = vld [vmem:[%s207 + $0x94] sm:$0xf]
      %v2572 = vld [vmem:[%s207 + $0x98] sm:$0xf]
      %v2573 = vld [vmem:[%s207 + $0x9c] sm:$0xf]
      %v2574 = vld [vmem:[%s207 + $0xa0] sm:$0x3]
      %s2575 = scalar_lea.vmem %s1, 96
      %v2576 = vld [vmem:[%s2575] sm:$0xf]
      %v2577 = vld [vmem:[%s2575 + $0x4] sm:$0xf]
      %v2578 = vld [vmem:[%s2575 + $0x8] sm:$0xf]
      %v2579 = vld [vmem:[%s2575 + $0xc] sm:$0xf]
      %v2617 = vunpack.c.l.b16 %v2538
      %v2618 = vunpack.c.l.b16 %v2539
      %v2619 = vunpack.c.l.b16 %v2540
      %v2620 = vunpack.c.l.b16 %v2541
      %v2621 = vunpack.c.l.b16 %v2542
      %v2622 = vunpack.c.l.b16 %v2543
      %v2623 = vunpack.c.l.b16 %v2544
      %v2624 = vunpack.c.l.b16 %v2545
      %v2625 = vunpack.c.l.b16 %v2546
      %v2626 = vunpack.c.l.b16 %v2547
      %v2627 = vunpack.c.l.b16 %v2548
      %v2628 = vunpack.c.l.b16 %v2549
      %v2629 = vunpack.c.l.b16 %v2550
      %v2630 = vunpack.c.l.b16 %v2551
      %v2631 = vunpack.c.l.b16 %v2552
      %v2632 = vunpack.c.l.b16 %v2553
      %v2633 = vunpack.c.l.b16 %v2554
      %v2634 = vunpack.c.l.b16 %v2555
      %v2635 = vunpack.c.l.b16 %v2556
      %v2636 = vunpack.c.l.b16 %v2557
      %v2637 = vunpack.c.l.b16 %v2558
      %v2638 = vunpack.c.l.b16 %v2559
      %v2639 = vunpack.c.l.b16 %v2560
      %v2640 = vunpack.c.l.b16 %v2561
      %v2641 = vunpack.c.l.b16 %v2562
      %v2642 = vunpack.c.l.b16 %v2563
      %v2643 = vunpack.c.l.b16 %v2564
      %v2644 = vunpack.c.l.b16 %v2565
      %v2645 = vunpack.c.l.b16 %v2566
      %v2646 = vunpack.c.l.b16 %v2567
      %v2647 = vunpack.c.l.b16 %v2568
      %v2648 = vunpack.c.l.b16 %v2569
      %v2649 = vunpack.c.l.b16 %v2570
      %v2650 = vunpack.c.l.b16 %v2571
      %v2651 = vunpack.c.l.b16 %v2572
      %v2652 = vunpack.c.l.b16 %v2573
      %v2653 = vunpack.c.l.b16 %v2574
      %v2654 = vpack.c.b16 %v2618, %v2617
      %v2655 = vpack.c.b16 %v2620, %v2619
      %v2656 = vpack.c.b16 %v2622, %v2621
      %v2657 = vpack.c.b16 %v2624, %v2623
      %v2658 = vpack.c.b16 %v2626, %v2625
      %v2659 = vpack.c.b16 %v2628, %v2627
      %v2660 = vpack.c.b16 %v2630, %v2629
      %v2661 = vpack.c.b16 %v2632, %v2631
      %v2662 = vpack.c.b16 %v2634, %v2633
      %v2663 = vpack.c.b16 %v2636, %v2635
      %v2664 = vpack.c.b16 %v2638, %v2637
      %v2665 = vpack.c.b16 %v2640, %v2639
      %v2666 = vpack.c.b16 %v2642, %v2641
      %v2667 = vpack.c.b16 %v2644, %v2643
      %v2668 = vpack.c.b16 %v2646, %v2645
      %v2669 = vpack.c.b16 %v2648, %v2647
      %v2670 = vpack.c.b16 %v2650, %v2649
      %v2671 = vpack.c.b16 %v2652, %v2651
      %v2672 = vpack.c.b16 %v2653, %v2653
      %v2673 = vrot.slane %v2654, 2
      %v2674 = vrot.slane %v2655, 2
      %v2675 = vsel %vm2221, %v2673, %v2674
      %v2676 = vrot.slane %v2656, 2
      %v2677 = vsel %vm2221, %v2674, %v2676
      %v2678 = vrot.slane %v2657, 2
      %v2679 = vsel %vm2221, %v2676, %v2678
      %v2680 = vrot.slane %v2658, 2
      %v2681 = vsel %vm2221, %v2678, %v2680
      %v2682 = vrot.slane %v2659, 2
      %v2683 = vsel %vm2221, %v2680, %v2682
      %v2684 = vrot.slane %v2660, 2
      %v2685 = vsel %vm2221, %v2682, %v2684
      %v2686 = vrot.slane %v2661, 2
      %v2687 = vsel %vm2221, %v2684, %v2686
      %v2688 = vrot.slane %v2662, 2
      %v2689 = vsel %vm2221, %v2686, %v2688
      %v2690 = vrot.slane %v2663, 2
      %v2691 = vsel %vm2221, %v2688, %v2690
      %v2692 = vrot.slane %v2664, 2
      %v2693 = vsel %vm2221, %v2690, %v2692
      %v2694 = vrot.slane %v2665, 2
      %v2695 = vsel %vm2221, %v2692, %v2694
      %v2696 = vrot.slane %v2666, 2
      %v2697 = vsel %vm2221, %v2694, %v2696
      %v2698 = vrot.slane %v2667, 2
      %v2699 = vsel %vm2221, %v2696, %v2698
      %v2700 = vrot.slane %v2668, 2
      %v2701 = vsel %vm2221, %v2698, %v2700
      %v2702 = vrot.slane %v2669, 2
      %v2703 = vsel %vm2221, %v2700, %v2702
      %v2704 = vrot.slane %v2670, 2
      %v2705 = vsel %vm2221, %v2702, %v2704
      %v2706 = vrot.slane %v2671, 2
      %v2707 = vsel %vm2221, %v2704, %v2706
      %v2708 = vrot.slane %v2672, 2
      %v2709 = vsel %vm2221, %v2706, %v2708
      %v2714 = vunpack.c.l.b16 %v2576
      %v2715 = vunpack.c.l.b16 %v2577
      %v2716 = vunpack.c.l.b16 %v2578
      %v2717 = vunpack.c.l.b16 %v2579
      %v2718 = vpack.c.b16 %v2715, %v2714
      %v2719 = vpack.c.b16 %v2717, %v2716
      %v2723 = vsel %vm519, %v2675, 0
      %v2726 = vsel %vm519, %v2677, 0
      %v2729 = vsel %vm519, %v2679, 0
      %v2732 = vsel %vm519, %v2681, 0
      %v2735 = vsel %vm519, %v2683, 0
      %v2738 = vsel %vm519, %v2685, 0
      %v2741 = vsel %vm519, %v2687, 0
      %v2744 = vsel %vm519, %v2689, 0
      %v2747 = vsel %vm519, %v2691, 0
      %v2750 = vsel %vm519, %v2693, 0
      %v2753 = vsel %vm519, %v2695, 0
      %v2756 = vsel %vm519, %v2697, 0
      %v2759 = vsel %vm519, %v2699, 0
      %v2762 = vsel %vm519, %v2701, 0
      %v2765 = vsel %vm519, %v2703, 0
      %v2768 = vsel %vm519, %v2705, 0
      %v2771 = vsel %vm519, %v2707, 0
      %v2774 = vsel %vm519, %v2709, 0
      %2776 = vmatprep.subr.bf16.mxu0 0
      %2777 = vmatpush1.bf16.msra.mxu0 0
      %2778 = vmatprep.subr.bf16.mxu0 0
      %2779 = vmatpush1.bf16.msra.mxu0 0
      %2780 = vmatprep.subr.bf16.mxu0 0
      %2781 = vmatpush1.bf16.msra.mxu0 0
      %2782 = vmatprep.subr.bf16.mxu0 0
      %2783 = vmatpush1.bf16.msra.mxu0 0
      %2784 = vmatprep.subr.bf16.mxu0 0
      %2785 = vmatpush1.bf16.msra.mxu0 0
      %2786 = vmatprep.subr.bf16.mxu0 0
      %2787 = vmatpush1.bf16.msra.mxu0 0
      %2788 = vmatprep.subr.bf16.mxu0 0
      %2789 = vmatpush1.bf16.msra.mxu0 %v2719
      %2790 = vmatprep.subr.bf16.mxu0 0
      %2791 = vmatpush1.bf16.msra.mxu0 %v2718
      %2792 = vmatprep.subr.bf16.mxu0 0
      %2793 = vmatpush2.bf16.msra.mxu0 0
      %2794 = vmatprep.subr.bf16.mxu0 0
      %2795 = vmatpush2.bf16.msra.mxu0 0
      %2796 = vmatprep.subr.bf16.mxu0 0
      %2797 = vmatpush2.bf16.msra.mxu0 0
      %2798 = vmatprep.subr.bf16.mxu0 0
      %2799 = vmatpush2.bf16.msra.mxu0 0
      %2800 = vmatprep.subr.bf16.mxu0 0
      %2801 = vmatpush2.bf16.msra.mxu0 0
      %2802 = vmatprep.subr.bf16.mxu0 0
      %2803 = vmatpush2.bf16.msra.mxu0 0
      %2804 = vmatprep.subr.bf16.mxu0 0
      %2805 = vmatpush2.bf16.msra.mxu0 0
      %2806 = vmatprep.subr.bf16.mxu0 0
      %2807 = vmatpush2.bf16.msra.mxu0 0
      %2808 = vmatprep.mubr.bf16.mxu0 0
      %2809 = vmatmul.mubr.bf16.gmra.mxu0 %v2723
      %v2810 = vpop.f32.mrf.mxu0
      %v2811 = vadd.f32 0.0, %v2810
      %v2812 = vpop.f32.mrf.mxu0
      %v2813 = vpop.f32.mrf.mxu0
      %v2814 = vadd.f32 0.0, %v2813
      %v2815 = vpop.f32.mrf.mxu0
      %2816 = vmatprep.mubr.bf16.mxu0 0
      %2817 = vmatmul.mubr.bf16.gmra.mxu0 %v2726
      %v2818 = vpop.f32.mrf.mxu0
      %v2819 = vadd.f32 0.0, %v2818
      %v2820 = vpop.f32.mrf.mxu0
      %v2821 = vpop.f32.mrf.mxu0
      %v2822 = vadd.f32 0.0, %v2821
      %v2823 = vpop.f32.mrf.mxu0
      %2824 = vmatprep.mubr.bf16.mxu0 0
      %2825 = vmatmul.mubr.bf16.gmra.mxu0 %v2729
      %v2826 = vpop.f32.mrf.mxu0
      %v2827 = vadd.f32 0.0, %v2826
      %v2828 = vpop.f32.mrf.mxu0
      %v2829 = vpop.f32.mrf.mxu0
      %v2830 = vadd.f32 0.0, %v2829
      %v2831 = vpop.f32.mrf.mxu0
      %2832 = vmatprep.mubr.bf16.mxu0 0
      %2833 = vmatmul.mubr.bf16.gmra.mxu0 %v2732
      %v2834 = vpop.f32.mrf.mxu0
      %v2835 = vadd.f32 0.0, %v2834
      %v2836 = vpop.f32.mrf.mxu0
      %v2837 = vpop.f32.mrf.mxu0
      %v2838 = vadd.f32 0.0, %v2837
      %v2839 = vpop.f32.mrf.mxu0
      %2840 = vmatprep.mubr.bf16.mxu0 0
      %2841 = vmatmul.mubr.bf16.gmra.mxu0 %v2735
      %v2842 = vpop.f32.mrf.mxu0
      %v2843 = vadd.f32 0.0, %v2842
      %v2844 = vpop.f32.mrf.mxu0
      %v2845 = vpop.f32.mrf.mxu0
      %v2846 = vadd.f32 0.0, %v2845
      %v2847 = vpop.f32.mrf.mxu0
      %2848 = vmatprep.mubr.bf16.mxu0 0
      %2849 = vmatmul.mubr.bf16.gmra.mxu0 %v2738
      %v2850 = vpop.f32.mrf.mxu0
      %v2851 = vadd.f32 0.0, %v2850
      %v2852 = vpop.f32.mrf.mxu0
      %v2853 = vpop.f32.mrf.mxu0
      %v2854 = vadd.f32 0.0, %v2853
      %v2855 = vpop.f32.mrf.mxu0
      %2856 = vmatprep.mubr.bf16.mxu0 0
      %2857 = vmatmul.mubr.bf16.gmra.mxu0 %v2741
      %v2858 = vpop.f32.mrf.mxu0
      %v2859 = vadd.f32 0.0, %v2858
      %v2860 = vpop.f32.mrf.mxu0
      %v2861 = vpop.f32.mrf.mxu0
      %v2862 = vadd.f32 0.0, %v2861
      %v2863 = vpop.f32.mrf.mxu0
      %2864 = vmatprep.mubr.bf16.mxu0 0
      %2865 = vmatmul.mubr.bf16.gmra.mxu0 %v2744
      %v2866 = vpop.f32.mrf.mxu0
      %v2867 = vadd.f32 0.0, %v2866
      %v2868 = vpop.f32.mrf.mxu0
      %v2869 = vpop.f32.mrf.mxu0
      %v2870 = vadd.f32 0.0, %v2869
      %v2871 = vpop.f32.mrf.mxu0
      %2872 = vmatprep.mubr.bf16.mxu0 0
      %2873 = vmatmul.mubr.bf16.gmra.mxu0 %v2747
      %v2874 = vpop.f32.mrf.mxu0
      %v2875 = vadd.f32 0.0, %v2874
      %v2876 = vpop.f32.mrf.mxu0
      %v2877 = vpop.f32.mrf.mxu0
      %v2878 = vadd.f32 0.0, %v2877
      %v2879 = vpop.f32.mrf.mxu0
      %2880 = vmatprep.mubr.bf16.mxu0 0
      %2881 = vmatmul.mubr.bf16.gmra.mxu0 %v2750
      %v2882 = vpop.f32.mrf.mxu0
      %v2883 = vadd.f32 0.0, %v2882
      %v2884 = vpop.f32.mrf.mxu0
      %v2885 = vpop.f32.mrf.mxu0
      %v2886 = vadd.f32 0.0, %v2885
      %v2887 = vpop.f32.mrf.mxu0
      %2888 = vmatprep.mubr.bf16.mxu0 0
      %2889 = vmatmul.mubr.bf16.gmra.mxu0 %v2753
      %v2890 = vpop.f32.mrf.mxu0
      %v2891 = vadd.f32 0.0, %v2890
      %v2892 = vpop.f32.mrf.mxu0
      %v2893 = vpop.f32.mrf.mxu0
      %v2894 = vadd.f32 0.0, %v2893
      %v2895 = vpop.f32.mrf.mxu0
      %2896 = vmatprep.mubr.bf16.mxu0 0
      %2897 = vmatmul.mubr.bf16.gmra.mxu0 %v2756
      %v2898 = vpop.f32.mrf.mxu0
      %v2899 = vadd.f32 0.0, %v2898
      %v2900 = vpop.f32.mrf.mxu0
      %v2901 = vpop.f32.mrf.mxu0
      %v2902 = vadd.f32 0.0, %v2901
      %v2903 = vpop.f32.mrf.mxu0
      %2904 = vmatprep.mubr.bf16.mxu0 0
      %2905 = vmatmul.mubr.bf16.gmra.mxu0 %v2759
      %v2906 = vpop.f32.mrf.mxu0
      %v2907 = vadd.f32 0.0, %v2906
      %v2908 = vpop.f32.mrf.mxu0
      %v2909 = vpop.f32.mrf.mxu0
      %v2910 = vadd.f32 0.0, %v2909
      %v2911 = vpop.f32.mrf.mxu0
      %2912 = vmatprep.mubr.bf16.mxu0 0
      %2913 = vmatmul.mubr.bf16.gmra.mxu0 %v2762
      %v2914 = vpop.f32.mrf.mxu0
      %v2915 = vadd.f32 0.0, %v2914
      %v2916 = vpop.f32.mrf.mxu0
      %v2917 = vpop.f32.mrf.mxu0
      %v2918 = vadd.f32 0.0, %v2917
      %v2919 = vpop.f32.mrf.mxu0
      %2920 = vmatprep.mubr.bf16.mxu0 0
      %2921 = vmatmul.mubr.bf16.gmra.mxu0 %v2765
      %v2922 = vpop.f32.mrf.mxu0
      %v2923 = vadd.f32 0.0, %v2922
      %v2924 = vpop.f32.mrf.mxu0
      %v2925 = vpop.f32.mrf.mxu0
      %v2926 = vadd.f32 0.0, %v2925
      %v2927 = vpop.f32.mrf.mxu0
      %2928 = vmatprep.mubr.bf16.mxu0 0
      %2929 = vmatmul.mubr.bf16.gmra.mxu0 %v2768
      %v2930 = vpop.f32.mrf.mxu0
      %v2931 = vadd.f32 0.0, %v2930
      %v2932 = vpop.f32.mrf.mxu0
      %v2933 = vpop.f32.mrf.mxu0
      %v2934 = vadd.f32 0.0, %v2933
      %v2935 = vpop.f32.mrf.mxu0
      %2936 = vmatprep.mubr.bf16.mxu0 0
      %2937 = vmatmul.mubr.bf16.gmra.mxu0 %v2771
      %v2938 = vpop.f32.mrf.mxu0
      %v2939 = vadd.f32 0.0, %v2938
      %v2940 = vpop.f32.mrf.mxu0
      %v2941 = vpop.f32.mrf.mxu0
      %v2942 = vadd.f32 0.0, %v2941
      %v2943 = vpop.f32.mrf.mxu0
      %2944 = vmatprep.mubr.bf16.mxu0 0
      %2945 = vmatmul.mubr.bf16.gmra.mxu0 %v2774
      %v2946 = vpop.f32.mrf.mxu0
      %v2947 = vadd.f32 0.0, %v2946
      %v2948 = vpop.f32.mrf.mxu0
      %v2949 = vpop.f32.mrf.mxu0
      %v2950 = vadd.f32 0.0, %v2949
      %v2951 = vpop.f32.mrf.mxu0
      %2952 = vdwg.mxu0
      %v2953 = vadd.f32 %v2502, %v2811
      %v2954 = vadd.f32 %v2503, %v2814
      %v2955 = vadd.f32 %v2504, %v2819
      %v2956 = vadd.f32 %v2505, %v2822
      %v2957 = vadd.f32 %v2506, %v2827
      %v2958 = vadd.f32 %v2507, %v2830
      %v2959 = vadd.f32 %v2508, %v2835
      %v2960 = vadd.f32 %v2509, %v2838
      %v2961 = vadd.f32 %v2510, %v2843
      %v2962 = vadd.f32 %v2511, %v2846
      %v2963 = vadd.f32 %v2512, %v2851
      %v2964 = vadd.f32 %v2513, %v2854
      %v2965 = vadd.f32 %v2514, %v2859
      %v2966 = vadd.f32 %v2515, %v2862
      %v2967 = vadd.f32 %v2516, %v2867
      %v2968 = vadd.f32 %v2517, %v2870
      %v2969 = vadd.f32 %v2518, %v2875
      %v2970 = vadd.f32 %v2519, %v2878
      %v2971 = vadd.f32 %v2520, %v2883
      %v2972 = vadd.f32 %v2521, %v2886
      %v2973 = vadd.f32 %v2522, %v2891
      %v2974 = vadd.f32 %v2523, %v2894
      %v2975 = vadd.f32 %v2524, %v2899
      %v2976 = vadd.f32 %v2525, %v2902
      %v2977 = vadd.f32 %v2526, %v2907
      %v2978 = vadd.f32 %v2527, %v2910
      %v2979 = vadd.f32 %v2528, %v2915
      %v2980 = vadd.f32 %v2529, %v2918
      %v2981 = vadd.f32 %v2530, %v2923
      %v2982 = vadd.f32 %v2531, %v2926
      %v2983 = vadd.f32 %v2532, %v2931
      %v2984 = vadd.f32 %v2533, %v2934
      %v2985 = vadd.f32 %v2534, %v2939
      %v2986 = vadd.f32 %v2535, %v2942
      %v2987 = vadd.f32 %v2536, %v2947
      %v2988 = vadd.f32 %v2537, %v2950
      %v2989 = vld [vmem:[%s207 + $0xa0] sm:$0x7]
      %s2990 = scalar_lea.vmem %s1, 112
      %v2991 = vld [vmem:[%s2990] sm:$0xf]
      %v2992 = vld [vmem:[%s2990 + $0x4] sm:$0xf]
      %v2993 = vld [vmem:[%s2990 + $0x8] sm:$0xf]
      %v2994 = vld [vmem:[%s2990 + $0xc] sm:$0xf]
      %v2996 = vunpack.c.l.b16 %v2989
      %v2997 = vpack.c.b16 %v2996, %v2996
      %vm2998 = vsmask.f32 5376
      %v3000 = vshrl.u32 %v2654, 16
      %v3002 = vrot.slane %v3000, 2
      %v3003 = vshll.u32 %v2654, 16
      %v3005 = vrot.slane %v3003, 3
      %v3006 = vor.u32 %v3002, %v3005
      %v3008 = vshrl.u32 %v2655, 16
      %v3010 = vrot.slane %v3008, 2
      %v3011 = vshll.u32 %v2655, 16
      %v3013 = vrot.slane %v3011, 3
      %v3014 = vor.u32 %v3010, %v3013
      %v3015 = vsel %vm2998, %v3006, %v3014
      %v3017 = vshrl.u32 %v2656, 16
      %v3019 = vrot.slane %v3017, 2
      %v3020 = vshll.u32 %v2656, 16
      %v3022 = vrot.slane %v3020, 3
      %v3023 = vor.u32 %v3019, %v3022
      %v3024 = vsel %vm2998, %v3014, %v3023
      %v3026 = vshrl.u32 %v2657, 16
      %v3028 = vrot.slane %v3026, 2
      %v3029 = vshll.u32 %v2657, 16
      %v3031 = vrot.slane %v3029, 3
      %v3032 = vor.u32 %v3028, %v3031
      %v3033 = vsel %vm2998, %v3023, %v3032
      %v3035 = vshrl.u32 %v2658, 16
      %v3037 = vrot.slane %v3035, 2
      %v3038 = vshll.u32 %v2658, 16
      %v3040 = vrot.slane %v3038, 3
      %v3041 = vor.u32 %v3037, %v3040
      %v3042 = vsel %vm2998, %v3032, %v3041
      %v3044 = vshrl.u32 %v2659, 16
      %v3046 = vrot.slane %v3044, 2
      %v3047 = vshll.u32 %v2659, 16
      %v3049 = vrot.slane %v3047, 3
      %v3050 = vor.u32 %v3046, %v3049
      %v3051 = vsel %vm2998, %v3041, %v3050
      %v3053 = vshrl.u32 %v2660, 16
      %v3055 = vrot.slane %v3053, 2
      %v3056 = vshll.u32 %v2660, 16
      %v3058 = vrot.slane %v3056, 3
      %v3059 = vor.u32 %v3055, %v3058
      %v3060 = vsel %vm2998, %v3050, %v3059
      %v3062 = vshrl.u32 %v2661, 16
      %v3064 = vrot.slane %v3062, 2
      %v3065 = vshll.u32 %v2661, 16
      %v3067 = vrot.slane %v3065, 3
      %v3068 = vor.u32 %v3064, %v3067
      %v3069 = vsel %vm2998, %v3059, %v3068
      %v3071 = vshrl.u32 %v2662, 16
      %v3073 = vrot.slane %v3071, 2
      %v3074 = vshll.u32 %v2662, 16
      %v3076 = vrot.slane %v3074, 3
      %v3077 = vor.u32 %v3073, %v3076
      %v3078 = vsel %vm2998, %v3068, %v3077
      %v3080 = vshrl.u32 %v2663, 16
      %v3082 = vrot.slane %v3080, 2
      %v3083 = vshll.u32 %v2663, 16
      %v3085 = vrot.slane %v3083, 3
      %v3086 = vor.u32 %v3082, %v3085
      %v3087 = vsel %vm2998, %v3077, %v3086
      %v3089 = vshrl.u32 %v2664, 16
      %v3091 = vrot.slane %v3089, 2
      %v3092 = vshll.u32 %v2664, 16
      %v3094 = vrot.slane %v3092, 3
      %v3095 = vor.u32 %v3091, %v3094
      %v3096 = vsel %vm2998, %v3086, %v3095
      %v3098 = vshrl.u32 %v2665, 16
      %v3100 = vrot.slane %v3098, 2
      %v3101 = vshll.u32 %v2665, 16
      %v3103 = vrot.slane %v3101, 3
      %v3104 = vor.u32 %v3100, %v3103
      %v3105 = vsel %vm2998, %v3095, %v3104
      %v3107 = vshrl.u32 %v2666, 16
      %v3109 = vrot.slane %v3107, 2
      %v3110 = vshll.u32 %v2666, 16
      %v3112 = vrot.slane %v3110, 3
      %v3113 = vor.u32 %v3109, %v3112
      %v3114 = vsel %vm2998, %v3104, %v3113
      %v3116 = vshrl.u32 %v2667, 16
      %v3118 = vrot.slane %v3116, 2
      %v3119 = vshll.u32 %v2667, 16
      %v3121 = vrot.slane %v3119, 3
      %v3122 = vor.u32 %v3118, %v3121
      %v3123 = vsel %vm2998, %v3113, %v3122
      %v3125 = vshrl.u32 %v2668, 16
      %v3127 = vrot.slane %v3125, 2
      %v3128 = vshll.u32 %v2668, 16
      %v3130 = vrot.slane %v3128, 3
      %v3131 = vor.u32 %v3127, %v3130
      %v3132 = vsel %vm2998, %v3122, %v3131
      %v3134 = vshrl.u32 %v2669, 16
      %v3136 = vrot.slane %v3134, 2
      %v3137 = vshll.u32 %v2669, 16
      %v3139 = vrot.slane %v3137, 3
      %v3140 = vor.u32 %v3136, %v3139
      %v3141 = vsel %vm2998, %v3131, %v3140
      %v3143 = vshrl.u32 %v2670, 16
      %v3145 = vrot.slane %v3143, 2
      %v3146 = vshll.u32 %v2670, 16
      %v3148 = vrot.slane %v3146, 3
      %v3149 = vor.u32 %v3145, %v3148
      %v3150 = vsel %vm2998, %v3140, %v3149
      %v3152 = vshrl.u32 %v2671, 16
      %v3154 = vrot.slane %v3152, 2
      %v3155 = vshll.u32 %v2671, 16
      %v3157 = vrot.slane %v3155, 3
      %v3158 = vor.u32 %v3154, %v3157
      %v3159 = vsel %vm2998, %v3149, %v3158
      %v3161 = vshrl.u32 %v2997, 16
      %v3163 = vrot.slane %v3161, 2
      %v3164 = vshll.u32 %v2997, 16
      %v3166 = vrot.slane %v3164, 3
      %v3167 = vor.u32 %v3163, %v3166
      %v3168 = vsel %vm2998, %v3158, %v3167
      %v3173 = vunpack.c.l.b16 %v2991
      %v3174 = vunpack.c.l.b16 %v2992
      %v3175 = vunpack.c.l.b16 %v2993
      %v3176 = vunpack.c.l.b16 %v2994
      %v3177 = vpack.c.b16 %v3174, %v3173
      %v3178 = vpack.c.b16 %v3176, %v3175
      %v3182 = vsel %vm519, %v3015, 0
      %v3185 = vsel %vm519, %v3024, 0
      %v3188 = vsel %vm519, %v3033, 0
      %v3191 = vsel %vm519, %v3042, 0
      %v3194 = vsel %vm519, %v3051, 0
      %v3197 = vsel %vm519, %v3060, 0
      %v3200 = vsel %vm519, %v3069, 0
      %v3203 = vsel %vm519, %v3078, 0
      %v3206 = vsel %vm519, %v3087, 0
      %v3209 = vsel %vm519, %v3096, 0
      %v3212 = vsel %vm519, %v3105, 0
      %v3215 = vsel %vm519, %v3114, 0
      %v3218 = vsel %vm519, %v3123, 0
      %v3221 = vsel %vm519, %v3132, 0
      %v3224 = vsel %vm519, %v3141, 0
      %v3227 = vsel %vm519, %v3150, 0
      %v3230 = vsel %vm519, %v3159, 0
      %v3233 = vsel %vm519, %v3168, 0
      %3235 = vmatprep.subr.bf16.mxu0 0
      %3236 = vmatpush1.bf16.msra.mxu0 0
      %3237 = vmatprep.subr.bf16.mxu0 0
      %3238 = vmatpush1.bf16.msra.mxu0 0
      %3239 = vmatprep.subr.bf16.mxu0 0
      %3240 = vmatpush1.bf16.msra.mxu0 0
      %3241 = vmatprep.subr.bf16.mxu0 0
      %3242 = vmatpush1.bf16.msra.mxu0 0
      %3243 = vmatprep.subr.bf16.mxu0 0
      %3244 = vmatpush1.bf16.msra.mxu0 0
      %3245 = vmatprep.subr.bf16.mxu0 0
      %3246 = vmatpush1.bf16.msra.mxu0 0
      %3247 = vmatprep.subr.bf16.mxu0 0
      %3248 = vmatpush1.bf16.msra.mxu0 %v3178
      %3249 = vmatprep.subr.bf16.mxu0 0
      %3250 = vmatpush1.bf16.msra.mxu0 %v3177
      %3251 = vmatprep.subr.bf16.mxu0 0
      %3252 = vmatpush2.bf16.msra.mxu0 0
      %3253 = vmatprep.subr.bf16.mxu0 0
      %3254 = vmatpush2.bf16.msra.mxu0 0
      %3255 = vmatprep.subr.bf16.mxu0 0
      %3256 = vmatpush2.bf16.msra.mxu0 0
      %3257 = vmatprep.subr.bf16.mxu0 0
      %3258 = vmatpush2.bf16.msra.mxu0 0
      %3259 = vmatprep.subr.bf16.mxu0 0
      %3260 = vmatpush2.bf16.msra.mxu0 0
      %3261 = vmatprep.subr.bf16.mxu0 0
      %3262 = vmatpush2.bf16.msra.mxu0 0
      %3263 = vmatprep.subr.bf16.mxu0 0
      %3264 = vmatpush2.bf16.msra.mxu0 0
      %3265 = vmatprep.subr.bf16.mxu0 0
      %3266 = vmatpush2.bf16.msra.mxu0 0
      %3267 = vmatprep.mubr.bf16.mxu0 0
      %3268 = vmatmul.mubr.bf16.gmra.mxu0 %v3182
      %v3269 = vpop.f32.mrf.mxu0
      %v3270 = vadd.f32 0.0, %v3269
      %v3271 = vpop.f32.mrf.mxu0
      %v3272 = vpop.f32.mrf.mxu0
      %v3273 = vadd.f32 0.0, %v3272
      %v3274 = vpop.f32.mrf.mxu0
      %3275 = vmatprep.mubr.bf16.mxu0 0
      %3276 = vmatmul.mubr.bf16.gmra.mxu0 %v3185
      %v3277 = vpop.f32.mrf.mxu0
      %v3278 = vadd.f32 0.0, %v3277
      %v3279 = vpop.f32.mrf.mxu0
      %v3280 = vpop.f32.mrf.mxu0
      %v3281 = vadd.f32 0.0, %v3280
      %v3282 = vpop.f32.mrf.mxu0
      %3283 = vmatprep.mubr.bf16.mxu0 0
      %3284 = vmatmul.mubr.bf16.gmra.mxu0 %v3188
      %v3285 = vpop.f32.mrf.mxu0
      %v3286 = vadd.f32 0.0, %v3285
      %v3287 = vpop.f32.mrf.mxu0
      %v3288 = vpop.f32.mrf.mxu0
      %v3289 = vadd.f32 0.0, %v3288
      %v3290 = vpop.f32.mrf.mxu0
      %3291 = vmatprep.mubr.bf16.mxu0 0
      %3292 = vmatmul.mubr.bf16.gmra.mxu0 %v3191
      %v3293 = vpop.f32.mrf.mxu0
      %v3294 = vadd.f32 0.0, %v3293
      %v3295 = vpop.f32.mrf.mxu0
      %v3296 = vpop.f32.mrf.mxu0
      %v3297 = vadd.f32 0.0, %v3296
      %v3298 = vpop.f32.mrf.mxu0
      %3299 = vmatprep.mubr.bf16.mxu0 0
      %3300 = vmatmul.mubr.bf16.gmra.mxu0 %v3194
      %v3301 = vpop.f32.mrf.mxu0
      %v3302 = vadd.f32 0.0, %v3301
      %v3303 = vpop.f32.mrf.mxu0
      %v3304 = vpop.f32.mrf.mxu0
      %v3305 = vadd.f32 0.0, %v3304
      %v3306 = vpop.f32.mrf.mxu0
      %3307 = vmatprep.mubr.bf16.mxu0 0
      %3308 = vmatmul.mubr.bf16.gmra.mxu0 %v3197
      %v3309 = vpop.f32.mrf.mxu0
      %v3310 = vadd.f32 0.0, %v3309
      %v3311 = vpop.f32.mrf.mxu0
      %v3312 = vpop.f32.mrf.mxu0
      %v3313 = vadd.f32 0.0, %v3312
      %v3314 = vpop.f32.mrf.mxu0
      %3315 = vmatprep.mubr.bf16.mxu0 0
      %3316 = vmatmul.mubr.bf16.gmra.mxu0 %v3200
      %v3317 = vpop.f32.mrf.mxu0
      %v3318 = vadd.f32 0.0, %v3317
      %v3319 = vpop.f32.mrf.mxu0
      %v3320 = vpop.f32.mrf.mxu0
      %v3321 = vadd.f32 0.0, %v3320
      %v3322 = vpop.f32.mrf.mxu0
      %3323 = vmatprep.mubr.bf16.mxu0 0
      %3324 = vmatmul.mubr.bf16.gmra.mxu0 %v3203
      %v3325 = vpop.f32.mrf.mxu0
      %v3326 = vadd.f32 0.0, %v3325
      %v3327 = vpop.f32.mrf.mxu0
      %v3328 = vpop.f32.mrf.mxu0
      %v3329 = vadd.f32 0.0, %v3328
      %v3330 = vpop.f32.mrf.mxu0
      %3331 = vmatprep.mubr.bf16.mxu0 0
      %3332 = vmatmul.mubr.bf16.gmra.mxu0 %v3206
      %v3333 = vpop.f32.mrf.mxu0
      %v3334 = vadd.f32 0.0, %v3333
      %v3335 = vpop.f32.mrf.mxu0
      %v3336 = vpop.f32.mrf.mxu0
      %v3337 = vadd.f32 0.0, %v3336
      %v3338 = vpop.f32.mrf.mxu0
      %3339 = vmatprep.mubr.bf16.mxu0 0
      %3340 = vmatmul.mubr.bf16.gmra.mxu0 %v3209
      %v3341 = vpop.f32.mrf.mxu0
      %v3342 = vadd.f32 0.0, %v3341
      %v3343 = vpop.f32.mrf.mxu0
      %v3344 = vpop.f32.mrf.mxu0
      %v3345 = vadd.f32 0.0, %v3344
      %v3346 = vpop.f32.mrf.mxu0
      %3347 = vmatprep.mubr.bf16.mxu0 0
      %3348 = vmatmul.mubr.bf16.gmra.mxu0 %v3212
      %v3349 = vpop.f32.mrf.mxu0
      %v3350 = vadd.f32 0.0, %v3349
      %v3351 = vpop.f32.mrf.mxu0
      %v3352 = vpop.f32.mrf.mxu0
      %v3353 = vadd.f32 0.0, %v3352
      %v3354 = vpop.f32.mrf.mxu0
      %3355 = vmatprep.mubr.bf16.mxu0 0
      %3356 = vmatmul.mubr.bf16.gmra.mxu0 %v3215
      %v3357 = vpop.f32.mrf.mxu0
      %v3358 = vadd.f32 0.0, %v3357
      %v3359 = vpop.f32.mrf.mxu0
      %v3360 = vpop.f32.mrf.mxu0
      %v3361 = vadd.f32 0.0, %v3360
      %v3362 = vpop.f32.mrf.mxu0
      %3363 = vmatprep.mubr.bf16.mxu0 0
      %3364 = vmatmul.mubr.bf16.gmra.mxu0 %v3218
      %v3365 = vpop.f32.mrf.mxu0
      %v3366 = vadd.f32 0.0, %v3365
      %v3367 = vpop.f32.mrf.mxu0
      %v3368 = vpop.f32.mrf.mxu0
      %v3369 = vadd.f32 0.0, %v3368
      %v3370 = vpop.f32.mrf.mxu0
      %3371 = vmatprep.mubr.bf16.mxu0 0
      %3372 = vmatmul.mubr.bf16.gmra.mxu0 %v3221
      %v3373 = vpop.f32.mrf.mxu0
      %v3374 = vadd.f32 0.0, %v3373
      %v3375 = vpop.f32.mrf.mxu0
      %v3376 = vpop.f32.mrf.mxu0
      %v3377 = vadd.f32 0.0, %v3376
      %v3378 = vpop.f32.mrf.mxu0
      %3379 = vmatprep.mubr.bf16.mxu0 0
      %3380 = vmatmul.mubr.bf16.gmra.mxu0 %v3224
      %v3381 = vpop.f32.mrf.mxu0
      %v3382 = vadd.f32 0.0, %v3381
      %v3383 = vpop.f32.mrf.mxu0
      %v3384 = vpop.f32.mrf.mxu0
      %v3385 = vadd.f32 0.0, %v3384
      %v3386 = vpop.f32.mrf.mxu0
      %3387 = vmatprep.mubr.bf16.mxu0 0
      %3388 = vmatmul.mubr.bf16.gmra.mxu0 %v3227
      %v3389 = vpop.f32.mrf.mxu0
      %v3390 = vadd.f32 0.0, %v3389
      %v3391 = vpop.f32.mrf.mxu0
      %v3392 = vpop.f32.mrf.mxu0
      %v3393 = vadd.f32 0.0, %v3392
      %v3394 = vpop.f32.mrf.mxu0
      %3395 = vmatprep.mubr.bf16.mxu0 0
      %3396 = vmatmul.mubr.bf16.gmra.mxu0 %v3230
      %v3397 = vpop.f32.mrf.mxu0
      %v3398 = vadd.f32 0.0, %v3397
      %v3399 = vpop.f32.mrf.mxu0
      %v3400 = vpop.f32.mrf.mxu0
      %v3401 = vadd.f32 0.0, %v3400
      %v3402 = vpop.f32.mrf.mxu0
      %3403 = vmatprep.mubr.bf16.mxu0 0
      %3404 = vmatmul.mubr.bf16.gmra.mxu0 %v3233
      %v3405 = vpop.f32.mrf.mxu0
      %v3406 = vadd.f32 0.0, %v3405
      %v3407 = vpop.f32.mrf.mxu0
      %v3408 = vpop.f32.mrf.mxu0
      %v3409 = vadd.f32 0.0, %v3408
      %v3410 = vpop.f32.mrf.mxu0
      %3411 = vdwg.mxu0
      %v3412 = vadd.f32 %v2953, %v3270
      %v3413 = vadd.f32 %v2954, %v3273
      %v3414 = vadd.f32 %v2955, %v3278
      %v3415 = vadd.f32 %v2956, %v3281
      %v3416 = vadd.f32 %v2957, %v3286
      %v3417 = vadd.f32 %v2958, %v3289
      %v3418 = vadd.f32 %v2959, %v3294
      %v3419 = vadd.f32 %v2960, %v3297
      %v3420 = vadd.f32 %v2961, %v3302
      %v3421 = vadd.f32 %v2962, %v3305
      %v3422 = vadd.f32 %v2963, %v3310
      %v3423 = vadd.f32 %v2964, %v3313
      %v3424 = vadd.f32 %v2965, %v3318
      %v3425 = vadd.f32 %v2966, %v3321
      %v3426 = vadd.f32 %v2967, %v3326
      %v3427 = vadd.f32 %v2968, %v3329
      %v3428 = vadd.f32 %v2969, %v3334
      %v3429 = vadd.f32 %v2970, %v3337
      %v3430 = vadd.f32 %v2971, %v3342
      %v3431 = vadd.f32 %v2972, %v3345
      %v3432 = vadd.f32 %v2973, %v3350
      %v3433 = vadd.f32 %v2974, %v3353
      %v3434 = vadd.f32 %v2975, %v3358
      %v3435 = vadd.f32 %v2976, %v3361
      %v3436 = vadd.f32 %v2977, %v3366
      %v3437 = vadd.f32 %v2978, %v3369
      %v3438 = vadd.f32 %v2979, %v3374
      %v3439 = vadd.f32 %v2980, %v3377
      %v3440 = vadd.f32 %v2981, %v3382
      %v3441 = vadd.f32 %v2982, %v3385
      %v3442 = vadd.f32 %v2983, %v3390
      %v3443 = vadd.f32 %v2984, %v3393
      %v3444 = vadd.f32 %v2985, %v3398
      %v3445 = vadd.f32 %v2986, %v3401
      %v3446 = vadd.f32 %v2987, %v3406
      %v3447 = vadd.f32 %v2988, %v3409
      %v3448 = vld [vmem:[%s207 + $0x10] sm:$0x8]
      %s3449 = scalar_lea.vmem %s1, 128
      %v3450 = vld [vmem:[%s3449] sm:$0xf]
      %v3451 = vld [vmem:[%s3449 + $0x4] sm:$0xf]
      %v3452 = vld [vmem:[%s3449 + $0x8] sm:$0xf]
      %v3453 = vld [vmem:[%s3449 + $0xc] sm:$0xf]
      %v3455 = vunpack.c.l.b16 %v3448
      %v3456 = vpack.c.b16 %v2618, %v3455
      %vm3457 = vcmask 1044480
      %v3458 = vrot.slane %v3456, 3
      %v3459 = vrot.slane %v2655, 3
      %v3460 = vsel %vm3457, %v3458, %v3459
      %v3461 = vrot.slane %v2656, 3
      %v3462 = vsel %vm3457, %v3459, %v3461
      %v3463 = vrot.slane %v2657, 3
      %v3464 = vsel %vm3457, %v3461, %v3463
      %v3465 = vrot.slane %v2658, 3
      %v3466 = vsel %vm3457, %v3463, %v3465
      %v3467 = vrot.slane %v2659, 3
      %v3468 = vsel %vm3457, %v3465, %v3467
      %v3469 = vrot.slane %v2660, 3
      %v3470 = vsel %vm3457, %v3467, %v3469
      %v3471 = vrot.slane %v2661, 3
      %v3472 = vsel %vm3457, %v3469, %v3471
      %v3473 = vrot.slane %v2662, 3
      %v3474 = vsel %vm3457, %v3471, %v3473
      %v3475 = vrot.slane %v2663, 3
      %v3476 = vsel %vm3457, %v3473, %v3475
      %v3477 = vrot.slane %v2664, 3
      %v3478 = vsel %vm3457, %v3475, %v3477
      %v3479 = vrot.slane %v2665, 3
      %v3480 = vsel %vm3457, %v3477, %v3479
      %v3481 = vrot.slane %v2666, 3
      %v3482 = vsel %vm3457, %v3479, %v3481
      %v3483 = vrot.slane %v2667, 3
      %v3484 = vsel %vm3457, %v3481, %v3483
      %v3485 = vrot.slane %v2668, 3
      %v3486 = vsel %vm3457, %v3483, %v3485
      %v3487 = vrot.slane %v2669, 3
      %v3488 = vsel %vm3457, %v3485, %v3487
      %v3489 = vrot.slane %v2670, 3
      %v3490 = vsel %vm3457, %v3487, %v3489
      %v3491 = vrot.slane %v2671, 3
      %v3492 = vsel %vm3457, %v3489, %v3491
      %v3493 = vrot.slane %v2997, 3
      %v3494 = vsel %vm3457, %v3491, %v3493
      %v3499 = vunpack.c.l.b16 %v3450
      %v3500 = vunpack.c.l.b16 %v3451
      %v3501 = vunpack.c.l.b16 %v3452
      %v3502 = vunpack.c.l.b16 %v3453
      %v3503 = vpack.c.b16 %v3500, %v3499
      %v3504 = vpack.c.b16 %v3502, %v3501
      %v3508 = vsel %vm519, %v3460, 0
      %v3511 = vsel %vm519, %v3462, 0
      %v3514 = vsel %vm519, %v3464, 0
      %v3517 = vsel %vm519, %v3466, 0
      %v3520 = vsel %vm519, %v3468, 0
      %v3523 = vsel %vm519, %v3470, 0
      %v3526 = vsel %vm519, %v3472, 0
      %v3529 = vsel %vm519, %v3474, 0
      %v3532 = vsel %vm519, %v3476, 0
      %v3535 = vsel %vm519, %v3478, 0
      %v3538 = vsel %vm519, %v3480, 0
      %v3541 = vsel %vm519, %v3482, 0
      %v3544 = vsel %vm519, %v3484, 0
      %v3547 = vsel %vm519, %v3486, 0
      %v3550 = vsel %vm519, %v3488, 0
      %v3553 = vsel %vm519, %v3490, 0
      %v3556 = vsel %vm519, %v3492, 0
      %v3559 = vsel %vm519, %v3494, 0
      %3561 = vmatprep.subr.bf16.mxu0 0
      %3562 = vmatpush1.bf16.msra.mxu0 0
      %3563 = vmatprep.subr.bf16.mxu0 0
      %3564 = vmatpush1.bf16.msra.mxu0 0
      %3565 = vmatprep.subr.bf16.mxu0 0
      %3566 = vmatpush1.bf16.msra.mxu0 0
      %3567 = vmatprep.subr.bf16.mxu0 0
      %3568 = vmatpush1.bf16.msra.mxu0 0
      %3569 = vmatprep.subr.bf16.mxu0 0
      %3570 = vmatpush1.bf16.msra.mxu0 0
      %3571 = vmatprep.subr.bf16.mxu0 0
      %3572 = vmatpush1.bf16.msra.mxu0 0
      %3573 = vmatprep.subr.bf16.mxu0 0
      %3574 = vmatpush1.bf16.msra.mxu0 %v3504
      %3575 = vmatprep.subr.bf16.mxu0 0
      %3576 = vmatpush1.bf16.msra.mxu0 %v3503
      %3577 = vmatprep.subr.bf16.mxu0 0
      %3578 = vmatpush2.bf16.msra.mxu0 0
      %3579 = vmatprep.subr.bf16.mxu0 0
      %3580 = vmatpush2.bf16.msra.mxu0 0
      %3581 = vmatprep.subr.bf16.mxu0 0
      %3582 = vmatpush2.bf16.msra.mxu0 0
      %3583 = vmatprep.subr.bf16.mxu0 0
      %3584 = vmatpush2.bf16.msra.mxu0 0
      %3585 = vmatprep.subr.bf16.mxu0 0
      %3586 = vmatpush2.bf16.msra.mxu0 0
      %3587 = vmatprep.subr.bf16.mxu0 0
      %3588 = vmatpush2.bf16.msra.mxu0 0
      %3589 = vmatprep.subr.bf16.mxu0 0
      %3590 = vmatpush2.bf16.msra.mxu0 0
      %3591 = vmatprep.subr.bf16.mxu0 0
      %3592 = vmatpush2.bf16.msra.mxu0 0
      %3593 = vmatprep.mubr.bf16.mxu0 0
      %3594 = vmatmul.mubr.bf16.gmra.mxu0 %v3508
      %v3595 = vpop.f32.mrf.mxu0
      %v3596 = vadd.f32 0.0, %v3595
      %v3597 = vpop.f32.mrf.mxu0
      %v3598 = vpop.f32.mrf.mxu0
      %v3599 = vadd.f32 0.0, %v3598
      %v3600 = vpop.f32.mrf.mxu0
      %3601 = vmatprep.mubr.bf16.mxu0 0
      %3602 = vmatmul.mubr.bf16.gmra.mxu0 %v3511
      %v3603 = vpop.f32.mrf.mxu0
      %v3604 = vadd.f32 0.0, %v3603
      %v3605 = vpop.f32.mrf.mxu0
      %v3606 = vpop.f32.mrf.mxu0
      %v3607 = vadd.f32 0.0, %v3606
      %v3608 = vpop.f32.mrf.mxu0
      %3609 = vmatprep.mubr.bf16.mxu0 0
      %3610 = vmatmul.mubr.bf16.gmra.mxu0 %v3514
      %v3611 = vpop.f32.mrf.mxu0
      %v3612 = vadd.f32 0.0, %v3611
      %v3613 = vpop.f32.mrf.mxu0
      %v3614 = vpop.f32.mrf.mxu0
      %v3615 = vadd.f32 0.0, %v3614
      %v3616 = vpop.f32.mrf.mxu0
      %3617 = vmatprep.mubr.bf16.mxu0 0
      %3618 = vmatmul.mubr.bf16.gmra.mxu0 %v3517
      %v3619 = vpop.f32.mrf.mxu0
      %v3620 = vadd.f32 0.0, %v3619
      %v3621 = vpop.f32.mrf.mxu0
      %v3622 = vpop.f32.mrf.mxu0
      %v3623 = vadd.f32 0.0, %v3622
      %v3624 = vpop.f32.mrf.mxu0
      %3625 = vmatprep.mubr.bf16.mxu0 0
      %3626 = vmatmul.mubr.bf16.gmra.mxu0 %v3520
      %v3627 = vpop.f32.mrf.mxu0
      %v3628 = vadd.f32 0.0, %v3627
      %v3629 = vpop.f32.mrf.mxu0
      %v3630 = vpop.f32.mrf.mxu0
      %v3631 = vadd.f32 0.0, %v3630
      %v3632 = vpop.f32.mrf.mxu0
      %3633 = vmatprep.mubr.bf16.mxu0 0
      %3634 = vmatmul.mubr.bf16.gmra.mxu0 %v3523
      %v3635 = vpop.f32.mrf.mxu0
      %v3636 = vadd.f32 0.0, %v3635
      %v3637 = vpop.f32.mrf.mxu0
      %v3638 = vpop.f32.mrf.mxu0
      %v3639 = vadd.f32 0.0, %v3638
      %v3640 = vpop.f32.mrf.mxu0
      %3641 = vmatprep.mubr.bf16.mxu0 0
      %3642 = vmatmul.mubr.bf16.gmra.mxu0 %v3526
      %v3643 = vpop.f32.mrf.mxu0
      %v3644 = vadd.f32 0.0, %v3643
      %v3645 = vpop.f32.mrf.mxu0
      %v3646 = vpop.f32.mrf.mxu0
      %v3647 = vadd.f32 0.0, %v3646
      %v3648 = vpop.f32.mrf.mxu0
      %3649 = vmatprep.mubr.bf16.mxu0 0
      %3650 = vmatmul.mubr.bf16.gmra.mxu0 %v3529
      %v3651 = vpop.f32.mrf.mxu0
      %v3652 = vadd.f32 0.0, %v3651
      %v3653 = vpop.f32.mrf.mxu0
      %v3654 = vpop.f32.mrf.mxu0
      %v3655 = vadd.f32 0.0, %v3654
      %v3656 = vpop.f32.mrf.mxu0
      %3657 = vmatprep.mubr.bf16.mxu0 0
      %3658 = vmatmul.mubr.bf16.gmra.mxu0 %v3532
      %v3659 = vpop.f32.mrf.mxu0
      %v3660 = vadd.f32 0.0, %v3659
      %v3661 = vpop.f32.mrf.mxu0
      %v3662 = vpop.f32.mrf.mxu0
      %v3663 = vadd.f32 0.0, %v3662
      %v3664 = vpop.f32.mrf.mxu0
      %3665 = vmatprep.mubr.bf16.mxu0 0
      %3666 = vmatmul.mubr.bf16.gmra.mxu0 %v3535
      %v3667 = vpop.f32.mrf.mxu0
      %v3668 = vadd.f32 0.0, %v3667
      %v3669 = vpop.f32.mrf.mxu0
      %v3670 = vpop.f32.mrf.mxu0
      %v3671 = vadd.f32 0.0, %v3670
      %v3672 = vpop.f32.mrf.mxu0
      %3673 = vmatprep.mubr.bf16.mxu0 0
      %3674 = vmatmul.mubr.bf16.gmra.mxu0 %v3538
      %v3675 = vpop.f32.mrf.mxu0
      %v3676 = vadd.f32 0.0, %v3675
      %v3677 = vpop.f32.mrf.mxu0
      %v3678 = vpop.f32.mrf.mxu0
      %v3679 = vadd.f32 0.0, %v3678
      %v3680 = vpop.f32.mrf.mxu0
      %3681 = vmatprep.mubr.bf16.mxu0 0
      %3682 = vmatmul.mubr.bf16.gmra.mxu0 %v3541
      %v3683 = vpop.f32.mrf.mxu0
      %v3684 = vadd.f32 0.0, %v3683
      %v3685 = vpop.f32.mrf.mxu0
      %v3686 = vpop.f32.mrf.mxu0
      %v3687 = vadd.f32 0.0, %v3686
      %v3688 = vpop.f32.mrf.mxu0
      %3689 = vmatprep.mubr.bf16.mxu0 0
      %3690 = vmatmul.mubr.bf16.gmra.mxu0 %v3544
      %v3691 = vpop.f32.mrf.mxu0
      %v3692 = vadd.f32 0.0, %v3691
      %v3693 = vpop.f32.mrf.mxu0
      %v3694 = vpop.f32.mrf.mxu0
      %v3695 = vadd.f32 0.0, %v3694
      %v3696 = vpop.f32.mrf.mxu0
      %3697 = vmatprep.mubr.bf16.mxu0 0
      %3698 = vmatmul.mubr.bf16.gmra.mxu0 %v3547
      %v3699 = vpop.f32.mrf.mxu0
      %v3700 = vadd.f32 0.0, %v3699
      %v3701 = vpop.f32.mrf.mxu0
      %v3702 = vpop.f32.mrf.mxu0
      %v3703 = vadd.f32 0.0, %v3702
      %v3704 = vpop.f32.mrf.mxu0
      %3705 = vmatprep.mubr.bf16.mxu0 0
      %3706 = vmatmul.mubr.bf16.gmra.mxu0 %v3550
      %v3707 = vpop.f32.mrf.mxu0
      %v3708 = vadd.f32 0.0, %v3707
      %v3709 = vpop.f32.mrf.mxu0
      %v3710 = vpop.f32.mrf.mxu0
      %v3711 = vadd.f32 0.0, %v3710
      %v3712 = vpop.f32.mrf.mxu0
      %3713 = vmatprep.mubr.bf16.mxu0 0
      %3714 = vmatmul.mubr.bf16.gmra.mxu0 %v3553
      %v3715 = vpop.f32.mrf.mxu0
      %v3716 = vadd.f32 0.0, %v3715
      %v3717 = vpop.f32.mrf.mxu0
      %v3718 = vpop.f32.mrf.mxu0
      %v3719 = vadd.f32 0.0, %v3718
      %v3720 = vpop.f32.mrf.mxu0
      %3721 = vmatprep.mubr.bf16.mxu0 0
      %3722 = vmatmul.mubr.bf16.gmra.mxu0 %v3556
      %v3723 = vpop.f32.mrf.mxu0
      %v3724 = vadd.f32 0.0, %v3723
      %v3725 = vpop.f32.mrf.mxu0
      %v3726 = vpop.f32.mrf.mxu0
      %v3727 = vadd.f32 0.0, %v3726
      %v3728 = vpop.f32.mrf.mxu0
      %3729 = vmatprep.mubr.bf16.mxu0 0
      %3730 = vmatmul.mubr.bf16.gmra.mxu0 %v3559
      %v3731 = vpop.f32.mrf.mxu0
      %v3732 = vadd.f32 0.0, %v3731
      %v3733 = vpop.f32.mrf.mxu0
      %v3734 = vpop.f32.mrf.mxu0
      %v3735 = vadd.f32 0.0, %v3734
      %v3736 = vpop.f32.mrf.mxu0
      %3737 = vdwg.mxu0
      %v3738 = vadd.f32 %v3412, %v3596
      %v3739 = vadd.f32 %v3413, %v3599
      %v3740 = vadd.f32 %v3414, %v3604
      %v3741 = vadd.f32 %v3415, %v3607
      %v3742 = vadd.f32 %v3416, %v3612
      %v3743 = vadd.f32 %v3417, %v3615
      %v3744 = vadd.f32 %v3418, %v3620
      %v3745 = vadd.f32 %v3419, %v3623
      %v3746 = vadd.f32 %v3420, %v3628
      %v3747 = vadd.f32 %v3421, %v3631
      %v3748 = vadd.f32 %v3422, %v3636
      %v3749 = vadd.f32 %v3423, %v3639
      %v3750 = vadd.f32 %v3424, %v3644
      %v3751 = vadd.f32 %v3425, %v3647
      %v3752 = vadd.f32 %v3426, %v3652
      %v3753 = vadd.f32 %v3427, %v3655
      %v3754 = vadd.f32 %v3428, %v3660
      %v3755 = vadd.f32 %v3429, %v3663
      %v3756 = vadd.f32 %v3430, %v3668
      %v3757 = vadd.f32 %v3431, %v3671
      %v3758 = vadd.f32 %v3432, %v3676
      %v3759 = vadd.f32 %v3433, %v3679
      %v3760 = vadd.f32 %v3434, %v3684
      %v3761 = vadd.f32 %v3435, %v3687
      %v3762 = vadd.f32 %v3436, %v3692
      %v3763 = vadd.f32 %v3437, %v3695
      %v3764 = vadd.f32 %v3438, %v3700
      %v3765 = vadd.f32 %v3439, %v3703
      %v3766 = vadd.f32 %v3440, %v3708
      %v3767 = vadd.f32 %v3441, %v3711
      %v3768 = vadd.f32 %v3442, %v3716
      %v3769 = vadd.f32 %v3443, %v3719
      %v3770 = vadd.f32 %v3444, %v3724
      %v3771 = vadd.f32 %v3445, %v3727
      %v3772 = vadd.f32 %v3446, %v3732
      %v3773 = vadd.f32 %v3447, %v3735
      %v3774 = vld [vmem:[%s2] sm:$0x1]
      %v3776 = vlaneseq
      %v3777 = vshrl.u32 %v3776, 7
      %v3778 = vsub.s32 0, %v3777
      %v3779 = vrot.slane %v3774, %v3778
      %v3781 = vadd.f32 %v3738, %v3779
      %v3782 = vadd.f32 %v3739, %v3779
      %v3783 = vadd.f32 %v3740, %v3779
      %v3784 = vadd.f32 %v3741, %v3779
      %v3785 = vadd.f32 %v3742, %v3779
      %v3786 = vadd.f32 %v3743, %v3779
      %v3787 = vadd.f32 %v3744, %v3779
      %v3788 = vadd.f32 %v3745, %v3779
      %v3789 = vadd.f32 %v3746, %v3779
      %v3790 = vadd.f32 %v3747, %v3779
      %v3791 = vadd.f32 %v3748, %v3779
      %v3792 = vadd.f32 %v3749, %v3779
      %v3793 = vadd.f32 %v3750, %v3779
      %v3794 = vadd.f32 %v3751, %v3779
      %v3795 = vadd.f32 %v3752, %v3779
      %v3796 = vadd.f32 %v3753, %v3779
      %v3797 = vadd.f32 %v3754, %v3779
      %v3798 = vadd.f32 %v3755, %v3779
      %v3799 = vadd.f32 %v3756, %v3779
      %v3800 = vadd.f32 %v3757, %v3779
      %v3801 = vadd.f32 %v3758, %v3779
      %v3802 = vadd.f32 %v3759, %v3779
      %v3803 = vadd.f32 %v3760, %v3779
      %v3804 = vadd.f32 %v3761, %v3779
      %v3805 = vadd.f32 %v3762, %v3779
      %v3806 = vadd.f32 %v3763, %v3779
      %v3807 = vadd.f32 %v3764, %v3779
      %v3808 = vadd.f32 %v3765, %v3779
      %v3809 = vadd.f32 %v3766, %v3779
      %v3810 = vadd.f32 %v3767, %v3779
      %v3811 = vadd.f32 %v3768, %v3779
      %v3812 = vadd.f32 %v3769, %v3779
      %v3813 = vadd.f32 %v3770, %v3779
      %v3814 = vadd.f32 %v3771, %v3779
      %v3815 = vadd.f32 %v3772, %v3779
      %v3816 = vadd.f32 %v3773, %v3779
      %v3817 = vsub.f32 0.0, %v3781
      %v3818 = vsub.f32 0.0, %v3782
      %v3819 = vsub.f32 0.0, %v3783
      %v3820 = vsub.f32 0.0, %v3784
      %v3821 = vsub.f32 0.0, %v3785
      %v3822 = vsub.f32 0.0, %v3786
      %v3823 = vsub.f32 0.0, %v3787
      %v3824 = vsub.f32 0.0, %v3788
      %v3825 = vsub.f32 0.0, %v3789
      %v3826 = vsub.f32 0.0, %v3790
      %v3827 = vsub.f32 0.0, %v3791
      %v3828 = vsub.f32 0.0, %v3792
      %v3829 = vsub.f32 0.0, %v3793
      %v3830 = vsub.f32 0.0, %v3794
      %v3831 = vsub.f32 0.0, %v3795
      %v3832 = vsub.f32 0.0, %v3796
      %v3833 = vsub.f32 0.0, %v3797
      %v3834 = vsub.f32 0.0, %v3798
      %v3835 = vsub.f32 0.0, %v3799
      %v3836 = vsub.f32 0.0, %v3800
      %v3837 = vsub.f32 0.0, %v3801
      %v3838 = vsub.f32 0.0, %v3802
      %v3839 = vsub.f32 0.0, %v3803
      %v3840 = vsub.f32 0.0, %v3804
      %v3841 = vsub.f32 0.0, %v3805
      %v3842 = vsub.f32 0.0, %v3806
      %v3843 = vsub.f32 0.0, %v3807
      %v3844 = vsub.f32 0.0, %v3808
      %v3845 = vsub.f32 0.0, %v3809
      %v3846 = vsub.f32 0.0, %v3810
      %v3847 = vsub.f32 0.0, %v3811
      %v3848 = vsub.f32 0.0, %v3812
      %v3849 = vsub.f32 0.0, %v3813
      %v3850 = vsub.f32 0.0, %v3814
      %v3851 = vsub.f32 0.0, %v3815
      %v3852 = vsub.f32 0.0, %v3816
      %v3853 = vmul.f32 %v3817, 1.442695
      %v3854 = vpow.pop %v3853
      %v3855 = vmul.f32 %v3818, 1.442695
      %v3856 = vpow.pop %v3855
      %v3857 = vmul.f32 %v3819, 1.442695
      %v3858 = vpow.pop %v3857
      %v3859 = vmul.f32 %v3820, 1.442695
      %v3860 = vpow.pop %v3859
      %v3861 = vmul.f32 %v3821, 1.442695
      %v3862 = vpow.pop %v3861
      %v3863 = vmul.f32 %v3822, 1.442695
      %v3864 = vpow.pop %v3863
      %v3865 = vmul.f32 %v3823, 1.442695
      %v3866 = vpow.pop %v3865
      %v3867 = vmul.f32 %v3824, 1.442695
      %v3868 = vpow.pop %v3867
      %v3869 = vmul.f32 %v3825, 1.442695
      %v3870 = vpow.pop %v3869
      %v3871 = vmul.f32 %v3826, 1.442695
      %v3872 = vpow.pop %v3871
      %v3873 = vmul.f32 %v3827, 1.442695
      %v3874 = vpow.pop %v3873
      %v3875 = vmul.f32 %v3828, 1.442695
      %v3876 = vpow.pop %v3875
      %v3877 = vmul.f32 %v3829, 1.442695
      %v3878 = vpow.pop %v3877
      %v3879 = vmul.f32 %v3830, 1.442695
      %v3880 = vpow.pop %v3879
      %v3881 = vmul.f32 %v3831, 1.442695
      %v3882 = vpow.pop %v3881
      %v3883 = vmul.f32 %v3832, 1.442695
      %v3884 = vpow.pop %v3883
      %v3885 = vmul.f32 %v3833, 1.442695
      %v3886 = vpow.pop %v3885
      %v3887 = vmul.f32 %v3834, 1.442695
      %v3888 = vpow.pop %v3887
      %v3889 = vmul.f32 %v3835, 1.442695
      %v3890 = vpow.pop %v3889
      %v3891 = vmul.f32 %v3836, 1.442695
      %v3892 = vpow.pop %v3891
      %v3893 = vmul.f32 %v3837, 1.442695
      %v3894 = vpow.pop %v3893
      %v3895 = vmul.f32 %v3838, 1.442695
      %v3896 = vpow.pop %v3895
      %v3897 = vmul.f32 %v3839, 1.442695
      %v3898 = vpow.pop %v3897
      %v3899 = vmul.f32 %v3840, 1.442695
      %v3900 = vpow.pop %v3899
      %v3901 = vmul.f32 %v3841, 1.442695
      %v3902 = vpow.pop %v3901
      %v3903 = vmul.f32 %v3842, 1.442695
      %v3904 = vpow.pop %v3903
      %v3905 = vmul.f32 %v3843, 1.442695
      %v3906 = vpow.pop %v3905
      %v3907 = vmul.f32 %v3844, 1.442695
      %v3908 = vpow.pop %v3907
      %v3909 = vmul.f32 %v3845, 1.442695
      %v3910 = vpow.pop %v3909
      %v3911 = vmul.f32 %v3846, 1.442695
      %v3912 = vpow.pop %v3911
      %v3913 = vmul.f32 %v3847, 1.442695
      %v3914 = vpow.pop %v3913
      %v3915 = vmul.f32 %v3848, 1.442695
      %v3916 = vpow.pop %v3915
      %v3917 = vmul.f32 %v3849, 1.442695
      %v3918 = vpow.pop %v3917
      %v3919 = vmul.f32 %v3850, 1.442695
      %v3920 = vpow.pop %v3919
      %v3921 = vmul.f32 %v3851, 1.442695
      %v3922 = vpow.pop %v3921
      %v3923 = vmul.f32 %v3852, 1.442695
      %v3924 = vpow.pop %v3923
      %v3925 = vadd.f32 %v3854, 1.0
      %v3926 = vadd.f32 %v3856, 1.0
      %v3927 = vadd.f32 %v3858, 1.0
      %v3928 = vadd.f32 %v3860, 1.0
      %v3929 = vadd.f32 %v3862, 1.0
      %v3930 = vadd.f32 %v3864, 1.0
      %v3931 = vadd.f32 %v3866, 1.0
      %v3932 = vadd.f32 %v3868, 1.0
      %v3933 = vadd.f32 %v3870, 1.0
      %v3934 = vadd.f32 %v3872, 1.0
      %v3935 = vadd.f32 %v3874, 1.0
      %v3936 = vadd.f32 %v3876, 1.0
      %v3937 = vadd.f32 %v3878, 1.0
      %v3938 = vadd.f32 %v3880, 1.0
      %v3939 = vadd.f32 %v3882, 1.0
      %v3940 = vadd.f32 %v3884, 1.0
      %v3941 = vadd.f32 %v3886, 1.0
      %v3942 = vadd.f32 %v3888, 1.0
      %v3943 = vadd.f32 %v3890, 1.0
      %v3944 = vadd.f32 %v3892, 1.0
      %v3945 = vadd.f32 %v3894, 1.0
      %v3946 = vadd.f32 %v3896, 1.0
      %v3947 = vadd.f32 %v3898, 1.0
      %v3948 = vadd.f32 %v3900, 1.0
      %v3949 = vadd.f32 %v3902, 1.0
      %v3950 = vadd.f32 %v3904, 1.0
      %v3951 = vadd.f32 %v3906, 1.0
      %v3952 = vadd.f32 %v3908, 1.0
      %v3953 = vadd.f32 %v3910, 1.0
      %v3954 = vadd.f32 %v3912, 1.0
      %v3955 = vadd.f32 %v3914, 1.0
      %v3956 = vadd.f32 %v3916, 1.0
      %v3957 = vadd.f32 %v3918, 1.0
      %v3958 = vadd.f32 %v3920, 1.0
      %v3959 = vadd.f32 %v3922, 1.0
      %v3960 = vadd.f32 %v3924, 1.0
      %v3961 = vrcp.pop %v3925
      %v3962 = vrcp.pop %v3926
      %v3963 = vrcp.pop %v3927
      %v3964 = vrcp.pop %v3928
      %v3965 = vrcp.pop %v3929
      %v3966 = vrcp.pop %v3930
      %v3967 = vrcp.pop %v3931
      %v3968 = vrcp.pop %v3932
      %v3969 = vrcp.pop %v3933
      %v3970 = vrcp.pop %v3934
      %v3971 = vrcp.pop %v3935
      %v3972 = vrcp.pop %v3936
      %v3973 = vrcp.pop %v3937
      %v3974 = vrcp.pop %v3938
      %v3975 = vrcp.pop %v3939
      %v3976 = vrcp.pop %v3940
      %v3977 = vrcp.pop %v3941
      %v3978 = vrcp.pop %v3942
      %v3979 = vrcp.pop %v3943
      %v3980 = vrcp.pop %v3944
      %v3981 = vrcp.pop %v3945
      %v3982 = vrcp.pop %v3946
      %v3983 = vrcp.pop %v3947
      %v3984 = vrcp.pop %v3948
      %v3985 = vrcp.pop %v3949
      %v3986 = vrcp.pop %v3950
      %v3987 = vrcp.pop %v3951
      %v3988 = vrcp.pop %v3952
      %v3989 = vrcp.pop %v3953
      %v3990 = vrcp.pop %v3954
      %v3991 = vrcp.pop %v3955
      %v3992 = vrcp.pop %v3956
      %v3993 = vrcp.pop %v3957
      %v3994 = vrcp.pop %v3958
      %v3995 = vrcp.pop %v3959
      %v3996 = vrcp.pop %v3960
      %v3997 = vmul.f32 %v3781, %v3961
      %v3998 = vmul.f32 %v3782, %v3962
      %v3999 = vmul.f32 %v3783, %v3963
      %v4000 = vmul.f32 %v3784, %v3964
      %v4001 = vmul.f32 %v3785, %v3965
      %v4002 = vmul.f32 %v3786, %v3966
      %v4003 = vmul.f32 %v3787, %v3967
      %v4004 = vmul.f32 %v3788, %v3968
      %v4005 = vmul.f32 %v3789, %v3969
      %v4006 = vmul.f32 %v3790, %v3970
      %v4007 = vmul.f32 %v3791, %v3971
      %v4008 = vmul.f32 %v3792, %v3972
      %v4009 = vmul.f32 %v3793, %v3973
      %v4010 = vmul.f32 %v3794, %v3974
      %v4011 = vmul.f32 %v3795, %v3975
      %v4012 = vmul.f32 %v3796, %v3976
      %v4013 = vmul.f32 %v3797, %v3977
      %v4014 = vmul.f32 %v3798, %v3978
      %v4015 = vmul.f32 %v3799, %v3979
      %v4016 = vmul.f32 %v3800, %v3980
      %v4017 = vmul.f32 %v3801, %v3981
      %v4018 = vmul.f32 %v3802, %v3982
      %v4019 = vmul.f32 %v3803, %v3983
      %v4020 = vmul.f32 %v3804, %v3984
      %v4021 = vmul.f32 %v3805, %v3985
      %v4022 = vmul.f32 %v3806, %v3986
      %v4023 = vmul.f32 %v3807, %v3987
      %v4024 = vmul.f32 %v3808, %v3988
      %v4025 = vmul.f32 %v3809, %v3989
      %v4026 = vmul.f32 %v3810, %v3990
      %v4027 = vmul.f32 %v3811, %v3991
      %v4028 = vmul.f32 %v3812, %v3992
      %v4029 = vmul.f32 %v3813, %v3993
      %v4030 = vmul.f32 %v3814, %v3994
      %v4031 = vmul.f32 %v3815, %v3995
      %v4032 = vmul.f32 %v3816, %v3996
      %4033 = vst.msk [vmem:[#allocation2] sm:$0xff] %vm519, %v3997
      %4034 = vst.msk [vmem:[#allocation2 + $0x8] sm:$0xff] %vm519, %v3998
      %4035 = vst.msk [vmem:[#allocation2 + $0x10] sm:$0xff] %vm519, %v3999
      %4036 = vst.msk [vmem:[#allocation2 + $0x18] sm:$0xff] %vm519, %v4000
      %4037 = vst.msk [vmem:[#allocation2 + $0x20] sm:$0xff] %vm519, %v4001
      %4038 = vst.msk [vmem:[#allocation2 + $0x28] sm:$0xff] %vm519, %v4002
      %4039 = vst.msk [vmem:[#allocation2 + $0x30] sm:$0xff] %vm519, %v4003
      %4040 = vst.msk [vmem:[#allocation2 + $0x38] sm:$0xff] %vm519, %v4004
      %4041 = vst.msk [vmem:[#allocation2 + $0x40] sm:$0xff] %vm519, %v4005
      %4042 = vst.msk [vmem:[#allocation2 + $0x48] sm:$0xff] %vm519, %v4006
      %4043 = vst.msk [vmem:[#allocation2 + $0x50] sm:$0xff] %vm519, %v4007
      %4044 = vst.msk [vmem:[#allocation2 + $0x58] sm:$0xff] %vm519, %v4008
      %4045 = vst.msk [vmem:[#allocation2 + $0x60] sm:$0xff] %vm519, %v4009
      %4046 = vst.msk [vmem:[#allocation2 + $0x68] sm:$0xff] %vm519, %v4010
      %4047 = vst.msk [vmem:[#allocation2 + $0x70] sm:$0xff] %vm519, %v4011
      %4048 = vst.msk [vmem:[#allocation2 + $0x78] sm:$0xff] %vm519, %v4012
      %4049 = vst.msk [vmem:[#allocation2 + $0x80] sm:$0xff] %vm519, %v4013
      %4050 = vst.msk [vmem:[#allocation2 + $0x88] sm:$0xff] %vm519, %v4014
      %4051 = vst.msk [vmem:[#allocation2 + $0x90] sm:$0xff] %vm519, %v4015
      %4052 = vst.msk [vmem:[#allocation2 + $0x98] sm:$0xff] %vm519, %v4016
      %4053 = vst.msk [vmem:[#allocation2 + $0xa0] sm:$0xff] %vm519, %v4017
      %4054 = vst.msk [vmem:[#allocation2 + $0xa8] sm:$0xff] %vm519, %v4018
      %4055 = vst.msk [vmem:[#allocation2 + $0xb0] sm:$0xff] %vm519, %v4019
      %4056 = vst.msk [vmem:[#allocation2 + $0xb8] sm:$0xff] %vm519, %v4020
      %4057 = vst.msk [vmem:[#allocation2 + $0xc0] sm:$0xff] %vm519, %v4021
      %4058 = vst.msk [vmem:[#allocation2 + $0xc8] sm:$0xff] %vm519, %v4022
      %4059 = vst.msk [vmem:[#allocation2 + $0xd0] sm:$0xff] %vm519, %v4023
      %4060 = vst.msk [vmem:[#allocation2 + $0xd8] sm:$0xff] %vm519, %v4024
      %4061 = vst.msk [vmem:[#allocation2 + $0xe0] sm:$0xff] %vm519, %v4025
      %4062 = vst.msk [vmem:[#allocation2 + $0xe8] sm:$0xff] %vm519, %v4026
      %4063 = vst.msk [vmem:[#allocation2 + $0xf0] sm:$0xff] %vm519, %v4027
      %4064 = vst.msk [vmem:[#allocation2 + $0xf8] sm:$0xff] %vm519, %v4028
      %4065 = vst.msk [vmem:[#allocation2 + $0x100] sm:$0xff] %vm519, %v4029
      %4066 = vst.msk [vmem:[#allocation2 + $0x108] sm:$0xff] %vm519, %v4030
      %4067 = vst.msk [vmem:[#allocation2 + $0x110] sm:$0xff] %vm519, %v4031
      %4068 = vst.msk [vmem:[#allocation2 + $0x118] sm:$0xff] %vm519, %v4032
      %v4069 = vld [vmem:[#allocation2] sm:$0xff]
      %v4070 = vld [vmem:[#allocation2 + $0x8] sm:$0xff]
      %v4071 = vld [vmem:[#allocation2 + $0x12] sm:$0xff]
      %v4072 = vld [vmem:[#allocation2 + $0x1a] sm:$0xff]
      %v4073 = vld [vmem:[#allocation2 + $0x24] sm:$0xff]
      %v4074 = vld [vmem:[#allocation2 + $0x2c] sm:$0xff]
      %v4075 = vld [vmem:[#allocation2 + $0x36] sm:$0xff]
      %v4076 = vld [vmem:[#allocation2 + $0x3e] sm:$0xff]
      %v4077 = vld [vmem:[#allocation2 + $0x48] sm:$0xff]
      %v4078 = vld [vmem:[#allocation2 + $0x50] sm:$0xff]
      %v4079 = vld [vmem:[#allocation2 + $0x5a] sm:$0xff]
      %v4080 = vld [vmem:[#allocation2 + $0x62] sm:$0xff]
      %v4081 = vld [vmem:[#allocation2 + $0x6c] sm:$0xff]
      %v4082 = vld [vmem:[#allocation2 + $0x74] sm:$0xff]
      %v4083 = vld [vmem:[#allocation2 + $0x7e] sm:$0xff]
      %v4084 = vld [vmem:[#allocation2 + $0x86] sm:$0xff]
      %v4085 = vld [vmem:[#allocation2 + $0x90] sm:$0xff]
      %v4086 = vld [vmem:[#allocation2 + $0x98] sm:$0xff]
      %v4087 = vld [vmem:[#allocation2 + $0xa2] sm:$0xff]
      %v4088 = vld [vmem:[#allocation2 + $0xaa] sm:$0xff]
      %v4089 = vld [vmem:[#allocation2 + $0xb4] sm:$0xff]
      %v4090 = vld [vmem:[#allocation2 + $0xbc] sm:$0xff]
      %v4091 = vld [vmem:[#allocation2 + $0xc6] sm:$0xff]
      %v4092 = vld [vmem:[#allocation2 + $0xce] sm:$0xff]
      %v4093 = vld [vmem:[#allocation2 + $0xd8] sm:$0xff]
      %v4094 = vld [vmem:[#allocation2 + $0xe0] sm:$0xff]
      %v4095 = vld [vmem:[#allocation2 + $0xea] sm:$0xff]
      %v4096 = vld [vmem:[#allocation2 + $0xf2] sm:$0xff]
      %v4097 = vld [vmem:[#allocation2 + $0xfc] sm:$0xff]
      %v4098 = vld [vmem:[#allocation2 + $0x104] sm:$0xff]
      %v4099 = vld [vmem:[#allocation2 + $0x10e] sm:$0xff]
      %v4100 = vld [vmem:[#allocation2 + $0x116] sm:$0xff]
      %v4101 = vld [vmem:[%s212] sm:$0xf]
      %v4102 = vld [vmem:[%s212 + $0x4] sm:$0xf]
      %v4103 = vld [vmem:[%s212 + $0x8] sm:$0xf]
      %v4104 = vld [vmem:[%s212 + $0xc] sm:$0xf]
      %v4105 = vld [vmem:[%s212 + $0x10] sm:$0xf]
      %v4106 = vld [vmem:[%s212 + $0x14] sm:$0xf]
      %v4107 = vld [vmem:[%s212 + $0x18] sm:$0xf]
      %v4108 = vld [vmem:[%s212 + $0x1c] sm:$0xf]
      %v4109 = vld [vmem:[%s212 + $0x20] sm:$0xf]
      %v4110 = vld [vmem:[%s212 + $0x24] sm:$0xf]
      %v4111 = vld [vmem:[%s212 + $0x28] sm:$0xf]
      %v4112 = vld [vmem:[%s212 + $0x2c] sm:$0xf]
      %v4113 = vld [vmem:[%s212 + $0x30] sm:$0xf]
      %v4114 = vld [vmem:[%s212 + $0x34] sm:$0xf]
      %v4115 = vld [vmem:[%s212 + $0x38] sm:$0xf]
      %v4116 = vld [vmem:[%s212 + $0x3c] sm:$0xf]
      %v4117 = vld [vmem:[%s212 + $0x40] sm:$0xf]
      %v4118 = vld [vmem:[%s212 + $0x44] sm:$0xf]
      %v4119 = vld [vmem:[%s212 + $0x48] sm:$0xf]
      %v4120 = vld [vmem:[%s212 + $0x4c] sm:$0xf]
      %v4121 = vld [vmem:[%s212 + $0x50] sm:$0xf]
      %v4122 = vld [vmem:[%s212 + $0x54] sm:$0xf]
      %v4123 = vld [vmem:[%s212 + $0x58] sm:$0xf]
      %v4124 = vld [vmem:[%s212 + $0x5c] sm:$0xf]
      %v4125 = vld [vmem:[%s212 + $0x60] sm:$0xf]
      %v4126 = vld [vmem:[%s212 + $0x64] sm:$0xf]
      %v4127 = vld [vmem:[%s212 + $0x68] sm:$0xf]
      %v4128 = vld [vmem:[%s212 + $0x6c] sm:$0xf]
      %v4129 = vld [vmem:[%s212 + $0x70] sm:$0xf]
      %v4130 = vld [vmem:[%s212 + $0x74] sm:$0xf]
      %v4131 = vld [vmem:[%s212 + $0x78] sm:$0xf]
      %v4132 = vld [vmem:[%s212 + $0x7c] sm:$0xf]
      %v4133 = vunpack.c.l.bf16 %v4101
      %v4134 = vunpack.c.l.bf16 %v4102
      %v4135 = vunpack.c.l.bf16 %v4103
      %v4136 = vunpack.c.l.bf16 %v4104
      %v4137 = vunpack.c.l.bf16 %v4105
      %v4138 = vunpack.c.l.bf16 %v4106
      %v4139 = vunpack.c.l.bf16 %v4107
      %v4140 = vunpack.c.l.bf16 %v4108
      %v4141 = vunpack.c.l.bf16 %v4109
      %v4142 = vunpack.c.l.bf16 %v4110
      %v4143 = vunpack.c.l.bf16 %v4111
      %v4144 = vunpack.c.l.bf16 %v4112
      %v4145 = vunpack.c.l.bf16 %v4113
      %v4146 = vunpack.c.l.bf16 %v4114
      %v4147 = vunpack.c.l.bf16 %v4115
      %v4148 = vunpack.c.l.bf16 %v4116
      %v4149 = vunpack.c.l.bf16 %v4117
      %v4150 = vunpack.c.l.bf16 %v4118
      %v4151 = vunpack.c.l.bf16 %v4119
      %v4152 = vunpack.c.l.bf16 %v4120
      %v4153 = vunpack.c.l.bf16 %v4121
      %v4154 = vunpack.c.l.bf16 %v4122
      %v4155 = vunpack.c.l.bf16 %v4123
      %v4156 = vunpack.c.l.bf16 %v4124
      %v4157 = vunpack.c.l.bf16 %v4125
      %v4158 = vunpack.c.l.bf16 %v4126
      %v4159 = vunpack.c.l.bf16 %v4127
      %v4160 = vunpack.c.l.bf16 %v4128
      %v4161 = vunpack.c.l.bf16 %v4129
      %v4162 = vunpack.c.l.bf16 %v4130
      %v4163 = vunpack.c.l.bf16 %v4131
      %v4164 = vunpack.c.l.bf16 %v4132
      %v4165 = vadd.f32 %v4069, %v4133
      %v4166 = vadd.f32 %v4070, %v4134
      %v4167 = vadd.f32 %v4071, %v4135
      %v4168 = vadd.f32 %v4072, %v4136
      %v4169 = vadd.f32 %v4073, %v4137
      %v4170 = vadd.f32 %v4074, %v4138
      %v4171 = vadd.f32 %v4075, %v4139
      %v4172 = vadd.f32 %v4076, %v4140
      %v4173 = vadd.f32 %v4077, %v4141
      %v4174 = vadd.f32 %v4078, %v4142
      %v4175 = vadd.f32 %v4079, %v4143
      %v4176 = vadd.f32 %v4080, %v4144
      %v4177 = vadd.f32 %v4081, %v4145
      %v4178 = vadd.f32 %v4082, %v4146
      %v4179 = vadd.f32 %v4083, %v4147
      %v4180 = vadd.f32 %v4084, %v4148
      %v4181 = vadd.f32 %v4085, %v4149
      %v4182 = vadd.f32 %v4086, %v4150
      %v4183 = vadd.f32 %v4087, %v4151
      %v4184 = vadd.f32 %v4088, %v4152
      %v4185 = vadd.f32 %v4089, %v4153
      %v4186 = vadd.f32 %v4090, %v4154
      %v4187 = vadd.f32 %v4091, %v4155
      %v4188 = vadd.f32 %v4092, %v4156
      %v4189 = vadd.f32 %v4093, %v4157
      %v4190 = vadd.f32 %v4094, %v4158
      %v4191 = vadd.f32 %v4095, %v4159
      %v4192 = vadd.f32 %v4096, %v4160
      %v4193 = vadd.f32 %v4097, %v4161
      %v4194 = vadd.f32 %v4098, %v4162
      %v4195 = vadd.f32 %v4099, %v4163
      %v4196 = vadd.f32 %v4100, %v4164
      %v4197 = vpack.c.bf16 %v4166, %v4165
      %v4198 = vpack.c.bf16 %v4168, %v4167
      %v4199 = vpack.c.bf16 %v4170, %v4169
      %v4200 = vpack.c.bf16 %v4172, %v4171
      %v4201 = vpack.c.bf16 %v4174, %v4173
      %v4202 = vpack.c.bf16 %v4176, %v4175
      %v4203 = vpack.c.bf16 %v4178, %v4177
      %v4204 = vpack.c.bf16 %v4180, %v4179
      %v4205 = vpack.c.bf16 %v4182, %v4181
      %v4206 = vpack.c.bf16 %v4184, %v4183
      %v4207 = vpack.c.bf16 %v4186, %v4185
      %v4208 = vpack.c.bf16 %v4188, %v4187
      %v4209 = vpack.c.bf16 %v4190, %v4189
      %v4210 = vpack.c.bf16 %v4192, %v4191
      %v4211 = vpack.c.bf16 %v4194, %v4193
      %v4212 = vpack.c.bf16 %v4196, %v4195
      %v4229 = vunpack.c.l.b16 %v4197
      %v4230 = vunpack.c.h.b16 %v4197
      %v4231 = vunpack.c.l.b16 %v4198
      %v4232 = vunpack.c.h.b16 %v4198
      %v4233 = vunpack.c.l.b16 %v4199
      %v4234 = vunpack.c.h.b16 %v4199
      %v4235 = vunpack.c.l.b16 %v4200
      %v4236 = vunpack.c.h.b16 %v4200
      %v4237 = vunpack.c.l.b16 %v4201
      %v4238 = vunpack.c.h.b16 %v4201
      %v4239 = vunpack.c.l.b16 %v4202
      %v4240 = vunpack.c.h.b16 %v4202
      %v4241 = vunpack.c.l.b16 %v4203
      %v4242 = vunpack.c.h.b16 %v4203
      %v4243 = vunpack.c.l.b16 %v4204
      %v4244 = vunpack.c.h.b16 %v4204
      %v4245 = vunpack.c.l.b16 %v4205
      %v4246 = vunpack.c.h.b16 %v4205
      %v4247 = vunpack.c.l.b16 %v4206
      %v4248 = vunpack.c.h.b16 %v4206
      %v4249 = vunpack.c.l.b16 %v4207
      %v4250 = vunpack.c.h.b16 %v4207
      %v4251 = vunpack.c.l.b16 %v4208
      %v4252 = vunpack.c.h.b16 %v4208
      %v4253 = vunpack.c.l.b16 %v4209
      %v4254 = vunpack.c.h.b16 %v4209
      %v4255 = vunpack.c.l.b16 %v4210
      %v4256 = vunpack.c.h.b16 %v4210
      %v4257 = vunpack.c.l.b16 %v4211
      %v4258 = vunpack.c.h.b16 %v4211
      %v4259 = vunpack.c.l.b16 %v4212
      %v4260 = vunpack.c.h.b16 %v4212
      %v4261 = vpack.c.b16 %v4229, %v4229
      %v4262 = vpack.c.b16 %v4230, %v4230
      %v4263 = vpack.c.b16 %v4231, %v4231
      %v4264 = vpack.c.b16 %v4232, %v4232
      %v4265 = vpack.c.b16 %v4233, %v4233
      %v4266 = vpack.c.b16 %v4234, %v4234
      %v4267 = vpack.c.b16 %v4235, %v4235
      %v4268 = vpack.c.b16 %v4236, %v4236
      %v4269 = vpack.c.b16 %v4237, %v4237
      %v4270 = vpack.c.b16 %v4238, %v4238
      %v4271 = vpack.c.b16 %v4239, %v4239
      %v4272 = vpack.c.b16 %v4240, %v4240
      %v4273 = vpack.c.b16 %v4241, %v4241
      %v4274 = vpack.c.b16 %v4242, %v4242
      %v4275 = vpack.c.b16 %v4243, %v4243
      %v4276 = vpack.c.b16 %v4244, %v4244
      %v4277 = vpack.c.b16 %v4245, %v4245
      %v4278 = vpack.c.b16 %v4246, %v4246
      %v4279 = vpack.c.b16 %v4247, %v4247
      %v4280 = vpack.c.b16 %v4248, %v4248
      %v4281 = vpack.c.b16 %v4249, %v4249
      %v4282 = vpack.c.b16 %v4250, %v4250
      %v4283 = vpack.c.b16 %v4251, %v4251
      %v4284 = vpack.c.b16 %v4252, %v4252
      %v4285 = vpack.c.b16 %v4253, %v4253
      %v4286 = vpack.c.b16 %v4254, %v4254
      %v4287 = vpack.c.b16 %v4255, %v4255
      %v4288 = vpack.c.b16 %v4256, %v4256
      %v4289 = vpack.c.b16 %v4257, %v4257
      %v4290 = vpack.c.b16 %v4258, %v4258
      %v4291 = vpack.c.b16 %v4259, %v4259
      %v4292 = vpack.c.b16 %v4260, %v4260
      %vm4325 = vcmask 257024
      %4326 = vst.msk [vmem:[%s217] sm:$0xf] %vm4325, %v4261
      %4327 = vst.msk [vmem:[%s217 + $0x4] sm:$0xf] %vm4325, %v4262
      %4328 = vst.msk [vmem:[%s217 + $0x8] sm:$0xf] %vm4325, %v4263
      %4329 = vst.msk [vmem:[%s217 + $0xc] sm:$0xf] %vm4325, %v4264
      %4330 = vst.msk [vmem:[%s217 + $0x10] sm:$0xf] %vm4325, %v4265
      %4331 = vst.msk [vmem:[%s217 + $0x14] sm:$0xf] %vm4325, %v4266
      %4332 = vst.msk [vmem:[%s217 + $0x18] sm:$0xf] %vm4325, %v4267
      %4333 = vst.msk [vmem:[%s217 + $0x1c] sm:$0xf] %vm4325, %v4268
      %4334 = vst.msk [vmem:[%s217 + $0x20] sm:$0xf] %vm4325, %v4269
      %4335 = vst.msk [vmem:[%s217 + $0x24] sm:$0xf] %vm4325, %v4270
      %4336 = vst.msk [vmem:[%s217 + $0x28] sm:$0xf] %vm4325, %v4271
      %4337 = vst.msk [vmem:[%s217 + $0x2c] sm:$0xf] %vm4325, %v4272
      %4338 = vst.msk [vmem:[%s217 + $0x30] sm:$0xf] %vm4325, %v4273
      %4339 = vst.msk [vmem:[%s217 + $0x34] sm:$0xf] %vm4325, %v4274
      %4340 = vst.msk [vmem:[%s217 + $0x38] sm:$0xf] %vm4325, %v4275
      %4341 = vst.msk [vmem:[%s217 + $0x3c] sm:$0xf] %vm4325, %v4276
      %4342 = vst.msk [vmem:[%s217 + $0x40] sm:$0xf] %vm4325, %v4277
      %4343 = vst.msk [vmem:[%s217 + $0x44] sm:$0xf] %vm4325, %v4278
      %4344 = vst.msk [vmem:[%s217 + $0x48] sm:$0xf] %vm4325, %v4279
      %4345 = vst.msk [vmem:[%s217 + $0x4c] sm:$0xf] %vm4325, %v4280
      %4346 = vst.msk [vmem:[%s217 + $0x50] sm:$0xf] %vm4325, %v4281
      %4347 = vst.msk [vmem:[%s217 + $0x54] sm:$0xf] %vm4325, %v4282
      %4348 = vst.msk [vmem:[%s217 + $0x58] sm:$0xf] %vm4325, %v4283
      %4349 = vst.msk [vmem:[%s217 + $0x5c] sm:$0xf] %vm4325, %v4284
      %4350 = vst.msk [vmem:[%s217 + $0x60] sm:$0xf] %vm4325, %v4285
      %4351 = vst.msk [vmem:[%s217 + $0x64] sm:$0xf] %vm4325, %v4286
      %4352 = vst.msk [vmem:[%s217 + $0x68] sm:$0xf] %vm4325, %v4287
      %4353 = vst.msk [vmem:[%s217 + $0x6c] sm:$0xf] %vm4325, %v4288
      %4354 = vst.msk [vmem:[%s217 + $0x70] sm:$0xf] %vm4325, %v4289
      %4355 = vst.msk [vmem:[%s217 + $0x74] sm:$0xf] %vm4325, %v4290
      %4356 = vst.msk [vmem:[%s217 + $0x78] sm:$0xf] %vm4325, %v4291
      %4357 = vst.msk [vmem:[%s217 + $0x7c] sm:$0xf] %vm4325, %v4292
      %p4358 = scmp.lt.s32.totalorder %s15, 1
      %s4359 = scalar_select %p4358, %s15, 1
      %s4360 = smul.addr %s4359, 32
      %s4361 = smul.addr %s4360, 4
      %s4362 = scalar_lea.vmem %s4, %s4361
      // Predicated region
      $region37: #{csp_stage_forward.8} parent=35 // pred_check
        %p4363 = pneg %p127
      $region38: #{csp_stage_forward.8} parent=35 // pred_check_branch
        %4365 = sbr.rel (%p4363) target = $region40
      $region39: #{csp_stage_forward.8} parent=35 // pred_region
        _
      $region40: #{csp_stage_forward.8} parent=35 // pred_fallthru
        _
    $region36: #{csp_stage_forward.8} parent=5 // pred_fallthru
      _
    %p4366 = scmp.le.s32.totalorder 2, %s10
    // Predicated region
    $region41: #{csp_stage_forward.8} parent=5 // pred_check
      %p4367 = pneg %p4366
    $region42: #{csp_stage_forward.8} parent=5 // pred_check_branch
      %4369 = sbr.rel (%p4367) target = $region44
    $region43: #{csp_stage_forward.8} parent=5 // pred_region
      %s4370 = ssub.s32 %s10, 2
      // Predicated region
      $region45: #{csp_stage_forward.8} parent=43 // pred_check
        %p4371 = pneg %p133
      $region46: #{csp_stage_forward.8} parent=43 // pred_check_branch
        %4373 = sbr.rel (%p4371) target = $region48
      $region47: #{csp_stage_forward.8} parent=43 // pred_region
        %p4374 = scmp.lt.s32.totalorder %s16, 1
        %s4375 = scalar_select %p4374, %s16, 1
        %s4376 = smul.addr %s4375, 32
        %s4377 = smul.addr %s4376, 4
        %s4378 = scalar_lea.vmem %s4, %s4377
      $region48: #{csp_stage_forward.8} parent=43 // pred_fallthru
        _
    $region44: #{csp_stage_forward.8} parent=5 // pred_fallthru
      _
  $region6: #{csp_stage_forward.8} parent=0 // loop_footer
    %s14 = sadd.s32 1, %s10
  $region7: #{csp_stage_forward.8} parent=0 // loop_footer_branch
    %9 = sbr.rel target = $region3
  $region8: #{csp_stage_forward.8} parent=0 // loop_exit
    _

</llo_original>
